<compile_context>
chip_gen: v7x
topology: tpu7x:2x2x1
jax: 0.10.0
libtpu: 0.0.40
codegen_flags: <defaults>
</compile_context>

<pallas_src>
import functools

import jax
import jax.numpy as jnp
from jax import lax
from jax.experimental import pallas as pl
from jax.experimental.pallas import tpu as pltpu


def _round_up(x, m):
    return (x + m - 1) // m * m


# ----------------------------------------------------------------------------
# Fused cross-attention kernel (one batch element per grid step, all heads)
# ----------------------------------------------------------------------------
def _cross_attn_kernel(x_ref, ctx_ref, wq_ref, wkv_ref, wo_ref, bo_ref,
                       o_ref, acc_ref, *, heads, dim_head, seq_len):
    f32 = jnp.float32
    bf16 = jnp.bfloat16
    inner = heads * dim_head

    x_cn = x_ref[0]                              # (C, N) f32, kept for the residual
    x_b = x_cn.astype(bf16)                      # (C, N) bf16 for the MXU
    c_b = ctx_ref[0]                             # (Mp, Dc) bf16, zero-padded context
    N = x_cn.shape[1]
    Mp = c_b.shape[0]

    # Q projection (scale pre-folded into wq): (C, inner)^T-contract x (C, N) -> (inner, N)
    qT = lax.dot_general(wq_ref[...], x_b, (((0,), (0,)), ((), ())),
                         preferred_element_type=f32).astype(bf16)      # (inner, N)

    # Fused K/V projection: (Dc, 2*inner) x (Mp, Dc) -> (2*inner, Mp), one MXU pass.
    kvT = lax.dot_general(wkv_ref[...], c_b, (((0,), (1,)), ((), ())),
                          preferred_element_type=f32).astype(bf16)     # (2*inner, Mp)
    kT = kvT[:inner, :]                          # (inner, Mp)  free sublane slice
    vT = kvT[inner:, :]                          # (inner, Mp)

    # One additive mask row for the zero-padded context columns.
    if seq_len < Mp:
        col = lax.broadcasted_iota(jnp.int32, (1, Mp), 1)
        mask_row = jnp.where(col < seq_len, 0.0, -1e30).astype(f32)    # (1, Mp)
    else:
        mask_row = None

    for h in range(heads):                       # static unrolled head loop (in-VMEM)
        r0 = h * dim_head
        q_hT = qT[r0:r0 + dim_head, :]           # (d, N)  bf16
        k_h = kT[r0:r0 + dim_head, :]            # (d, Mp) bf16
        v_h = vT[r0:r0 + dim_head, :]            # (d, Mp) bf16

        # scores: contract the head dim directly (LHS-transposed matmul, no XLU xpose)
        s = lax.dot_general(q_hT, k_h, (((0,), (0,)), ((), ())),
                            preferred_element_type=f32)                # (N, Mp)
        if mask_row is not None:
            s = s + mask_row
        m = jnp.max(s, axis=-1, keepdims=True)
        e = jnp.exp(s - m)
        denom = jnp.sum(e, axis=-1, keepdims=True)
        p = (e * pl.reciprocal(denom, approx=True)).astype(bf16)       # EUP reciprocal

        # out_h^T = v_h @ p^T -> (d, N), 128-deep contraction; stage into bf16 scratch.
        o_hT = lax.dot_general(v_h, p, (((1,), (1,)), ((), ())),
                               preferred_element_type=f32)
        acc_ref[r0:r0 + dim_head, :] = o_hT.astype(bf16)

    # Output projection back to query_dim, channel-major: (C, inner) x (inner, N) -> (C, N)
    out_cn = lax.dot_general(wo_ref[...], acc_ref[...], (((1,), (0,)), ((), ())),
                             preferred_element_type=f32)

    # Fused epilogue: projection bias + residual, lane-dense (N last) store.
    o_ref[0] = (x_cn + out_cn + bo_ref[...]).astype(o_ref.dtype)


def cross_attention_pallas(x, context, params, *, heads=8, dim_head=64):
    """x: (B, C, H, W) f32, context: (B, M, Dc) f32 -> (B, C, H, W) f32."""
    B, C, H, W = x.shape
    N = H * W
    M, Dc = context.shape[1], context.shape[2]
    inner = heads * dim_head
    scale = float(dim_head) ** -0.5

    x_cn = x.reshape(B, C, N).astype(jnp.float32)           # free reshape, stays NCHW-major
    Mp = _round_up(max(M, 1), 128)                          # pad tiny context once
    ctx = context.astype(jnp.float32)
    if Mp != M:
        ctx = jnp.pad(ctx, ((0, 0), (0, Mp - M), (0, 0)))   # hard invariant: padded rows are 0
    ctx = ctx.astype(jnp.bfloat16)                          # (B, Mp, Dc) bf16

    # Weights shipped bf16 + lane-dense; attention scale folded into wq; K/V fused.
    wq = jnp.asarray(params["wq"], jnp.float32)             # (inner, C)   PyTorch layout
    wk = jnp.asarray(params["wk"], jnp.float32)             # (inner, Dc)
    wv = jnp.asarray(params["wv"], jnp.float32)             # (inner, Dc)
    wq_t = (wq.T * scale).astype(jnp.bfloat16)              # (C, inner)
    wkv_t = jnp.concatenate([wk, wv], axis=0).T.astype(jnp.bfloat16)   # (Dc, 2*inner)
    wo = jnp.asarray(params["wo"], jnp.float32).astype(jnp.bfloat16)   # (C, inner)
    bo = jnp.asarray(params["bo"], jnp.float32).reshape(C, 1)          # (C, 1) channel-major

    kern = functools.partial(_cross_attn_kernel, heads=heads, dim_head=dim_head,
                             seq_len=M)

    out_cn = pl.pallas_call(
        kern,
        out_shape=jax.ShapeDtypeStruct((B, C, N), jnp.float32),
        grid=(B,),
        in_specs=[
            pl.BlockSpec((1, C, N), lambda b: (b, 0, 0)),        # x, channel-major
            pl.BlockSpec((1, Mp, Dc), lambda b: (b, 0, 0)),      # padded context (bf16)
            pl.BlockSpec((C, inner), lambda b: (0, 0)),          # wq^T * scale (bf16)
            pl.BlockSpec((Dc, 2 * inner), lambda b: (0, 0)),     # [wk;wv]^T     (bf16)
            pl.BlockSpec((C, inner), lambda b: (0, 0)),          # wo            (bf16)
            pl.BlockSpec((C, 1), lambda b: (0, 0)),              # bo            (f32)
        ],
        out_specs=pl.BlockSpec((1, C, N), lambda b: (b, 0, 0)),
        scratch_shapes=[pltpu.VMEM((inner, N), jnp.bfloat16)],   # per-head output staging
        compiler_params=pltpu.CompilerParams(
            dimension_semantics=("parallel",)),
    )(x_cn, ctx, wq_t, wkv_t, wo, bo)

    return out_cn.reshape(B, C, H, W)


# ----------------------------------------------------------------------------
# Pure-JAX reference (mirrors the PyTorch module exactly) for validation
# ----------------------------------------------------------------------------
def cross_attention_ref(x, context, params, *, heads=8, dim_head=64):
    B, C, H, W = x.shape
    N = H * W
    x_flat = jnp.transpose(x.reshape(B, C, N), (0, 2, 1))          # (B, N, C)
    q = x_flat @ params["wq"].T
    k = context @ params["wk"].T
    v = context @ params["wv"].T

    def split(t):
        Bq, L, _ = t.shape
        return jnp.transpose(t.reshape(Bq, L, heads, dim_head), (0, 2, 1, 3))

    qh, kh, vh = split(q), split(k), split(v)
    attn = jnp.einsum("bhnd,bhmd->bhnm", qh, kh) * (float(dim_head) ** -0.5)
    attn = jax.nn.softmax(attn, axis=-1)
    out = jnp.einsum("bhnm,bhmd->bhnd", attn, vh)
    out = jnp.transpose(out, (0, 2, 1, 3)).reshape(B, N, heads * dim_head)
    out = out @ params["wo"].T + params["bo"]
    out = jnp.transpose(out, (0, 2, 1)).reshape(B, C, H, W)
    return x + out


# ----------------------------------------------------------------------------
if __name__ == "__main__":
    key = jax.random.PRNGKey(0)
    kx, kc, k1, k2, k3, k4, k5 = jax.random.split(key, 7)

    B, C, H, W = 2, 32, 16, 16         # query_dim = 32, N = H*W = 256
    SEQ, CTX_DIM = 8, 64               # context length / context_dim
    HEADS, DIM_HEAD = 8, 64            # module defaults -> inner_dim = 512
    INNER = HEADS * DIM_HEAD

    def uni(k, shape, fan_in):
        bound = fan_in ** -0.5
        return jax.random.uniform(k, shape, jnp.float32, -bound, bound)

    params = {
        "wq": uni(k1, (INNER, C), C),
        "wk": uni(k2, (INNER, CTX_DIM), CTX_DIM),
        "wv": uni(k3, (INNER, CTX_DIM), CTX_DIM),
        "wo": uni(k4, (C, INNER), INNER),
        "bo": uni(k5, (C,), INNER),
    }

    x = jax.random.normal(kx, (B, C, H, W), jnp.float32)
    context = jax.random.normal(kc, (B, SEQ, CTX_DIM), jnp.float32)

    fwd = jax.jit(functools.partial(cross_attention_pallas,
                                    heads=HEADS, dim_head=DIM_HEAD))
    out = jax.block_until_ready(fwd(x, context, params))

    ref = cross_attention_ref(x, context, params, heads=HEADS, dim_head=DIM_HEAD)

    assert out.shape == (B, C, H, W), out.shape
    assert bool(jnp.all(jnp.isfinite(out)))
    max_err = float(jnp.max(jnp.abs(out - ref)))
    assert max_err < 0.15, f"max abs err {max_err}"   # bf16-MXU + approx-recip tolerance
    print("KERNEL_OK")
</pallas_src>

<mosaic_0001>
module attributes {stable_mosaic.version = 11 : i64} {
  func.func @_cross_attn_kernel(%arg0: i32, %arg1: memref<1x32x256xf32, #tpu.memory_space<vmem>>, %arg2: memref<1x128x64xbf16, #tpu.memory_space<vmem>>, %arg3: memref<32x512xbf16, #tpu.memory_space<vmem>>, %arg4: memref<64x1024xbf16, #tpu.memory_space<vmem>>, %arg5: memref<32x512xbf16, #tpu.memory_space<vmem>>, %arg6: memref<32x1xf32, #tpu.memory_space<vmem>>, %arg7: memref<1x32x256xf32, #tpu.memory_space<vmem>>, %arg8: memref<512x256xbf16, #tpu.memory_space<vmem>>) attributes {dimension_semantics = [#tpu.dimension_semantics<parallel>], iteration_bounds = array<i64: 2>, scalar_prefetch = 0 : i64, scratch_operands = 1 : i64, tpu.core_type = #tpu.core_type<tc>, window_params = [{transform_indices = @transform_0, window_bounds = array<i64: 1, 32, 256>}, {transform_indices = @transform_1, window_bounds = array<i64: 1, 128, 64>}, {pipeline_mode = #tpu.pipeline_mode<synchronous>, transform_indices = @transform_2, window_bounds = array<i64: 32, 512>}, {pipeline_mode = #tpu.pipeline_mode<synchronous>, transform_indices = @transform_3, window_bounds = array<i64: 64, 1024>}, {pipeline_mode = #tpu.pipeline_mode<synchronous>, transform_indices = @transform_4, window_bounds = array<i64: 32, 512>}, {pipeline_mode = #tpu.pipeline_mode<synchronous>, transform_indices = @transform_5, window_bounds = array<i64: 32, 1>}, {transform_indices = @transform_6, window_bounds = array<i64: 1, 32, 256>}]} {
    %c0 = arith.constant 0 : index
    %c0_0 = arith.constant 0 : index
    %c0_1 = arith.constant 0 : index
    %0 = vector.load %arg1[%c0, %c0_0, %c0_1] : memref<1x32x256xf32, #tpu.memory_space<vmem>>, vector<1x32x256xf32>
    %1 = vector.shape_cast %0 : vector<1x32x256xf32> to vector<32x256xf32>
    %2 = arith.truncf %1 : vector<32x256xf32> to vector<32x256xbf16>
    %c0_2 = arith.constant 0 : index
    %c0_3 = arith.constant 0 : index
    %c0_4 = arith.constant 0 : index
    %3 = vector.load %arg2[%c0_2, %c0_3, %c0_4] : memref<1x128x64xbf16, #tpu.memory_space<vmem>>, vector<1x128x64xbf16>
    %4 = vector.shape_cast %3 : vector<1x128x64xbf16> to vector<128x64xbf16>
    %c0_5 = arith.constant 0 : index
    %c0_6 = arith.constant 0 : index
    %5 = vector.load %arg3[%c0_5, %c0_6] : memref<32x512xbf16, #tpu.memory_space<vmem>>, vector<32x512xbf16>
    %cst = arith.constant dense<0.000000e+00> : vector<512x256xf32>
    %6 = tpu.matmul %5, %2, %cst {dimension_numbers = #tpu.dot_dimension_numbers<[0], [0], [1], [1], [0, 1, 1, 1], [], []>} : vector<32x512xbf16>, vector<32x256xbf16>, vector<512x256xf32> -> vector<512x256xf32>
    %7 = arith.truncf %6 : vector<512x256xf32> to vector<512x256xbf16>
    %c0_7 = arith.constant 0 : index
    %c0_8 = arith.constant 0 : index
    %8 = vector.load %arg4[%c0_7, %c0_8] : memref<64x1024xbf16, #tpu.memory_space<vmem>>, vector<64x1024xbf16>
    %cst_9 = arith.constant dense<0.000000e+00> : vector<1024x128xf32>
    %9 = tpu.matmul %8, %4, %cst_9 {dimension_numbers = #tpu.dot_dimension_numbers<[0], [1], [1], [0], [0, 1, 1, 0], [], []>} : vector<64x1024xbf16>, vector<128x64xbf16>, vector<1024x128xf32> -> vector<1024x128xf32>
    %10 = arith.truncf %9 : vector<1024x128xf32> to vector<1024x128xbf16>
    %11 = vector.extract_strided_slice %10 {offsets = [0, 0], sizes = [512, 128], strides = [1, 1]} : vector<1024x128xbf16> to vector<512x128xbf16>
    %12 = vector.extract_strided_slice %10 {offsets = [512, 0], sizes = [512, 128], strides = [1, 1]} : vector<1024x128xbf16> to vector<512x128xbf16>
    %13 = tpu.iota {dimensions = array<i32: 1>} : vector<1x128xi32>
    %c8_i32 = arith.constant 8 : i32
    %14 = vector.broadcast %c8_i32 : i32 to vector<1x128xi32>
    %15 = arith.cmpi slt, %13, %14 : vector<1x128xi32>
    %cst_10 = arith.constant 0.000000e+00 : f32
    %cst_11 = arith.constant -1.000000e+30 : f32
    %16 = vector.broadcast %cst_10 : f32 to vector<1x128xf32>
    %17 = vector.broadcast %cst_11 : f32 to vector<1x128xf32>
    %18 = arith.select %15, %16, %17 : vector<1x128xi1>, vector<1x128xf32>
    %19 = vector.extract_strided_slice %7 {offsets = [0, 0], sizes = [64, 256], strides = [1, 1]} : vector<512x256xbf16> to vector<64x256xbf16>
    %20 = vector.extract_strided_slice %11 {offsets = [0, 0], sizes = [64, 128], strides = [1, 1]} : vector<512x128xbf16> to vector<64x128xbf16>
    %21 = vector.extract_strided_slice %12 {offsets = [0, 0], sizes = [64, 128], strides = [1, 1]} : vector<512x128xbf16> to vector<64x128xbf16>
    %cst_12 = arith.constant dense<0.000000e+00> : vector<256x128xf32>
    %22 = tpu.matmul %19, %20, %cst_12 {dimension_numbers = #tpu.dot_dimension_numbers<[0], [0], [1], [1], [0, 1, 1, 1], [], []>} : vector<64x256xbf16>, vector<64x128xbf16>, vector<256x128xf32> -> vector<256x128xf32>
    %23 = vector.broadcast %18 : vector<1x128xf32> to vector<256x128xf32>
    %24 = arith.addf %22, %23 : vector<256x128xf32>
    %cst_13 = arith.constant dense<0xFF800000> : vector<256xf32>
    %25 = vector.multi_reduction <maximumf>, %24, %cst_13 [1] : vector<256x128xf32> to vector<256xf32>
    %26 = vector.shape_cast %25 : vector<256xf32> to vector<256x1xf32>
    %27 = vector.broadcast %26 : vector<256x1xf32> to vector<256x128xf32>
    %28 = arith.subf %24, %27 : vector<256x128xf32>
    %29 = math.exp %28 : vector<256x128xf32>
    %cst_14 = arith.constant dense<0.000000e+00> : vector<256xf32>
    %30 = vector.multi_reduction <add>, %29, %cst_14 [1] : vector<256x128xf32> to vector<256xf32>
    %31 = vector.shape_cast %30 : vector<256xf32> to vector<256x1xf32>
    %32 = tpu.reciprocal %31 {approx = true} : vector<256x1xf32> -> vector<256x1xf32>
    %33 = vector.broadcast %32 : vector<256x1xf32> to vector<256x128xf32>
    %34 = arith.mulf %29, %33 : vector<256x128xf32>
    %35 = arith.truncf %34 : vector<256x128xf32> to vector<256x128xbf16>
    %cst_15 = arith.constant dense<0.000000e+00> : vector<64x256xf32>
    %36 = tpu.matmul %21, %35, %cst_15 {dimension_numbers = #tpu.dot_dimension_numbers<[1], [1], [0], [0], [0, 0, 1, 0], [], []>} : vector<64x128xbf16>, vector<256x128xbf16>, vector<64x256xf32> -> vector<64x256xf32>
    %37 = arith.truncf %36 : vector<64x256xf32> to vector<64x256xbf16>
    %c0_16 = arith.constant 0 : index
    %c0_17 = arith.constant 0 : index
    %38 = vector.load %arg8[%c0_16, %c0_17] : memref<512x256xbf16, #tpu.memory_space<vmem>>, vector<64x256xbf16>
    tpu.vector_store %arg8[%c0_16, %c0_17], %37 {strides = array<i32>} : memref<512x256xbf16, #tpu.memory_space<vmem>>, vector<64x256xbf16>,
    %39 = vector.extract_strided_slice %7 {offsets = [64, 0], sizes = [64, 256], strides = [1, 1]} : vector<512x256xbf16> to vector<64x256xbf16>
    %40 = vector.extract_strided_slice %11 {offsets = [64, 0], sizes = [64, 128], strides = [1, 1]} : vector<512x128xbf16> to vector<64x128xbf16>
    %41 = vector.extract_strided_slice %12 {offsets = [64, 0], sizes = [64, 128], strides = [1, 1]} : vector<512x128xbf16> to vector<64x128xbf16>
    %cst_18 = arith.constant dense<0.000000e+00> : vector<256x128xf32>
    %42 = tpu.matmul %39, %40, %cst_18 {dimension_numbers = #tpu.dot_dimension_numbers<[0], [0], [1], [1], [0, 1, 1, 1], [], []>} : vector<64x256xbf16>, vector<64x128xbf16>, vector<256x128xf32> -> vector<256x128xf32>
    %43 = vector.broadcast %18 : vector<1x128xf32> to vector<256x128xf32>
    %44 = arith.addf %42, %43 : vector<256x128xf32>
    %cst_19 = arith.constant dense<0xFF800000> : vector<256xf32>
    %45 = vector.multi_reduction <maximumf>, %44, %cst_19 [1] : vector<256x128xf32> to vector<256xf32>
    %46 = vector.shape_cast %45 : vector<256xf32> to vector<256x1xf32>
    %47 = vector.broadcast %46 : vector<256x1xf32> to vector<256x128xf32>
    %48 = arith.subf %44, %47 : vector<256x128xf32>
    %49 = math.exp %48 : vector<256x128xf32>
    %cst_20 = arith.constant dense<0.000000e+00> : vector<256xf32>
    %50 = vector.multi_reduction <add>, %49, %cst_20 [1] : vector<256x128xf32> to vector<256xf32>
    %51 = vector.shape_cast %50 : vector<256xf32> to vector<256x1xf32>
    %52 = tpu.reciprocal %51 {approx = true} : vector<256x1xf32> -> vector<256x1xf32>
    %53 = vector.broadcast %52 : vector<256x1xf32> to vector<256x128xf32>
    %54 = arith.mulf %49, %53 : vector<256x128xf32>
    %55 = arith.truncf %54 : vector<256x128xf32> to vector<256x128xbf16>
    %cst_21 = arith.constant dense<0.000000e+00> : vector<64x256xf32>
    %56 = tpu.matmul %41, %55, %cst_21 {dimension_numbers = #tpu.dot_dimension_numbers<[1], [1], [0], [0], [0, 0, 1, 0], [], []>} : vector<64x128xbf16>, vector<256x128xbf16>, vector<64x256xf32> -> vector<64x256xf32>
    %57 = arith.truncf %56 : vector<64x256xf32> to vector<64x256xbf16>
    %c64 = arith.constant 64 : index
    %c0_22 = arith.constant 0 : index
    %58 = vector.load %arg8[%c64, %c0_22] : memref<512x256xbf16, #tpu.memory_space<vmem>>, vector<64x256xbf16>
    tpu.vector_store %arg8[%c64, %c0_22], %57 {strides = array<i32>} : memref<512x256xbf16, #tpu.memory_space<vmem>>, vector<64x256xbf16>,
    %59 = vector.extract_strided_slice %7 {offsets = [128, 0], sizes = [64, 256], strides = [1, 1]} : vector<512x256xbf16> to vector<64x256xbf16>
    %60 = vector.extract_strided_slice %11 {offsets = [128, 0], sizes = [64, 128], strides = [1, 1]} : vector<512x128xbf16> to vector<64x128xbf16>
    %61 = vector.extract_strided_slice %12 {offsets = [128, 0], sizes = [64, 128], strides = [1, 1]} : vector<512x128xbf16> to vector<64x128xbf16>
    %cst_23 = arith.constant dense<0.000000e+00> : vector<256x128xf32>
    %62 = tpu.matmul %59, %60, %cst_23 {dimension_numbers = #tpu.dot_dimension_numbers<[0], [0], [1], [1], [0, 1, 1, 1], [], []>} : vector<64x256xbf16>, vector<64x128xbf16>, vector<256x128xf32> -> vector<256x128xf32>
    %63 = vector.broadcast %18 : vector<1x128xf32> to vector<256x128xf32>
    %64 = arith.addf %62, %63 : vector<256x128xf32>
    %cst_24 = arith.constant dense<0xFF800000> : vector<256xf32>
    %65 = vector.multi_reduction <maximumf>, %64, %cst_24 [1] : vector<256x128xf32> to vector<256xf32>
    %66 = vector.shape_cast %65 : vector<256xf32> to vector<256x1xf32>
    %67 = vector.broadcast %66 : vector<256x1xf32> to vector<256x128xf32>
    %68 = arith.subf %64, %67 : vector<256x128xf32>
    %69 = math.exp %68 : vector<256x128xf32>
    %cst_25 = arith.constant dense<0.000000e+00> : vector<256xf32>
    %70 = vector.multi_reduction <add>, %69, %cst_25 [1] : vector<256x128xf32> to vector<256xf32>
    %71 = vector.shape_cast %70 : vector<256xf32> to vector<256x1xf32>
    %72 = tpu.reciprocal %71 {approx = true} : vector<256x1xf32> -> vector<256x1xf32>
    %73 = vector.broadcast %72 : vector<256x1xf32> to vector<256x128xf32>
    %74 = arith.mulf %69, %73 : vector<256x128xf32>
    %75 = arith.truncf %74 : vector<256x128xf32> to vector<256x128xbf16>
    %cst_26 = arith.constant dense<0.000000e+00> : vector<64x256xf32>
    %76 = tpu.matmul %61, %75, %cst_26 {dimension_numbers = #tpu.dot_dimension_numbers<[1], [1], [0], [0], [0, 0, 1, 0], [], []>} : vector<64x128xbf16>, vector<256x128xbf16>, vector<64x256xf32> -> vector<64x256xf32>
    %77 = arith.truncf %76 : vector<64x256xf32> to vector<64x256xbf16>
    %c128 = arith.constant 128 : index
    %c0_27 = arith.constant 0 : index
    %78 = vector.load %arg8[%c128, %c0_27] : memref<512x256xbf16, #tpu.memory_space<vmem>>, vector<64x256xbf16>
    tpu.vector_store %arg8[%c128, %c0_27], %77 {strides = array<i32>} : memref<512x256xbf16, #tpu.memory_space<vmem>>, vector<64x256xbf16>,
    %79 = vector.extract_strided_slice %7 {offsets = [192, 0], sizes = [64, 256], strides = [1, 1]} : vector<512x256xbf16> to vector<64x256xbf16>
    %80 = vector.extract_strided_slice %11 {offsets = [192, 0], sizes = [64, 128], strides = [1, 1]} : vector<512x128xbf16> to vector<64x128xbf16>
    %81 = vector.extract_strided_slice %12 {offsets = [192, 0], sizes = [64, 128], strides = [1, 1]} : vector<512x128xbf16> to vector<64x128xbf16>
    %cst_28 = arith.constant dense<0.000000e+00> : vector<256x128xf32>
    %82 = tpu.matmul %79, %80, %cst_28 {dimension_numbers = #tpu.dot_dimension_numbers<[0], [0], [1], [1], [0, 1, 1, 1], [], []>} : vector<64x256xbf16>, vector<64x128xbf16>, vector<256x128xf32> -> vector<256x128xf32>
    %83 = vector.broadcast %18 : vector<1x128xf32> to vector<256x128xf32>
    %84 = arith.addf %82, %83 : vector<256x128xf32>
    %cst_29 = arith.constant dense<0xFF800000> : vector<256xf32>
    %85 = vector.multi_reduction <maximumf>, %84, %cst_29 [1] : vector<256x128xf32> to vector<256xf32>
    %86 = vector.shape_cast %85 : vector<256xf32> to vector<256x1xf32>
    %87 = vector.broadcast %86 : vector<256x1xf32> to vector<256x128xf32>
    %88 = arith.subf %84, %87 : vector<256x128xf32>
    %89 = math.exp %88 : vector<256x128xf32>
    %cst_30 = arith.constant dense<0.000000e+00> : vector<256xf32>
    %90 = vector.multi_reduction <add>, %89, %cst_30 [1] : vector<256x128xf32> to vector<256xf32>
    %91 = vector.shape_cast %90 : vector<256xf32> to vector<256x1xf32>
    %92 = tpu.reciprocal %91 {approx = true} : vector<256x1xf32> -> vector<256x1xf32>
    %93 = vector.broadcast %92 : vector<256x1xf32> to vector<256x128xf32>
    %94 = arith.mulf %89, %93 : vector<256x128xf32>
    %95 = arith.truncf %94 : vector<256x128xf32> to vector<256x128xbf16>
    %cst_31 = arith.constant dense<0.000000e+00> : vector<64x256xf32>
    %96 = tpu.matmul %81, %95, %cst_31 {dimension_numbers = #tpu.dot_dimension_numbers<[1], [1], [0], [0], [0, 0, 1, 0], [], []>} : vector<64x128xbf16>, vector<256x128xbf16>, vector<64x256xf32> -> vector<64x256xf32>
    %97 = arith.truncf %96 : vector<64x256xf32> to vector<64x256xbf16>
    %c192 = arith.constant 192 : index
    %c0_32 = arith.constant 0 : index
    %98 = vector.load %arg8[%c192, %c0_32] : memref<512x256xbf16, #tpu.memory_space<vmem>>, vector<64x256xbf16>
    tpu.vector_store %arg8[%c192, %c0_32], %97 {strides = array<i32>} : memref<512x256xbf16, #tpu.memory_space<vmem>>, vector<64x256xbf16>,
    %99 = vector.extract_strided_slice %7 {offsets = [256, 0], sizes = [64, 256], strides = [1, 1]} : vector<512x256xbf16> to vector<64x256xbf16>
    %100 = vector.extract_strided_slice %11 {offsets = [256, 0], sizes = [64, 128], strides = [1, 1]} : vector<512x128xbf16> to vector<64x128xbf16>
    %101 = vector.extract_strided_slice %12 {offsets = [256, 0], sizes = [64, 128], strides = [1, 1]} : vector<512x128xbf16> to vector<64x128xbf16>
    %cst_33 = arith.constant dense<0.000000e+00> : vector<256x128xf32>
    %102 = tpu.matmul %99, %100, %cst_33 {dimension_numbers = #tpu.dot_dimension_numbers<[0], [0], [1], [1], [0, 1, 1, 1], [], []>} : vector<64x256xbf16>, vector<64x128xbf16>, vector<256x128xf32> -> vector<256x128xf32>
    %103 = vector.broadcast %18 : vector<1x128xf32> to vector<256x128xf32>
    %104 = arith.addf %102, %103 : vector<256x128xf32>
    %cst_34 = arith.constant dense<0xFF800000> : vector<256xf32>
    %105 = vector.multi_reduction <maximumf>, %104, %cst_34 [1] : vector<256x128xf32> to vector<256xf32>
    %106 = vector.shape_cast %105 : vector<256xf32> to vector<256x1xf32>
    %107 = vector.broadcast %106 : vector<256x1xf32> to vector<256x128xf32>
    %108 = arith.subf %104, %107 : vector<256x128xf32>
    %109 = math.exp %108 : vector<256x128xf32>
    %cst_35 = arith.constant dense<0.000000e+00> : vector<256xf32>
    %110 = vector.multi_reduction <add>, %109, %cst_35 [1] : vector<256x128xf32> to vector<256xf32>
    %111 = vector.shape_cast %110 : vector<256xf32> to vector<256x1xf32>
    %112 = tpu.reciprocal %111 {approx = true} : vector<256x1xf32> -> vector<256x1xf32>
    %113 = vector.broadcast %112 : vector<256x1xf32> to vector<256x128xf32>
    %114 = arith.mulf %109, %113 : vector<256x128xf32>
    %115 = arith.truncf %114 : vector<256x128xf32> to vector<256x128xbf16>
    %cst_36 = arith.constant dense<0.000000e+00> : vector<64x256xf32>
    %116 = tpu.matmul %101, %115, %cst_36 {dimension_numbers = #tpu.dot_dimension_numbers<[1], [1], [0], [0], [0, 0, 1, 0], [], []>} : vector<64x128xbf16>, vector<256x128xbf16>, vector<64x256xf32> -> vector<64x256xf32>
    %117 = arith.truncf %116 : vector<64x256xf32> to vector<64x256xbf16>
    %c256 = arith.constant 256 : index
    %c0_37 = arith.constant 0 : index
    %118 = vector.load %arg8[%c256, %c0_37] : memref<512x256xbf16, #tpu.memory_space<vmem>>, vector<64x256xbf16>
    tpu.vector_store %arg8[%c256, %c0_37], %117 {strides = array<i32>} : memref<512x256xbf16, #tpu.memory_space<vmem>>, vector<64x256xbf16>,
    %119 = vector.extract_strided_slice %7 {offsets = [320, 0], sizes = [64, 256], strides = [1, 1]} : vector<512x256xbf16> to vector<64x256xbf16>
    %120 = vector.extract_strided_slice %11 {offsets = [320, 0], sizes = [64, 128], strides = [1, 1]} : vector<512x128xbf16> to vector<64x128xbf16>
    %121 = vector.extract_strided_slice %12 {offsets = [320, 0], sizes = [64, 128], strides = [1, 1]} : vector<512x128xbf16> to vector<64x128xbf16>
    %cst_38 = arith.constant dense<0.000000e+00> : vector<256x128xf32>
    %122 = tpu.matmul %119, %120, %cst_38 {dimension_numbers = #tpu.dot_dimension_numbers<[0], [0], [1], [1], [0, 1, 1, 1], [], []>} : vector<64x256xbf16>, vector<64x128xbf16>, vector<256x128xf32> -> vector<256x128xf32>
    %123 = vector.broadcast %18 : vector<1x128xf32> to vector<256x128xf32>
    %124 = arith.addf %122, %123 : vector<256x128xf32>
    %cst_39 = arith.constant dense<0xFF800000> : vector<256xf32>
    %125 = vector.multi_reduction <maximumf>, %124, %cst_39 [1] : vector<256x128xf32> to vector<256xf32>
    %126 = vector.shape_cast %125 : vector<256xf32> to vector<256x1xf32>
    %127 = vector.broadcast %126 : vector<256x1xf32> to vector<256x128xf32>
    %128 = arith.subf %124, %127 : vector<256x128xf32>
    %129 = math.exp %128 : vector<256x128xf32>
    %cst_40 = arith.constant dense<0.000000e+00> : vector<256xf32>
    %130 = vector.multi_reduction <add>, %129, %cst_40 [1] : vector<256x128xf32> to vector<256xf32>
    %131 = vector.shape_cast %130 : vector<256xf32> to vector<256x1xf32>
    %132 = tpu.reciprocal %131 {approx = true} : vector<256x1xf32> -> vector<256x1xf32>
    %133 = vector.broadcast %132 : vector<256x1xf32> to vector<256x128xf32>
    %134 = arith.mulf %129, %133 : vector<256x128xf32>
    %135 = arith.truncf %134 : vector<256x128xf32> to vector<256x128xbf16>
    %cst_41 = arith.constant dense<0.000000e+00> : vector<64x256xf32>
    %136 = tpu.matmul %121, %135, %cst_41 {dimension_numbers = #tpu.dot_dimension_numbers<[1], [1], [0], [0], [0, 0, 1, 0], [], []>} : vector<64x128xbf16>, vector<256x128xbf16>, vector<64x256xf32> -> vector<64x256xf32>
    %137 = arith.truncf %136 : vector<64x256xf32> to vector<64x256xbf16>
    %c320 = arith.constant 320 : index
    %c0_42 = arith.constant 0 : index
    %138 = vector.load %arg8[%c320, %c0_42] : memref<512x256xbf16, #tpu.memory_space<vmem>>, vector<64x256xbf16>
    tpu.vector_store %arg8[%c320, %c0_42], %137 {strides = array<i32>} : memref<512x256xbf16, #tpu.memory_space<vmem>>, vector<64x256xbf16>,
    %139 = vector.extract_strided_slice %7 {offsets = [384, 0], sizes = [64, 256], strides = [1, 1]} : vector<512x256xbf16> to vector<64x256xbf16>
    %140 = vector.extract_strided_slice %11 {offsets = [384, 0], sizes = [64, 128], strides = [1, 1]} : vector<512x128xbf16> to vector<64x128xbf16>
    %141 = vector.extract_strided_slice %12 {offsets = [384, 0], sizes = [64, 128], strides = [1, 1]} : vector<512x128xbf16> to vector<64x128xbf16>
    %cst_43 = arith.constant dense<0.000000e+00> : vector<256x128xf32>
    %142 = tpu.matmul %139, %140, %cst_43 {dimension_numbers = #tpu.dot_dimension_numbers<[0], [0], [1], [1], [0, 1, 1, 1], [], []>} : vector<64x256xbf16>, vector<64x128xbf16>, vector<256x128xf32> -> vector<256x128xf32>
    %143 = vector.broadcast %18 : vector<1x128xf32> to vector<256x128xf32>
    %144 = arith.addf %142, %143 : vector<256x128xf32>
    %cst_44 = arith.constant dense<0xFF800000> : vector<256xf32>
    %145 = vector.multi_reduction <maximumf>, %144, %cst_44 [1] : vector<256x128xf32> to vector<256xf32>
    %146 = vector.shape_cast %145 : vector<256xf32> to vector<256x1xf32>
    %147 = vector.broadcast %146 : vector<256x1xf32> to vector<256x128xf32>
    %148 = arith.subf %144, %147 : vector<256x128xf32>
    %149 = math.exp %148 : vector<256x128xf32>
    %cst_45 = arith.constant dense<0.000000e+00> : vector<256xf32>
    %150 = vector.multi_reduction <add>, %149, %cst_45 [1] : vector<256x128xf32> to vector<256xf32>
    %151 = vector.shape_cast %150 : vector<256xf32> to vector<256x1xf32>
    %152 = tpu.reciprocal %151 {approx = true} : vector<256x1xf32> -> vector<256x1xf32>
    %153 = vector.broadcast %152 : vector<256x1xf32> to vector<256x128xf32>
    %154 = arith.mulf %149, %153 : vector<256x128xf32>
    %155 = arith.truncf %154 : vector<256x128xf32> to vector<256x128xbf16>
    %cst_46 = arith.constant dense<0.000000e+00> : vector<64x256xf32>
    %156 = tpu.matmul %141, %155, %cst_46 {dimension_numbers = #tpu.dot_dimension_numbers<[1], [1], [0], [0], [0, 0, 1, 0], [], []>} : vector<64x128xbf16>, vector<256x128xbf16>, vector<64x256xf32> -> vector<64x256xf32>
    %157 = arith.truncf %156 : vector<64x256xf32> to vector<64x256xbf16>
    %c384 = arith.constant 384 : index
    %c0_47 = arith.constant 0 : index
    %158 = vector.load %arg8[%c384, %c0_47] : memref<512x256xbf16, #tpu.memory_space<vmem>>, vector<64x256xbf16>
    tpu.vector_store %arg8[%c384, %c0_47], %157 {strides = array<i32>} : memref<512x256xbf16, #tpu.memory_space<vmem>>, vector<64x256xbf16>,
    %159 = vector.extract_strided_slice %7 {offsets = [448, 0], sizes = [64, 256], strides = [1, 1]} : vector<512x256xbf16> to vector<64x256xbf16>
    %160 = vector.extract_strided_slice %11 {offsets = [448, 0], sizes = [64, 128], strides = [1, 1]} : vector<512x128xbf16> to vector<64x128xbf16>
    %161 = vector.extract_strided_slice %12 {offsets = [448, 0], sizes = [64, 128], strides = [1, 1]} : vector<512x128xbf16> to vector<64x128xbf16>
    %cst_48 = arith.constant dense<0.000000e+00> : vector<256x128xf32>
    %162 = tpu.matmul %159, %160, %cst_48 {dimension_numbers = #tpu.dot_dimension_numbers<[0], [0], [1], [1], [0, 1, 1, 1], [], []>} : vector<64x256xbf16>, vector<64x128xbf16>, vector<256x128xf32> -> vector<256x128xf32>
    %163 = vector.broadcast %18 : vector<1x128xf32> to vector<256x128xf32>
    %164 = arith.addf %162, %163 : vector<256x128xf32>
    %cst_49 = arith.constant dense<0xFF800000> : vector<256xf32>
    %165 = vector.multi_reduction <maximumf>, %164, %cst_49 [1] : vector<256x128xf32> to vector<256xf32>
    %166 = vector.shape_cast %165 : vector<256xf32> to vector<256x1xf32>
    %167 = vector.broadcast %166 : vector<256x1xf32> to vector<256x128xf32>
    %168 = arith.subf %164, %167 : vector<256x128xf32>
    %169 = math.exp %168 : vector<256x128xf32>
    %cst_50 = arith.constant dense<0.000000e+00> : vector<256xf32>
    %170 = vector.multi_reduction <add>, %169, %cst_50 [1] : vector<256x128xf32> to vector<256xf32>
    %171 = vector.shape_cast %170 : vector<256xf32> to vector<256x1xf32>
    %172 = tpu.reciprocal %171 {approx = true} : vector<256x1xf32> -> vector<256x1xf32>
    %173 = vector.broadcast %172 : vector<256x1xf32> to vector<256x128xf32>
    %174 = arith.mulf %169, %173 : vector<256x128xf32>
    %175 = arith.truncf %174 : vector<256x128xf32> to vector<256x128xbf16>
    %cst_51 = arith.constant dense<0.000000e+00> : vector<64x256xf32>
    %176 = tpu.matmul %161, %175, %cst_51 {dimension_numbers = #tpu.dot_dimension_numbers<[1], [1], [0], [0], [0, 0, 1, 0], [], []>} : vector<64x128xbf16>, vector<256x128xbf16>, vector<64x256xf32> -> vector<64x256xf32>
    %177 = arith.truncf %176 : vector<64x256xf32> to vector<64x256xbf16>
    %c448 = arith.constant 448 : index
    %c0_52 = arith.constant 0 : index
    %178 = vector.load %arg8[%c448, %c0_52] : memref<512x256xbf16, #tpu.memory_space<vmem>>, vector<64x256xbf16>
    tpu.vector_store %arg8[%c448, %c0_52], %177 {strides = array<i32>} : memref<512x256xbf16, #tpu.memory_space<vmem>>, vector<64x256xbf16>,
    %c0_53 = arith.constant 0 : index
    %c0_54 = arith.constant 0 : index
    %179 = vector.load %arg5[%c0_53, %c0_54] : memref<32x512xbf16, #tpu.memory_space<vmem>>, vector<32x512xbf16>
    %c0_55 = arith.constant 0 : index
    %c0_56 = arith.constant 0 : index
    %180 = vector.load %arg8[%c0_55, %c0_56] : memref<512x256xbf16, #tpu.memory_space<vmem>>, vector<512x256xbf16>
    %cst_57 = arith.constant dense<0.000000e+00> : vector<32x256xf32>
    %181 = tpu.matmul %179, %180, %cst_57 {dimension_numbers = #tpu.dot_dimension_numbers<[1], [0], [0], [1], [0, 0, 1, 1], [], []>} : vector<32x512xbf16>, vector<512x256xbf16>, vector<32x256xf32> -> vector<32x256xf32>
    %182 = arith.addf %1, %181 : vector<32x256xf32>
    %c0_58 = arith.constant 0 : index
    %c0_59 = arith.constant 0 : index
    %183 = vector.load %arg6[%c0_58, %c0_59] : memref<32x1xf32, #tpu.memory_space<vmem>>, vector<32x1xf32>
    %184 = vector.broadcast %183 : vector<32x1xf32> to vector<32x256xf32>
    %185 = arith.addf %182, %184 : vector<32x256xf32>
    %c0_60 = arith.constant 0 : index
    %c0_61 = arith.constant 0 : index
    %c0_62 = arith.constant 0 : index
    %186 = vector.load %arg7[%c0_60, %c0_61, %c0_62] : memref<1x32x256xf32, #tpu.memory_space<vmem>>, vector<1x32x256xf32>
    %187 = vector.shape_cast %186 : vector<1x32x256xf32> to vector<32x256xf32>
    %188 = vector.shape_cast %185 : vector<32x256xf32> to vector<1x32x256xf32>
    tpu.vector_store %arg7[%c0_60, %c0_61, %c0_62], %188 {strides = array<i32>} : memref<1x32x256xf32, #tpu.memory_space<vmem>>, vector<1x32x256xf32>,
    return
  }
  func.func @transform_0(%arg0: i32) -> (i32, i32, i32) {
    %c0_i32 = arith.constant 0 : i32
    %c0_i32_0 = arith.constant 0 : i32
    %c0_i32_1 = arith.constant 0 : i32
    return %arg0, %c0_i32, %c0_i32_0 : i32, i32, i32
  }
  func.func @transform_1(%arg0: i32) -> (i32, i32, i32) {
    %c0_i32 = arith.constant 0 : i32
    %c0_i32_0 = arith.constant 0 : i32
    %c0_i32_1 = arith.constant 0 : i32
    return %arg0, %c0_i32, %c0_i32_0 : i32, i32, i32
  }
  func.func @transform_2(%arg0: i32) -> (i32, i32) {
    %c0_i32 = arith.constant 0 : i32
    %c0_i32_0 = arith.constant 0 : i32
    %c0_i32_1 = arith.constant 0 : i32
    return %c0_i32, %c0_i32_0 : i32, i32
  }
  func.func @transform_3(%arg0: i32) -> (i32, i32) {
    %c0_i32 = arith.constant 0 : i32
    %c0_i32_0 = arith.constant 0 : i32
    %c0_i32_1 = arith.constant 0 : i32
    return %c0_i32, %c0_i32_0 : i32, i32
  }
  func.func @transform_4(%arg0: i32) -> (i32, i32) {
    %c0_i32 = arith.constant 0 : i32
    %c0_i32_0 = arith.constant 0 : i32
    %c0_i32_1 = arith.constant 0 : i32
    return %c0_i32, %c0_i32_0 : i32, i32
  }
  func.func @transform_5(%arg0: i32) -> (i32, i32) {
    %c0_i32 = arith.constant 0 : i32
    %c0_i32_0 = arith.constant 0 : i32
    %c0_i32_1 = arith.constant 0 : i32
    return %c0_i32, %c0_i32_0 : i32, i32
  }
  func.func @transform_6(%arg0: i32) -> (i32, i32, i32) {
    %c0_i32 = arith.constant 0 : i32
    %c0_i32_0 = arith.constant 0 : i32
    %c0_i32_1 = arith.constant 0 : i32
    return %arg0, %c0_i32, %c0_i32_0 : i32, i32, i32
  }
}

</mosaic_0001>

<llo_original>
// kernel: cross_attention_pallas.1
$region0: #{cross_attention_pallas.1}
  #allocation0 [shape = 'u32[]', space=smem, size = 0x4, offset = 0x4, fixed_abs, tag = 'smem constant byte address 0x4 - core index']
  #allocation1 [shape = 'u32[144,128]{1,0:T(1,128)}', space=vmem, size = 0x12000, scoped, tag = 'internal scratch']
  #allocation2 [shape = 'bf16[512,256]{1,0:T(16,128)(2,1)}', space=vmem, size = 0x40000, scoped, tag = 'scratch operand']
  %s0 = inlined_call_operand.vmem [shape: f32[2,32,256], index: 0, kind: input, shape index: {}]
  %s1 = inlined_call_operand.vmem [shape: bf16[2,128,64], index: 1, kind: input, shape index: {}]
  %s2 = inlined_call_operand.vmem [shape: bf16[32,512], index: 2, kind: input, shape index: {}]
  %s3 = inlined_call_operand.vmem [shape: bf16[64,1024], index: 3, kind: input, shape index: {}]
  %s4 = inlined_call_operand.vmem [shape: bf16[32,512], index: 4, kind: input, shape index: {}]
  %s5 = inlined_call_operand.vmem [shape: f32[32,1], index: 5, kind: input, shape index: {}]
  %s6 = inlined_call_operand.vmem [shape: f32[2,32,256], index: 6, kind: output, shape index: {}]
  %s7 = sld [smem:[#allocation0]]
  $region57: #{cross_attention_pallas.1} parent=0
    _
  %s9 = ssub.s32 1, %s7
  %s10 = scalar_select 0, %s9, %s7
  loop: start=0, step=1, limit=4
  $region2: #{cross_attention_pallas.1} parent=0 // loop_pre_header
    _
  $region3: #{cross_attention_pallas.1} parent=0 // loop_header
    %s12 = sphi 0, %s16
    %p13 = scmp.ge.s32.totalorder %s12, 4
    %s22 = sphi 0, %s24
    %s25 = sphi 0, %s22
    %s26 = sphi 0, %s25
    %s42 = sphi 0, %s26
    %s48 = sphi 0, %s50
    %s51 = sphi 0, %s48
    %s52 = sphi 0, %s51
    %s68 = sphi 0, %s52
    %s72 = sphi 0, %s72
    %s74 = sphi 0, %s72
    %s75 = sphi 0, %s74
    %s89 = sphi 0, %s75
    %s93 = sphi 0, %s93
    %s95 = sphi 0, %s93
    %s96 = sphi 0, %s95
    %s110 = sphi 0, %s96
    %s114 = sphi 0, %s114
    %s116 = sphi 0, %s114
    %s117 = sphi 0, %s116
    %s131 = sphi 0, %s117
    %s135 = sphi 0, %s135
    %s137 = sphi 0, %s135
    %s138 = sphi 0, %s137
    %s152 = sphi 0, %s138
    %s158 = sphi 0, %s160
    %s161 = sphi 0, %s158
    %s162 = sphi 0, %s161
    %s178 = sphi 0, %s162
  $region4: #{cross_attention_pallas.1} parent=0 // loop_header_branch
    %15 = sbr.rel (%p13) target = $region8
  $region5: #{cross_attention_pallas.1} parent=0 // loop_body
    %s17 = ssub.s32 %s12, 1
    %s18 = ssub.s32 %s12, 2
    %s19 = sadd.s32 %s12, 1
    %s20 = ssub.s32 %s12, %s19
    %p21 = scmp.eq.s32.totalorder %s20, 0
    %s23 = sadd.s32 %s22, 1
    %s24 = scalar_select %p21, %s22, %s23
    %p27 = pneg %p21
    %p28 = scmp.eq.s32.totalorder %s12, 1
    %p29 = por %p27, %p28
    %p30 = scmp.ne.s32.totalorder %s22, %s25
    %p31 = scmp.eq.s32.totalorder %s12, 0
    %p32 = por %p30, %p31
    %p33 = scmp.ne.s32.totalorder %s22, %s25
    %p34 = scmp.eq.s32.totalorder %s17, 1
    %p35 = por %p33, %p34
    %p36 = scmp.ne.s32.totalorder %s25, %s26
    %p37 = scmp.eq.s32.totalorder %s17, 0
    %p38 = por %p36, %p37
    %p39 = scmp.ne.s32.totalorder %s25, %s26
    %p40 = scmp.eq.s32.totalorder %s18, 1
    %p41 = por %p39, %p40
    %p43 = scmp.ne.s32.totalorder %s26, %s42
    %p44 = scmp.eq.s32.totalorder %s18, 0
    %p45 = por %p43, %p44
    %s46 = ssub.s32 %s12, %s19
    %p47 = scmp.eq.s32.totalorder %s46, 0
    %s49 = sadd.s32 %s48, 1
    %s50 = scalar_select %p47, %s48, %s49
    %p53 = pneg %p47
    %p54 = scmp.eq.s32.totalorder %s12, 1
    %p55 = por %p53, %p54
    %p56 = scmp.ne.s32.totalorder %s48, %s51
    %p57 = scmp.eq.s32.totalorder %s12, 0
    %p58 = por %p56, %p57
    %p59 = scmp.ne.s32.totalorder %s48, %s51
    %p60 = scmp.eq.s32.totalorder %s17, 1
    %p61 = por %p59, %p60
    %p62 = scmp.ne.s32.totalorder %s51, %s52
    %p63 = scmp.eq.s32.totalorder %s17, 0
    %p64 = por %p62, %p63
    %p65 = scmp.ne.s32.totalorder %s51, %s52
    %p66 = scmp.eq.s32.totalorder %s18, 1
    %p67 = por %p65, %p66
    %p69 = scmp.ne.s32.totalorder %s52, %s68
    %p70 = scmp.eq.s32.totalorder %s18, 0
    %p71 = por %p69, %p70
    %s73 = sadd.s32 %s72, 1
    %p76 = scmp.eq.s32.totalorder %s12, 1
    %p77 = scmp.ne.s32.totalorder %s72, %s74
    %p78 = scmp.eq.s32.totalorder %s12, 0
    %p79 = por %p77, %p78
    %p80 = scmp.ne.s32.totalorder %s72, %s74
    %p81 = scmp.eq.s32.totalorder %s17, 1
    %p82 = por %p80, %p81
    %p83 = scmp.ne.s32.totalorder %s74, %s75
    %p84 = scmp.eq.s32.totalorder %s17, 0
    %p85 = por %p83, %p84
    %p86 = scmp.ne.s32.totalorder %s74, %s75
    %p87 = scmp.eq.s32.totalorder %s18, 1
    %p88 = por %p86, %p87
    %p90 = scmp.ne.s32.totalorder %s75, %s89
    %p91 = scmp.eq.s32.totalorder %s18, 0
    %p92 = por %p90, %p91
    %s94 = sadd.s32 %s93, 1
    %p97 = scmp.eq.s32.totalorder %s12, 1
    %p98 = scmp.ne.s32.totalorder %s93, %s95
    %p99 = scmp.eq.s32.totalorder %s12, 0
    %p100 = por %p98, %p99
    %p101 = scmp.ne.s32.totalorder %s93, %s95
    %p102 = scmp.eq.s32.totalorder %s17, 1
    %p103 = por %p101, %p102
    %p104 = scmp.ne.s32.totalorder %s95, %s96
    %p105 = scmp.eq.s32.totalorder %s17, 0
    %p106 = por %p104, %p105
    %p107 = scmp.ne.s32.totalorder %s95, %s96
    %p108 = scmp.eq.s32.totalorder %s18, 1
    %p109 = por %p107, %p108
    %p111 = scmp.ne.s32.totalorder %s96, %s110
    %p112 = scmp.eq.s32.totalorder %s18, 0
    %p113 = por %p111, %p112
    %s115 = sadd.s32 %s114, 1
    %p118 = scmp.eq.s32.totalorder %s12, 1
    %p119 = scmp.ne.s32.totalorder %s114, %s116
    %p120 = scmp.eq.s32.totalorder %s12, 0
    %p121 = por %p119, %p120
    %p122 = scmp.ne.s32.totalorder %s114, %s116
    %p123 = scmp.eq.s32.totalorder %s17, 1
    %p124 = por %p122, %p123
    %p125 = scmp.ne.s32.totalorder %s116, %s117
    %p126 = scmp.eq.s32.totalorder %s17, 0
    %p127 = por %p125, %p126
    %p128 = scmp.ne.s32.totalorder %s116, %s117
    %p129 = scmp.eq.s32.totalorder %s18, 1
    %p130 = por %p128, %p129
    %p132 = scmp.ne.s32.totalorder %s117, %s131
    %p133 = scmp.eq.s32.totalorder %s18, 0
    %p134 = por %p132, %p133
    %s136 = sadd.s32 %s135, 1
    %p139 = scmp.eq.s32.totalorder %s12, 1
    %p140 = scmp.ne.s32.totalorder %s135, %s137
    %p141 = scmp.eq.s32.totalorder %s12, 0
    %p142 = por %p140, %p141
    %p143 = scmp.ne.s32.totalorder %s135, %s137
    %p144 = scmp.eq.s32.totalorder %s17, 1
    %p145 = por %p143, %p144
    %p146 = scmp.ne.s32.totalorder %s137, %s138
    %p147 = scmp.eq.s32.totalorder %s17, 0
    %p148 = por %p146, %p147
    %p149 = scmp.ne.s32.totalorder %s137, %s138
    %p150 = scmp.eq.s32.totalorder %s18, 1
    %p151 = por %p149, %p150
    %p153 = scmp.ne.s32.totalorder %s138, %s152
    %p154 = scmp.eq.s32.totalorder %s18, 0
    %p155 = por %p153, %p154
    %s156 = ssub.s32 %s12, %s19
    %p157 = scmp.eq.s32.totalorder %s156, 0
    %s159 = sadd.s32 %s158, 1
    %s160 = scalar_select %p157, %s158, %s159
    %p163 = pneg %p157
    %p164 = scmp.eq.s32.totalorder %s12, 1
    %p165 = por %p163, %p164
    %p166 = scmp.ne.s32.totalorder %s158, %s161
    %p167 = scmp.eq.s32.totalorder %s12, 0
    %p168 = por %p166, %p167
    %p169 = scmp.ne.s32.totalorder %s158, %s161
    %p170 = scmp.eq.s32.totalorder %s17, 1
    %p171 = por %p169, %p170
    %p172 = scmp.ne.s32.totalorder %s161, %s162
    %p173 = scmp.eq.s32.totalorder %s17, 0
    %p174 = por %p172, %p173
    %p175 = scmp.ne.s32.totalorder %s161, %s162
    %p176 = scmp.eq.s32.totalorder %s18, 1
    %p177 = por %p175, %p176
    %p179 = scmp.ne.s32.totalorder %s162, %s178
    %p180 = scmp.eq.s32.totalorder %s18, 0
    %p181 = por %p179, %p180
    %p182 = scmp.le.s32.totalorder 1, %s12
    %p183 = scmp.lt.s32.totalorder %s12, 3
    %p184 = pnand %p182, %p183
    %p185 = pneg %p184
    // Predicated region
    $region9: #{cross_attention_pallas.1} parent=5 // pred_check
      _
    $region10: #{cross_attention_pallas.1} parent=5 // pred_check_branch
      %187 = sbr.rel (%p184) target = $region12
    $region11: #{cross_attention_pallas.1} parent=5 // pred_region
      %s188 = ssub.s32 %s12, 1
      // Predicated region
      $region13: #{cross_attention_pallas.1} parent=11 // pred_check
        %p189 = pneg %p85
      $region14: #{cross_attention_pallas.1} parent=11 // pred_check_branch
        %191 = sbr.rel (%p189) target = $region16
      $region15: #{cross_attention_pallas.1} parent=11 // pred_region
        _
      $region16: #{cross_attention_pallas.1} parent=11 // pred_fallthru
        _
      // Predicated region
      $region17: #{cross_attention_pallas.1} parent=11 // pred_check
        %p192 = pneg %p106
      $region18: #{cross_attention_pallas.1} parent=11 // pred_check_branch
        %194 = sbr.rel (%p192) target = $region20
      $region19: #{cross_attention_pallas.1} parent=11 // pred_region
        _
      $region20: #{cross_attention_pallas.1} parent=11 // pred_fallthru
        _
      // Predicated region
      $region21: #{cross_attention_pallas.1} parent=11 // pred_check
        %p195 = pneg %p127
      $region22: #{cross_attention_pallas.1} parent=11 // pred_check_branch
        %197 = sbr.rel (%p195) target = $region24
      $region23: #{cross_attention_pallas.1} parent=11 // pred_region
        _
      $region24: #{cross_attention_pallas.1} parent=11 // pred_fallthru
        _
      // Predicated region
      $region25: #{cross_attention_pallas.1} parent=11 // pred_check
        %p198 = pneg %p148
      $region26: #{cross_attention_pallas.1} parent=11 // pred_check_branch
        %200 = sbr.rel (%p198) target = $region28
      $region27: #{cross_attention_pallas.1} parent=11 // pred_region
        _
      $region28: #{cross_attention_pallas.1} parent=11 // pred_fallthru
        _
    $region12: #{cross_attention_pallas.1} parent=5 // pred_fallthru
      _
    %p201 = scmp.lt.s32.totalorder %s12, 2
    // Predicated region
    $region29: #{cross_attention_pallas.1} parent=5 // pred_check
      %p202 = pneg %p201
    $region30: #{cross_attention_pallas.1} parent=5 // pred_check_branch
      %204 = sbr.rel (%p202) target = $region32
    $region31: #{cross_attention_pallas.1} parent=5 // pred_region
      // Predicated region
      $region33: #{cross_attention_pallas.1} parent=31 // pred_check
        %p205 = pneg %p32
      $region34: #{cross_attention_pallas.1} parent=31 // pred_check_branch
        %207 = sbr.rel (%p205) target = $region36
      $region35: #{cross_attention_pallas.1} parent=31 // pred_region
        %p208 = scmp.lt.s32.totalorder %s12, 1
        %s209 = scalar_select %p208, %s12, 1
        %s210 = smul.addr %s209, 8
        %s211 = smul.addr %s210, 8
        %s212 = scalar_lea.vmem %s0, %s211
      $region36: #{cross_attention_pallas.1} parent=31 // pred_fallthru
        _
      // Predicated region
      $region37: #{cross_attention_pallas.1} parent=31 // pred_check
        %p213 = pneg %p58
      $region38: #{cross_attention_pallas.1} parent=31 // pred_check_branch
        %215 = sbr.rel (%p213) target = $region40
      $region39: #{cross_attention_pallas.1} parent=31 // pred_region
        %p216 = scmp.lt.s32.totalorder %s12, 1
        %s217 = scalar_select %p216, %s12, 1
        %s218 = smul.addr %s217, 16
        %s219 = smul.addr %s218, 4
        %s220 = scalar_lea.vmem %s1, %s219
      $region40: #{cross_attention_pallas.1} parent=31 // pred_fallthru
        _
    $region32: #{cross_attention_pallas.1} parent=5 // pred_fallthru
      _
    %p221 = scmp.le.s32.totalorder 1, %s12
    %p222 = scmp.lt.s32.totalorder %s12, 3
    %p223 = pnand %p221, %p222
    %p224 = pneg %p223
    // Predicated region
    $region41: #{cross_attention_pallas.1} parent=5 // pred_check
      _
    $region42: #{cross_attention_pallas.1} parent=5 // pred_check_branch
      %226 = sbr.rel (%p223) target = $region44
    $region43: #{cross_attention_pallas.1} parent=5 // pred_region
      %s227 = ssub.s32 %s12, 1
      %p228 = scmp.lt.s32.totalorder %s17, 1
      %s229 = scalar_select %p228, %s17, 1
      %s230 = smul.addr %s229, 8
      %s231 = smul.addr %s230, 8
      %s232 = scalar_lea.vmem %s0, %s231
      %p233 = pneg %p38
      %p234 = pneg %p35
      %p235 = scmp.lt.s32.totalorder %s17, 1
      %s236 = scalar_select %p235, %s17, 1
      %s237 = smul.addr %s236, 16
      %s238 = smul.addr %s237, 4
      %s239 = scalar_lea.vmem %s1, %s238
      %p240 = pneg %p64
      %p241 = pneg %p61
      %p242 = pneg %p85
      %p243 = pneg %p82
      %p244 = pneg %p106
      %p245 = pneg %p103
      %p246 = pneg %p127
      %p247 = pneg %p124
      %p248 = pneg %p148
      %p249 = pneg %p145
      %p250 = pneg %p174
      %p251 = pneg %p171
      %p252 = scmp.lt.s32.totalorder %s17, 1
      %s253 = scalar_select %p252, %s17, 1
      %s254 = smul.addr %s253, 8
      %s255 = smul.addr %s254, 8
      %s256 = scalar_lea.vmem %s6, %s255
      %p257 = scmp.lt.s32.totalorder %s17, 1
      %s258 = scalar_select %p257, %s17, 1
      %s259 = smul.addr %s258, 8
      %s260 = smul.addr %s259, 8
      %s261 = scalar_lea.vmem %s0, %s260
      %p262 = scmp.lt.s32.totalorder %s17, 1
      %s263 = scalar_select %p262, %s17, 1
      %s264 = smul.addr %s263, 16
      %s265 = smul.addr %s264, 4
      %s266 = scalar_lea.vmem %s1, %s265
      %p267 = scmp.lt.s32.totalorder %s17, 1
      %s268 = scalar_select %p267, %s17, 1
      %s269 = smul.addr %s268, 8
      %s270 = smul.addr %s269, 8
      %s271 = scalar_lea.vmem %s6, %s270
      %v273 = vld [vmem:[%s261] sm:$0xff]
      %v274 = vld [vmem:[%s261 + $0x8] sm:$0xff]
      %v275 = vld [vmem:[%s261 + $0x10] sm:$0xff]
      %v276 = vld [vmem:[%s261 + $0x18] sm:$0xff]
      %v277 = vld [vmem:[%s261 + $0x20] sm:$0xff]
      %v278 = vld [vmem:[%s261 + $0x28] sm:$0xff]
      %v279 = vld [vmem:[%s261 + $0x30] sm:$0xff]
      %v280 = vld [vmem:[%s261 + $0x38] sm:$0xff]
      %v281 = vpack.c.bf16 %v275, %v273
      %v282 = vpack.c.bf16 %v276, %v274
      %v283 = vpack.c.bf16 %v279, %v277
      %v284 = vpack.c.bf16 %v280, %v278
      %v285 = vld [vmem:[%s266] sm:$0xf]
      %v286 = vld [vmem:[%s266 + $0x4] sm:$0xf]
      %v287 = vld [vmem:[%s266 + $0x8] sm:$0xf]
      %v288 = vld [vmem:[%s266 + $0xc] sm:$0xf]
      %v289 = vld [vmem:[%s266 + $0x10] sm:$0xf]
      %v290 = vld [vmem:[%s266 + $0x14] sm:$0xf]
      %v291 = vld [vmem:[%s266 + $0x18] sm:$0xf]
      %v292 = vld [vmem:[%s266 + $0x1c] sm:$0xf]
      %v293 = vld [vmem:[%s266 + $0x20] sm:$0xf]
      %v294 = vld [vmem:[%s266 + $0x24] sm:$0xf]
      %v295 = vld [vmem:[%s266 + $0x28] sm:$0xf]
      %v296 = vld [vmem:[%s266 + $0x2c] sm:$0xf]
      %v297 = vld [vmem:[%s266 + $0x30] sm:$0xf]
      %v298 = vld [vmem:[%s266 + $0x34] sm:$0xf]
      %v299 = vld [vmem:[%s266 + $0x38] sm:$0xf]
      %v300 = vld [vmem:[%s266 + $0x3c] sm:$0xf]
      %v301 = vld [vmem:[%s2] sm:$0xff]
      %v302 = vld [vmem:[%s2 + $0x8] sm:$0xff]
      %v303 = vld [vmem:[%s2 + $0x10] sm:$0xff]
      %v304 = vld [vmem:[%s2 + $0x18] sm:$0xff]
      %v305 = vld [vmem:[%s2 + $0x20] sm:$0xff]
      %v306 = vld [vmem:[%s2 + $0x28] sm:$0xff]
      %v307 = vld [vmem:[%s2 + $0x30] sm:$0xff]
      %v308 = vld [vmem:[%s2 + $0x38] sm:$0xff]
      %v317 = vunpack.c.l.b16 %v301
      %v318 = vunpack.c.h.b16 %v301
      %v319 = vunpack.c.l.b16 %v302
      %v320 = vunpack.c.h.b16 %v302
      %v321 = vunpack.c.l.b16 %v303
      %v322 = vunpack.c.h.b16 %v303
      %v323 = vunpack.c.l.b16 %v304
      %v324 = vunpack.c.h.b16 %v304
      %v325 = vunpack.c.l.b16 %v305
      %v326 = vunpack.c.h.b16 %v305
      %v327 = vunpack.c.l.b16 %v306
      %v328 = vunpack.c.h.b16 %v306
      %v329 = vunpack.c.l.b16 %v307
      %v330 = vunpack.c.h.b16 %v307
      %v331 = vunpack.c.l.b16 %v308
      %v332 = vunpack.c.h.b16 %v308
      %v333 = vpack.c.b16 %v321, %v317
      %v334 = vpack.c.b16 %v322, %v318
      %v335 = vpack.c.b16 %v323, %v319
      %v336 = vpack.c.b16 %v324, %v320
      %v337 = vpack.c.b16 %v329, %v325
      %v338 = vpack.c.b16 %v330, %v326
      %v339 = vpack.c.b16 %v331, %v327
      %v340 = vpack.c.b16 %v332, %v328
      %349 = vxpose.xlu0.c.b16.start [1/8] %v333, 128
      %350 = vxpose.xlu0.c.b16.cont [2/8] %v337, 128
      %351 = vxpose.xlu0.c.b16.cont [3/8] 0, 128
      %352 = vxpose.xlu0.c.b16.cont [4/8] 0, 128
      %353 = vxpose.xlu0.c.b16.cont [5/8] 0, 128
      %354 = vxpose.xlu0.c.b16.cont [6/8] 0, 128
      %355 = vxpose.xlu0.c.b16.cont [7/8] 0, 128
      %356 = vxpose.xlu0.c.b16.end [8/8] 0, 128
      %v357 = vpop.trf.xlu0
      %v358 = vpop.trf.xlu0
      %v359 = vpop.trf.xlu0
      %v360 = vpop.trf.xlu0
      %v361 = vpop.trf.xlu0
      %v362 = vpop.trf.xlu0
      %v363 = vpop.trf.xlu0
      %v364 = vpop.trf.xlu0
      %365 = vxpose.xlu0.c.b16.start [1/8] %v334, 128
      %366 = vxpose.xlu0.c.b16.cont [2/8] %v338, 128
      %367 = vxpose.xlu0.c.b16.cont [3/8] 0, 128
      %368 = vxpose.xlu0.c.b16.cont [4/8] 0, 128
      %369 = vxpose.xlu0.c.b16.cont [5/8] 0, 128
      %370 = vxpose.xlu0.c.b16.cont [6/8] 0, 128
      %371 = vxpose.xlu0.c.b16.cont [7/8] 0, 128
      %372 = vxpose.xlu0.c.b16.end [8/8] 0, 128
      %v373 = vpop.trf.xlu0
      %v374 = vpop.trf.xlu0
      %v375 = vpop.trf.xlu0
      %v376 = vpop.trf.xlu0
      %v377 = vpop.trf.xlu0
      %v378 = vpop.trf.xlu0
      %v379 = vpop.trf.xlu0
      %v380 = vpop.trf.xlu0
      %381 = vxpose.xlu0.c.b16.start [1/8] %v335, 128
      %382 = vxpose.xlu0.c.b16.cont [2/8] %v339, 128
      %383 = vxpose.xlu0.c.b16.cont [3/8] 0, 128
      %384 = vxpose.xlu0.c.b16.cont [4/8] 0, 128
      %385 = vxpose.xlu0.c.b16.cont [5/8] 0, 128
      %386 = vxpose.xlu0.c.b16.cont [6/8] 0, 128
      %387 = vxpose.xlu0.c.b16.cont [7/8] 0, 128
      %388 = vxpose.xlu0.c.b16.end [8/8] 0, 128
      %v389 = vpop.trf.xlu0
      %v390 = vpop.trf.xlu0
      %v391 = vpop.trf.xlu0
      %v392 = vpop.trf.xlu0
      %v393 = vpop.trf.xlu0
      %v394 = vpop.trf.xlu0
      %v395 = vpop.trf.xlu0
      %v396 = vpop.trf.xlu0
      %397 = vxpose.xlu0.c.b16.start [1/8] %v336, 128
      %398 = vxpose.xlu0.c.b16.cont [2/8] %v340, 128
      %399 = vxpose.xlu0.c.b16.cont [3/8] 0, 128
      %400 = vxpose.xlu0.c.b16.cont [4/8] 0, 128
      %401 = vxpose.xlu0.c.b16.cont [5/8] 0, 128
      %402 = vxpose.xlu0.c.b16.cont [6/8] 0, 128
      %403 = vxpose.xlu0.c.b16.cont [7/8] 0, 128
      %404 = vxpose.xlu0.c.b16.end [8/8] 0, 128
      %v405 = vpop.trf.xlu0
      %v406 = vpop.trf.xlu0
      %v407 = vpop.trf.xlu0
      %v408 = vpop.trf.xlu0
      %v409 = vpop.trf.xlu0
      %v410 = vpop.trf.xlu0
      %v411 = vpop.trf.xlu0
      %v412 = vpop.trf.xlu0
      %vm413 = vcmask 261120
      %v415 = vsel %vm413, %v357, 0
      %v418 = vsel %vm413, %v358, 0
      %v421 = vsel %vm413, %v359, 0
      %v424 = vsel %vm413, %v360, 0
      %v427 = vsel %vm413, %v361, 0
      %v430 = vsel %vm413, %v362, 0
      %v433 = vsel %vm413, %v363, 0
      %v436 = vsel %vm413, %v364, 0
      %v439 = vsel %vm413, %v373, 0
      %v442 = vsel %vm413, %v374, 0
      %v445 = vsel %vm413, %v375, 0
      %v448 = vsel %vm413, %v376, 0
      %v451 = vsel %vm413, %v377, 0
      %v454 = vsel %vm413, %v378, 0
      %v457 = vsel %vm413, %v379, 0
      %v460 = vsel %vm413, %v380, 0
      %v463 = vsel %vm413, %v389, 0
      %v466 = vsel %vm413, %v390, 0
      %v469 = vsel %vm413, %v391, 0
      %v472 = vsel %vm413, %v392, 0
      %v475 = vsel %vm413, %v393, 0
      %v478 = vsel %vm413, %v394, 0
      %v481 = vsel %vm413, %v395, 0
      %v484 = vsel %vm413, %v396, 0
      %v487 = vsel %vm413, %v405, 0
      %v490 = vsel %vm413, %v406, 0
      %v493 = vsel %vm413, %v407, 0
      %v496 = vsel %vm413, %v408, 0
      %v499 = vsel %vm413, %v409, 0
      %v502 = vsel %vm413, %v410, 0
      %v505 = vsel %vm413, %v411, 0
      %v508 = vsel %vm413, %v412, 0
      %510 = vmatprep.subr.bf16.mxu0 %v282
      %511 = vmatpush1.bf16.msra.mxu0 %v281
      %512 = vmatprep.subr.bf16.mxu0 %v284
      %513 = vmatpush1.bf16.msra.mxu0 %v283
      %514 = vmatprep.subr.bf16.mxu0 0
      %515 = vmatpush1.bf16.msra.mxu0 0
      %516 = vmatprep.subr.bf16.mxu0 0
      %517 = vmatpush1.bf16.msra.mxu0 0
      %518 = vmatprep.subr.bf16.mxu0 0
      %519 = vmatpush1.bf16.msra.mxu0 0
      %520 = vmatprep.subr.bf16.mxu0 0
      %521 = vmatpush1.bf16.msra.mxu0 0
      %522 = vmatprep.subr.bf16.mxu0 0
      %523 = vmatpush1.bf16.msra.mxu0 0
      %524 = vmatprep.subr.bf16.mxu0 0
      %525 = vmatpush1.bf16.msra.mxu0 0
      %526 = vmatprep.subr.bf16.mxu0 0
      %527 = vmatpush1.bf16.msra.mxu0 0
      %528 = vmatprep.subr.bf16.mxu0 0
      %529 = vmatpush1.bf16.msra.mxu0 0
      %530 = vmatprep.subr.bf16.mxu0 0
      %531 = vmatpush1.bf16.msra.mxu0 0
      %532 = vmatprep.subr.bf16.mxu0 0
      %533 = vmatpush1.bf16.msra.mxu0 0
      %534 = vmatprep.subr.bf16.mxu0 0
      %535 = vmatpush1.bf16.msra.mxu0 0
      %536 = vmatprep.subr.bf16.mxu0 0
      %537 = vmatpush1.bf16.msra.mxu0 0
      %538 = vmatprep.subr.bf16.mxu0 0
      %539 = vmatpush1.bf16.msra.mxu0 0
      %540 = vmatprep.subr.bf16.mxu0 0
      %541 = vmatpush1.bf16.msra.mxu0 0
      %542 = vmatprep.mubr.bf16.mxu0 0
      %543 = vmatmul.mubr.bf16.gmra.mrb[0].mxu0 %v415
      %v544 = vpop.f32.mrb[0].mxu0
      %v545 = vadd.f32 0.0, %v544
      %v546 = vpop.f32.mrb[0].mxu0
      %v547 = vadd.f32 0.0, %v546
      %v548 = vpop.f32.mrb[0].mxu0
      %v549 = vadd.f32 0.0, %v548
      %v550 = vpop.f32.mrb[0].mxu0
      %v551 = vadd.f32 0.0, %v550
      %552 = vmatprep.mubr.bf16.mxu0 0
      %553 = vmatmul.mubr.bf16.gmra.mrb[0].mxu0 %v418
      %v554 = vpop.f32.mrb[0].mxu0
      %v555 = vadd.f32 0.0, %v554
      %v556 = vpop.f32.mrb[0].mxu0
      %v557 = vadd.f32 0.0, %v556
      %v558 = vpop.f32.mrb[0].mxu0
      %v559 = vadd.f32 0.0, %v558
      %v560 = vpop.f32.mrb[0].mxu0
      %v561 = vadd.f32 0.0, %v560
      %562 = vmatprep.mubr.bf16.mxu0 0
      %563 = vmatmul.mubr.bf16.gmra.mrb[0].mxu0 %v421
      %v564 = vpop.f32.mrb[0].mxu0
      %v565 = vadd.f32 0.0, %v564
      %v566 = vpop.f32.mrb[0].mxu0
      %v567 = vadd.f32 0.0, %v566
      %v568 = vpop.f32.mrb[0].mxu0
      %v569 = vadd.f32 0.0, %v568
      %v570 = vpop.f32.mrb[0].mxu0
      %v571 = vadd.f32 0.0, %v570
      %572 = vmatprep.mubr.bf16.mxu0 0
      %573 = vmatmul.mubr.bf16.gmra.mrb[0].mxu0 %v424
      %v574 = vpop.f32.mrb[0].mxu0
      %v575 = vadd.f32 0.0, %v574
      %v576 = vpop.f32.mrb[0].mxu0
      %v577 = vadd.f32 0.0, %v576
      %v578 = vpop.f32.mrb[0].mxu0
      %v579 = vadd.f32 0.0, %v578
      %v580 = vpop.f32.mrb[0].mxu0
      %v581 = vadd.f32 0.0, %v580
      %582 = vmatprep.mubr.bf16.mxu0 0
      %583 = vmatmul.mubr.bf16.gmra.mrb[0].mxu0 %v427
      %v584 = vpop.f32.mrb[0].mxu0
      %v585 = vadd.f32 0.0, %v584
      %v586 = vpop.f32.mrb[0].mxu0
      %v587 = vadd.f32 0.0, %v586
      %v588 = vpop.f32.mrb[0].mxu0
      %v589 = vadd.f32 0.0, %v588
      %v590 = vpop.f32.mrb[0].mxu0
      %v591 = vadd.f32 0.0, %v590
      %592 = vmatprep.mubr.bf16.mxu0 0
      %593 = vmatmul.mubr.bf16.gmra.mrb[0].mxu0 %v430
      %v594 = vpop.f32.mrb[0].mxu0
      %v595 = vadd.f32 0.0, %v594
      %v596 = vpop.f32.mrb[0].mxu0
      %v597 = vadd.f32 0.0, %v596
      %v598 = vpop.f32.mrb[0].mxu0
      %v599 = vadd.f32 0.0, %v598
      %v600 = vpop.f32.mrb[0].mxu0
      %v601 = vadd.f32 0.0, %v600
      %602 = vmatprep.mubr.bf16.mxu0 0
      %603 = vmatmul.mubr.bf16.gmra.mrb[0].mxu0 %v433
      %v604 = vpop.f32.mrb[0].mxu0
      %v605 = vadd.f32 0.0, %v604
      %v606 = vpop.f32.mrb[0].mxu0
      %v607 = vadd.f32 0.0, %v606
      %v608 = vpop.f32.mrb[0].mxu0
      %v609 = vadd.f32 0.0, %v608
      %v610 = vpop.f32.mrb[0].mxu0
      %v611 = vadd.f32 0.0, %v610
      %612 = vmatprep.mubr.bf16.mxu0 0
      %613 = vmatmul.mubr.bf16.gmra.mrb[0].mxu0 %v436
      %v614 = vpop.f32.mrb[0].mxu0
      %v615 = vadd.f32 0.0, %v614
      %v616 = vpop.f32.mrb[0].mxu0
      %v617 = vadd.f32 0.0, %v616
      %v618 = vpop.f32.mrb[0].mxu0
      %v619 = vadd.f32 0.0, %v618
      %v620 = vpop.f32.mrb[0].mxu0
      %v621 = vadd.f32 0.0, %v620
      %622 = vmatprep.mubr.bf16.mxu0 0
      %623 = vmatmul.mubr.bf16.gmra.mrb[0].mxu0 %v439
      %v624 = vpop.f32.mrb[0].mxu0
      %v625 = vadd.f32 0.0, %v624
      %v626 = vpop.f32.mrb[0].mxu0
      %v627 = vadd.f32 0.0, %v626
      %v628 = vpop.f32.mrb[0].mxu0
      %v629 = vadd.f32 0.0, %v628
      %v630 = vpop.f32.mrb[0].mxu0
      %v631 = vadd.f32 0.0, %v630
      %632 = vmatprep.mubr.bf16.mxu0 0
      %633 = vmatmul.mubr.bf16.gmra.mrb[0].mxu0 %v442
      %v634 = vpop.f32.mrb[0].mxu0
      %v635 = vadd.f32 0.0, %v634
      %v636 = vpop.f32.mrb[0].mxu0
      %v637 = vadd.f32 0.0, %v636
      %v638 = vpop.f32.mrb[0].mxu0
      %v639 = vadd.f32 0.0, %v638
      %v640 = vpop.f32.mrb[0].mxu0
      %v641 = vadd.f32 0.0, %v640
      %642 = vmatprep.mubr.bf16.mxu0 0
      %643 = vmatmul.mubr.bf16.gmra.mrb[0].mxu0 %v445
      %v644 = vpop.f32.mrb[0].mxu0
      %v645 = vadd.f32 0.0, %v644
      %v646 = vpop.f32.mrb[0].mxu0
      %v647 = vadd.f32 0.0, %v646
      %v648 = vpop.f32.mrb[0].mxu0
      %v649 = vadd.f32 0.0, %v648
      %v650 = vpop.f32.mrb[0].mxu0
      %v651 = vadd.f32 0.0, %v650
      %652 = vmatprep.mubr.bf16.mxu0 0
      %653 = vmatmul.mubr.bf16.gmra.mrb[0].mxu0 %v448
      %v654 = vpop.f32.mrb[0].mxu0
      %v655 = vadd.f32 0.0, %v654
      %v656 = vpop.f32.mrb[0].mxu0
      %v657 = vadd.f32 0.0, %v656
      %v658 = vpop.f32.mrb[0].mxu0
      %v659 = vadd.f32 0.0, %v658
      %v660 = vpop.f32.mrb[0].mxu0
      %v661 = vadd.f32 0.0, %v660
      %662 = vmatprep.mubr.bf16.mxu0 0
      %663 = vmatmul.mubr.bf16.gmra.mrb[0].mxu0 %v451
      %v664 = vpop.f32.mrb[0].mxu0
      %v665 = vadd.f32 0.0, %v664
      %v666 = vpop.f32.mrb[0].mxu0
      %v667 = vadd.f32 0.0, %v666
      %v668 = vpop.f32.mrb[0].mxu0
      %v669 = vadd.f32 0.0, %v668
      %v670 = vpop.f32.mrb[0].mxu0
      %v671 = vadd.f32 0.0, %v670
      %672 = vmatprep.mubr.bf16.mxu0 0
      %673 = vmatmul.mubr.bf16.gmra.mrb[0].mxu0 %v454
      %v674 = vpop.f32.mrb[0].mxu0
      %v675 = vadd.f32 0.0, %v674
      %v676 = vpop.f32.mrb[0].mxu0
      %v677 = vadd.f32 0.0, %v676
      %v678 = vpop.f32.mrb[0].mxu0
      %v679 = vadd.f32 0.0, %v678
      %v680 = vpop.f32.mrb[0].mxu0
      %v681 = vadd.f32 0.0, %v680
      %682 = vmatprep.mubr.bf16.mxu0 0
      %683 = vmatmul.mubr.bf16.gmra.mrb[0].mxu0 %v457
      %v684 = vpop.f32.mrb[0].mxu0
      %v685 = vadd.f32 0.0, %v684
      %v686 = vpop.f32.mrb[0].mxu0
      %v687 = vadd.f32 0.0, %v686
      %v688 = vpop.f32.mrb[0].mxu0
      %v689 = vadd.f32 0.0, %v688
      %v690 = vpop.f32.mrb[0].mxu0
      %v691 = vadd.f32 0.0, %v690
      %692 = vmatprep.mubr.bf16.mxu0 0
      %693 = vmatmul.mubr.bf16.gmra.mrb[0].mxu0 %v460
      %v694 = vpop.f32.mrb[0].mxu0
      %v695 = vadd.f32 0.0, %v694
      %v696 = vpop.f32.mrb[0].mxu0
      %v697 = vadd.f32 0.0, %v696
      %v698 = vpop.f32.mrb[0].mxu0
      %v699 = vadd.f32 0.0, %v698
      %v700 = vpop.f32.mrb[0].mxu0
      %v701 = vadd.f32 0.0, %v700
      %702 = vmatprep.mubr.bf16.mxu0 0
      %703 = vmatmul.mubr.bf16.gmra.mrb[0].mxu0 %v463
      %v704 = vpop.f32.mrb[0].mxu0
      %v705 = vadd.f32 0.0, %v704
      %v706 = vpop.f32.mrb[0].mxu0
      %v707 = vadd.f32 0.0, %v706
      %v708 = vpop.f32.mrb[0].mxu0
      %v709 = vadd.f32 0.0, %v708
      %v710 = vpop.f32.mrb[0].mxu0
      %v711 = vadd.f32 0.0, %v710
      %712 = vmatprep.mubr.bf16.mxu0 0
      %713 = vmatmul.mubr.bf16.gmra.mrb[0].mxu0 %v466
      %v714 = vpop.f32.mrb[0].mxu0
      %v715 = vadd.f32 0.0, %v714
      %v716 = vpop.f32.mrb[0].mxu0
      %v717 = vadd.f32 0.0, %v716
      %v718 = vpop.f32.mrb[0].mxu0
      %v719 = vadd.f32 0.0, %v718
      %v720 = vpop.f32.mrb[0].mxu0
      %v721 = vadd.f32 0.0, %v720
      %722 = vmatprep.mubr.bf16.mxu0 0
      %723 = vmatmul.mubr.bf16.gmra.mrb[0].mxu0 %v469
      %v724 = vpop.f32.mrb[0].mxu0
      %v725 = vadd.f32 0.0, %v724
      %v726 = vpop.f32.mrb[0].mxu0
      %v727 = vadd.f32 0.0, %v726
      %v728 = vpop.f32.mrb[0].mxu0
      %v729 = vadd.f32 0.0, %v728
      %v730 = vpop.f32.mrb[0].mxu0
      %v731 = vadd.f32 0.0, %v730
      %732 = vmatprep.mubr.bf16.mxu0 0
      %733 = vmatmul.mubr.bf16.gmra.mrb[0].mxu0 %v472
      %v734 = vpop.f32.mrb[0].mxu0
      %v735 = vadd.f32 0.0, %v734
      %v736 = vpop.f32.mrb[0].mxu0
      %v737 = vadd.f32 0.0, %v736
      %v738 = vpop.f32.mrb[0].mxu0
      %v739 = vadd.f32 0.0, %v738
      %v740 = vpop.f32.mrb[0].mxu0
      %v741 = vadd.f32 0.0, %v740
      %742 = vmatprep.mubr.bf16.mxu0 0
      %743 = vmatmul.mubr.bf16.gmra.mrb[0].mxu0 %v475
      %v744 = vpop.f32.mrb[0].mxu0
      %v745 = vadd.f32 0.0, %v744
      %v746 = vpop.f32.mrb[0].mxu0
      %v747 = vadd.f32 0.0, %v746
      %v748 = vpop.f32.mrb[0].mxu0
      %v749 = vadd.f32 0.0, %v748
      %v750 = vpop.f32.mrb[0].mxu0
      %v751 = vadd.f32 0.0, %v750
      %752 = vmatprep.mubr.bf16.mxu0 0
      %753 = vmatmul.mubr.bf16.gmra.mrb[0].mxu0 %v478
      %v754 = vpop.f32.mrb[0].mxu0
      %v755 = vadd.f32 0.0, %v754
      %v756 = vpop.f32.mrb[0].mxu0
      %v757 = vadd.f32 0.0, %v756
      %v758 = vpop.f32.mrb[0].mxu0
      %v759 = vadd.f32 0.0, %v758
      %v760 = vpop.f32.mrb[0].mxu0
      %v761 = vadd.f32 0.0, %v760
      %762 = vmatprep.mubr.bf16.mxu0 0
      %763 = vmatmul.mubr.bf16.gmra.mrb[0].mxu0 %v481
      %v764 = vpop.f32.mrb[0].mxu0
      %v765 = vadd.f32 0.0, %v764
      %v766 = vpop.f32.mrb[0].mxu0
      %v767 = vadd.f32 0.0, %v766
      %v768 = vpop.f32.mrb[0].mxu0
      %v769 = vadd.f32 0.0, %v768
      %v770 = vpop.f32.mrb[0].mxu0
      %v771 = vadd.f32 0.0, %v770
      %772 = vmatprep.mubr.bf16.mxu0 0
      %773 = vmatmul.mubr.bf16.gmra.mrb[0].mxu0 %v484
      %v774 = vpop.f32.mrb[0].mxu0
      %v775 = vadd.f32 0.0, %v774
      %v776 = vpop.f32.mrb[0].mxu0
      %v777 = vadd.f32 0.0, %v776
      %v778 = vpop.f32.mrb[0].mxu0
      %v779 = vadd.f32 0.0, %v778
      %v780 = vpop.f32.mrb[0].mxu0
      %v781 = vadd.f32 0.0, %v780
      %782 = vmatprep.mubr.bf16.mxu0 0
      %783 = vmatmul.mubr.bf16.gmra.mrb[0].mxu0 %v487
      %v784 = vpop.f32.mrb[0].mxu0
      %v785 = vadd.f32 0.0, %v784
      %v786 = vpop.f32.mrb[0].mxu0
      %v787 = vadd.f32 0.0, %v786
      %v788 = vpop.f32.mrb[0].mxu0
      %v789 = vadd.f32 0.0, %v788
      %v790 = vpop.f32.mrb[0].mxu0
      %v791 = vadd.f32 0.0, %v790
      %792 = vmatprep.mubr.bf16.mxu0 0
      %793 = vmatmul.mubr.bf16.gmra.mrb[0].mxu0 %v490
      %v794 = vpop.f32.mrb[0].mxu0
      %v795 = vadd.f32 0.0, %v794
      %v796 = vpop.f32.mrb[0].mxu0
      %v797 = vadd.f32 0.0, %v796
      %v798 = vpop.f32.mrb[0].mxu0
      %v799 = vadd.f32 0.0, %v798
      %v800 = vpop.f32.mrb[0].mxu0
      %v801 = vadd.f32 0.0, %v800
      %802 = vmatprep.mubr.bf16.mxu0 0
      %803 = vmatmul.mubr.bf16.gmra.mrb[0].mxu0 %v493
      %v804 = vpop.f32.mrb[0].mxu0
      %v805 = vadd.f32 0.0, %v804
      %v806 = vpop.f32.mrb[0].mxu0
      %v807 = vadd.f32 0.0, %v806
      %v808 = vpop.f32.mrb[0].mxu0
      %v809 = vadd.f32 0.0, %v808
      %v810 = vpop.f32.mrb[0].mxu0
      %v811 = vadd.f32 0.0, %v810
      %812 = vmatprep.mubr.bf16.mxu0 0
      %813 = vmatmul.mubr.bf16.gmra.mrb[0].mxu0 %v496
      %v814 = vpop.f32.mrb[0].mxu0
      %v815 = vadd.f32 0.0, %v814
      %v816 = vpop.f32.mrb[0].mxu0
      %v817 = vadd.f32 0.0, %v816
      %v818 = vpop.f32.mrb[0].mxu0
      %v819 = vadd.f32 0.0, %v818
      %v820 = vpop.f32.mrb[0].mxu0
      %v821 = vadd.f32 0.0, %v820
      %822 = vmatprep.mubr.bf16.mxu0 0
      %823 = vmatmul.mubr.bf16.gmra.mrb[0].mxu0 %v499
      %v824 = vpop.f32.mrb[0].mxu0
      %v825 = vadd.f32 0.0, %v824
      %v826 = vpop.f32.mrb[0].mxu0
      %v827 = vadd.f32 0.0, %v826
      %v828 = vpop.f32.mrb[0].mxu0
      %v829 = vadd.f32 0.0, %v828
      %v830 = vpop.f32.mrb[0].mxu0
      %v831 = vadd.f32 0.0, %v830
      %832 = vmatprep.mubr.bf16.mxu0 0
      %833 = vmatmul.mubr.bf16.gmra.mrb[0].mxu0 %v502
      %v834 = vpop.f32.mrb[0].mxu0
      %v835 = vadd.f32 0.0, %v834
      %v836 = vpop.f32.mrb[0].mxu0
      %v837 = vadd.f32 0.0, %v836
      %v838 = vpop.f32.mrb[0].mxu0
      %v839 = vadd.f32 0.0, %v838
      %v840 = vpop.f32.mrb[0].mxu0
      %v841 = vadd.f32 0.0, %v840
      %842 = vmatprep.mubr.bf16.mxu0 0
      %843 = vmatmul.mubr.bf16.gmra.mrb[0].mxu0 %v505
      %v844 = vpop.f32.mrb[0].mxu0
      %v845 = vadd.f32 0.0, %v844
      %v846 = vpop.f32.mrb[0].mxu0
      %v847 = vadd.f32 0.0, %v846
      %v848 = vpop.f32.mrb[0].mxu0
      %v849 = vadd.f32 0.0, %v848
      %v850 = vpop.f32.mrb[0].mxu0
      %v851 = vadd.f32 0.0, %v850
      %852 = vmatprep.mubr.bf16.mxu0 0
      %853 = vmatmul.mubr.bf16.gmra.mrb[0].mxu0 %v508
      %v854 = vpop.f32.mrb[0].mxu0
      %v855 = vadd.f32 0.0, %v854
      %v856 = vpop.f32.mrb[0].mxu0
      %v857 = vadd.f32 0.0, %v856
      %v858 = vpop.f32.mrb[0].mxu0
      %v859 = vadd.f32 0.0, %v858
      %v860 = vpop.f32.mrb[0].mxu0
      %v861 = vadd.f32 0.0, %v860
      %862 = vdwg.mxu0
      %v863 = vpack.c.bf16 %v549, %v545
      %v864 = vpack.c.bf16 %v551, %v547
      %v865 = vpack.c.bf16 %v559, %v555
      %v866 = vpack.c.bf16 %v561, %v557
      %v867 = vpack.c.bf16 %v569, %v565
      %v868 = vpack.c.bf16 %v571, %v567
      %v869 = vpack.c.bf16 %v579, %v575
      %v870 = vpack.c.bf16 %v581, %v577
      %v871 = vpack.c.bf16 %v589, %v585
      %v872 = vpack.c.bf16 %v591, %v587
      %v873 = vpack.c.bf16 %v599, %v595
      %v874 = vpack.c.bf16 %v601, %v597
      %v875 = vpack.c.bf16 %v609, %v605
      %v876 = vpack.c.bf16 %v611, %v607
      %v877 = vpack.c.bf16 %v619, %v615
      %v878 = vpack.c.bf16 %v621, %v617
      %v879 = vpack.c.bf16 %v629, %v625
      %v880 = vpack.c.bf16 %v631, %v627
      %v881 = vpack.c.bf16 %v639, %v635
      %v882 = vpack.c.bf16 %v641, %v637
      %v883 = vpack.c.bf16 %v649, %v645
      %v884 = vpack.c.bf16 %v651, %v647
      %v885 = vpack.c.bf16 %v659, %v655
      %v886 = vpack.c.bf16 %v661, %v657
      %v887 = vpack.c.bf16 %v669, %v665
      %v888 = vpack.c.bf16 %v671, %v667
      %v889 = vpack.c.bf16 %v679, %v675
      %v890 = vpack.c.bf16 %v681, %v677
      %v891 = vpack.c.bf16 %v689, %v685
      %v892 = vpack.c.bf16 %v691, %v687
      %v893 = vpack.c.bf16 %v699, %v695
      %v894 = vpack.c.bf16 %v701, %v697
      %v895 = vpack.c.bf16 %v709, %v705
      %v896 = vpack.c.bf16 %v711, %v707
      %v897 = vpack.c.bf16 %v719, %v715
      %v898 = vpack.c.bf16 %v721, %v717
      %v899 = vpack.c.bf16 %v729, %v725
      %v900 = vpack.c.bf16 %v731, %v727
      %v901 = vpack.c.bf16 %v739, %v735
      %v902 = vpack.c.bf16 %v741, %v737
      %v903 = vpack.c.bf16 %v749, %v745
      %v904 = vpack.c.bf16 %v751, %v747
      %v905 = vpack.c.bf16 %v759, %v755
      %v906 = vpack.c.bf16 %v761, %v757
      %v907 = vpack.c.bf16 %v769, %v765
      %v908 = vpack.c.bf16 %v771, %v767
      %v909 = vpack.c.bf16 %v779, %v775
      %v910 = vpack.c.bf16 %v781, %v777
      %v911 = vpack.c.bf16 %v789, %v785
      %v912 = vpack.c.bf16 %v791, %v787
      %v913 = vpack.c.bf16 %v799, %v795
      %v914 = vpack.c.bf16 %v801, %v797
      %v915 = vpack.c.bf16 %v809, %v805
      %v916 = vpack.c.bf16 %v811, %v807
      %v917 = vpack.c.bf16 %v819, %v815
      %v918 = vpack.c.bf16 %v821, %v817
      %v919 = vpack.c.bf16 %v829, %v825
      %v920 = vpack.c.bf16 %v831, %v827
      %v921 = vpack.c.bf16 %v839, %v835
      %v922 = vpack.c.bf16 %v841, %v837
      %v923 = vpack.c.bf16 %v849, %v845
      %v924 = vpack.c.bf16 %v851, %v847
      %v925 = vpack.c.bf16 %v859, %v855
      %v926 = vpack.c.bf16 %v861, %v857
      %v927 = vld [vmem:[%s3] sm:$0xff]
      %v928 = vld [vmem:[%s3 + $0x8] sm:$0xff]
      %v929 = vld [vmem:[%s3 + $0x10] sm:$0xff]
      %v930 = vld [vmem:[%s3 + $0x18] sm:$0xff]
      %v931 = vld [vmem:[%s3 + $0x20] sm:$0xff]
      %v932 = vld [vmem:[%s3 + $0x28] sm:$0xff]
      %v933 = vld [vmem:[%s3 + $0x30] sm:$0xff]
      %v934 = vld [vmem:[%s3 + $0x38] sm:$0xff]
      %v935 = vld [vmem:[%s3 + $0x40] sm:$0xff]
      %v936 = vld [vmem:[%s3 + $0x48] sm:$0xff]
      %v937 = vld [vmem:[%s3 + $0x50] sm:$0xff]
      %v938 = vld [vmem:[%s3 + $0x58] sm:$0xff]
      %v939 = vld [vmem:[%s3 + $0x60] sm:$0xff]
      %v940 = vld [vmem:[%s3 + $0x68] sm:$0xff]
      %v941 = vld [vmem:[%s3 + $0x70] sm:$0xff]
      %v942 = vld [vmem:[%s3 + $0x78] sm:$0xff]
      %v943 = vld [vmem:[%s3 + $0x80] sm:$0xff]
      %v944 = vld [vmem:[%s3 + $0x88] sm:$0xff]
      %v945 = vld [vmem:[%s3 + $0x90] sm:$0xff]
      %v946 = vld [vmem:[%s3 + $0x98] sm:$0xff]
      %v947 = vld [vmem:[%s3 + $0xa0] sm:$0xff]
      %v948 = vld [vmem:[%s3 + $0xa8] sm:$0xff]
      %v949 = vld [vmem:[%s3 + $0xb0] sm:$0xff]
      %v950 = vld [vmem:[%s3 + $0xb8] sm:$0xff]
      %v951 = vld [vmem:[%s3 + $0xc0] sm:$0xff]
      %v952 = vld [vmem:[%s3 + $0xc8] sm:$0xff]
      %v953 = vld [vmem:[%s3 + $0xd0] sm:$0xff]
      %v954 = vld [vmem:[%s3 + $0xd8] sm:$0xff]
      %v955 = vld [vmem:[%s3 + $0xe0] sm:$0xff]
      %v956 = vld [vmem:[%s3 + $0xe8] sm:$0xff]
      %v957 = vld [vmem:[%s3 + $0xf0] sm:$0xff]
      %v958 = vld [vmem:[%s3 + $0xf8] sm:$0xff]
      %v991 = vunpack.c.l.b16 %v927
      %v992 = vunpack.c.h.b16 %v927
      %v993 = vunpack.c.l.b16 %v928
      %v994 = vunpack.c.h.b16 %v928
      %v995 = vunpack.c.l.b16 %v929
      %v996 = vunpack.c.h.b16 %v929
      %v997 = vunpack.c.l.b16 %v930
      %v998 = vunpack.c.h.b16 %v930
      %v999 = vunpack.c.l.b16 %v931
      %v1000 = vunpack.c.h.b16 %v931
      %v1001 = vunpack.c.l.b16 %v932
      %v1002 = vunpack.c.h.b16 %v932
      %v1003 = vunpack.c.l.b16 %v933
      %v1004 = vunpack.c.h.b16 %v933
      %v1005 = vunpack.c.l.b16 %v934
      %v1006 = vunpack.c.h.b16 %v934
      %v1007 = vunpack.c.l.b16 %v935
      %v1008 = vunpack.c.h.b16 %v935
      %v1009 = vunpack.c.l.b16 %v936
      %v1010 = vunpack.c.h.b16 %v936
      %v1011 = vunpack.c.l.b16 %v937
      %v1012 = vunpack.c.h.b16 %v937
      %v1013 = vunpack.c.l.b16 %v938
      %v1014 = vunpack.c.h.b16 %v938
      %v1015 = vunpack.c.l.b16 %v939
      %v1016 = vunpack.c.h.b16 %v939
      %v1017 = vunpack.c.l.b16 %v940
      %v1018 = vunpack.c.h.b16 %v940
      %v1019 = vunpack.c.l.b16 %v941
      %v1020 = vunpack.c.h.b16 %v941
      %v1021 = vunpack.c.l.b16 %v942
      %v1022 = vunpack.c.h.b16 %v942
      %v1023 = vunpack.c.l.b16 %v943
      %v1024 = vunpack.c.h.b16 %v943
      %v1025 = vunpack.c.l.b16 %v944
      %v1026 = vunpack.c.h.b16 %v944
      %v1027 = vunpack.c.l.b16 %v945
      %v1028 = vunpack.c.h.b16 %v945
      %v1029 = vunpack.c.l.b16 %v946
      %v1030 = vunpack.c.h.b16 %v946
      %v1031 = vunpack.c.l.b16 %v947
      %v1032 = vunpack.c.h.b16 %v947
      %v1033 = vunpack.c.l.b16 %v948
      %v1034 = vunpack.c.h.b16 %v948
      %v1035 = vunpack.c.l.b16 %v949
      %v1036 = vunpack.c.h.b16 %v949
      %v1037 = vunpack.c.l.b16 %v950
      %v1038 = vunpack.c.h.b16 %v950
      %v1039 = vunpack.c.l.b16 %v951
      %v1040 = vunpack.c.h.b16 %v951
      %v1041 = vunpack.c.l.b16 %v952
      %v1042 = vunpack.c.h.b16 %v952
      %v1043 = vunpack.c.l.b16 %v953
      %v1044 = vunpack.c.h.b16 %v953
      %v1045 = vunpack.c.l.b16 %v954
      %v1046 = vunpack.c.h.b16 %v954
      %v1047 = vunpack.c.l.b16 %v955
      %v1048 = vunpack.c.h.b16 %v955
      %v1049 = vunpack.c.l.b16 %v956
      %v1050 = vunpack.c.h.b16 %v956
      %v1051 = vunpack.c.l.b16 %v957
      %v1052 = vunpack.c.h.b16 %v957
      %v1053 = vunpack.c.l.b16 %v958
      %v1054 = vunpack.c.h.b16 %v958
      %v1055 = vpack.c.b16 %v999, %v991
      %v1056 = vpack.c.b16 %v1000, %v992
      %v1057 = vpack.c.b16 %v1001, %v993
      %v1058 = vpack.c.b16 %v1002, %v994
      %v1059 = vpack.c.b16 %v1003, %v995
      %v1060 = vpack.c.b16 %v1004, %v996
      %v1061 = vpack.c.b16 %v1005, %v997
      %v1062 = vpack.c.b16 %v1006, %v998
      %v1063 = vpack.c.b16 %v1015, %v1007
      %v1064 = vpack.c.b16 %v1016, %v1008
      %v1065 = vpack.c.b16 %v1017, %v1009
      %v1066 = vpack.c.b16 %v1018, %v1010
      %v1067 = vpack.c.b16 %v1019, %v1011
      %v1068 = vpack.c.b16 %v1020, %v1012
      %v1069 = vpack.c.b16 %v1021, %v1013
      %v1070 = vpack.c.b16 %v1022, %v1014
      %v1071 = vpack.c.b16 %v1031, %v1023
      %v1072 = vpack.c.b16 %v1032, %v1024
      %v1073 = vpack.c.b16 %v1033, %v1025
      %v1074 = vpack.c.b16 %v1034, %v1026
      %v1075 = vpack.c.b16 %v1035, %v1027
      %v1076 = vpack.c.b16 %v1036, %v1028
      %v1077 = vpack.c.b16 %v1037, %v1029
      %v1078 = vpack.c.b16 %v1038, %v1030
      %v1079 = vpack.c.b16 %v1047, %v1039
      %v1080 = vpack.c.b16 %v1048, %v1040
      %v1081 = vpack.c.b16 %v1049, %v1041
      %v1082 = vpack.c.b16 %v1050, %v1042
      %v1083 = vpack.c.b16 %v1051, %v1043
      %v1084 = vpack.c.b16 %v1052, %v1044
      %v1085 = vpack.c.b16 %v1053, %v1045
      %v1086 = vpack.c.b16 %v1054, %v1046
      %1119 = vxpose.xlu0.c.b16.start [1/8] %v1055, 128
      %1120 = vxpose.xlu0.c.b16.cont [2/8] %v1063, 128
      %1121 = vxpose.xlu0.c.b16.cont [3/8] %v1071, 128
      %1122 = vxpose.xlu0.c.b16.cont [4/8] %v1079, 128
      %1123 = vxpose.xlu0.c.b16.cont [5/8] 0, 128
      %1124 = vxpose.xlu0.c.b16.cont [6/8] 0, 128
      %1125 = vxpose.xlu0.c.b16.cont [7/8] 0, 128
      %1126 = vxpose.xlu0.c.b16.end [8/8] 0, 128
      %v1127 = vpop.trf.xlu0
      %v1128 = vpop.trf.xlu0
      %v1129 = vpop.trf.xlu0
      %v1130 = vpop.trf.xlu0
      %v1131 = vpop.trf.xlu0
      %v1132 = vpop.trf.xlu0
      %v1133 = vpop.trf.xlu0
      %v1134 = vpop.trf.xlu0
      %1135 = vxpose.xlu0.c.b16.start [1/8] %v1056, 128
      %1136 = vxpose.xlu0.c.b16.cont [2/8] %v1064, 128
      %1137 = vxpose.xlu0.c.b16.cont [3/8] %v1072, 128
      %1138 = vxpose.xlu0.c.b16.cont [4/8] %v1080, 128
      %1139 = vxpose.xlu0.c.b16.cont [5/8] 0, 128
      %1140 = vxpose.xlu0.c.b16.cont [6/8] 0, 128
      %1141 = vxpose.xlu0.c.b16.cont [7/8] 0, 128
      %1142 = vxpose.xlu0.c.b16.end [8/8] 0, 128
      %v1143 = vpop.trf.xlu0
      %v1144 = vpop.trf.xlu0
      %v1145 = vpop.trf.xlu0
      %v1146 = vpop.trf.xlu0
      %v1147 = vpop.trf.xlu0
      %v1148 = vpop.trf.xlu0
      %v1149 = vpop.trf.xlu0
      %v1150 = vpop.trf.xlu0
      %1151 = vxpose.xlu0.c.b16.start [1/8] %v1057, 128
      %1152 = vxpose.xlu0.c.b16.cont [2/8] %v1065, 128
      %1153 = vxpose.xlu0.c.b16.cont [3/8] %v1073, 128
      %1154 = vxpose.xlu0.c.b16.cont [4/8] %v1081, 128
      %1155 = vxpose.xlu0.c.b16.cont [5/8] 0, 128
      %1156 = vxpose.xlu0.c.b16.cont [6/8] 0, 128
      %1157 = vxpose.xlu0.c.b16.cont [7/8] 0, 128
      %1158 = vxpose.xlu0.c.b16.end [8/8] 0, 128
      %v1159 = vpop.trf.xlu0
      %v1160 = vpop.trf.xlu0
      %v1161 = vpop.trf.xlu0
      %v1162 = vpop.trf.xlu0
      %v1163 = vpop.trf.xlu0
      %v1164 = vpop.trf.xlu0
      %v1165 = vpop.trf.xlu0
      %v1166 = vpop.trf.xlu0
      %1167 = vxpose.xlu0.c.b16.start [1/8] %v1058, 128
      %1168 = vxpose.xlu0.c.b16.cont [2/8] %v1066, 128
      %1169 = vxpose.xlu0.c.b16.cont [3/8] %v1074, 128
      %1170 = vxpose.xlu0.c.b16.cont [4/8] %v1082, 128
      %1171 = vxpose.xlu0.c.b16.cont [5/8] 0, 128
      %1172 = vxpose.xlu0.c.b16.cont [6/8] 0, 128
      %1173 = vxpose.xlu0.c.b16.cont [7/8] 0, 128
      %1174 = vxpose.xlu0.c.b16.end [8/8] 0, 128
      %v1175 = vpop.trf.xlu0
      %v1176 = vpop.trf.xlu0
      %v1177 = vpop.trf.xlu0
      %v1178 = vpop.trf.xlu0
      %v1179 = vpop.trf.xlu0
      %v1180 = vpop.trf.xlu0
      %v1181 = vpop.trf.xlu0
      %v1182 = vpop.trf.xlu0
      %1183 = vxpose.xlu0.c.b16.start [1/8] %v1059, 128
      %1184 = vxpose.xlu0.c.b16.cont [2/8] %v1067, 128
      %1185 = vxpose.xlu0.c.b16.cont [3/8] %v1075, 128
      %1186 = vxpose.xlu0.c.b16.cont [4/8] %v1083, 128
      %1187 = vxpose.xlu0.c.b16.cont [5/8] 0, 128
      %1188 = vxpose.xlu0.c.b16.cont [6/8] 0, 128
      %1189 = vxpose.xlu0.c.b16.cont [7/8] 0, 128
      %1190 = vxpose.xlu0.c.b16.end [8/8] 0, 128
      %v1191 = vpop.trf.xlu0
      %v1192 = vpop.trf.xlu0
      %v1193 = vpop.trf.xlu0
      %v1194 = vpop.trf.xlu0
      %v1195 = vpop.trf.xlu0
      %v1196 = vpop.trf.xlu0
      %v1197 = vpop.trf.xlu0
      %v1198 = vpop.trf.xlu0
      %1199 = vxpose.xlu0.c.b16.start [1/8] %v1060, 128
      %1200 = vxpose.xlu0.c.b16.cont [2/8] %v1068, 128
      %1201 = vxpose.xlu0.c.b16.cont [3/8] %v1076, 128
      %1202 = vxpose.xlu0.c.b16.cont [4/8] %v1084, 128
      %1203 = vxpose.xlu0.c.b16.cont [5/8] 0, 128
      %1204 = vxpose.xlu0.c.b16.cont [6/8] 0, 128
      %1205 = vxpose.xlu0.c.b16.cont [7/8] 0, 128
      %1206 = vxpose.xlu0.c.b16.end [8/8] 0, 128
      %v1207 = vpop.trf.xlu0
      %v1208 = vpop.trf.xlu0
      %v1209 = vpop.trf.xlu0
      %v1210 = vpop.trf.xlu0
      %v1211 = vpop.trf.xlu0
      %v1212 = vpop.trf.xlu0
      %v1213 = vpop.trf.xlu0
      %v1214 = vpop.trf.xlu0
      %1215 = vxpose.xlu0.c.b16.start [1/8] %v1061, 128
      %1216 = vxpose.xlu0.c.b16.cont [2/8] %v1069, 128
      %1217 = vxpose.xlu0.c.b16.cont [3/8] %v1077, 128
      %1218 = vxpose.xlu0.c.b16.cont [4/8] %v1085, 128
      %1219 = vxpose.xlu0.c.b16.cont [5/8] 0, 128
      %1220 = vxpose.xlu0.c.b16.cont [6/8] 0, 128
      %1221 = vxpose.xlu0.c.b16.cont [7/8] 0, 128
      %1222 = vxpose.xlu0.c.b16.end [8/8] 0, 128
      %v1223 = vpop.trf.xlu0
      %v1224 = vpop.trf.xlu0
      %v1225 = vpop.trf.xlu0
      %v1226 = vpop.trf.xlu0
      %v1227 = vpop.trf.xlu0
      %v1228 = vpop.trf.xlu0
      %v1229 = vpop.trf.xlu0
      %v1230 = vpop.trf.xlu0
      %1231 = vxpose.xlu0.c.b16.start [1/8] %v1062, 128
      %1232 = vxpose.xlu0.c.b16.cont [2/8] %v1070, 128
      %1233 = vxpose.xlu0.c.b16.cont [3/8] %v1078, 128
      %1234 = vxpose.xlu0.c.b16.cont [4/8] %v1086, 128
      %1235 = vxpose.xlu0.c.b16.cont [5/8] 0, 128
      %1236 = vxpose.xlu0.c.b16.cont [6/8] 0, 128
      %1237 = vxpose.xlu0.c.b16.cont [7/8] 0, 128
      %1238 = vxpose.xlu0.c.b16.end [8/8] 0, 128
      %v1239 = vpop.trf.xlu0
      %v1240 = vpop.trf.xlu0
      %v1241 = vpop.trf.xlu0
      %v1242 = vpop.trf.xlu0
      %v1243 = vpop.trf.xlu0
      %v1244 = vpop.trf.xlu0
      %v1245 = vpop.trf.xlu0
      %v1246 = vpop.trf.xlu0
      %v1263 = vunpack.c.l.b16 %v285
      %v1264 = vunpack.c.l.b16 %v286
      %v1265 = vunpack.c.l.b16 %v287
      %v1266 = vunpack.c.l.b16 %v288
      %v1267 = vunpack.c.l.b16 %v289
      %v1268 = vunpack.c.l.b16 %v290
      %v1269 = vunpack.c.l.b16 %v291
      %v1270 = vunpack.c.l.b16 %v292
      %v1271 = vunpack.c.l.b16 %v293
      %v1272 = vunpack.c.l.b16 %v294
      %v1273 = vunpack.c.l.b16 %v295
      %v1274 = vunpack.c.l.b16 %v296
      %v1275 = vunpack.c.l.b16 %v297
      %v1276 = vunpack.c.l.b16 %v298
      %v1277 = vunpack.c.l.b16 %v299
      %v1278 = vunpack.c.l.b16 %v300
      %v1279 = vpack.c.b16 %v1264, %v1263
      %v1280 = vpack.c.b16 %v1266, %v1265
      %v1281 = vpack.c.b16 %v1268, %v1267
      %v1282 = vpack.c.b16 %v1270, %v1269
      %v1283 = vpack.c.b16 %v1272, %v1271
      %v1284 = vpack.c.b16 %v1274, %v1273
      %v1285 = vpack.c.b16 %v1276, %v1275
      %v1286 = vpack.c.b16 %v1278, %v1277
      %vm1287 = vcmask 523264
      %v1289 = vsel %vm1287, %v1127, 0
      %v1292 = vsel %vm1287, %v1128, 0
      %v1295 = vsel %vm1287, %v1129, 0
      %v1298 = vsel %vm1287, %v1130, 0
      %v1301 = vsel %vm1287, %v1131, 0
      %v1304 = vsel %vm1287, %v1132, 0
      %v1307 = vsel %vm1287, %v1133, 0
      %v1310 = vsel %vm1287, %v1134, 0
      %v1313 = vsel %vm1287, %v1143, 0
      %v1316 = vsel %vm1287, %v1144, 0
      %v1319 = vsel %vm1287, %v1145, 0
      %v1322 = vsel %vm1287, %v1146, 0
      %v1325 = vsel %vm1287, %v1147, 0
      %v1328 = vsel %vm1287, %v1148, 0
      %v1331 = vsel %vm1287, %v1149, 0
      %v1334 = vsel %vm1287, %v1150, 0
      %v1337 = vsel %vm1287, %v1159, 0
      %v1340 = vsel %vm1287, %v1160, 0
      %v1343 = vsel %vm1287, %v1161, 0
      %v1346 = vsel %vm1287, %v1162, 0
      %v1349 = vsel %vm1287, %v1163, 0
      %v1352 = vsel %vm1287, %v1164, 0
      %v1355 = vsel %vm1287, %v1165, 0
      %v1358 = vsel %vm1287, %v1166, 0
      %v1361 = vsel %vm1287, %v1175, 0
      %v1364 = vsel %vm1287, %v1176, 0
      %v1367 = vsel %vm1287, %v1177, 0
      %v1370 = vsel %vm1287, %v1178, 0
      %v1373 = vsel %vm1287, %v1179, 0
      %v1376 = vsel %vm1287, %v1180, 0
      %v1379 = vsel %vm1287, %v1181, 0
      %v1382 = vsel %vm1287, %v1182, 0
      %v1385 = vsel %vm1287, %v1191, 0
      %v1388 = vsel %vm1287, %v1192, 0
      %v1391 = vsel %vm1287, %v1193, 0
      %v1394 = vsel %vm1287, %v1194, 0
      %v1397 = vsel %vm1287, %v1195, 0
      %v1400 = vsel %vm1287, %v1196, 0
      %v1403 = vsel %vm1287, %v1197, 0
      %v1406 = vsel %vm1287, %v1198, 0
      %v1409 = vsel %vm1287, %v1207, 0
      %v1412 = vsel %vm1287, %v1208, 0
      %v1415 = vsel %vm1287, %v1209, 0
      %v1418 = vsel %vm1287, %v1210, 0
      %v1421 = vsel %vm1287, %v1211, 0
      %v1424 = vsel %vm1287, %v1212, 0
      %v1427 = vsel %vm1287, %v1213, 0
      %v1430 = vsel %vm1287, %v1214, 0
      %v1433 = vsel %vm1287, %v1223, 0
      %v1436 = vsel %vm1287, %v1224, 0
      %v1439 = vsel %vm1287, %v1225, 0
      %v1442 = vsel %vm1287, %v1226, 0
      %v1445 = vsel %vm1287, %v1227, 0
      %v1448 = vsel %vm1287, %v1228, 0
      %v1451 = vsel %vm1287, %v1229, 0
      %v1454 = vsel %vm1287, %v1230, 0
      %v1457 = vsel %vm1287, %v1239, 0
      %v1460 = vsel %vm1287, %v1240, 0
      %v1463 = vsel %vm1287, %v1241, 0
      %v1466 = vsel %vm1287, %v1242, 0
      %v1469 = vsel %vm1287, %v1243, 0
      %v1472 = vsel %vm1287, %v1244, 0
      %v1475 = vsel %vm1287, %v1245, 0
      %v1478 = vsel %vm1287, %v1246, 0
      %v1481 = vsel %vm1287, %v1279, 0
      %v1484 = vsel %vm1287, %v1280, 0
      %v1487 = vsel %vm1287, %v1281, 0
      %v1490 = vsel %vm1287, %v1282, 0
      %v1493 = vsel %vm1287, %v1283, 0
      %v1496 = vsel %vm1287, %v1284, 0
      %v1499 = vsel %vm1287, %v1285, 0
      %v1502 = vsel %vm1287, %v1286, 0
      %1504 = vmatprep.subr.bf16.mxu0 0
      %1505 = vmatpush1.bf16.xpose.msra.mxu0 %v1481
      %1506 = vmatprep.subr.bf16.mxu0 0
      %1507 = vmatpush1.bf16.xpose.msra.mxu0 %v1484
      %1508 = vmatprep.subr.bf16.mxu0 0
      %1509 = vmatpush1.bf16.xpose.msra.mxu0 %v1487
      %1510 = vmatprep.subr.bf16.mxu0 0
      %1511 = vmatpush1.bf16.xpose.msra.mxu0 %v1490
      %1512 = vmatprep.subr.bf16.mxu0 0
      %1513 = vmatpush1.bf16.xpose.msra.mxu0 %v1493
      %1514 = vmatprep.subr.bf16.mxu0 0
      %1515 = vmatpush1.bf16.xpose.msra.mxu0 %v1496
      %1516 = vmatprep.subr.bf16.mxu0 0
      %1517 = vmatpush1.bf16.xpose.msra.mxu0 %v1499
      %1518 = vmatprep.subr.bf16.mxu0 0
      %1519 = vmatpush1.bf16.xpose.msra.mxu0 %v1502
      %1520 = vmatprep.subr.bf16.mxu0 0
      %1521 = vmatpush1.bf16.xpose.msra.mxu0 0
      %1522 = vmatprep.subr.bf16.mxu0 0
      %1523 = vmatpush1.bf16.xpose.msra.mxu0 0
      %1524 = vmatprep.subr.bf16.mxu0 0
      %1525 = vmatpush1.bf16.xpose.msra.mxu0 0
      %1526 = vmatprep.subr.bf16.mxu0 0
      %1527 = vmatpush1.bf16.xpose.msra.mxu0 0
      %1528 = vmatprep.subr.bf16.mxu0 0
      %1529 = vmatpush1.bf16.xpose.msra.mxu0 0
      %1530 = vmatprep.subr.bf16.mxu0 0
      %1531 = vmatpush1.bf16.xpose.msra.mxu0 0
      %1532 = vmatprep.subr.bf16.mxu0 0
      %1533 = vmatpush1.bf16.xpose.msra.mxu0 0
      %1534 = vmatprep.subr.bf16.mxu0 0
      %1535 = vmatpush1.bf16.xpose.msra.mxu0 0
      %1536 = vmatprep.mubr.bf16.mxu0 0
      %1537 = vmatmul.mubr.bf16.gmra.mrb[0].mxu0 %v1289
      %v1538 = vpop.f32.mrb[0].mxu0
      %v1539 = vadd.f32 0.0, %v1538
      %v1540 = vpop.f32.mrb[0].mxu0
      %v1541 = vpop.f32.mrb[0].mxu0
      %v1542 = vadd.f32 0.0, %v1541
      %v1543 = vpop.f32.mrb[0].mxu0
      %1544 = vmatprep.mubr.bf16.mxu0 0
      %1545 = vmatmul.mubr.bf16.gmra.mrb[0].mxu0 %v1292
      %v1546 = vpop.f32.mrb[0].mxu0
      %v1547 = vadd.f32 0.0, %v1546
      %v1548 = vpop.f32.mrb[0].mxu0
      %v1549 = vpop.f32.mrb[0].mxu0
      %v1550 = vadd.f32 0.0, %v1549
      %v1551 = vpop.f32.mrb[0].mxu0
      %1552 = vmatprep.mubr.bf16.mxu0 0
      %1553 = vmatmul.mubr.bf16.gmra.mrb[0].mxu0 %v1295
      %v1554 = vpop.f32.mrb[0].mxu0
      %v1555 = vadd.f32 0.0, %v1554
      %v1556 = vpop.f32.mrb[0].mxu0
      %v1557 = vpop.f32.mrb[0].mxu0
      %v1558 = vadd.f32 0.0, %v1557
      %v1559 = vpop.f32.mrb[0].mxu0
      %1560 = vmatprep.mubr.bf16.mxu0 0
      %1561 = vmatmul.mubr.bf16.gmra.mrb[0].mxu0 %v1298
      %v1562 = vpop.f32.mrb[0].mxu0
      %v1563 = vadd.f32 0.0, %v1562
      %v1564 = vpop.f32.mrb[0].mxu0
      %v1565 = vpop.f32.mrb[0].mxu0
      %v1566 = vadd.f32 0.0, %v1565
      %v1567 = vpop.f32.mrb[0].mxu0
      %1568 = vmatprep.mubr.bf16.mxu0 0
      %1569 = vmatmul.mubr.bf16.gmra.mrb[0].mxu0 %v1301
      %v1570 = vpop.f32.mrb[0].mxu0
      %v1571 = vadd.f32 0.0, %v1570
      %v1572 = vpop.f32.mrb[0].mxu0
      %v1573 = vpop.f32.mrb[0].mxu0
      %v1574 = vadd.f32 0.0, %v1573
      %v1575 = vpop.f32.mrb[0].mxu0
      %1576 = vmatprep.mubr.bf16.mxu0 0
      %1577 = vmatmul.mubr.bf16.gmra.mrb[0].mxu0 %v1304
      %v1578 = vpop.f32.mrb[0].mxu0
      %v1579 = vadd.f32 0.0, %v1578
      %v1580 = vpop.f32.mrb[0].mxu0
      %v1581 = vpop.f32.mrb[0].mxu0
      %v1582 = vadd.f32 0.0, %v1581
      %v1583 = vpop.f32.mrb[0].mxu0
      %1584 = vmatprep.mubr.bf16.mxu0 0
      %1585 = vmatmul.mubr.bf16.gmra.mrb[0].mxu0 %v1307
      %v1586 = vpop.f32.mrb[0].mxu0
      %v1587 = vadd.f32 0.0, %v1586
      %v1588 = vpop.f32.mrb[0].mxu0
      %v1589 = vpop.f32.mrb[0].mxu0
      %v1590 = vadd.f32 0.0, %v1589
      %v1591 = vpop.f32.mrb[0].mxu0
      %1592 = vmatprep.mubr.bf16.mxu0 0
      %1593 = vmatmul.mubr.bf16.gmra.mrb[0].mxu0 %v1310
      %v1594 = vpop.f32.mrb[0].mxu0
      %v1595 = vadd.f32 0.0, %v1594
      %v1596 = vpop.f32.mrb[0].mxu0
      %v1597 = vpop.f32.mrb[0].mxu0
      %v1598 = vadd.f32 0.0, %v1597
      %v1599 = vpop.f32.mrb[0].mxu0
      %1600 = vmatprep.mubr.bf16.mxu0 0
      %1601 = vmatmul.mubr.bf16.gmra.mrb[0].mxu0 %v1313
      %v1602 = vpop.f32.mrb[0].mxu0
      %v1603 = vadd.f32 0.0, %v1602
      %v1604 = vpop.f32.mrb[0].mxu0
      %v1605 = vpop.f32.mrb[0].mxu0
      %v1606 = vadd.f32 0.0, %v1605
      %v1607 = vpop.f32.mrb[0].mxu0
      %1608 = vmatprep.mubr.bf16.mxu0 0
      %1609 = vmatmul.mubr.bf16.gmra.mrb[0].mxu0 %v1316
      %v1610 = vpop.f32.mrb[0].mxu0
      %v1611 = vadd.f32 0.0, %v1610
      %v1612 = vpop.f32.mrb[0].mxu0
      %v1613 = vpop.f32.mrb[0].mxu0
      %v1614 = vadd.f32 0.0, %v1613
      %v1615 = vpop.f32.mrb[0].mxu0
      %1616 = vmatprep.mubr.bf16.mxu0 0
      %1617 = vmatmul.mubr.bf16.gmra.mrb[0].mxu0 %v1319
      %v1618 = vpop.f32.mrb[0].mxu0
      %v1619 = vadd.f32 0.0, %v1618
      %v1620 = vpop.f32.mrb[0].mxu0
      %v1621 = vpop.f32.mrb[0].mxu0
      %v1622 = vadd.f32 0.0, %v1621
      %v1623 = vpop.f32.mrb[0].mxu0
      %1624 = vmatprep.mubr.bf16.mxu0 0
      %1625 = vmatmul.mubr.bf16.gmra.mrb[0].mxu0 %v1322
      %v1626 = vpop.f32.mrb[0].mxu0
      %v1627 = vadd.f32 0.0, %v1626
      %v1628 = vpop.f32.mrb[0].mxu0
      %v1629 = vpop.f32.mrb[0].mxu0
      %v1630 = vadd.f32 0.0, %v1629
      %v1631 = vpop.f32.mrb[0].mxu0
      %1632 = vmatprep.mubr.bf16.mxu0 0
      %1633 = vmatmul.mubr.bf16.gmra.mrb[0].mxu0 %v1325
      %v1634 = vpop.f32.mrb[0].mxu0
      %v1635 = vadd.f32 0.0, %v1634
      %v1636 = vpop.f32.mrb[0].mxu0
      %v1637 = vpop.f32.mrb[0].mxu0
      %v1638 = vadd.f32 0.0, %v1637
      %v1639 = vpop.f32.mrb[0].mxu0
      %1640 = vmatprep.mubr.bf16.mxu0 0
      %1641 = vmatmul.mubr.bf16.gmra.mrb[0].mxu0 %v1328
      %v1642 = vpop.f32.mrb[0].mxu0
      %v1643 = vadd.f32 0.0, %v1642
      %v1644 = vpop.f32.mrb[0].mxu0
      %v1645 = vpop.f32.mrb[0].mxu0
      %v1646 = vadd.f32 0.0, %v1645
      %v1647 = vpop.f32.mrb[0].mxu0
      %1648 = vmatprep.mubr.bf16.mxu0 0
      %1649 = vmatmul.mubr.bf16.gmra.mrb[0].mxu0 %v1331
      %v1650 = vpop.f32.mrb[0].mxu0
      %v1651 = vadd.f32 0.0, %v1650
      %v1652 = vpop.f32.mrb[0].mxu0
      %v1653 = vpop.f32.mrb[0].mxu0
      %v1654 = vadd.f32 0.0, %v1653
      %v1655 = vpop.f32.mrb[0].mxu0
      %1656 = vmatprep.mubr.bf16.mxu0 0
      %1657 = vmatmul.mubr.bf16.gmra.mrb[0].mxu0 %v1334
      %v1658 = vpop.f32.mrb[0].mxu0
      %v1659 = vadd.f32 0.0, %v1658
      %v1660 = vpop.f32.mrb[0].mxu0
      %v1661 = vpop.f32.mrb[0].mxu0
      %v1662 = vadd.f32 0.0, %v1661
      %v1663 = vpop.f32.mrb[0].mxu0
      %1664 = vmatprep.mubr.bf16.mxu0 0
      %1665 = vmatmul.mubr.bf16.gmra.mrb[0].mxu0 %v1337
      %v1666 = vpop.f32.mrb[0].mxu0
      %v1667 = vadd.f32 0.0, %v1666
      %v1668 = vpop.f32.mrb[0].mxu0
      %v1669 = vpop.f32.mrb[0].mxu0
      %v1670 = vadd.f32 0.0, %v1669
      %v1671 = vpop.f32.mrb[0].mxu0
      %1672 = vmatprep.mubr.bf16.mxu0 0
      %1673 = vmatmul.mubr.bf16.gmra.mrb[0].mxu0 %v1340
      %v1674 = vpop.f32.mrb[0].mxu0
      %v1675 = vadd.f32 0.0, %v1674
      %v1676 = vpop.f32.mrb[0].mxu0
      %v1677 = vpop.f32.mrb[0].mxu0
      %v1678 = vadd.f32 0.0, %v1677
      %v1679 = vpop.f32.mrb[0].mxu0
      %1680 = vmatprep.mubr.bf16.mxu0 0
      %1681 = vmatmul.mubr.bf16.gmra.mrb[0].mxu0 %v1343
      %v1682 = vpop.f32.mrb[0].mxu0
      %v1683 = vadd.f32 0.0, %v1682
      %v1684 = vpop.f32.mrb[0].mxu0
      %v1685 = vpop.f32.mrb[0].mxu0
      %v1686 = vadd.f32 0.0, %v1685
      %v1687 = vpop.f32.mrb[0].mxu0
      %1688 = vmatprep.mubr.bf16.mxu0 0
      %1689 = vmatmul.mubr.bf16.gmra.mrb[0].mxu0 %v1346
      %v1690 = vpop.f32.mrb[0].mxu0
      %v1691 = vadd.f32 0.0, %v1690
      %v1692 = vpop.f32.mrb[0].mxu0
      %v1693 = vpop.f32.mrb[0].mxu0
      %v1694 = vadd.f32 0.0, %v1693
      %v1695 = vpop.f32.mrb[0].mxu0
      %1696 = vmatprep.mubr.bf16.mxu0 0
      %1697 = vmatmul.mubr.bf16.gmra.mrb[0].mxu0 %v1349
      %v1698 = vpop.f32.mrb[0].mxu0
      %v1699 = vadd.f32 0.0, %v1698
      %v1700 = vpop.f32.mrb[0].mxu0
      %v1701 = vpop.f32.mrb[0].mxu0
      %v1702 = vadd.f32 0.0, %v1701
      %v1703 = vpop.f32.mrb[0].mxu0
      %1704 = vmatprep.mubr.bf16.mxu0 0
      %1705 = vmatmul.mubr.bf16.gmra.mrb[0].mxu0 %v1352
      %v1706 = vpop.f32.mrb[0].mxu0
      %v1707 = vadd.f32 0.0, %v1706
      %v1708 = vpop.f32.mrb[0].mxu0
      %v1709 = vpop.f32.mrb[0].mxu0
      %v1710 = vadd.f32 0.0, %v1709
      %v1711 = vpop.f32.mrb[0].mxu0
      %1712 = vmatprep.mubr.bf16.mxu0 0
      %1713 = vmatmul.mubr.bf16.gmra.mrb[0].mxu0 %v1355
      %v1714 = vpop.f32.mrb[0].mxu0
      %v1715 = vadd.f32 0.0, %v1714
      %v1716 = vpop.f32.mrb[0].mxu0
      %v1717 = vpop.f32.mrb[0].mxu0
      %v1718 = vadd.f32 0.0, %v1717
      %v1719 = vpop.f32.mrb[0].mxu0
      %1720 = vmatprep.mubr.bf16.mxu0 0
      %1721 = vmatmul.mubr.bf16.gmra.mrb[0].mxu0 %v1358
      %v1722 = vpop.f32.mrb[0].mxu0
      %v1723 = vadd.f32 0.0, %v1722
      %v1724 = vpop.f32.mrb[0].mxu0
      %v1725 = vpop.f32.mrb[0].mxu0
      %v1726 = vadd.f32 0.0, %v1725
      %v1727 = vpop.f32.mrb[0].mxu0
      %1728 = vmatprep.mubr.bf16.mxu0 0
      %1729 = vmatmul.mubr.bf16.gmra.mrb[0].mxu0 %v1361
      %v1730 = vpop.f32.mrb[0].mxu0
      %v1731 = vadd.f32 0.0, %v1730
      %v1732 = vpop.f32.mrb[0].mxu0
      %v1733 = vpop.f32.mrb[0].mxu0
      %v1734 = vadd.f32 0.0, %v1733
      %v1735 = vpop.f32.mrb[0].mxu0
      %1736 = vmatprep.mubr.bf16.mxu0 0
      %1737 = vmatmul.mubr.bf16.gmra.mrb[0].mxu0 %v1364
      %v1738 = vpop.f32.mrb[0].mxu0
      %v1739 = vadd.f32 0.0, %v1738
      %v1740 = vpop.f32.mrb[0].mxu0
      %v1741 = vpop.f32.mrb[0].mxu0
      %v1742 = vadd.f32 0.0, %v1741
      %v1743 = vpop.f32.mrb[0].mxu0
      %1744 = vmatprep.mubr.bf16.mxu0 0
      %1745 = vmatmul.mubr.bf16.gmra.mrb[0].mxu0 %v1367
      %v1746 = vpop.f32.mrb[0].mxu0
      %v1747 = vadd.f32 0.0, %v1746
      %v1748 = vpop.f32.mrb[0].mxu0
      %v1749 = vpop.f32.mrb[0].mxu0
      %v1750 = vadd.f32 0.0, %v1749
      %v1751 = vpop.f32.mrb[0].mxu0
      %1752 = vmatprep.mubr.bf16.mxu0 0
      %1753 = vmatmul.mubr.bf16.gmra.mrb[0].mxu0 %v1370
      %v1754 = vpop.f32.mrb[0].mxu0
      %v1755 = vadd.f32 0.0, %v1754
      %v1756 = vpop.f32.mrb[0].mxu0
      %v1757 = vpop.f32.mrb[0].mxu0
      %v1758 = vadd.f32 0.0, %v1757
      %v1759 = vpop.f32.mrb[0].mxu0
      %1760 = vmatprep.mubr.bf16.mxu0 0
      %1761 = vmatmul.mubr.bf16.gmra.mrb[0].mxu0 %v1373
      %v1762 = vpop.f32.mrb[0].mxu0
      %v1763 = vadd.f32 0.0, %v1762
      %v1764 = vpop.f32.mrb[0].mxu0
      %v1765 = vpop.f32.mrb[0].mxu0
      %v1766 = vadd.f32 0.0, %v1765
      %v1767 = vpop.f32.mrb[0].mxu0
      %1768 = vmatprep.mubr.bf16.mxu0 0
      %1769 = vmatmul.mubr.bf16.gmra.mrb[0].mxu0 %v1376
      %v1770 = vpop.f32.mrb[0].mxu0
      %v1771 = vadd.f32 0.0, %v1770
      %v1772 = vpop.f32.mrb[0].mxu0
      %v1773 = vpop.f32.mrb[0].mxu0
      %v1774 = vadd.f32 0.0, %v1773
      %v1775 = vpop.f32.mrb[0].mxu0
      %1776 = vmatprep.mubr.bf16.mxu0 0
      %1777 = vmatmul.mubr.bf16.gmra.mrb[0].mxu0 %v1379
      %v1778 = vpop.f32.mrb[0].mxu0
      %v1779 = vadd.f32 0.0, %v1778
      %v1780 = vpop.f32.mrb[0].mxu0
      %v1781 = vpop.f32.mrb[0].mxu0
      %v1782 = vadd.f32 0.0, %v1781
      %v1783 = vpop.f32.mrb[0].mxu0
      %1784 = vmatprep.mubr.bf16.mxu0 0
      %1785 = vmatmul.mubr.bf16.gmra.mrb[0].mxu0 %v1382
      %v1786 = vpop.f32.mrb[0].mxu0
      %v1787 = vadd.f32 0.0, %v1786
      %v1788 = vpop.f32.mrb[0].mxu0
      %v1789 = vpop.f32.mrb[0].mxu0
      %v1790 = vadd.f32 0.0, %v1789
      %v1791 = vpop.f32.mrb[0].mxu0
      %1792 = vmatprep.mubr.bf16.mxu0 0
      %1793 = vmatmul.mubr.bf16.gmra.mrb[0].mxu0 %v1385
      %v1794 = vpop.f32.mrb[0].mxu0
      %v1795 = vadd.f32 0.0, %v1794
      %v1796 = vpop.f32.mrb[0].mxu0
      %v1797 = vpop.f32.mrb[0].mxu0
      %v1798 = vadd.f32 0.0, %v1797
      %v1799 = vpop.f32.mrb[0].mxu0
      %1800 = vmatprep.mubr.bf16.mxu0 0
      %1801 = vmatmul.mubr.bf16.gmra.mrb[0].mxu0 %v1388
      %v1802 = vpop.f32.mrb[0].mxu0
      %v1803 = vadd.f32 0.0, %v1802
      %v1804 = vpop.f32.mrb[0].mxu0
      %v1805 = vpop.f32.mrb[0].mxu0
      %v1806 = vadd.f32 0.0, %v1805
      %v1807 = vpop.f32.mrb[0].mxu0
      %1808 = vmatprep.mubr.bf16.mxu0 0
      %1809 = vmatmul.mubr.bf16.gmra.mrb[0].mxu0 %v1391
      %v1810 = vpop.f32.mrb[0].mxu0
      %v1811 = vadd.f32 0.0, %v1810
      %v1812 = vpop.f32.mrb[0].mxu0
      %v1813 = vpop.f32.mrb[0].mxu0
      %v1814 = vadd.f32 0.0, %v1813
      %v1815 = vpop.f32.mrb[0].mxu0
      %1816 = vmatprep.mubr.bf16.mxu0 0
      %1817 = vmatmul.mubr.bf16.gmra.mrb[0].mxu0 %v1394
      %v1818 = vpop.f32.mrb[0].mxu0
      %v1819 = vadd.f32 0.0, %v1818
      %v1820 = vpop.f32.mrb[0].mxu0
      %v1821 = vpop.f32.mrb[0].mxu0
      %v1822 = vadd.f32 0.0, %v1821
      %v1823 = vpop.f32.mrb[0].mxu0
      %1824 = vmatprep.mubr.bf16.mxu0 0
      %1825 = vmatmul.mubr.bf16.gmra.mrb[0].mxu0 %v1397
      %v1826 = vpop.f32.mrb[0].mxu0
      %v1827 = vadd.f32 0.0, %v1826
      %v1828 = vpop.f32.mrb[0].mxu0
      %v1829 = vpop.f32.mrb[0].mxu0
      %v1830 = vadd.f32 0.0, %v1829
      %v1831 = vpop.f32.mrb[0].mxu0
      %1832 = vmatprep.mubr.bf16.mxu0 0
      %1833 = vmatmul.mubr.bf16.gmra.mrb[0].mxu0 %v1400
      %v1834 = vpop.f32.mrb[0].mxu0
      %v1835 = vadd.f32 0.0, %v1834
      %v1836 = vpop.f32.mrb[0].mxu0
      %v1837 = vpop.f32.mrb[0].mxu0
      %v1838 = vadd.f32 0.0, %v1837
      %v1839 = vpop.f32.mrb[0].mxu0
      %1840 = vmatprep.mubr.bf16.mxu0 0
      %1841 = vmatmul.mubr.bf16.gmra.mrb[0].mxu0 %v1403
      %v1842 = vpop.f32.mrb[0].mxu0
      %v1843 = vadd.f32 0.0, %v1842
      %v1844 = vpop.f32.mrb[0].mxu0
      %v1845 = vpop.f32.mrb[0].mxu0
      %v1846 = vadd.f32 0.0, %v1845
      %v1847 = vpop.f32.mrb[0].mxu0
      %1848 = vmatprep.mubr.bf16.mxu0 0
      %1849 = vmatmul.mubr.bf16.gmra.mrb[0].mxu0 %v1406
      %v1850 = vpop.f32.mrb[0].mxu0
      %v1851 = vadd.f32 0.0, %v1850
      %v1852 = vpop.f32.mrb[0].mxu0
      %v1853 = vpop.f32.mrb[0].mxu0
      %v1854 = vadd.f32 0.0, %v1853
      %v1855 = vpop.f32.mrb[0].mxu0
      %1856 = vmatprep.mubr.bf16.mxu0 0
      %1857 = vmatmul.mubr.bf16.gmra.mrb[0].mxu0 %v1409
      %v1858 = vpop.f32.mrb[0].mxu0
      %v1859 = vadd.f32 0.0, %v1858
      %v1860 = vpop.f32.mrb[0].mxu0
      %v1861 = vpop.f32.mrb[0].mxu0
      %v1862 = vadd.f32 0.0, %v1861
      %v1863 = vpop.f32.mrb[0].mxu0
      %1864 = vmatprep.mubr.bf16.mxu0 0
      %1865 = vmatmul.mubr.bf16.gmra.mrb[0].mxu0 %v1412
      %v1866 = vpop.f32.mrb[0].mxu0
      %v1867 = vadd.f32 0.0, %v1866
      %v1868 = vpop.f32.mrb[0].mxu0
      %v1869 = vpop.f32.mrb[0].mxu0
      %v1870 = vadd.f32 0.0, %v1869
      %v1871 = vpop.f32.mrb[0].mxu0
      %1872 = vmatprep.mubr.bf16.mxu0 0
      %1873 = vmatmul.mubr.bf16.gmra.mrb[0].mxu0 %v1415
      %v1874 = vpop.f32.mrb[0].mxu0
      %v1875 = vadd.f32 0.0, %v1874
      %v1876 = vpop.f32.mrb[0].mxu0
      %v1877 = vpop.f32.mrb[0].mxu0
      %v1878 = vadd.f32 0.0, %v1877
      %v1879 = vpop.f32.mrb[0].mxu0
      %1880 = vmatprep.mubr.bf16.mxu0 0
      %1881 = vmatmul.mubr.bf16.gmra.mrb[0].mxu0 %v1418
      %v1882 = vpop.f32.mrb[0].mxu0
      %v1883 = vadd.f32 0.0, %v1882
      %v1884 = vpop.f32.mrb[0].mxu0
      %v1885 = vpop.f32.mrb[0].mxu0
      %v1886 = vadd.f32 0.0, %v1885
      %v1887 = vpop.f32.mrb[0].mxu0
      %1888 = vmatprep.mubr.bf16.mxu0 0
      %1889 = vmatmul.mubr.bf16.gmra.mrb[0].mxu0 %v1421
      %v1890 = vpop.f32.mrb[0].mxu0
      %v1891 = vadd.f32 0.0, %v1890
      %v1892 = vpop.f32.mrb[0].mxu0
      %v1893 = vpop.f32.mrb[0].mxu0
      %v1894 = vadd.f32 0.0, %v1893
      %v1895 = vpop.f32.mrb[0].mxu0
      %1896 = vmatprep.mubr.bf16.mxu0 0
      %1897 = vmatmul.mubr.bf16.gmra.mrb[0].mxu0 %v1424
      %v1898 = vpop.f32.mrb[0].mxu0
      %v1899 = vadd.f32 0.0, %v1898
      %v1900 = vpop.f32.mrb[0].mxu0
      %v1901 = vpop.f32.mrb[0].mxu0
      %v1902 = vadd.f32 0.0, %v1901
      %v1903 = vpop.f32.mrb[0].mxu0
      %1904 = vmatprep.mubr.bf16.mxu0 0
      %1905 = vmatmul.mubr.bf16.gmra.mrb[0].mxu0 %v1427
      %v1906 = vpop.f32.mrb[0].mxu0
      %v1907 = vadd.f32 0.0, %v1906
      %v1908 = vpop.f32.mrb[0].mxu0
      %v1909 = vpop.f32.mrb[0].mxu0
      %v1910 = vadd.f32 0.0, %v1909
      %v1911 = vpop.f32.mrb[0].mxu0
      %1912 = vmatprep.mubr.bf16.mxu0 0
      %1913 = vmatmul.mubr.bf16.gmra.mrb[0].mxu0 %v1430
      %v1914 = vpop.f32.mrb[0].mxu0
      %v1915 = vadd.f32 0.0, %v1914
      %v1916 = vpop.f32.mrb[0].mxu0
      %v1917 = vpop.f32.mrb[0].mxu0
      %v1918 = vadd.f32 0.0, %v1917
      %v1919 = vpop.f32.mrb[0].mxu0
      %1920 = vmatprep.mubr.bf16.mxu0 0
      %1921 = vmatmul.mubr.bf16.gmra.mrb[0].mxu0 %v1433
      %v1922 = vpop.f32.mrb[0].mxu0
      %v1923 = vadd.f32 0.0, %v1922
      %v1924 = vpop.f32.mrb[0].mxu0
      %v1925 = vpop.f32.mrb[0].mxu0
      %v1926 = vadd.f32 0.0, %v1925
      %v1927 = vpop.f32.mrb[0].mxu0
      %1928 = vmatprep.mubr.bf16.mxu0 0
      %1929 = vmatmul.mubr.bf16.gmra.mrb[0].mxu0 %v1436
      %v1930 = vpop.f32.mrb[0].mxu0
      %v1931 = vadd.f32 0.0, %v1930
      %v1932 = vpop.f32.mrb[0].mxu0
      %v1933 = vpop.f32.mrb[0].mxu0
      %v1934 = vadd.f32 0.0, %v1933
      %v1935 = vpop.f32.mrb[0].mxu0
      %1936 = vmatprep.mubr.bf16.mxu0 0
      %1937 = vmatmul.mubr.bf16.gmra.mrb[0].mxu0 %v1439
      %v1938 = vpop.f32.mrb[0].mxu0
      %v1939 = vadd.f32 0.0, %v1938
      %v1940 = vpop.f32.mrb[0].mxu0
      %v1941 = vpop.f32.mrb[0].mxu0
      %v1942 = vadd.f32 0.0, %v1941
      %v1943 = vpop.f32.mrb[0].mxu0
      %1944 = vmatprep.mubr.bf16.mxu0 0
      %1945 = vmatmul.mubr.bf16.gmra.mrb[0].mxu0 %v1442
      %v1946 = vpop.f32.mrb[0].mxu0
      %v1947 = vadd.f32 0.0, %v1946
      %v1948 = vpop.f32.mrb[0].mxu0
      %v1949 = vpop.f32.mrb[0].mxu0
      %v1950 = vadd.f32 0.0, %v1949
      %v1951 = vpop.f32.mrb[0].mxu0
      %1952 = vmatprep.mubr.bf16.mxu0 0
      %1953 = vmatmul.mubr.bf16.gmra.mrb[0].mxu0 %v1445
      %v1954 = vpop.f32.mrb[0].mxu0
      %v1955 = vadd.f32 0.0, %v1954
      %v1956 = vpop.f32.mrb[0].mxu0
      %v1957 = vpop.f32.mrb[0].mxu0
      %v1958 = vadd.f32 0.0, %v1957
      %v1959 = vpop.f32.mrb[0].mxu0
      %1960 = vmatprep.mubr.bf16.mxu0 0
      %1961 = vmatmul.mubr.bf16.gmra.mrb[0].mxu0 %v1448
      %v1962 = vpop.f32.mrb[0].mxu0
      %v1963 = vadd.f32 0.0, %v1962
      %v1964 = vpop.f32.mrb[0].mxu0
      %v1965 = vpop.f32.mrb[0].mxu0
      %v1966 = vadd.f32 0.0, %v1965
      %v1967 = vpop.f32.mrb[0].mxu0
      %1968 = vmatprep.mubr.bf16.mxu0 0
      %1969 = vmatmul.mubr.bf16.gmra.mrb[0].mxu0 %v1451
      %v1970 = vpop.f32.mrb[0].mxu0
      %v1971 = vadd.f32 0.0, %v1970
      %v1972 = vpop.f32.mrb[0].mxu0
      %v1973 = vpop.f32.mrb[0].mxu0
      %v1974 = vadd.f32 0.0, %v1973
      %v1975 = vpop.f32.mrb[0].mxu0
      %1976 = vmatprep.mubr.bf16.mxu0 0
      %1977 = vmatmul.mubr.bf16.gmra.mrb[0].mxu0 %v1454
      %v1978 = vpop.f32.mrb[0].mxu0
      %v1979 = vadd.f32 0.0, %v1978
      %v1980 = vpop.f32.mrb[0].mxu0
      %v1981 = vpop.f32.mrb[0].mxu0
      %v1982 = vadd.f32 0.0, %v1981
      %v1983 = vpop.f32.mrb[0].mxu0
      %1984 = vmatprep.mubr.bf16.mxu0 0
      %1985 = vmatmul.mubr.bf16.gmra.mrb[0].mxu0 %v1457
      %v1986 = vpop.f32.mrb[0].mxu0
      %v1987 = vadd.f32 0.0, %v1986
      %v1988 = vpop.f32.mrb[0].mxu0
      %v1989 = vpop.f32.mrb[0].mxu0
      %v1990 = vadd.f32 0.0, %v1989
      %v1991 = vpop.f32.mrb[0].mxu0
      %1992 = vmatprep.mubr.bf16.mxu0 0
      %1993 = vmatmul.mubr.bf16.gmra.mrb[0].mxu0 %v1460
      %v1994 = vpop.f32.mrb[0].mxu0
      %v1995 = vadd.f32 0.0, %v1994
      %v1996 = vpop.f32.mrb[0].mxu0
      %v1997 = vpop.f32.mrb[0].mxu0
      %v1998 = vadd.f32 0.0, %v1997
      %v1999 = vpop.f32.mrb[0].mxu0
      %2000 = vmatprep.mubr.bf16.mxu0 0
      %2001 = vmatmul.mubr.bf16.gmra.mrb[0].mxu0 %v1463
      %v2002 = vpop.f32.mrb[0].mxu0
      %v2003 = vadd.f32 0.0, %v2002
      %v2004 = vpop.f32.mrb[0].mxu0
      %v2005 = vpop.f32.mrb[0].mxu0
      %v2006 = vadd.f32 0.0, %v2005
      %v2007 = vpop.f32.mrb[0].mxu0
      %2008 = vmatprep.mubr.bf16.mxu0 0
      %2009 = vmatmul.mubr.bf16.gmra.mrb[0].mxu0 %v1466
      %v2010 = vpop.f32.mrb[0].mxu0
      %v2011 = vadd.f32 0.0, %v2010
      %v2012 = vpop.f32.mrb[0].mxu0
      %v2013 = vpop.f32.mrb[0].mxu0
      %v2014 = vadd.f32 0.0, %v2013
      %v2015 = vpop.f32.mrb[0].mxu0
      %2016 = vmatprep.mubr.bf16.mxu0 0
      %2017 = vmatmul.mubr.bf16.gmra.mrb[0].mxu0 %v1469
      %v2018 = vpop.f32.mrb[0].mxu0
      %v2019 = vadd.f32 0.0, %v2018
      %v2020 = vpop.f32.mrb[0].mxu0
      %v2021 = vpop.f32.mrb[0].mxu0
      %v2022 = vadd.f32 0.0, %v2021
      %v2023 = vpop.f32.mrb[0].mxu0
      %2024 = vmatprep.mubr.bf16.mxu0 0
      %2025 = vmatmul.mubr.bf16.gmra.mrb[0].mxu0 %v1472
      %v2026 = vpop.f32.mrb[0].mxu0
      %v2027 = vadd.f32 0.0, %v2026
      %v2028 = vpop.f32.mrb[0].mxu0
      %v2029 = vpop.f32.mrb[0].mxu0
      %v2030 = vadd.f32 0.0, %v2029
      %v2031 = vpop.f32.mrb[0].mxu0
      %2032 = vmatprep.mubr.bf16.mxu0 0
      %2033 = vmatmul.mubr.bf16.gmra.mrb[0].mxu0 %v1475
      %v2034 = vpop.f32.mrb[0].mxu0
      %v2035 = vadd.f32 0.0, %v2034
      %v2036 = vpop.f32.mrb[0].mxu0
      %v2037 = vpop.f32.mrb[0].mxu0
      %v2038 = vadd.f32 0.0, %v2037
      %v2039 = vpop.f32.mrb[0].mxu0
      %2040 = vmatprep.mubr.bf16.mxu0 0
      %2041 = vmatmul.mubr.bf16.gmra.mrb[0].mxu0 %v1478
      %v2042 = vpop.f32.mrb[0].mxu0
      %v2043 = vadd.f32 0.0, %v2042
      %v2044 = vpop.f32.mrb[0].mxu0
      %v2045 = vpop.f32.mrb[0].mxu0
      %v2046 = vadd.f32 0.0, %v2045
      %v2047 = vpop.f32.mrb[0].mxu0
      %2048 = vdwg.mxu0
      %v2049 = vpack.c.bf16 %v1542, %v1539
      %v2050 = vpack.c.bf16 %v1550, %v1547
      %v2051 = vpack.c.bf16 %v1558, %v1555
      %v2052 = vpack.c.bf16 %v1566, %v1563
      %v2053 = vpack.c.bf16 %v1574, %v1571
      %v2054 = vpack.c.bf16 %v1582, %v1579
      %v2055 = vpack.c.bf16 %v1590, %v1587
      %v2056 = vpack.c.bf16 %v1598, %v1595
      %v2057 = vpack.c.bf16 %v1606, %v1603
      %v2058 = vpack.c.bf16 %v1614, %v1611
      %v2059 = vpack.c.bf16 %v1622, %v1619
      %v2060 = vpack.c.bf16 %v1630, %v1627
      %v2061 = vpack.c.bf16 %v1638, %v1635
      %v2062 = vpack.c.bf16 %v1646, %v1643
      %v2063 = vpack.c.bf16 %v1654, %v1651
      %v2064 = vpack.c.bf16 %v1662, %v1659
      %v2065 = vpack.c.bf16 %v1670, %v1667
      %v2066 = vpack.c.bf16 %v1678, %v1675
      %v2067 = vpack.c.bf16 %v1686, %v1683
      %v2068 = vpack.c.bf16 %v1694, %v1691
      %v2069 = vpack.c.bf16 %v1702, %v1699
      %v2070 = vpack.c.bf16 %v1710, %v1707
      %v2071 = vpack.c.bf16 %v1718, %v1715
      %v2072 = vpack.c.bf16 %v1726, %v1723
      %v2073 = vpack.c.bf16 %v1734, %v1731
      %v2074 = vpack.c.bf16 %v1742, %v1739
      %v2075 = vpack.c.bf16 %v1750, %v1747
      %v2076 = vpack.c.bf16 %v1758, %v1755
      %v2077 = vpack.c.bf16 %v1766, %v1763
      %v2078 = vpack.c.bf16 %v1774, %v1771
      %v2079 = vpack.c.bf16 %v1782, %v1779
      %v2080 = vpack.c.bf16 %v1790, %v1787
      %v2081 = vpack.c.bf16 %v1798, %v1795
      %v2082 = vpack.c.bf16 %v1806, %v1803
      %v2083 = vpack.c.bf16 %v1814, %v1811
      %v2084 = vpack.c.bf16 %v1822, %v1819
      %v2085 = vpack.c.bf16 %v1830, %v1827
      %v2086 = vpack.c.bf16 %v1838, %v1835
      %v2087 = vpack.c.bf16 %v1846, %v1843
      %v2088 = vpack.c.bf16 %v1854, %v1851
      %v2089 = vpack.c.bf16 %v1862, %v1859
      %v2090 = vpack.c.bf16 %v1870, %v1867
      %v2091 = vpack.c.bf16 %v1878, %v1875
      %v2092 = vpack.c.bf16 %v1886, %v1883
      %v2093 = vpack.c.bf16 %v1894, %v1891
      %v2094 = vpack.c.bf16 %v1902, %v1899
      %v2095 = vpack.c.bf16 %v1910, %v1907
      %v2096 = vpack.c.bf16 %v1918, %v1915
      %v2097 = vpack.c.bf16 %v1926, %v1923
      %v2098 = vpack.c.bf16 %v1934, %v1931
      %v2099 = vpack.c.bf16 %v1942, %v1939
      %v2100 = vpack.c.bf16 %v1950, %v1947
      %v2101 = vpack.c.bf16 %v1958, %v1955
      %v2102 = vpack.c.bf16 %v1966, %v1963
      %v2103 = vpack.c.bf16 %v1974, %v1971
      %v2104 = vpack.c.bf16 %v1982, %v1979
      %v2105 = vpack.c.bf16 %v1990, %v1987
      %v2106 = vpack.c.bf16 %v1998, %v1995
      %v2107 = vpack.c.bf16 %v2006, %v2003
      %v2108 = vpack.c.bf16 %v2014, %v2011
      %v2109 = vpack.c.bf16 %v2022, %v2019
      %v2110 = vpack.c.bf16 %v2030, %v2027
      %v2111 = vpack.c.bf16 %v2038, %v2035
      %v2112 = vpack.c.bf16 %v2046, %v2043
      %v2113 = vlaneseq
      %v2114 = vand.u32 %v2113, 127
      %vm2115 = vcmp.lt.s32.totalorder %v2114, 8
      %v2116 = vsel %vm2115, 0.0, -1e+30
      %2117 = vxpose.xlu0.c.b16.start [1/8] %v863, 128
      %2118 = vxpose.xlu0.c.b16.cont [2/8] %v865, 128
      %2119 = vxpose.xlu0.c.b16.cont [3/8] %v867, 128
      %2120 = vxpose.xlu0.c.b16.cont [4/8] %v869, 128
      %2121 = vxpose.xlu0.c.b16.cont [5/8] 0, 128
      %2122 = vxpose.xlu0.c.b16.cont [6/8] 0, 128
      %2123 = vxpose.xlu0.c.b16.cont [7/8] 0, 128
      %2124 = vxpose.xlu0.c.b16.end [8/8] 0, 128
      %v2125 = vpop.trf.xlu0
      %v2126 = vpop.trf.xlu0
      %v2127 = vpop.trf.xlu0
      %v2128 = vpop.trf.xlu0
      %v2129 = vpop.trf.xlu0
      %v2130 = vpop.trf.xlu0
      %v2131 = vpop.trf.xlu0
      %v2132 = vpop.trf.xlu0
      %2133 = vxpose.xlu0.c.b16.start [1/8] %v864, 128
      %2134 = vxpose.xlu0.c.b16.cont [2/8] %v866, 128
      %2135 = vxpose.xlu0.c.b16.cont [3/8] %v868, 128
      %2136 = vxpose.xlu0.c.b16.cont [4/8] %v870, 128
      %2137 = vxpose.xlu0.c.b16.cont [5/8] 0, 128
      %2138 = vxpose.xlu0.c.b16.cont [6/8] 0, 128
      %2139 = vxpose.xlu0.c.b16.cont [7/8] 0, 128
      %2140 = vxpose.xlu0.c.b16.end [8/8] 0, 128
      %v2141 = vpop.trf.xlu0
      %v2142 = vpop.trf.xlu0
      %v2143 = vpop.trf.xlu0
      %v2144 = vpop.trf.xlu0
      %v2145 = vpop.trf.xlu0
      %v2146 = vpop.trf.xlu0
      %v2147 = vpop.trf.xlu0
      %v2148 = vpop.trf.xlu0
      %v2150 = vsel %vm1287, %v2125, 0
      %v2153 = vsel %vm1287, %v2126, 0
      %v2156 = vsel %vm1287, %v2127, 0
      %v2159 = vsel %vm1287, %v2128, 0
      %v2162 = vsel %vm1287, %v2129, 0
      %v2165 = vsel %vm1287, %v2130, 0
      %v2168 = vsel %vm1287, %v2131, 0
      %v2171 = vsel %vm1287, %v2132, 0
      %v2174 = vsel %vm1287, %v2141, 0
      %v2177 = vsel %vm1287, %v2142, 0
      %v2180 = vsel %vm1287, %v2143, 0
      %v2183 = vsel %vm1287, %v2144, 0
      %v2186 = vsel %vm1287, %v2145, 0
      %v2189 = vsel %vm1287, %v2146, 0
      %v2192 = vsel %vm1287, %v2147, 0
      %v2195 = vsel %vm1287, %v2148, 0
      %2197 = vmatprep.subr.bf16.mxu0 0
      %2198 = vmatpush1.bf16.msra.mxu0 %v2049
      %2199 = vmatprep.subr.bf16.mxu0 0
      %2200 = vmatpush1.bf16.msra.mxu0 %v2050
      %2201 = vmatprep.subr.bf16.mxu0 0
      %2202 = vmatpush1.bf16.msra.mxu0 %v2051
      %2203 = vmatprep.subr.bf16.mxu0 0
      %2204 = vmatpush1.bf16.msra.mxu0 %v2052
      %2205 = vmatprep.subr.bf16.mxu0 0
      %2206 = vmatpush1.bf16.msra.mxu0 0
      %2207 = vmatprep.subr.bf16.mxu0 0
      %2208 = vmatpush1.bf16.msra.mxu0 0
      %2209 = vmatprep.subr.bf16.mxu0 0
      %2210 = vmatpush1.bf16.msra.mxu0 0
      %2211 = vmatprep.subr.bf16.mxu0 0
      %2212 = vmatpush1.bf16.msra.mxu0 0
      %2213 = vmatprep.subr.bf16.mxu0 0
      %2214 = vmatpush1.bf16.msra.mxu0 0
      %2215 = vmatprep.subr.bf16.mxu0 0
      %2216 = vmatpush1.bf16.msra.mxu0 0
      %2217 = vmatprep.subr.bf16.mxu0 0
      %2218 = vmatpush1.bf16.msra.mxu0 0
      %2219 = vmatprep.subr.bf16.mxu0 0
      %2220 = vmatpush1.bf16.msra.mxu0 0
      %2221 = vmatprep.subr.bf16.mxu0 0
      %2222 = vmatpush1.bf16.msra.mxu0 0
      %2223 = vmatprep.subr.bf16.mxu0 0
      %2224 = vmatpush1.bf16.msra.mxu0 0
      %2225 = vmatprep.subr.bf16.mxu0 0
      %2226 = vmatpush1.bf16.msra.mxu0 0
      %2227 = vmatprep.subr.bf16.mxu0 0
      %2228 = vmatpush1.bf16.msra.mxu0 0
      %2229 = vmatprep.mubr.bf16.mxu0 0
      %2230 = vmatmul.mubr.bf16.gmra.mrb[0].mxu0 %v2150
      %v2231 = vpop.f32.mrb[0].mxu0
      %v2232 = vadd.f32 %v2116, %v2231
      %v2233 = vpop.f32.mrb[0].mxu0
      %v2234 = vpop.f32.mrb[0].mxu0
      %v2235 = vadd.f32 %v2116, %v2234
      %v2236 = vpop.f32.mrb[0].mxu0
      %2237 = vmatprep.mubr.bf16.mxu0 0
      %2238 = vmatmul.mubr.bf16.gmra.mrb[0].mxu0 %v2153
      %v2239 = vpop.f32.mrb[0].mxu0
      %v2240 = vadd.f32 %v2116, %v2239
      %v2241 = vpop.f32.mrb[0].mxu0
      %v2242 = vpop.f32.mrb[0].mxu0
      %v2243 = vadd.f32 %v2116, %v2242
      %v2244 = vpop.f32.mrb[0].mxu0
      %2245 = vmatprep.mubr.bf16.mxu0 0
      %2246 = vmatmul.mubr.bf16.gmra.mrb[0].mxu0 %v2156
      %v2247 = vpop.f32.mrb[0].mxu0
      %v2248 = vadd.f32 %v2116, %v2247
      %v2249 = vpop.f32.mrb[0].mxu0
      %v2250 = vpop.f32.mrb[0].mxu0
      %v2251 = vadd.f32 %v2116, %v2250
      %v2252 = vpop.f32.mrb[0].mxu0
      %2253 = vmatprep.mubr.bf16.mxu0 0
      %2254 = vmatmul.mubr.bf16.gmra.mrb[0].mxu0 %v2159
      %v2255 = vpop.f32.mrb[0].mxu0
      %v2256 = vadd.f32 %v2116, %v2255
      %v2257 = vpop.f32.mrb[0].mxu0
      %v2258 = vpop.f32.mrb[0].mxu0
      %v2259 = vadd.f32 %v2116, %v2258
      %v2260 = vpop.f32.mrb[0].mxu0
      %2261 = vmatprep.mubr.bf16.mxu0 0
      %2262 = vmatmul.mubr.bf16.gmra.mrb[0].mxu0 %v2162
      %v2263 = vpop.f32.mrb[0].mxu0
      %v2264 = vadd.f32 %v2116, %v2263
      %v2265 = vpop.f32.mrb[0].mxu0
      %v2266 = vpop.f32.mrb[0].mxu0
      %v2267 = vadd.f32 %v2116, %v2266
      %v2268 = vpop.f32.mrb[0].mxu0
      %2269 = vmatprep.mubr.bf16.mxu0 0
      %2270 = vmatmul.mubr.bf16.gmra.mrb[0].mxu0 %v2165
      %v2271 = vpop.f32.mrb[0].mxu0
      %v2272 = vadd.f32 %v2116, %v2271
      %v2273 = vpop.f32.mrb[0].mxu0
      %v2274 = vpop.f32.mrb[0].mxu0
      %v2275 = vadd.f32 %v2116, %v2274
      %v2276 = vpop.f32.mrb[0].mxu0
      %2277 = vmatprep.mubr.bf16.mxu0 0
      %2278 = vmatmul.mubr.bf16.gmra.mrb[0].mxu0 %v2168
      %v2279 = vpop.f32.mrb[0].mxu0
      %v2280 = vadd.f32 %v2116, %v2279
      %v2281 = vpop.f32.mrb[0].mxu0
      %v2282 = vpop.f32.mrb[0].mxu0
      %v2283 = vadd.f32 %v2116, %v2282
      %v2284 = vpop.f32.mrb[0].mxu0
      %2285 = vmatprep.mubr.bf16.mxu0 0
      %2286 = vmatmul.mubr.bf16.gmra.mrb[0].mxu0 %v2171
      %v2287 = vpop.f32.mrb[0].mxu0
      %v2288 = vadd.f32 %v2116, %v2287
      %v2289 = vpop.f32.mrb[0].mxu0
      %v2290 = vpop.f32.mrb[0].mxu0
      %v2291 = vadd.f32 %v2116, %v2290
      %v2292 = vpop.f32.mrb[0].mxu0
      %2293 = vmatprep.mubr.bf16.mxu0 0
      %2294 = vmatmul.mubr.bf16.gmra.mrb[0].mxu0 %v2174
      %v2295 = vpop.f32.mrb[0].mxu0
      %v2296 = vadd.f32 %v2116, %v2295
      %v2297 = vpop.f32.mrb[0].mxu0
      %v2298 = vpop.f32.mrb[0].mxu0
      %v2299 = vadd.f32 %v2116, %v2298
      %v2300 = vpop.f32.mrb[0].mxu0
      %2301 = vmatprep.mubr.bf16.mxu0 0
      %2302 = vmatmul.mubr.bf16.gmra.mrb[0].mxu0 %v2177
      %v2303 = vpop.f32.mrb[0].mxu0
      %v2304 = vadd.f32 %v2116, %v2303
      %v2305 = vpop.f32.mrb[0].mxu0
      %v2306 = vpop.f32.mrb[0].mxu0
      %v2307 = vadd.f32 %v2116, %v2306
      %v2308 = vpop.f32.mrb[0].mxu0
      %2309 = vmatprep.mubr.bf16.mxu0 0
      %2310 = vmatmul.mubr.bf16.gmra.mrb[0].mxu0 %v2180
      %v2311 = vpop.f32.mrb[0].mxu0
      %v2312 = vadd.f32 %v2116, %v2311
      %v2313 = vpop.f32.mrb[0].mxu0
      %v2314 = vpop.f32.mrb[0].mxu0
      %v2315 = vadd.f32 %v2116, %v2314
      %v2316 = vpop.f32.mrb[0].mxu0
      %2317 = vmatprep.mubr.bf16.mxu0 0
      %2318 = vmatmul.mubr.bf16.gmra.mrb[0].mxu0 %v2183
      %v2319 = vpop.f32.mrb[0].mxu0
      %v2320 = vadd.f32 %v2116, %v2319
      %v2321 = vpop.f32.mrb[0].mxu0
      %v2322 = vpop.f32.mrb[0].mxu0
      %v2323 = vadd.f32 %v2116, %v2322
      %v2324 = vpop.f32.mrb[0].mxu0
      %2325 = vmatprep.mubr.bf16.mxu0 0
      %2326 = vmatmul.mubr.bf16.gmra.mrb[0].mxu0 %v2186
      %v2327 = vpop.f32.mrb[0].mxu0
      %v2328 = vadd.f32 %v2116, %v2327
      %v2329 = vpop.f32.mrb[0].mxu0
      %v2330 = vpop.f32.mrb[0].mxu0
      %v2331 = vadd.f32 %v2116, %v2330
      %v2332 = vpop.f32.mrb[0].mxu0
      %2333 = vmatprep.mubr.bf16.mxu0 0
      %2334 = vmatmul.mubr.bf16.gmra.mrb[0].mxu0 %v2189
      %v2335 = vpop.f32.mrb[0].mxu0
      %v2336 = vadd.f32 %v2116, %v2335
      %v2337 = vpop.f32.mrb[0].mxu0
      %v2338 = vpop.f32.mrb[0].mxu0
      %v2339 = vadd.f32 %v2116, %v2338
      %v2340 = vpop.f32.mrb[0].mxu0
      %2341 = vmatprep.mubr.bf16.mxu0 0
      %2342 = vmatmul.mubr.bf16.gmra.mrb[0].mxu0 %v2192
      %v2343 = vpop.f32.mrb[0].mxu0
      %v2344 = vadd.f32 %v2116, %v2343
      %v2345 = vpop.f32.mrb[0].mxu0
      %v2346 = vpop.f32.mrb[0].mxu0
      %v2347 = vadd.f32 %v2116, %v2346
      %v2348 = vpop.f32.mrb[0].mxu0
      %2349 = vmatprep.mubr.bf16.mxu0 0
      %2350 = vmatmul.mubr.bf16.gmra.mrb[0].mxu0 %v2195
      %v2351 = vpop.f32.mrb[0].mxu0
      %v2352 = vadd.f32 %v2116, %v2351
      %v2353 = vpop.f32.mrb[0].mxu0
      %v2354 = vpop.f32.mrb[0].mxu0
      %v2355 = vadd.f32 %v2116, %v2354
      %v2356 = vpop.f32.mrb[0].mxu0
      %2357 = vdwg.mxu0
      %2358 = vmax.xlane.f32.xlu0 %v2232
      %v2359 = vpop.xlane.xlu0 %2358
      %2360 = vmax.xlane.f32.xlu0 %v2235
      %v2361 = vpop.xlane.xlu0 %2360
      %2362 = vmax.xlane.f32.xlu0 %v2240
      %v2363 = vpop.xlane.xlu0 %2362
      %2364 = vmax.xlane.f32.xlu0 %v2243
      %v2365 = vpop.xlane.xlu0 %2364
      %2366 = vmax.xlane.f32.xlu0 %v2248
      %v2367 = vpop.xlane.xlu0 %2366
      %2368 = vmax.xlane.f32.xlu0 %v2251
      %v2369 = vpop.xlane.xlu0 %2368
      %2370 = vmax.xlane.f32.xlu0 %v2256
      %v2371 = vpop.xlane.xlu0 %2370
      %2372 = vmax.xlane.f32.xlu0 %v2259
      %v2373 = vpop.xlane.xlu0 %2372
      %2374 = vmax.xlane.f32.xlu0 %v2264
      %v2375 = vpop.xlane.xlu0 %2374
      %2376 = vmax.xlane.f32.xlu0 %v2267
      %v2377 = vpop.xlane.xlu0 %2376
      %2378 = vmax.xlane.f32.xlu0 %v2272
      %v2379 = vpop.xlane.xlu0 %2378
      %2380 = vmax.xlane.f32.xlu0 %v2275
      %v2381 = vpop.xlane.xlu0 %2380
      %2382 = vmax.xlane.f32.xlu0 %v2280
      %v2383 = vpop.xlane.xlu0 %2382
      %2384 = vmax.xlane.f32.xlu0 %v2283
      %v2385 = vpop.xlane.xlu0 %2384
      %2386 = vmax.xlane.f32.xlu0 %v2288
      %v2387 = vpop.xlane.xlu0 %2386
      %2388 = vmax.xlane.f32.xlu0 %v2291
      %v2389 = vpop.xlane.xlu0 %2388
      %2390 = vmax.xlane.f32.xlu0 %v2296
      %v2391 = vpop.xlane.xlu0 %2390
      %2392 = vmax.xlane.f32.xlu0 %v2299
      %v2393 = vpop.xlane.xlu0 %2392
      %2394 = vmax.xlane.f32.xlu0 %v2304
      %v2395 = vpop.xlane.xlu0 %2394
      %2396 = vmax.xlane.f32.xlu0 %v2307
      %v2397 = vpop.xlane.xlu0 %2396
      %2398 = vmax.xlane.f32.xlu0 %v2312
      %v2399 = vpop.xlane.xlu0 %2398
      %2400 = vmax.xlane.f32.xlu0 %v2315
      %v2401 = vpop.xlane.xlu0 %2400
      %2402 = vmax.xlane.f32.xlu0 %v2320
      %v2403 = vpop.xlane.xlu0 %2402
      %2404 = vmax.xlane.f32.xlu0 %v2323
      %v2405 = vpop.xlane.xlu0 %2404
      %2406 = vmax.xlane.f32.xlu0 %v2328
      %v2407 = vpop.xlane.xlu0 %2406
      %2408 = vmax.xlane.f32.xlu0 %v2331
      %v2409 = vpop.xlane.xlu0 %2408
      %2410 = vmax.xlane.f32.xlu0 %v2336
      %v2411 = vpop.xlane.xlu0 %2410
      %2412 = vmax.xlane.f32.xlu0 %v2339
      %v2413 = vpop.xlane.xlu0 %2412
      %2414 = vmax.xlane.f32.xlu0 %v2344
      %v2415 = vpop.xlane.xlu0 %2414
      %2416 = vmax.xlane.f32.xlu0 %v2347
      %v2417 = vpop.xlane.xlu0 %2416
      %2418 = vmax.xlane.f32.xlu0 %v2352
      %v2419 = vpop.xlane.xlu0 %2418
      %2420 = vmax.xlane.f32.xlu0 %v2355
      %v2421 = vpop.xlane.xlu0 %2420
      %v2422 = vsub.f32 %v2232, %v2359
      %v2423 = vsub.f32 %v2235, %v2361
      %v2424 = vsub.f32 %v2240, %v2363
      %v2425 = vsub.f32 %v2243, %v2365
      %v2426 = vsub.f32 %v2248, %v2367
      %v2427 = vsub.f32 %v2251, %v2369
      %v2428 = vsub.f32 %v2256, %v2371
      %v2429 = vsub.f32 %v2259, %v2373
      %v2430 = vsub.f32 %v2264, %v2375
      %v2431 = vsub.f32 %v2267, %v2377
      %v2432 = vsub.f32 %v2272, %v2379
      %v2433 = vsub.f32 %v2275, %v2381
      %v2434 = vsub.f32 %v2280, %v2383
      %v2435 = vsub.f32 %v2283, %v2385
      %v2436 = vsub.f32 %v2288, %v2387
      %v2437 = vsub.f32 %v2291, %v2389
      %v2438 = vsub.f32 %v2296, %v2391
      %v2439 = vsub.f32 %v2299, %v2393
      %v2440 = vsub.f32 %v2304, %v2395
      %v2441 = vsub.f32 %v2307, %v2397
      %v2442 = vsub.f32 %v2312, %v2399
      %v2443 = vsub.f32 %v2315, %v2401
      %v2444 = vsub.f32 %v2320, %v2403
      %v2445 = vsub.f32 %v2323, %v2405
      %v2446 = vsub.f32 %v2328, %v2407
      %v2447 = vsub.f32 %v2331, %v2409
      %v2448 = vsub.f32 %v2336, %v2411
      %v2449 = vsub.f32 %v2339, %v2413
      %v2450 = vsub.f32 %v2344, %v2415
      %v2451 = vsub.f32 %v2347, %v2417
      %v2452 = vsub.f32 %v2352, %v2419
      %v2453 = vsub.f32 %v2355, %v2421
      %v2454 = vmul.f32 %v2422, 1.442695
      %v2455 = vpow.pop %v2454
      %v2456 = vmul.f32 %v2423, 1.442695
      %v2457 = vpow.pop %v2456
      %v2458 = vmul.f32 %v2424, 1.442695
      %v2459 = vpow.pop %v2458
      %v2460 = vmul.f32 %v2425, 1.442695
      %v2461 = vpow.pop %v2460
      %v2462 = vmul.f32 %v2426, 1.442695
      %v2463 = vpow.pop %v2462
      %v2464 = vmul.f32 %v2427, 1.442695
      %v2465 = vpow.pop %v2464
      %v2466 = vmul.f32 %v2428, 1.442695
      %v2467 = vpow.pop %v2466
      %v2468 = vmul.f32 %v2429, 1.442695
      %v2469 = vpow.pop %v2468
      %v2470 = vmul.f32 %v2430, 1.442695
      %v2471 = vpow.pop %v2470
      %v2472 = vmul.f32 %v2431, 1.442695
      %v2473 = vpow.pop %v2472
      %v2474 = vmul.f32 %v2432, 1.442695
      %v2475 = vpow.pop %v2474
      %v2476 = vmul.f32 %v2433, 1.442695
      %v2477 = vpow.pop %v2476
      %v2478 = vmul.f32 %v2434, 1.442695
      %v2479 = vpow.pop %v2478
      %v2480 = vmul.f32 %v2435, 1.442695
      %v2481 = vpow.pop %v2480
      %v2482 = vmul.f32 %v2436, 1.442695
      %v2483 = vpow.pop %v2482
      %v2484 = vmul.f32 %v2437, 1.442695
      %v2485 = vpow.pop %v2484
      %v2486 = vmul.f32 %v2438, 1.442695
      %v2487 = vpow.pop %v2486
      %v2488 = vmul.f32 %v2439, 1.442695
      %v2489 = vpow.pop %v2488
      %v2490 = vmul.f32 %v2440, 1.442695
      %v2491 = vpow.pop %v2490
      %v2492 = vmul.f32 %v2441, 1.442695
      %v2493 = vpow.pop %v2492
      %v2494 = vmul.f32 %v2442, 1.442695
      %v2495 = vpow.pop %v2494
      %v2496 = vmul.f32 %v2443, 1.442695
      %v2497 = vpow.pop %v2496
      %v2498 = vmul.f32 %v2444, 1.442695
      %v2499 = vpow.pop %v2498
      %v2500 = vmul.f32 %v2445, 1.442695
      %v2501 = vpow.pop %v2500
      %v2502 = vmul.f32 %v2446, 1.442695
      %v2503 = vpow.pop %v2502
      %v2504 = vmul.f32 %v2447, 1.442695
      %v2505 = vpow.pop %v2504
      %v2506 = vmul.f32 %v2448, 1.442695
      %v2507 = vpow.pop %v2506
      %v2508 = vmul.f32 %v2449, 1.442695
      %v2509 = vpow.pop %v2508
      %v2510 = vmul.f32 %v2450, 1.442695
      %v2511 = vpow.pop %v2510
      %v2512 = vmul.f32 %v2451, 1.442695
      %v2513 = vpow.pop %v2512
      %v2514 = vmul.f32 %v2452, 1.442695
      %v2515 = vpow.pop %v2514
      %v2516 = vmul.f32 %v2453, 1.442695
      %v2517 = vpow.pop %v2516
      %2518 = vadd.xlane.f32.xlu0 %v2455
      %v2519 = vpop.xlane.xlu0 %2518
      %2520 = vadd.xlane.f32.xlu0 %v2457
      %v2521 = vpop.xlane.xlu0 %2520
      %2522 = vadd.xlane.f32.xlu0 %v2459
      %v2523 = vpop.xlane.xlu0 %2522
      %2524 = vadd.xlane.f32.xlu0 %v2461
      %v2525 = vpop.xlane.xlu0 %2524
      %2526 = vadd.xlane.f32.xlu0 %v2463
      %v2527 = vpop.xlane.xlu0 %2526
      %2528 = vadd.xlane.f32.xlu0 %v2465
      %v2529 = vpop.xlane.xlu0 %2528
      %2530 = vadd.xlane.f32.xlu0 %v2467
      %v2531 = vpop.xlane.xlu0 %2530
      %2532 = vadd.xlane.f32.xlu0 %v2469
      %v2533 = vpop.xlane.xlu0 %2532
      %2534 = vadd.xlane.f32.xlu0 %v2471
      %v2535 = vpop.xlane.xlu0 %2534
      %2536 = vadd.xlane.f32.xlu0 %v2473
      %v2537 = vpop.xlane.xlu0 %2536
      %2538 = vadd.xlane.f32.xlu0 %v2475
      %v2539 = vpop.xlane.xlu0 %2538
      %2540 = vadd.xlane.f32.xlu0 %v2477
      %v2541 = vpop.xlane.xlu0 %2540
      %2542 = vadd.xlane.f32.xlu0 %v2479
      %v2543 = vpop.xlane.xlu0 %2542
      %2544 = vadd.xlane.f32.xlu0 %v2481
      %v2545 = vpop.xlane.xlu0 %2544
      %2546 = vadd.xlane.f32.xlu0 %v2483
      %v2547 = vpop.xlane.xlu0 %2546
      %2548 = vadd.xlane.f32.xlu0 %v2485
      %v2549 = vpop.xlane.xlu0 %2548
      %2550 = vadd.xlane.f32.xlu0 %v2487
      %v2551 = vpop.xlane.xlu0 %2550
      %2552 = vadd.xlane.f32.xlu0 %v2489
      %v2553 = vpop.xlane.xlu0 %2552
      %2554 = vadd.xlane.f32.xlu0 %v2491
      %v2555 = vpop.xlane.xlu0 %2554
      %2556 = vadd.xlane.f32.xlu0 %v2493
      %v2557 = vpop.xlane.xlu0 %2556
      %2558 = vadd.xlane.f32.xlu0 %v2495
      %v2559 = vpop.xlane.xlu0 %2558
      %2560 = vadd.xlane.f32.xlu0 %v2497
      %v2561 = vpop.xlane.xlu0 %2560
      %2562 = vadd.xlane.f32.xlu0 %v2499
      %v2563 = vpop.xlane.xlu0 %2562
      %2564 = vadd.xlane.f32.xlu0 %v2501
      %v2565 = vpop.xlane.xlu0 %2564
      %2566 = vadd.xlane.f32.xlu0 %v2503
      %v2567 = vpop.xlane.xlu0 %2566
      %2568 = vadd.xlane.f32.xlu0 %v2505
      %v2569 = vpop.xlane.xlu0 %2568
      %2570 = vadd.xlane.f32.xlu0 %v2507
      %v2571 = vpop.xlane.xlu0 %2570
      %2572 = vadd.xlane.f32.xlu0 %v2509
      %v2573 = vpop.xlane.xlu0 %2572
      %2574 = vadd.xlane.f32.xlu0 %v2511
      %v2575 = vpop.xlane.xlu0 %2574
      %2576 = vadd.xlane.f32.xlu0 %v2513
      %v2577 = vpop.xlane.xlu0 %2576
      %2578 = vadd.xlane.f32.xlu0 %v2515
      %v2579 = vpop.xlane.xlu0 %2578
      %2580 = vadd.xlane.f32.xlu0 %v2517
      %v2581 = vpop.xlane.xlu0 %2580
      %v2582 = vrcp.pop %v2519
      %v2583 = vrcp.pop %v2521
      %v2584 = vrcp.pop %v2523
      %v2585 = vrcp.pop %v2525
      %v2586 = vrcp.pop %v2527
      %v2587 = vrcp.pop %v2529
      %v2588 = vrcp.pop %v2531
      %v2589 = vrcp.pop %v2533
      %v2590 = vrcp.pop %v2535
      %v2591 = vrcp.pop %v2537
      %v2592 = vrcp.pop %v2539
      %v2593 = vrcp.pop %v2541
      %v2594 = vrcp.pop %v2543
      %v2595 = vrcp.pop %v2545
      %v2596 = vrcp.pop %v2547
      %v2597 = vrcp.pop %v2549
      %v2598 = vrcp.pop %v2551
      %v2599 = vrcp.pop %v2553
      %v2600 = vrcp.pop %v2555
      %v2601 = vrcp.pop %v2557
      %v2602 = vrcp.pop %v2559
      %v2603 = vrcp.pop %v2561
      %v2604 = vrcp.pop %v2563
      %v2605 = vrcp.pop %v2565
      %v2606 = vrcp.pop %v2567
      %v2607 = vrcp.pop %v2569
      %v2608 = vrcp.pop %v2571
      %v2609 = vrcp.pop %v2573
      %v2610 = vrcp.pop %v2575
      %v2611 = vrcp.pop %v2577
      %v2612 = vrcp.pop %v2579
      %v2613 = vrcp.pop %v2581
      %v2614 = vmul.f32 %v2455, %v2582
      %v2615 = vmul.f32 %v2457, %v2583
      %v2616 = vmul.f32 %v2459, %v2584
      %v2617 = vmul.f32 %v2461, %v2585
      %v2618 = vmul.f32 %v2463, %v2586
      %v2619 = vmul.f32 %v2465, %v2587
      %v2620 = vmul.f32 %v2467, %v2588
      %v2621 = vmul.f32 %v2469, %v2589
      %v2622 = vmul.f32 %v2471, %v2590
      %v2623 = vmul.f32 %v2473, %v2591
      %v2624 = vmul.f32 %v2475, %v2592
      %v2625 = vmul.f32 %v2477, %v2593
      %v2626 = vmul.f32 %v2479, %v2594
      %v2627 = vmul.f32 %v2481, %v2595
      %v2628 = vmul.f32 %v2483, %v2596
      %v2629 = vmul.f32 %v2485, %v2597
      %v2630 = vmul.f32 %v2487, %v2598
      %v2631 = vmul.f32 %v2489, %v2599
      %v2632 = vmul.f32 %v2491, %v2600
      %v2633 = vmul.f32 %v2493, %v2601
      %v2634 = vmul.f32 %v2495, %v2602
      %v2635 = vmul.f32 %v2497, %v2603
      %v2636 = vmul.f32 %v2499, %v2604
      %v2637 = vmul.f32 %v2501, %v2605
      %v2638 = vmul.f32 %v2503, %v2606
      %v2639 = vmul.f32 %v2505, %v2607
      %v2640 = vmul.f32 %v2507, %v2608
      %v2641 = vmul.f32 %v2509, %v2609
      %v2642 = vmul.f32 %v2511, %v2610
      %v2643 = vmul.f32 %v2513, %v2611
      %v2644 = vmul.f32 %v2515, %v2612
      %v2645 = vmul.f32 %v2517, %v2613
      %v2646 = vpack.c.bf16 %v2615, %v2614
      %v2647 = vpack.c.bf16 %v2617, %v2616
      %v2648 = vpack.c.bf16 %v2619, %v2618
      %v2649 = vpack.c.bf16 %v2621, %v2620
      %v2650 = vpack.c.bf16 %v2623, %v2622
      %v2651 = vpack.c.bf16 %v2625, %v2624
      %v2652 = vpack.c.bf16 %v2627, %v2626
      %v2653 = vpack.c.bf16 %v2629, %v2628
      %v2654 = vpack.c.bf16 %v2631, %v2630
      %v2655 = vpack.c.bf16 %v2633, %v2632
      %v2656 = vpack.c.bf16 %v2635, %v2634
      %v2657 = vpack.c.bf16 %v2637, %v2636
      %v2658 = vpack.c.bf16 %v2639, %v2638
      %v2659 = vpack.c.bf16 %v2641, %v2640
      %v2660 = vpack.c.bf16 %v2643, %v2642
      %v2661 = vpack.c.bf16 %v2645, %v2644
      %2662 = vmatprep.subr.bf16.mxu0 0
      %2663 = vmatpush1.bf16.xpose.msra.mxu0 %v2646
      %2664 = vmatprep.subr.bf16.mxu0 0
      %2665 = vmatpush1.bf16.xpose.msra.mxu0 %v2647
      %2666 = vmatprep.subr.bf16.mxu0 0
      %2667 = vmatpush1.bf16.xpose.msra.mxu0 %v2648
      %2668 = vmatprep.subr.bf16.mxu0 0
      %2669 = vmatpush1.bf16.xpose.msra.mxu0 %v2649
      %2670 = vmatprep.subr.bf16.mxu0 0
      %2671 = vmatpush1.bf16.xpose.msra.mxu0 %v2650
      %2672 = vmatprep.subr.bf16.mxu0 0
      %2673 = vmatpush1.bf16.xpose.msra.mxu0 %v2651
      %2674 = vmatprep.subr.bf16.mxu0 0
      %2675 = vmatpush1.bf16.xpose.msra.mxu0 %v2652
      %2676 = vmatprep.subr.bf16.mxu0 0
      %2677 = vmatpush1.bf16.xpose.msra.mxu0 %v2653
      %2678 = vmatprep.subr.bf16.mxu0 0
      %2679 = vmatpush1.bf16.xpose.msra.mxu0 %v2654
      %2680 = vmatprep.subr.bf16.mxu0 0
      %2681 = vmatpush1.bf16.xpose.msra.mxu0 %v2655
      %2682 = vmatprep.subr.bf16.mxu0 0
      %2683 = vmatpush1.bf16.xpose.msra.mxu0 %v2656
      %2684 = vmatprep.subr.bf16.mxu0 0
      %2685 = vmatpush1.bf16.xpose.msra.mxu0 %v2657
      %2686 = vmatprep.subr.bf16.mxu0 0
      %2687 = vmatpush1.bf16.xpose.msra.mxu0 %v2658
      %2688 = vmatprep.subr.bf16.mxu0 0
      %2689 = vmatpush1.bf16.xpose.msra.mxu0 %v2659
      %2690 = vmatprep.subr.bf16.mxu0 0
      %2691 = vmatpush1.bf16.xpose.msra.mxu0 %v2660
      %2692 = vmatprep.subr.bf16.mxu0 0
      %2693 = vmatpush1.bf16.xpose.msra.mxu0 %v2661
      %2694 = vmatprep.mubr.bf16.mxu0 0
      %2695 = vmatmul.mubr.bf16.gmra.mrb[0].mxu0 %v2081
      %v2696 = vpop.f32.mrb[0].mxu0
      %v2697 = vadd.f32 0.0, %v2696
      %v2698 = vpop.f32.mrb[0].mxu0
      %v2699 = vadd.f32 0.0, %v2698
      %v2700 = vpop.f32.mrb[0].mxu0
      %v2701 = vadd.f32 0.0, %v2700
      %v2702 = vpop.f32.mrb[0].mxu0
      %v2703 = vadd.f32 0.0, %v2702
      %2704 = vmatprep.mubr.bf16.mxu0 0
      %2705 = vmatmul.mubr.bf16.gmra.mrb[0].mxu0 %v2082
      %v2706 = vpop.f32.mrb[0].mxu0
      %v2707 = vadd.f32 0.0, %v2706
      %v2708 = vpop.f32.mrb[0].mxu0
      %v2709 = vadd.f32 0.0, %v2708
      %v2710 = vpop.f32.mrb[0].mxu0
      %v2711 = vadd.f32 0.0, %v2710
      %v2712 = vpop.f32.mrb[0].mxu0
      %v2713 = vadd.f32 0.0, %v2712
      %2714 = vmatprep.mubr.bf16.mxu0 0
      %2715 = vmatmul.mubr.bf16.gmra.mrb[0].mxu0 %v2083
      %v2716 = vpop.f32.mrb[0].mxu0
      %v2717 = vadd.f32 0.0, %v2716
      %v2718 = vpop.f32.mrb[0].mxu0
      %v2719 = vadd.f32 0.0, %v2718
      %v2720 = vpop.f32.mrb[0].mxu0
      %v2721 = vadd.f32 0.0, %v2720
      %v2722 = vpop.f32.mrb[0].mxu0
      %v2723 = vadd.f32 0.0, %v2722
      %2724 = vmatprep.mubr.bf16.mxu0 0
      %2725 = vmatmul.mubr.bf16.gmra.mrb[0].mxu0 %v2084
      %v2726 = vpop.f32.mrb[0].mxu0
      %v2727 = vadd.f32 0.0, %v2726
      %v2728 = vpop.f32.mrb[0].mxu0
      %v2729 = vadd.f32 0.0, %v2728
      %v2730 = vpop.f32.mrb[0].mxu0
      %v2731 = vadd.f32 0.0, %v2730
      %v2732 = vpop.f32.mrb[0].mxu0
      %v2733 = vadd.f32 0.0, %v2732
      %2734 = vdwg.mxu0
      %v2735 = vpack.c.bf16 %v2701, %v2697
      %v2736 = vpack.c.bf16 %v2703, %v2699
      %v2737 = vpack.c.bf16 %v2711, %v2707
      %v2738 = vpack.c.bf16 %v2713, %v2709
      %v2739 = vpack.c.bf16 %v2721, %v2717
      %v2740 = vpack.c.bf16 %v2723, %v2719
      %v2741 = vpack.c.bf16 %v2731, %v2727
      %v2742 = vpack.c.bf16 %v2733, %v2729
      %2743 = vst [vmem:[#allocation2] sm:$0xff] %v2735
      %2744 = vst [vmem:[#allocation2 + $0x8] sm:$0xff] %v2736
      %2745 = vst [vmem:[#allocation2 + $0x10] sm:$0xff] %v2737
      %2746 = vst [vmem:[#allocation2 + $0x18] sm:$0xff] %v2738
      %2747 = vst [vmem:[#allocation2 + $0x20] sm:$0xff] %v2739
      %2748 = vst [vmem:[#allocation2 + $0x28] sm:$0xff] %v2740
      %2749 = vst [vmem:[#allocation2 + $0x30] sm:$0xff] %v2741
      %2750 = vst [vmem:[#allocation2 + $0x38] sm:$0xff] %v2742
      %2751 = vxpose.xlu0.c.b16.start [1/8] %v871, 128
      %2752 = vxpose.xlu0.c.b16.cont [2/8] %v873, 128
      %2753 = vxpose.xlu0.c.b16.cont [3/8] %v875, 128
      %2754 = vxpose.xlu0.c.b16.cont [4/8] %v877, 128
      %2755 = vxpose.xlu0.c.b16.cont [5/8] 0, 128
      %2756 = vxpose.xlu0.c.b16.cont [6/8] 0, 128
      %2757 = vxpose.xlu0.c.b16.cont [7/8] 0, 128
      %2758 = vxpose.xlu0.c.b16.end [8/8] 0, 128
      %v2759 = vpop.trf.xlu0
      %v2760 = vpop.trf.xlu0
      %v2761 = vpop.trf.xlu0
      %v2762 = vpop.trf.xlu0
      %v2763 = vpop.trf.xlu0
      %v2764 = vpop.trf.xlu0
      %v2765 = vpop.trf.xlu0
      %v2766 = vpop.trf.xlu0
      %2767 = vxpose.xlu0.c.b16.start [1/8] %v872, 128
      %2768 = vxpose.xlu0.c.b16.cont [2/8] %v874, 128
      %2769 = vxpose.xlu0.c.b16.cont [3/8] %v876, 128
      %2770 = vxpose.xlu0.c.b16.cont [4/8] %v878, 128
      %2771 = vxpose.xlu0.c.b16.cont [5/8] 0, 128
      %2772 = vxpose.xlu0.c.b16.cont [6/8] 0, 128
      %2773 = vxpose.xlu0.c.b16.cont [7/8] 0, 128
      %2774 = vxpose.xlu0.c.b16.end [8/8] 0, 128
      %v2775 = vpop.trf.xlu0
      %v2776 = vpop.trf.xlu0
      %v2777 = vpop.trf.xlu0
      %v2778 = vpop.trf.xlu0
      %v2779 = vpop.trf.xlu0
      %v2780 = vpop.trf.xlu0
      %v2781 = vpop.trf.xlu0
      %v2782 = vpop.trf.xlu0
      %v2784 = vsel %vm1287, %v2759, 0
      %v2787 = vsel %vm1287, %v2760, 0
      %v2790 = vsel %vm1287, %v2761, 0
      %v2793 = vsel %vm1287, %v2762, 0
      %v2796 = vsel %vm1287, %v2763, 0
      %v2799 = vsel %vm1287, %v2764, 0
      %v2802 = vsel %vm1287, %v2765, 0
      %v2805 = vsel %vm1287, %v2766, 0
      %v2808 = vsel %vm1287, %v2775, 0
      %v2811 = vsel %vm1287, %v2776, 0
      %v2814 = vsel %vm1287, %v2777, 0
      %v2817 = vsel %vm1287, %v2778, 0
      %v2820 = vsel %vm1287, %v2779, 0
      %v2823 = vsel %vm1287, %v2780, 0
      %v2826 = vsel %vm1287, %v2781, 0
      %v2829 = vsel %vm1287, %v2782, 0
      %2831 = vmatprep.subr.bf16.mxu0 0
      %2832 = vmatpush1.bf16.msra.mxu0 %v2053
      %2833 = vmatprep.subr.bf16.mxu0 0
      %2834 = vmatpush1.bf16.msra.mxu0 %v2054
      %2835 = vmatprep.subr.bf16.mxu0 0
      %2836 = vmatpush1.bf16.msra.mxu0 %v2055
      %2837 = vmatprep.subr.bf16.mxu0 0
      %2838 = vmatpush1.bf16.msra.mxu0 %v2056
      %2839 = vmatprep.subr.bf16.mxu0 0
      %2840 = vmatpush1.bf16.msra.mxu0 0
      %2841 = vmatprep.subr.bf16.mxu0 0
      %2842 = vmatpush1.bf16.msra.mxu0 0
      %2843 = vmatprep.subr.bf16.mxu0 0
      %2844 = vmatpush1.bf16.msra.mxu0 0
      %2845 = vmatprep.subr.bf16.mxu0 0
      %2846 = vmatpush1.bf16.msra.mxu0 0
      %2847 = vmatprep.subr.bf16.mxu0 0
      %2848 = vmatpush1.bf16.msra.mxu0 0
      %2849 = vmatprep.subr.bf16.mxu0 0
      %2850 = vmatpush1.bf16.msra.mxu0 0
      %2851 = vmatprep.subr.bf16.mxu0 0
      %2852 = vmatpush1.bf16.msra.mxu0 0
      %2853 = vmatprep.subr.bf16.mxu0 0
      %2854 = vmatpush1.bf16.msra.mxu0 0
      %2855 = vmatprep.subr.bf16.mxu0 0
      %2856 = vmatpush1.bf16.msra.mxu0 0
      %2857 = vmatprep.subr.bf16.mxu0 0
      %2858 = vmatpush1.bf16.msra.mxu0 0
      %2859 = vmatprep.subr.bf16.mxu0 0
      %2860 = vmatpush1.bf16.msra.mxu0 0
      %2861 = vmatprep.subr.bf16.mxu0 0
      %2862 = vmatpush1.bf16.msra.mxu0 0
      %2863 = vmatprep.mubr.bf16.mxu0 0
      %2864 = vmatmul.mubr.bf16.gmra.mrb[0].mxu0 %v2784
      %v2865 = vpop.f32.mrb[0].mxu0
      %v2866 = vadd.f32 %v2116, %v2865
      %v2867 = vpop.f32.mrb[0].mxu0
      %v2868 = vpop.f32.mrb[0].mxu0
      %v2869 = vadd.f32 %v2116, %v2868
      %v2870 = vpop.f32.mrb[0].mxu0
      %2871 = vmatprep.mubr.bf16.mxu0 0
      %2872 = vmatmul.mubr.bf16.gmra.mrb[0].mxu0 %v2787
      %v2873 = vpop.f32.mrb[0].mxu0
      %v2874 = vadd.f32 %v2116, %v2873
      %v2875 = vpop.f32.mrb[0].mxu0
      %v2876 = vpop.f32.mrb[0].mxu0
      %v2877 = vadd.f32 %v2116, %v2876
      %v2878 = vpop.f32.mrb[0].mxu0
      %2879 = vmatprep.mubr.bf16.mxu0 0
      %2880 = vmatmul.mubr.bf16.gmra.mrb[0].mxu0 %v2790
      %v2881 = vpop.f32.mrb[0].mxu0
      %v2882 = vadd.f32 %v2116, %v2881
      %v2883 = vpop.f32.mrb[0].mxu0
      %v2884 = vpop.f32.mrb[0].mxu0
      %v2885 = vadd.f32 %v2116, %v2884
      %v2886 = vpop.f32.mrb[0].mxu0
      %2887 = vmatprep.mubr.bf16.mxu0 0
      %2888 = vmatmul.mubr.bf16.gmra.mrb[0].mxu0 %v2793
      %v2889 = vpop.f32.mrb[0].mxu0
      %v2890 = vadd.f32 %v2116, %v2889
      %v2891 = vpop.f32.mrb[0].mxu0
      %v2892 = vpop.f32.mrb[0].mxu0
      %v2893 = vadd.f32 %v2116, %v2892
      %v2894 = vpop.f32.mrb[0].mxu0
      %2895 = vmatprep.mubr.bf16.mxu0 0
      %2896 = vmatmul.mubr.bf16.gmra.mrb[0].mxu0 %v2796
      %v2897 = vpop.f32.mrb[0].mxu0
      %v2898 = vadd.f32 %v2116, %v2897
      %v2899 = vpop.f32.mrb[0].mxu0
      %v2900 = vpop.f32.mrb[0].mxu0
      %v2901 = vadd.f32 %v2116, %v2900
      %v2902 = vpop.f32.mrb[0].mxu0
      %2903 = vmatprep.mubr.bf16.mxu0 0
      %2904 = vmatmul.mubr.bf16.gmra.mrb[0].mxu0 %v2799
      %v2905 = vpop.f32.mrb[0].mxu0
      %v2906 = vadd.f32 %v2116, %v2905
      %v2907 = vpop.f32.mrb[0].mxu0
      %v2908 = vpop.f32.mrb[0].mxu0
      %v2909 = vadd.f32 %v2116, %v2908
      %v2910 = vpop.f32.mrb[0].mxu0
      %2911 = vmatprep.mubr.bf16.mxu0 0
      %2912 = vmatmul.mubr.bf16.gmra.mrb[0].mxu0 %v2802
      %v2913 = vpop.f32.mrb[0].mxu0
      %v2914 = vadd.f32 %v2116, %v2913
      %v2915 = vpop.f32.mrb[0].mxu0
      %v2916 = vpop.f32.mrb[0].mxu0
      %v2917 = vadd.f32 %v2116, %v2916
      %v2918 = vpop.f32.mrb[0].mxu0
      %2919 = vmatprep.mubr.bf16.mxu0 0
      %2920 = vmatmul.mubr.bf16.gmra.mrb[0].mxu0 %v2805
      %v2921 = vpop.f32.mrb[0].mxu0
      %v2922 = vadd.f32 %v2116, %v2921
      %v2923 = vpop.f32.mrb[0].mxu0
      %v2924 = vpop.f32.mrb[0].mxu0
      %v2925 = vadd.f32 %v2116, %v2924
      %v2926 = vpop.f32.mrb[0].mxu0
      %2927 = vmatprep.mubr.bf16.mxu0 0
      %2928 = vmatmul.mubr.bf16.gmra.mrb[0].mxu0 %v2808
      %v2929 = vpop.f32.mrb[0].mxu0
      %v2930 = vadd.f32 %v2116, %v2929
      %v2931 = vpop.f32.mrb[0].mxu0
      %v2932 = vpop.f32.mrb[0].mxu0
      %v2933 = vadd.f32 %v2116, %v2932
      %v2934 = vpop.f32.mrb[0].mxu0
      %2935 = vmatprep.mubr.bf16.mxu0 0
      %2936 = vmatmul.mubr.bf16.gmra.mrb[0].mxu0 %v2811
      %v2937 = vpop.f32.mrb[0].mxu0
      %v2938 = vadd.f32 %v2116, %v2937
      %v2939 = vpop.f32.mrb[0].mxu0
      %v2940 = vpop.f32.mrb[0].mxu0
      %v2941 = vadd.f32 %v2116, %v2940
      %v2942 = vpop.f32.mrb[0].mxu0
      %2943 = vmatprep.mubr.bf16.mxu0 0
      %2944 = vmatmul.mubr.bf16.gmra.mrb[0].mxu0 %v2814
      %v2945 = vpop.f32.mrb[0].mxu0
      %v2946 = vadd.f32 %v2116, %v2945
      %v2947 = vpop.f32.mrb[0].mxu0
      %v2948 = vpop.f32.mrb[0].mxu0
      %v2949 = vadd.f32 %v2116, %v2948
      %v2950 = vpop.f32.mrb[0].mxu0
      %2951 = vmatprep.mubr.bf16.mxu0 0
      %2952 = vmatmul.mubr.bf16.gmra.mrb[0].mxu0 %v2817
      %v2953 = vpop.f32.mrb[0].mxu0
      %v2954 = vadd.f32 %v2116, %v2953
      %v2955 = vpop.f32.mrb[0].mxu0
      %v2956 = vpop.f32.mrb[0].mxu0
      %v2957 = vadd.f32 %v2116, %v2956
      %v2958 = vpop.f32.mrb[0].mxu0
      %2959 = vmatprep.mubr.bf16.mxu0 0
      %2960 = vmatmul.mubr.bf16.gmra.mrb[0].mxu0 %v2820
      %v2961 = vpop.f32.mrb[0].mxu0
      %v2962 = vadd.f32 %v2116, %v2961
      %v2963 = vpop.f32.mrb[0].mxu0
      %v2964 = vpop.f32.mrb[0].mxu0
      %v2965 = vadd.f32 %v2116, %v2964
      %v2966 = vpop.f32.mrb[0].mxu0
      %2967 = vmatprep.mubr.bf16.mxu0 0
      %2968 = vmatmul.mubr.bf16.gmra.mrb[0].mxu0 %v2823
      %v2969 = vpop.f32.mrb[0].mxu0
      %v2970 = vadd.f32 %v2116, %v2969
      %v2971 = vpop.f32.mrb[0].mxu0
      %v2972 = vpop.f32.mrb[0].mxu0
      %v2973 = vadd.f32 %v2116, %v2972
      %v2974 = vpop.f32.mrb[0].mxu0
      %2975 = vmatprep.mubr.bf16.mxu0 0
      %2976 = vmatmul.mubr.bf16.gmra.mrb[0].mxu0 %v2826
      %v2977 = vpop.f32.mrb[0].mxu0
      %v2978 = vadd.f32 %v2116, %v2977
      %v2979 = vpop.f32.mrb[0].mxu0
      %v2980 = vpop.f32.mrb[0].mxu0
      %v2981 = vadd.f32 %v2116, %v2980
      %v2982 = vpop.f32.mrb[0].mxu0
      %2983 = vmatprep.mubr.bf16.mxu0 0
      %2984 = vmatmul.mubr.bf16.gmra.mrb[0].mxu0 %v2829
      %v2985 = vpop.f32.mrb[0].mxu0
      %v2986 = vadd.f32 %v2116, %v2985
      %v2987 = vpop.f32.mrb[0].mxu0
      %v2988 = vpop.f32.mrb[0].mxu0
      %v2989 = vadd.f32 %v2116, %v2988
      %v2990 = vpop.f32.mrb[0].mxu0
      %2991 = vdwg.mxu0
      %2992 = vmax.xlane.f32.xlu0 %v2866
      %v2993 = vpop.xlane.xlu0 %2992
      %2994 = vmax.xlane.f32.xlu0 %v2869
      %v2995 = vpop.xlane.xlu0 %2994
      %2996 = vmax.xlane.f32.xlu0 %v2874
      %v2997 = vpop.xlane.xlu0 %2996
      %2998 = vmax.xlane.f32.xlu0 %v2877
      %v2999 = vpop.xlane.xlu0 %2998
      %3000 = vmax.xlane.f32.xlu0 %v2882
      %v3001 = vpop.xlane.xlu0 %3000
      %3002 = vmax.xlane.f32.xlu0 %v2885
      %v3003 = vpop.xlane.xlu0 %3002
      %3004 = vmax.xlane.f32.xlu0 %v2890
      %v3005 = vpop.xlane.xlu0 %3004
      %3006 = vmax.xlane.f32.xlu0 %v2893
      %v3007 = vpop.xlane.xlu0 %3006
      %3008 = vmax.xlane.f32.xlu0 %v2898
      %v3009 = vpop.xlane.xlu0 %3008
      %3010 = vmax.xlane.f32.xlu0 %v2901
      %v3011 = vpop.xlane.xlu0 %3010
      %3012 = vmax.xlane.f32.xlu0 %v2906
      %v3013 = vpop.xlane.xlu0 %3012
      %3014 = vmax.xlane.f32.xlu0 %v2909
      %v3015 = vpop.xlane.xlu0 %3014
      %3016 = vmax.xlane.f32.xlu0 %v2914
      %v3017 = vpop.xlane.xlu0 %3016
      %3018 = vmax.xlane.f32.xlu0 %v2917
      %v3019 = vpop.xlane.xlu0 %3018
      %3020 = vmax.xlane.f32.xlu0 %v2922
      %v3021 = vpop.xlane.xlu0 %3020
      %3022 = vmax.xlane.f32.xlu0 %v2925
      %v3023 = vpop.xlane.xlu0 %3022
      %3024 = vmax.xlane.f32.xlu0 %v2930
      %v3025 = vpop.xlane.xlu0 %3024
      %3026 = vmax.xlane.f32.xlu0 %v2933
      %v3027 = vpop.xlane.xlu0 %3026
      %3028 = vmax.xlane.f32.xlu0 %v2938
      %v3029 = vpop.xlane.xlu0 %3028
      %3030 = vmax.xlane.f32.xlu0 %v2941
      %v3031 = vpop.xlane.xlu0 %3030
      %3032 = vmax.xlane.f32.xlu0 %v2946
      %v3033 = vpop.xlane.xlu0 %3032
      %3034 = vmax.xlane.f32.xlu0 %v2949
      %v3035 = vpop.xlane.xlu0 %3034
      %3036 = vmax.xlane.f32.xlu0 %v2954
      %v3037 = vpop.xlane.xlu0 %3036
      %3038 = vmax.xlane.f32.xlu0 %v2957
      %v3039 = vpop.xlane.xlu0 %3038
      %3040 = vmax.xlane.f32.xlu0 %v2962
      %v3041 = vpop.xlane.xlu0 %3040
      %3042 = vmax.xlane.f32.xlu0 %v2965
      %v3043 = vpop.xlane.xlu0 %3042
      %3044 = vmax.xlane.f32.xlu0 %v2970
      %v3045 = vpop.xlane.xlu0 %3044
      %3046 = vmax.xlane.f32.xlu0 %v2973
      %v3047 = vpop.xlane.xlu0 %3046
      %3048 = vmax.xlane.f32.xlu0 %v2978
      %v3049 = vpop.xlane.xlu0 %3048
      %3050 = vmax.xlane.f32.xlu0 %v2981
      %v3051 = vpop.xlane.xlu0 %3050
      %3052 = vmax.xlane.f32.xlu0 %v2986
      %v3053 = vpop.xlane.xlu0 %3052
      %3054 = vmax.xlane.f32.xlu0 %v2989
      %v3055 = vpop.xlane.xlu0 %3054
      %v3056 = vsub.f32 %v2866, %v2993
      %v3057 = vsub.f32 %v2869, %v2995
      %v3058 = vsub.f32 %v2874, %v2997
      %v3059 = vsub.f32 %v2877, %v2999
      %v3060 = vsub.f32 %v2882, %v3001
      %v3061 = vsub.f32 %v2885, %v3003
      %v3062 = vsub.f32 %v2890, %v3005
      %v3063 = vsub.f32 %v2893, %v3007
      %v3064 = vsub.f32 %v2898, %v3009
      %v3065 = vsub.f32 %v2901, %v3011
      %v3066 = vsub.f32 %v2906, %v3013
      %v3067 = vsub.f32 %v2909, %v3015
      %v3068 = vsub.f32 %v2914, %v3017
      %v3069 = vsub.f32 %v2917, %v3019
      %v3070 = vsub.f32 %v2922, %v3021
      %v3071 = vsub.f32 %v2925, %v3023
      %v3072 = vsub.f32 %v2930, %v3025
      %v3073 = vsub.f32 %v2933, %v3027
      %v3074 = vsub.f32 %v2938, %v3029
      %v3075 = vsub.f32 %v2941, %v3031
      %v3076 = vsub.f32 %v2946, %v3033
      %v3077 = vsub.f32 %v2949, %v3035
      %v3078 = vsub.f32 %v2954, %v3037
      %v3079 = vsub.f32 %v2957, %v3039
      %v3080 = vsub.f32 %v2962, %v3041
      %v3081 = vsub.f32 %v2965, %v3043
      %v3082 = vsub.f32 %v2970, %v3045
      %v3083 = vsub.f32 %v2973, %v3047
      %v3084 = vsub.f32 %v2978, %v3049
      %v3085 = vsub.f32 %v2981, %v3051
      %v3086 = vsub.f32 %v2986, %v3053
      %v3087 = vsub.f32 %v2989, %v3055
      %v3088 = vmul.f32 %v3056, 1.442695
      %v3089 = vpow.pop %v3088
      %v3090 = vmul.f32 %v3057, 1.442695
      %v3091 = vpow.pop %v3090
      %v3092 = vmul.f32 %v3058, 1.442695
      %v3093 = vpow.pop %v3092
      %v3094 = vmul.f32 %v3059, 1.442695
      %v3095 = vpow.pop %v3094
      %v3096 = vmul.f32 %v3060, 1.442695
      %v3097 = vpow.pop %v3096
      %v3098 = vmul.f32 %v3061, 1.442695
      %v3099 = vpow.pop %v3098
      %v3100 = vmul.f32 %v3062, 1.442695
      %v3101 = vpow.pop %v3100
      %v3102 = vmul.f32 %v3063, 1.442695
      %v3103 = vpow.pop %v3102
      %v3104 = vmul.f32 %v3064, 1.442695
      %v3105 = vpow.pop %v3104
      %v3106 = vmul.f32 %v3065, 1.442695
      %v3107 = vpow.pop %v3106
      %v3108 = vmul.f32 %v3066, 1.442695
      %v3109 = vpow.pop %v3108
      %v3110 = vmul.f32 %v3067, 1.442695
      %v3111 = vpow.pop %v3110
      %v3112 = vmul.f32 %v3068, 1.442695
      %v3113 = vpow.pop %v3112
      %v3114 = vmul.f32 %v3069, 1.442695
      %v3115 = vpow.pop %v3114
      %v3116 = vmul.f32 %v3070, 1.442695
      %v3117 = vpow.pop %v3116
      %v3118 = vmul.f32 %v3071, 1.442695
      %v3119 = vpow.pop %v3118
      %v3120 = vmul.f32 %v3072, 1.442695
      %v3121 = vpow.pop %v3120
      %v3122 = vmul.f32 %v3073, 1.442695
      %v3123 = vpow.pop %v3122
      %v3124 = vmul.f32 %v3074, 1.442695
      %v3125 = vpow.pop %v3124
      %v3126 = vmul.f32 %v3075, 1.442695
      %v3127 = vpow.pop %v3126
      %v3128 = vmul.f32 %v3076, 1.442695
      %v3129 = vpow.pop %v3128
      %v3130 = vmul.f32 %v3077, 1.442695
      %v3131 = vpow.pop %v3130
      %v3132 = vmul.f32 %v3078, 1.442695
      %v3133 = vpow.pop %v3132
      %v3134 = vmul.f32 %v3079, 1.442695
      %v3135 = vpow.pop %v3134
      %v3136 = vmul.f32 %v3080, 1.442695
      %v3137 = vpow.pop %v3136
      %v3138 = vmul.f32 %v3081, 1.442695
      %v3139 = vpow.pop %v3138
      %v3140 = vmul.f32 %v3082, 1.442695
      %v3141 = vpow.pop %v3140
      %v3142 = vmul.f32 %v3083, 1.442695
      %v3143 = vpow.pop %v3142
      %v3144 = vmul.f32 %v3084, 1.442695
      %v3145 = vpow.pop %v3144
      %v3146 = vmul.f32 %v3085, 1.442695
      %v3147 = vpow.pop %v3146
      %v3148 = vmul.f32 %v3086, 1.442695
      %v3149 = vpow.pop %v3148
      %v3150 = vmul.f32 %v3087, 1.442695
      %v3151 = vpow.pop %v3150
      %3152 = vadd.xlane.f32.xlu0 %v3089
      %v3153 = vpop.xlane.xlu0 %3152
      %3154 = vadd.xlane.f32.xlu0 %v3091
      %v3155 = vpop.xlane.xlu0 %3154
      %3156 = vadd.xlane.f32.xlu0 %v3093
      %v3157 = vpop.xlane.xlu0 %3156
      %3158 = vadd.xlane.f32.xlu0 %v3095
      %v3159 = vpop.xlane.xlu0 %3158
      %3160 = vadd.xlane.f32.xlu0 %v3097
      %v3161 = vpop.xlane.xlu0 %3160
      %3162 = vadd.xlane.f32.xlu0 %v3099
      %v3163 = vpop.xlane.xlu0 %3162
      %3164 = vadd.xlane.f32.xlu0 %v3101
      %v3165 = vpop.xlane.xlu0 %3164
      %3166 = vadd.xlane.f32.xlu0 %v3103
      %v3167 = vpop.xlane.xlu0 %3166
      %3168 = vadd.xlane.f32.xlu0 %v3105
      %v3169 = vpop.xlane.xlu0 %3168
      %3170 = vadd.xlane.f32.xlu0 %v3107
      %v3171 = vpop.xlane.xlu0 %3170
      %3172 = vadd.xlane.f32.xlu0 %v3109
      %v3173 = vpop.xlane.xlu0 %3172
      %3174 = vadd.xlane.f32.xlu0 %v3111
      %v3175 = vpop.xlane.xlu0 %3174
      %3176 = vadd.xlane.f32.xlu0 %v3113
      %v3177 = vpop.xlane.xlu0 %3176
      %3178 = vadd.xlane.f32.xlu0 %v3115
      %v3179 = vpop.xlane.xlu0 %3178
      %3180 = vadd.xlane.f32.xlu0 %v3117
      %v3181 = vpop.xlane.xlu0 %3180
      %3182 = vadd.xlane.f32.xlu0 %v3119
      %v3183 = vpop.xlane.xlu0 %3182
      %3184 = vadd.xlane.f32.xlu0 %v3121
      %v3185 = vpop.xlane.xlu0 %3184
      %3186 = vadd.xlane.f32.xlu0 %v3123
      %v3187 = vpop.xlane.xlu0 %3186
      %3188 = vadd.xlane.f32.xlu0 %v3125
      %v3189 = vpop.xlane.xlu0 %3188
      %3190 = vadd.xlane.f32.xlu0 %v3127
      %v3191 = vpop.xlane.xlu0 %3190
      %3192 = vadd.xlane.f32.xlu0 %v3129
      %v3193 = vpop.xlane.xlu0 %3192
      %3194 = vadd.xlane.f32.xlu0 %v3131
      %v3195 = vpop.xlane.xlu0 %3194
      %3196 = vadd.xlane.f32.xlu0 %v3133
      %v3197 = vpop.xlane.xlu0 %3196
      %3198 = vadd.xlane.f32.xlu0 %v3135
      %v3199 = vpop.xlane.xlu0 %3198
      %3200 = vadd.xlane.f32.xlu0 %v3137
      %v3201 = vpop.xlane.xlu0 %3200
      %3202 = vadd.xlane.f32.xlu0 %v3139
      %v3203 = vpop.xlane.xlu0 %3202
      %3204 = vadd.xlane.f32.xlu0 %v3141
      %v3205 = vpop.xlane.xlu0 %3204
      %3206 = vadd.xlane.f32.xlu0 %v3143
      %v3207 = vpop.xlane.xlu0 %3206
      %3208 = vadd.xlane.f32.xlu0 %v3145
      %v3209 = vpop.xlane.xlu0 %3208
      %3210 = vadd.xlane.f32.xlu0 %v3147
      %v3211 = vpop.xlane.xlu0 %3210
      %3212 = vadd.xlane.f32.xlu0 %v3149
      %v3213 = vpop.xlane.xlu0 %3212
      %3214 = vadd.xlane.f32.xlu0 %v3151
      %v3215 = vpop.xlane.xlu0 %3214
      %v3216 = vrcp.pop %v3153
      %v3217 = vrcp.pop %v3155
      %v3218 = vrcp.pop %v3157
      %v3219 = vrcp.pop %v3159
      %v3220 = vrcp.pop %v3161
      %v3221 = vrcp.pop %v3163
      %v3222 = vrcp.pop %v3165
      %v3223 = vrcp.pop %v3167
      %v3224 = vrcp.pop %v3169
      %v3225 = vrcp.pop %v3171
      %v3226 = vrcp.pop %v3173
      %v3227 = vrcp.pop %v3175
      %v3228 = vrcp.pop %v3177
      %v3229 = vrcp.pop %v3179
      %v3230 = vrcp.pop %v3181
      %v3231 = vrcp.pop %v3183
      %v3232 = vrcp.pop %v3185
      %v3233 = vrcp.pop %v3187
      %v3234 = vrcp.pop %v3189
      %v3235 = vrcp.pop %v3191
      %v3236 = vrcp.pop %v3193
      %v3237 = vrcp.pop %v3195
      %v3238 = vrcp.pop %v3197
      %v3239 = vrcp.pop %v3199
      %v3240 = vrcp.pop %v3201
      %v3241 = vrcp.pop %v3203
      %v3242 = vrcp.pop %v3205
      %v3243 = vrcp.pop %v3207
      %v3244 = vrcp.pop %v3209
      %v3245 = vrcp.pop %v3211
      %v3246 = vrcp.pop %v3213
      %v3247 = vrcp.pop %v3215
      %v3248 = vmul.f32 %v3089, %v3216
      %v3249 = vmul.f32 %v3091, %v3217
      %v3250 = vmul.f32 %v3093, %v3218
      %v3251 = vmul.f32 %v3095, %v3219
      %v3252 = vmul.f32 %v3097, %v3220
      %v3253 = vmul.f32 %v3099, %v3221
      %v3254 = vmul.f32 %v3101, %v3222
      %v3255 = vmul.f32 %v3103, %v3223
      %v3256 = vmul.f32 %v3105, %v3224
      %v3257 = vmul.f32 %v3107, %v3225
      %v3258 = vmul.f32 %v3109, %v3226
      %v3259 = vmul.f32 %v3111, %v3227
      %v3260 = vmul.f32 %v3113, %v3228
      %v3261 = vmul.f32 %v3115, %v3229
      %v3262 = vmul.f32 %v3117, %v3230
      %v3263 = vmul.f32 %v3119, %v3231
      %v3264 = vmul.f32 %v3121, %v3232
      %v3265 = vmul.f32 %v3123, %v3233
      %v3266 = vmul.f32 %v3125, %v3234
      %v3267 = vmul.f32 %v3127, %v3235
      %v3268 = vmul.f32 %v3129, %v3236
      %v3269 = vmul.f32 %v3131, %v3237
      %v3270 = vmul.f32 %v3133, %v3238
      %v3271 = vmul.f32 %v3135, %v3239
      %v3272 = vmul.f32 %v3137, %v3240
      %v3273 = vmul.f32 %v3139, %v3241
      %v3274 = vmul.f32 %v3141, %v3242
      %v3275 = vmul.f32 %v3143, %v3243
      %v3276 = vmul.f32 %v3145, %v3244
      %v3277 = vmul.f32 %v3147, %v3245
      %v3278 = vmul.f32 %v3149, %v3246
      %v3279 = vmul.f32 %v3151, %v3247
      %v3280 = vpack.c.bf16 %v3249, %v3248
      %v3281 = vpack.c.bf16 %v3251, %v3250
      %v3282 = vpack.c.bf16 %v3253, %v3252
      %v3283 = vpack.c.bf16 %v3255, %v3254
      %v3284 = vpack.c.bf16 %v3257, %v3256
      %v3285 = vpack.c.bf16 %v3259, %v3258
      %v3286 = vpack.c.bf16 %v3261, %v3260
      %v3287 = vpack.c.bf16 %v3263, %v3262
      %v3288 = vpack.c.bf16 %v3265, %v3264
      %v3289 = vpack.c.bf16 %v3267, %v3266
      %v3290 = vpack.c.bf16 %v3269, %v3268
      %v3291 = vpack.c.bf16 %v3271, %v3270
      %v3292 = vpack.c.bf16 %v3273, %v3272
      %v3293 = vpack.c.bf16 %v3275, %v3274
      %v3294 = vpack.c.bf16 %v3277, %v3276
      %v3295 = vpack.c.bf16 %v3279, %v3278
      %3296 = vmatprep.subr.bf16.mxu0 0
      %3297 = vmatpush1.bf16.xpose.msra.mxu0 %v3280
      %3298 = vmatprep.subr.bf16.mxu0 0
      %3299 = vmatpush1.bf16.xpose.msra.mxu0 %v3281
      %3300 = vmatprep.subr.bf16.mxu0 0
      %3301 = vmatpush1.bf16.xpose.msra.mxu0 %v3282
      %3302 = vmatprep.subr.bf16.mxu0 0
      %3303 = vmatpush1.bf16.xpose.msra.mxu0 %v3283
      %3304 = vmatprep.subr.bf16.mxu0 0
      %3305 = vmatpush1.bf16.xpose.msra.mxu0 %v3284
      %3306 = vmatprep.subr.bf16.mxu0 0
      %3307 = vmatpush1.bf16.xpose.msra.mxu0 %v3285
      %3308 = vmatprep.subr.bf16.mxu0 0
      %3309 = vmatpush1.bf16.xpose.msra.mxu0 %v3286
      %3310 = vmatprep.subr.bf16.mxu0 0
      %3311 = vmatpush1.bf16.xpose.msra.mxu0 %v3287
      %3312 = vmatprep.subr.bf16.mxu0 0
      %3313 = vmatpush1.bf16.xpose.msra.mxu0 %v3288
      %3314 = vmatprep.subr.bf16.mxu0 0
      %3315 = vmatpush1.bf16.xpose.msra.mxu0 %v3289
      %3316 = vmatprep.subr.bf16.mxu0 0
      %3317 = vmatpush1.bf16.xpose.msra.mxu0 %v3290
      %3318 = vmatprep.subr.bf16.mxu0 0
      %3319 = vmatpush1.bf16.xpose.msra.mxu0 %v3291
      %3320 = vmatprep.subr.bf16.mxu0 0
      %3321 = vmatpush1.bf16.xpose.msra.mxu0 %v3292
      %3322 = vmatprep.subr.bf16.mxu0 0
      %3323 = vmatpush1.bf16.xpose.msra.mxu0 %v3293
      %3324 = vmatprep.subr.bf16.mxu0 0
      %3325 = vmatpush1.bf16.xpose.msra.mxu0 %v3294
      %3326 = vmatprep.subr.bf16.mxu0 0
      %3327 = vmatpush1.bf16.xpose.msra.mxu0 %v3295
      %3328 = vmatprep.mubr.bf16.mxu0 0
      %3329 = vmatmul.mubr.bf16.gmra.mrb[0].mxu0 %v2085
      %v3330 = vpop.f32.mrb[0].mxu0
      %v3331 = vadd.f32 0.0, %v3330
      %v3332 = vpop.f32.mrb[0].mxu0
      %v3333 = vadd.f32 0.0, %v3332
      %v3334 = vpop.f32.mrb[0].mxu0
      %v3335 = vadd.f32 0.0, %v3334
      %v3336 = vpop.f32.mrb[0].mxu0
      %v3337 = vadd.f32 0.0, %v3336
      %3338 = vmatprep.mubr.bf16.mxu0 0
      %3339 = vmatmul.mubr.bf16.gmra.mrb[0].mxu0 %v2086
      %v3340 = vpop.f32.mrb[0].mxu0
      %v3341 = vadd.f32 0.0, %v3340
      %v3342 = vpop.f32.mrb[0].mxu0
      %v3343 = vadd.f32 0.0, %v3342
      %v3344 = vpop.f32.mrb[0].mxu0
      %v3345 = vadd.f32 0.0, %v3344
      %v3346 = vpop.f32.mrb[0].mxu0
      %v3347 = vadd.f32 0.0, %v3346
      %3348 = vmatprep.mubr.bf16.mxu0 0
      %3349 = vmatmul.mubr.bf16.gmra.mrb[0].mxu0 %v2087
      %v3350 = vpop.f32.mrb[0].mxu0
      %v3351 = vadd.f32 0.0, %v3350
      %v3352 = vpop.f32.mrb[0].mxu0
      %v3353 = vadd.f32 0.0, %v3352
      %v3354 = vpop.f32.mrb[0].mxu0
      %v3355 = vadd.f32 0.0, %v3354
      %v3356 = vpop.f32.mrb[0].mxu0
      %v3357 = vadd.f32 0.0, %v3356
      %3358 = vmatprep.mubr.bf16.mxu0 0
      %3359 = vmatmul.mubr.bf16.gmra.mrb[0].mxu0 %v2088
      %v3360 = vpop.f32.mrb[0].mxu0
      %v3361 = vadd.f32 0.0, %v3360
      %v3362 = vpop.f32.mrb[0].mxu0
      %v3363 = vadd.f32 0.0, %v3362
      %v3364 = vpop.f32.mrb[0].mxu0
      %v3365 = vadd.f32 0.0, %v3364
      %v3366 = vpop.f32.mrb[0].mxu0
      %v3367 = vadd.f32 0.0, %v3366
      %3368 = vdwg.mxu0
      %v3369 = vpack.c.bf16 %v3335, %v3331
      %v3370 = vpack.c.bf16 %v3337, %v3333
      %v3371 = vpack.c.bf16 %v3345, %v3341
      %v3372 = vpack.c.bf16 %v3347, %v3343
      %v3373 = vpack.c.bf16 %v3355, %v3351
      %v3374 = vpack.c.bf16 %v3357, %v3353
      %v3375 = vpack.c.bf16 %v3365, %v3361
      %v3376 = vpack.c.bf16 %v3367, %v3363
      %3377 = vst [vmem:[#allocation2 + $0x40] sm:$0xff] %v3369
      %3378 = vst [vmem:[#allocation2 + $0x48] sm:$0xff] %v3370
      %3379 = vst [vmem:[#allocation2 + $0x50] sm:$0xff] %v3371
      %3380 = vst [vmem:[#allocation2 + $0x58] sm:$0xff] %v3372
      %3381 = vst [vmem:[#allocation2 + $0x60] sm:$0xff] %v3373
      %3382 = vst [vmem:[#allocation2 + $0x68] sm:$0xff] %v3374
      %3383 = vst [vmem:[#allocation2 + $0x70] sm:$0xff] %v3375
      %3384 = vst [vmem:[#allocation2 + $0x78] sm:$0xff] %v3376
      %3385 = vxpose.xlu0.c.b16.start [1/8] %v879, 128
      %3386 = vxpose.xlu0.c.b16.cont [2/8] %v881, 128
      %3387 = vxpose.xlu0.c.b16.cont [3/8] %v883, 128
      %3388 = vxpose.xlu0.c.b16.cont [4/8] %v885, 128
      %3389 = vxpose.xlu0.c.b16.cont [5/8] 0, 128
      %3390 = vxpose.xlu0.c.b16.cont [6/8] 0, 128
      %3391 = vxpose.xlu0.c.b16.cont [7/8] 0, 128
      %3392 = vxpose.xlu0.c.b16.end [8/8] 0, 128
      %v3393 = vpop.trf.xlu0
      %v3394 = vpop.trf.xlu0
      %v3395 = vpop.trf.xlu0
      %v3396 = vpop.trf.xlu0
      %v3397 = vpop.trf.xlu0
      %v3398 = vpop.trf.xlu0
      %v3399 = vpop.trf.xlu0
      %v3400 = vpop.trf.xlu0
      %3401 = vxpose.xlu0.c.b16.start [1/8] %v880, 128
      %3402 = vxpose.xlu0.c.b16.cont [2/8] %v882, 128
      %3403 = vxpose.xlu0.c.b16.cont [3/8] %v884, 128
      %3404 = vxpose.xlu0.c.b16.cont [4/8] %v886, 128
      %3405 = vxpose.xlu0.c.b16.cont [5/8] 0, 128
      %3406 = vxpose.xlu0.c.b16.cont [6/8] 0, 128
      %3407 = vxpose.xlu0.c.b16.cont [7/8] 0, 128
      %3408 = vxpose.xlu0.c.b16.end [8/8] 0, 128
      %v3409 = vpop.trf.xlu0
      %v3410 = vpop.trf.xlu0
      %v3411 = vpop.trf.xlu0
      %v3412 = vpop.trf.xlu0
      %v3413 = vpop.trf.xlu0
      %v3414 = vpop.trf.xlu0
      %v3415 = vpop.trf.xlu0
      %v3416 = vpop.trf.xlu0
      %v3418 = vsel %vm1287, %v3393, 0
      %v3421 = vsel %vm1287, %v3394, 0
      %v3424 = vsel %vm1287, %v3395, 0
      %v3427 = vsel %vm1287, %v3396, 0
      %v3430 = vsel %vm1287, %v3397, 0
      %v3433 = vsel %vm1287, %v3398, 0
      %v3436 = vsel %vm1287, %v3399, 0
      %v3439 = vsel %vm1287, %v3400, 0
      %v3442 = vsel %vm1287, %v3409, 0
      %v3445 = vsel %vm1287, %v3410, 0
      %v3448 = vsel %vm1287, %v3411, 0
      %v3451 = vsel %vm1287, %v3412, 0
      %v3454 = vsel %vm1287, %v3413, 0
      %v3457 = vsel %vm1287, %v3414, 0
      %v3460 = vsel %vm1287, %v3415, 0
      %v3463 = vsel %vm1287, %v3416, 0
      %3465 = vmatprep.subr.bf16.mxu0 0
      %3466 = vmatpush1.bf16.msra.mxu0 %v2057
      %3467 = vmatprep.subr.bf16.mxu0 0
      %3468 = vmatpush1.bf16.msra.mxu0 %v2058
      %3469 = vmatprep.subr.bf16.mxu0 0
      %3470 = vmatpush1.bf16.msra.mxu0 %v2059
      %3471 = vmatprep.subr.bf16.mxu0 0
      %3472 = vmatpush1.bf16.msra.mxu0 %v2060
      %3473 = vmatprep.subr.bf16.mxu0 0
      %3474 = vmatpush1.bf16.msra.mxu0 0
      %3475 = vmatprep.subr.bf16.mxu0 0
      %3476 = vmatpush1.bf16.msra.mxu0 0
      %3477 = vmatprep.subr.bf16.mxu0 0
      %3478 = vmatpush1.bf16.msra.mxu0 0
      %3479 = vmatprep.subr.bf16.mxu0 0
      %3480 = vmatpush1.bf16.msra.mxu0 0
      %3481 = vmatprep.subr.bf16.mxu0 0
      %3482 = vmatpush1.bf16.msra.mxu0 0
      %3483 = vmatprep.subr.bf16.mxu0 0
      %3484 = vmatpush1.bf16.msra.mxu0 0
      %3485 = vmatprep.subr.bf16.mxu0 0
      %3486 = vmatpush1.bf16.msra.mxu0 0
      %3487 = vmatprep.subr.bf16.mxu0 0
      %3488 = vmatpush1.bf16.msra.mxu0 0
      %3489 = vmatprep.subr.bf16.mxu0 0
      %3490 = vmatpush1.bf16.msra.mxu0 0
      %3491 = vmatprep.subr.bf16.mxu0 0
      %3492 = vmatpush1.bf16.msra.mxu0 0
      %3493 = vmatprep.subr.bf16.mxu0 0
      %3494 = vmatpush1.bf16.msra.mxu0 0
      %3495 = vmatprep.subr.bf16.mxu0 0
      %3496 = vmatpush1.bf16.msra.mxu0 0
      %3497 = vmatprep.mubr.bf16.mxu0 0
      %3498 = vmatmul.mubr.bf16.gmra.mrb[0].mxu0 %v3418
      %v3499 = vpop.f32.mrb[0].mxu0
      %v3500 = vadd.f32 %v2116, %v3499
      %v3501 = vpop.f32.mrb[0].mxu0
      %v3502 = vpop.f32.mrb[0].mxu0
      %v3503 = vadd.f32 %v2116, %v3502
      %v3504 = vpop.f32.mrb[0].mxu0
      %3505 = vmatprep.mubr.bf16.mxu0 0
      %3506 = vmatmul.mubr.bf16.gmra.mrb[0].mxu0 %v3421
      %v3507 = vpop.f32.mrb[0].mxu0
      %v3508 = vadd.f32 %v2116, %v3507
      %v3509 = vpop.f32.mrb[0].mxu0
      %v3510 = vpop.f32.mrb[0].mxu0
      %v3511 = vadd.f32 %v2116, %v3510
      %v3512 = vpop.f32.mrb[0].mxu0
      %3513 = vmatprep.mubr.bf16.mxu0 0
      %3514 = vmatmul.mubr.bf16.gmra.mrb[0].mxu0 %v3424
      %v3515 = vpop.f32.mrb[0].mxu0
      %v3516 = vadd.f32 %v2116, %v3515
      %v3517 = vpop.f32.mrb[0].mxu0
      %v3518 = vpop.f32.mrb[0].mxu0
      %v3519 = vadd.f32 %v2116, %v3518
      %v3520 = vpop.f32.mrb[0].mxu0
      %3521 = vmatprep.mubr.bf16.mxu0 0
      %3522 = vmatmul.mubr.bf16.gmra.mrb[0].mxu0 %v3427
      %v3523 = vpop.f32.mrb[0].mxu0
      %v3524 = vadd.f32 %v2116, %v3523
      %v3525 = vpop.f32.mrb[0].mxu0
      %v3526 = vpop.f32.mrb[0].mxu0
      %v3527 = vadd.f32 %v2116, %v3526
      %v3528 = vpop.f32.mrb[0].mxu0
      %3529 = vmatprep.mubr.bf16.mxu0 0
      %3530 = vmatmul.mubr.bf16.gmra.mrb[0].mxu0 %v3430
      %v3531 = vpop.f32.mrb[0].mxu0
      %v3532 = vadd.f32 %v2116, %v3531
      %v3533 = vpop.f32.mrb[0].mxu0
      %v3534 = vpop.f32.mrb[0].mxu0
      %v3535 = vadd.f32 %v2116, %v3534
      %v3536 = vpop.f32.mrb[0].mxu0
      %3537 = vmatprep.mubr.bf16.mxu0 0
      %3538 = vmatmul.mubr.bf16.gmra.mrb[0].mxu0 %v3433
      %v3539 = vpop.f32.mrb[0].mxu0
      %v3540 = vadd.f32 %v2116, %v3539
      %v3541 = vpop.f32.mrb[0].mxu0
      %v3542 = vpop.f32.mrb[0].mxu0
      %v3543 = vadd.f32 %v2116, %v3542
      %v3544 = vpop.f32.mrb[0].mxu0
      %3545 = vmatprep.mubr.bf16.mxu0 0
      %3546 = vmatmul.mubr.bf16.gmra.mrb[0].mxu0 %v3436
      %v3547 = vpop.f32.mrb[0].mxu0
      %v3548 = vadd.f32 %v2116, %v3547
      %v3549 = vpop.f32.mrb[0].mxu0
      %v3550 = vpop.f32.mrb[0].mxu0
      %v3551 = vadd.f32 %v2116, %v3550
      %v3552 = vpop.f32.mrb[0].mxu0
      %3553 = vmatprep.mubr.bf16.mxu0 0
      %3554 = vmatmul.mubr.bf16.gmra.mrb[0].mxu0 %v3439
      %v3555 = vpop.f32.mrb[0].mxu0
      %v3556 = vadd.f32 %v2116, %v3555
      %v3557 = vpop.f32.mrb[0].mxu0
      %v3558 = vpop.f32.mrb[0].mxu0
      %v3559 = vadd.f32 %v2116, %v3558
      %v3560 = vpop.f32.mrb[0].mxu0
      %3561 = vmatprep.mubr.bf16.mxu0 0
      %3562 = vmatmul.mubr.bf16.gmra.mrb[0].mxu0 %v3442
      %v3563 = vpop.f32.mrb[0].mxu0
      %v3564 = vadd.f32 %v2116, %v3563
      %v3565 = vpop.f32.mrb[0].mxu0
      %v3566 = vpop.f32.mrb[0].mxu0
      %v3567 = vadd.f32 %v2116, %v3566
      %v3568 = vpop.f32.mrb[0].mxu0
      %3569 = vmatprep.mubr.bf16.mxu0 0
      %3570 = vmatmul.mubr.bf16.gmra.mrb[0].mxu0 %v3445
      %v3571 = vpop.f32.mrb[0].mxu0
      %v3572 = vadd.f32 %v2116, %v3571
      %v3573 = vpop.f32.mrb[0].mxu0
      %v3574 = vpop.f32.mrb[0].mxu0
      %v3575 = vadd.f32 %v2116, %v3574
      %v3576 = vpop.f32.mrb[0].mxu0
      %3577 = vmatprep.mubr.bf16.mxu0 0
      %3578 = vmatmul.mubr.bf16.gmra.mrb[0].mxu0 %v3448
      %v3579 = vpop.f32.mrb[0].mxu0
      %v3580 = vadd.f32 %v2116, %v3579
      %v3581 = vpop.f32.mrb[0].mxu0
      %v3582 = vpop.f32.mrb[0].mxu0
      %v3583 = vadd.f32 %v2116, %v3582
      %v3584 = vpop.f32.mrb[0].mxu0
      %3585 = vmatprep.mubr.bf16.mxu0 0
      %3586 = vmatmul.mubr.bf16.gmra.mrb[0].mxu0 %v3451
      %v3587 = vpop.f32.mrb[0].mxu0
      %v3588 = vadd.f32 %v2116, %v3587
      %v3589 = vpop.f32.mrb[0].mxu0
      %v3590 = vpop.f32.mrb[0].mxu0
      %v3591 = vadd.f32 %v2116, %v3590
      %v3592 = vpop.f32.mrb[0].mxu0
      %3593 = vmatprep.mubr.bf16.mxu0 0
      %3594 = vmatmul.mubr.bf16.gmra.mrb[0].mxu0 %v3454
      %v3595 = vpop.f32.mrb[0].mxu0
      %v3596 = vadd.f32 %v2116, %v3595
      %v3597 = vpop.f32.mrb[0].mxu0
      %v3598 = vpop.f32.mrb[0].mxu0
      %v3599 = vadd.f32 %v2116, %v3598
      %v3600 = vpop.f32.mrb[0].mxu0
      %3601 = vmatprep.mubr.bf16.mxu0 0
      %3602 = vmatmul.mubr.bf16.gmra.mrb[0].mxu0 %v3457
      %v3603 = vpop.f32.mrb[0].mxu0
      %v3604 = vadd.f32 %v2116, %v3603
      %v3605 = vpop.f32.mrb[0].mxu0
      %v3606 = vpop.f32.mrb[0].mxu0
      %v3607 = vadd.f32 %v2116, %v3606
      %v3608 = vpop.f32.mrb[0].mxu0
      %3609 = vmatprep.mubr.bf16.mxu0 0
      %3610 = vmatmul.mubr.bf16.gmra.mrb[0].mxu0 %v3460
      %v3611 = vpop.f32.mrb[0].mxu0
      %v3612 = vadd.f32 %v2116, %v3611
      %v3613 = vpop.f32.mrb[0].mxu0
      %v3614 = vpop.f32.mrb[0].mxu0
      %v3615 = vadd.f32 %v2116, %v3614
      %v3616 = vpop.f32.mrb[0].mxu0
      %3617 = vmatprep.mubr.bf16.mxu0 0
      %3618 = vmatmul.mubr.bf16.gmra.mrb[0].mxu0 %v3463
      %v3619 = vpop.f32.mrb[0].mxu0
      %v3620 = vadd.f32 %v2116, %v3619
      %v3621 = vpop.f32.mrb[0].mxu0
      %v3622 = vpop.f32.mrb[0].mxu0
      %v3623 = vadd.f32 %v2116, %v3622
      %v3624 = vpop.f32.mrb[0].mxu0
      %3625 = vdwg.mxu0
      %3626 = vmax.xlane.f32.xlu0 %v3500
      %v3627 = vpop.xlane.xlu0 %3626
      %3628 = vmax.xlane.f32.xlu0 %v3503
      %v3629 = vpop.xlane.xlu0 %3628
      %3630 = vmax.xlane.f32.xlu0 %v3508
      %v3631 = vpop.xlane.xlu0 %3630
      %3632 = vmax.xlane.f32.xlu0 %v3511
      %v3633 = vpop.xlane.xlu0 %3632
      %3634 = vmax.xlane.f32.xlu0 %v3516
      %v3635 = vpop.xlane.xlu0 %3634
      %3636 = vmax.xlane.f32.xlu0 %v3519
      %v3637 = vpop.xlane.xlu0 %3636
      %3638 = vmax.xlane.f32.xlu0 %v3524
      %v3639 = vpop.xlane.xlu0 %3638
      %3640 = vmax.xlane.f32.xlu0 %v3527
      %v3641 = vpop.xlane.xlu0 %3640
      %3642 = vmax.xlane.f32.xlu0 %v3532
      %v3643 = vpop.xlane.xlu0 %3642
      %3644 = vmax.xlane.f32.xlu0 %v3535
      %v3645 = vpop.xlane.xlu0 %3644
      %3646 = vmax.xlane.f32.xlu0 %v3540
      %v3647 = vpop.xlane.xlu0 %3646
      %3648 = vmax.xlane.f32.xlu0 %v3543
      %v3649 = vpop.xlane.xlu0 %3648
      %3650 = vmax.xlane.f32.xlu0 %v3548
      %v3651 = vpop.xlane.xlu0 %3650
      %3652 = vmax.xlane.f32.xlu0 %v3551
      %v3653 = vpop.xlane.xlu0 %3652
      %3654 = vmax.xlane.f32.xlu0 %v3556
      %v3655 = vpop.xlane.xlu0 %3654
      %3656 = vmax.xlane.f32.xlu0 %v3559
      %v3657 = vpop.xlane.xlu0 %3656
      %3658 = vmax.xlane.f32.xlu0 %v3564
      %v3659 = vpop.xlane.xlu0 %3658
      %3660 = vmax.xlane.f32.xlu0 %v3567
      %v3661 = vpop.xlane.xlu0 %3660
      %3662 = vmax.xlane.f32.xlu0 %v3572
      %v3663 = vpop.xlane.xlu0 %3662
      %3664 = vmax.xlane.f32.xlu0 %v3575
      %v3665 = vpop.xlane.xlu0 %3664
      %3666 = vmax.xlane.f32.xlu0 %v3580
      %v3667 = vpop.xlane.xlu0 %3666
      %3668 = vmax.xlane.f32.xlu0 %v3583
      %v3669 = vpop.xlane.xlu0 %3668
      %3670 = vmax.xlane.f32.xlu0 %v3588
      %v3671 = vpop.xlane.xlu0 %3670
      %3672 = vmax.xlane.f32.xlu0 %v3591
      %v3673 = vpop.xlane.xlu0 %3672
      %3674 = vmax.xlane.f32.xlu0 %v3596
      %v3675 = vpop.xlane.xlu0 %3674
      %3676 = vmax.xlane.f32.xlu0 %v3599
      %v3677 = vpop.xlane.xlu0 %3676
      %3678 = vmax.xlane.f32.xlu0 %v3604
      %v3679 = vpop.xlane.xlu0 %3678
      %3680 = vmax.xlane.f32.xlu0 %v3607
      %v3681 = vpop.xlane.xlu0 %3680
      %3682 = vmax.xlane.f32.xlu0 %v3612
      %v3683 = vpop.xlane.xlu0 %3682
      %3684 = vmax.xlane.f32.xlu0 %v3615
      %v3685 = vpop.xlane.xlu0 %3684
      %3686 = vmax.xlane.f32.xlu0 %v3620
      %v3687 = vpop.xlane.xlu0 %3686
      %3688 = vmax.xlane.f32.xlu0 %v3623
      %v3689 = vpop.xlane.xlu0 %3688
      %v3690 = vsub.f32 %v3500, %v3627
      %v3691 = vsub.f32 %v3503, %v3629
      %v3692 = vsub.f32 %v3508, %v3631
      %v3693 = vsub.f32 %v3511, %v3633
      %v3694 = vsub.f32 %v3516, %v3635
      %v3695 = vsub.f32 %v3519, %v3637
      %v3696 = vsub.f32 %v3524, %v3639
      %v3697 = vsub.f32 %v3527, %v3641
      %v3698 = vsub.f32 %v3532, %v3643
      %v3699 = vsub.f32 %v3535, %v3645
      %v3700 = vsub.f32 %v3540, %v3647
      %v3701 = vsub.f32 %v3543, %v3649
      %v3702 = vsub.f32 %v3548, %v3651
      %v3703 = vsub.f32 %v3551, %v3653
      %v3704 = vsub.f32 %v3556, %v3655
      %v3705 = vsub.f32 %v3559, %v3657
      %v3706 = vsub.f32 %v3564, %v3659
      %v3707 = vsub.f32 %v3567, %v3661
      %v3708 = vsub.f32 %v3572, %v3663
      %v3709 = vsub.f32 %v3575, %v3665
      %v3710 = vsub.f32 %v3580, %v3667
      %v3711 = vsub.f32 %v3583, %v3669
      %v3712 = vsub.f32 %v3588, %v3671
      %v3713 = vsub.f32 %v3591, %v3673
      %v3714 = vsub.f32 %v3596, %v3675
      %v3715 = vsub.f32 %v3599, %v3677
      %v3716 = vsub.f32 %v3604, %v3679
      %v3717 = vsub.f32 %v3607, %v3681
      %v3718 = vsub.f32 %v3612, %v3683
      %v3719 = vsub.f32 %v3615, %v3685
      %v3720 = vsub.f32 %v3620, %v3687
      %v3721 = vsub.f32 %v3623, %v3689
      %v3722 = vmul.f32 %v3690, 1.442695
      %v3723 = vpow.pop %v3722
      %v3724 = vmul.f32 %v3691, 1.442695
      %v3725 = vpow.pop %v3724
      %v3726 = vmul.f32 %v3692, 1.442695
      %v3727 = vpow.pop %v3726
      %v3728 = vmul.f32 %v3693, 1.442695
      %v3729 = vpow.pop %v3728
      %v3730 = vmul.f32 %v3694, 1.442695
      %v3731 = vpow.pop %v3730
      %v3732 = vmul.f32 %v3695, 1.442695
      %v3733 = vpow.pop %v3732
      %v3734 = vmul.f32 %v3696, 1.442695
      %v3735 = vpow.pop %v3734
      %v3736 = vmul.f32 %v3697, 1.442695
      %v3737 = vpow.pop %v3736
      %v3738 = vmul.f32 %v3698, 1.442695
      %v3739 = vpow.pop %v3738
      %v3740 = vmul.f32 %v3699, 1.442695
      %v3741 = vpow.pop %v3740
      %v3742 = vmul.f32 %v3700, 1.442695
      %v3743 = vpow.pop %v3742
      %v3744 = vmul.f32 %v3701, 1.442695
      %v3745 = vpow.pop %v3744
      %v3746 = vmul.f32 %v3702, 1.442695
      %v3747 = vpow.pop %v3746
      %v3748 = vmul.f32 %v3703, 1.442695
      %v3749 = vpow.pop %v3748
      %v3750 = vmul.f32 %v3704, 1.442695
      %v3751 = vpow.pop %v3750
      %v3752 = vmul.f32 %v3705, 1.442695
      %v3753 = vpow.pop %v3752
      %v3754 = vmul.f32 %v3706, 1.442695
      %v3755 = vpow.pop %v3754
      %v3756 = vmul.f32 %v3707, 1.442695
      %v3757 = vpow.pop %v3756
      %v3758 = vmul.f32 %v3708, 1.442695
      %v3759 = vpow.pop %v3758
      %v3760 = vmul.f32 %v3709, 1.442695
      %v3761 = vpow.pop %v3760
      %v3762 = vmul.f32 %v3710, 1.442695
      %v3763 = vpow.pop %v3762
      %v3764 = vmul.f32 %v3711, 1.442695
      %v3765 = vpow.pop %v3764
      %v3766 = vmul.f32 %v3712, 1.442695
      %v3767 = vpow.pop %v3766
      %v3768 = vmul.f32 %v3713, 1.442695
      %v3769 = vpow.pop %v3768
      %v3770 = vmul.f32 %v3714, 1.442695
      %v3771 = vpow.pop %v3770
      %v3772 = vmul.f32 %v3715, 1.442695
      %v3773 = vpow.pop %v3772
      %v3774 = vmul.f32 %v3716, 1.442695
      %v3775 = vpow.pop %v3774
      %v3776 = vmul.f32 %v3717, 1.442695
      %v3777 = vpow.pop %v3776
      %v3778 = vmul.f32 %v3718, 1.442695
      %v3779 = vpow.pop %v3778
      %v3780 = vmul.f32 %v3719, 1.442695
      %v3781 = vpow.pop %v3780
      %v3782 = vmul.f32 %v3720, 1.442695
      %v3783 = vpow.pop %v3782
      %v3784 = vmul.f32 %v3721, 1.442695
      %v3785 = vpow.pop %v3784
      %3786 = vadd.xlane.f32.xlu0 %v3723
      %v3787 = vpop.xlane.xlu0 %3786
      %3788 = vadd.xlane.f32.xlu0 %v3725
      %v3789 = vpop.xlane.xlu0 %3788
      %3790 = vadd.xlane.f32.xlu0 %v3727
      %v3791 = vpop.xlane.xlu0 %3790
      %3792 = vadd.xlane.f32.xlu0 %v3729
      %v3793 = vpop.xlane.xlu0 %3792
      %3794 = vadd.xlane.f32.xlu0 %v3731
      %v3795 = vpop.xlane.xlu0 %3794
      %3796 = vadd.xlane.f32.xlu0 %v3733
      %v3797 = vpop.xlane.xlu0 %3796
      %3798 = vadd.xlane.f32.xlu0 %v3735
      %v3799 = vpop.xlane.xlu0 %3798
      %3800 = vadd.xlane.f32.xlu0 %v3737
      %v3801 = vpop.xlane.xlu0 %3800
      %3802 = vadd.xlane.f32.xlu0 %v3739
      %v3803 = vpop.xlane.xlu0 %3802
      %3804 = vadd.xlane.f32.xlu0 %v3741
      %v3805 = vpop.xlane.xlu0 %3804
      %3806 = vadd.xlane.f32.xlu0 %v3743
      %v3807 = vpop.xlane.xlu0 %3806
      %3808 = vadd.xlane.f32.xlu0 %v3745
      %v3809 = vpop.xlane.xlu0 %3808
      %3810 = vadd.xlane.f32.xlu0 %v3747
      %v3811 = vpop.xlane.xlu0 %3810
      %3812 = vadd.xlane.f32.xlu0 %v3749
      %v3813 = vpop.xlane.xlu0 %3812
      %3814 = vadd.xlane.f32.xlu0 %v3751
      %v3815 = vpop.xlane.xlu0 %3814
      %3816 = vadd.xlane.f32.xlu0 %v3753
      %v3817 = vpop.xlane.xlu0 %3816
      %3818 = vadd.xlane.f32.xlu0 %v3755
      %v3819 = vpop.xlane.xlu0 %3818
      %3820 = vadd.xlane.f32.xlu0 %v3757
      %v3821 = vpop.xlane.xlu0 %3820
      %3822 = vadd.xlane.f32.xlu0 %v3759
      %v3823 = vpop.xlane.xlu0 %3822
      %3824 = vadd.xlane.f32.xlu0 %v3761
      %v3825 = vpop.xlane.xlu0 %3824
      %3826 = vadd.xlane.f32.xlu0 %v3763
      %v3827 = vpop.xlane.xlu0 %3826
      %3828 = vadd.xlane.f32.xlu0 %v3765
      %v3829 = vpop.xlane.xlu0 %3828
      %3830 = vadd.xlane.f32.xlu0 %v3767
      %v3831 = vpop.xlane.xlu0 %3830
      %3832 = vadd.xlane.f32.xlu0 %v3769
      %v3833 = vpop.xlane.xlu0 %3832
      %3834 = vadd.xlane.f32.xlu0 %v3771
      %v3835 = vpop.xlane.xlu0 %3834
      %3836 = vadd.xlane.f32.xlu0 %v3773
      %v3837 = vpop.xlane.xlu0 %3836
      %3838 = vadd.xlane.f32.xlu0 %v3775
      %v3839 = vpop.xlane.xlu0 %3838
      %3840 = vadd.xlane.f32.xlu0 %v3777
      %v3841 = vpop.xlane.xlu0 %3840
      %3842 = vadd.xlane.f32.xlu0 %v3779
      %v3843 = vpop.xlane.xlu0 %3842
      %3844 = vadd.xlane.f32.xlu0 %v3781
      %v3845 = vpop.xlane.xlu0 %3844
      %3846 = vadd.xlane.f32.xlu0 %v3783
      %v3847 = vpop.xlane.xlu0 %3846
      %3848 = vadd.xlane.f32.xlu0 %v3785
      %v3849 = vpop.xlane.xlu0 %3848
      %v3850 = vrcp.pop %v3787
      %v3851 = vrcp.pop %v3789
      %v3852 = vrcp.pop %v3791
      %v3853 = vrcp.pop %v3793
      %v3854 = vrcp.pop %v3795
      %v3855 = vrcp.pop %v3797
      %v3856 = vrcp.pop %v3799
      %v3857 = vrcp.pop %v3801
      %v3858 = vrcp.pop %v3803
      %v3859 = vrcp.pop %v3805
      %v3860 = vrcp.pop %v3807
      %v3861 = vrcp.pop %v3809
      %v3862 = vrcp.pop %v3811
      %v3863 = vrcp.pop %v3813
      %v3864 = vrcp.pop %v3815
      %v3865 = vrcp.pop %v3817
      %v3866 = vrcp.pop %v3819
      %v3867 = vrcp.pop %v3821
      %v3868 = vrcp.pop %v3823
      %v3869 = vrcp.pop %v3825
      %v3870 = vrcp.pop %v3827
      %v3871 = vrcp.pop %v3829
      %v3872 = vrcp.pop %v3831
      %v3873 = vrcp.pop %v3833
      %v3874 = vrcp.pop %v3835
      %v3875 = vrcp.pop %v3837
      %v3876 = vrcp.pop %v3839
      %v3877 = vrcp.pop %v3841
      %v3878 = vrcp.pop %v3843
      %v3879 = vrcp.pop %v3845
      %v3880 = vrcp.pop %v3847
      %v3881 = vrcp.pop %v3849
      %v3882 = vmul.f32 %v3723, %v3850
      %v3883 = vmul.f32 %v3725, %v3851
      %v3884 = vmul.f32 %v3727, %v3852
      %v3885 = vmul.f32 %v3729, %v3853
      %v3886 = vmul.f32 %v3731, %v3854
      %v3887 = vmul.f32 %v3733, %v3855
      %v3888 = vmul.f32 %v3735, %v3856
      %v3889 = vmul.f32 %v3737, %v3857
      %v3890 = vmul.f32 %v3739, %v3858
      %v3891 = vmul.f32 %v3741, %v3859
      %v3892 = vmul.f32 %v3743, %v3860
      %v3893 = vmul.f32 %v3745, %v3861
      %v3894 = vmul.f32 %v3747, %v3862
      %v3895 = vmul.f32 %v3749, %v3863
      %v3896 = vmul.f32 %v3751, %v3864
      %v3897 = vmul.f32 %v3753, %v3865
      %v3898 = vmul.f32 %v3755, %v3866
      %v3899 = vmul.f32 %v3757, %v3867
      %v3900 = vmul.f32 %v3759, %v3868
      %v3901 = vmul.f32 %v3761, %v3869
      %v3902 = vmul.f32 %v3763, %v3870
      %v3903 = vmul.f32 %v3765, %v3871
      %v3904 = vmul.f32 %v3767, %v3872
      %v3905 = vmul.f32 %v3769, %v3873
      %v3906 = vmul.f32 %v3771, %v3874
      %v3907 = vmul.f32 %v3773, %v3875
      %v3908 = vmul.f32 %v3775, %v3876
      %v3909 = vmul.f32 %v3777, %v3877
      %v3910 = vmul.f32 %v3779, %v3878
      %v3911 = vmul.f32 %v3781, %v3879
      %v3912 = vmul.f32 %v3783, %v3880
      %v3913 = vmul.f32 %v3785, %v3881
      %v3914 = vpack.c.bf16 %v3883, %v3882
      %v3915 = vpack.c.bf16 %v3885, %v3884
      %v3916 = vpack.c.bf16 %v3887, %v3886
      %v3917 = vpack.c.bf16 %v3889, %v3888
      %v3918 = vpack.c.bf16 %v3891, %v3890
      %v3919 = vpack.c.bf16 %v3893, %v3892
      %v3920 = vpack.c.bf16 %v3895, %v3894
      %v3921 = vpack.c.bf16 %v3897, %v3896
      %v3922 = vpack.c.bf16 %v3899, %v3898
      %v3923 = vpack.c.bf16 %v3901, %v3900
      %v3924 = vpack.c.bf16 %v3903, %v3902
      %v3925 = vpack.c.bf16 %v3905, %v3904
      %v3926 = vpack.c.bf16 %v3907, %v3906
      %v3927 = vpack.c.bf16 %v3909, %v3908
      %v3928 = vpack.c.bf16 %v3911, %v3910
      %v3929 = vpack.c.bf16 %v3913, %v3912
      %3930 = vmatprep.subr.bf16.mxu0 0
      %3931 = vmatpush1.bf16.xpose.msra.mxu0 %v3914
      %3932 = vmatprep.subr.bf16.mxu0 0
      %3933 = vmatpush1.bf16.xpose.msra.mxu0 %v3915
      %3934 = vmatprep.subr.bf16.mxu0 0
      %3935 = vmatpush1.bf16.xpose.msra.mxu0 %v3916
      %3936 = vmatprep.subr.bf16.mxu0 0
      %3937 = vmatpush1.bf16.xpose.msra.mxu0 %v3917
      %3938 = vmatprep.subr.bf16.mxu0 0
      %3939 = vmatpush1.bf16.xpose.msra.mxu0 %v3918
      %3940 = vmatprep.subr.bf16.mxu0 0
      %3941 = vmatpush1.bf16.xpose.msra.mxu0 %v3919
      %3942 = vmatprep.subr.bf16.mxu0 0
      %3943 = vmatpush1.bf16.xpose.msra.mxu0 %v3920
      %3944 = vmatprep.subr.bf16.mxu0 0
      %3945 = vmatpush1.bf16.xpose.msra.mxu0 %v3921
      %3946 = vmatprep.subr.bf16.mxu0 0
      %3947 = vmatpush1.bf16.xpose.msra.mxu0 %v3922
      %3948 = vmatprep.subr.bf16.mxu0 0
      %3949 = vmatpush1.bf16.xpose.msra.mxu0 %v3923
      %3950 = vmatprep.subr.bf16.mxu0 0
      %3951 = vmatpush1.bf16.xpose.msra.mxu0 %v3924
      %3952 = vmatprep.subr.bf16.mxu0 0
      %3953 = vmatpush1.bf16.xpose.msra.mxu0 %v3925
      %3954 = vmatprep.subr.bf16.mxu0 0
      %3955 = vmatpush1.bf16.xpose.msra.mxu0 %v3926
      %3956 = vmatprep.subr.bf16.mxu0 0
      %3957 = vmatpush1.bf16.xpose.msra.mxu0 %v3927
      %3958 = vmatprep.subr.bf16.mxu0 0
      %3959 = vmatpush1.bf16.xpose.msra.mxu0 %v3928
      %3960 = vmatprep.subr.bf16.mxu0 0
      %3961 = vmatpush1.bf16.xpose.msra.mxu0 %v3929
      %3962 = vmatprep.mubr.bf16.mxu0 0
      %3963 = vmatmul.mubr.bf16.gmra.mrb[0].mxu0 %v2089
      %v3964 = vpop.f32.mrb[0].mxu0
      %v3965 = vadd.f32 0.0, %v3964
      %v3966 = vpop.f32.mrb[0].mxu0
      %v3967 = vadd.f32 0.0, %v3966
      %v3968 = vpop.f32.mrb[0].mxu0
      %v3969 = vadd.f32 0.0, %v3968
      %v3970 = vpop.f32.mrb[0].mxu0
      %v3971 = vadd.f32 0.0, %v3970
      %3972 = vmatprep.mubr.bf16.mxu0 0
      %3973 = vmatmul.mubr.bf16.gmra.mrb[0].mxu0 %v2090
      %v3974 = vpop.f32.mrb[0].mxu0
      %v3975 = vadd.f32 0.0, %v3974
      %v3976 = vpop.f32.mrb[0].mxu0
      %v3977 = vadd.f32 0.0, %v3976
      %v3978 = vpop.f32.mrb[0].mxu0
      %v3979 = vadd.f32 0.0, %v3978
      %v3980 = vpop.f32.mrb[0].mxu0
      %v3981 = vadd.f32 0.0, %v3980
      %3982 = vmatprep.mubr.bf16.mxu0 0
      %3983 = vmatmul.mubr.bf16.gmra.mrb[0].mxu0 %v2091
      %v3984 = vpop.f32.mrb[0].mxu0
      %v3985 = vadd.f32 0.0, %v3984
      %v3986 = vpop.f32.mrb[0].mxu0
      %v3987 = vadd.f32 0.0, %v3986
      %v3988 = vpop.f32.mrb[0].mxu0
      %v3989 = vadd.f32 0.0, %v3988
      %v3990 = vpop.f32.mrb[0].mxu0
      %v3991 = vadd.f32 0.0, %v3990
      %3992 = vmatprep.mubr.bf16.mxu0 0
      %3993 = vmatmul.mubr.bf16.gmra.mrb[0].mxu0 %v2092
      %v3994 = vpop.f32.mrb[0].mxu0
      %v3995 = vadd.f32 0.0, %v3994
      %v3996 = vpop.f32.mrb[0].mxu0
      %v3997 = vadd.f32 0.0, %v3996
      %v3998 = vpop.f32.mrb[0].mxu0
      %v3999 = vadd.f32 0.0, %v3998
      %v4000 = vpop.f32.mrb[0].mxu0
      %v4001 = vadd.f32 0.0, %v4000
      %4002 = vdwg.mxu0
      %v4003 = vpack.c.bf16 %v3969, %v3965
      %v4004 = vpack.c.bf16 %v3971, %v3967
      %v4005 = vpack.c.bf16 %v3979, %v3975
      %v4006 = vpack.c.bf16 %v3981, %v3977
      %v4007 = vpack.c.bf16 %v3989, %v3985
      %v4008 = vpack.c.bf16 %v3991, %v3987
      %v4009 = vpack.c.bf16 %v3999, %v3995
      %v4010 = vpack.c.bf16 %v4001, %v3997
      %4011 = vst [vmem:[#allocation2 + $0x80] sm:$0xff] %v4003
      %4012 = vst [vmem:[#allocation2 + $0x88] sm:$0xff] %v4004
      %4013 = vst [vmem:[#allocation2 + $0x90] sm:$0xff] %v4005
      %4014 = vst [vmem:[#allocation2 + $0x98] sm:$0xff] %v4006
      %4015 = vst [vmem:[#allocation2 + $0xa0] sm:$0xff] %v4007
      %4016 = vst [vmem:[#allocation2 + $0xa8] sm:$0xff] %v4008
      %4017 = vst [vmem:[#allocation2 + $0xb0] sm:$0xff] %v4009
      %4018 = vst [vmem:[#allocation2 + $0xb8] sm:$0xff] %v4010
      %4019 = vxpose.xlu0.c.b16.start [1/8] %v887, 128
      %4020 = vxpose.xlu0.c.b16.cont [2/8] %v889, 128
      %4021 = vxpose.xlu0.c.b16.cont [3/8] %v891, 128
      %4022 = vxpose.xlu0.c.b16.cont [4/8] %v893, 128
      %4023 = vxpose.xlu0.c.b16.cont [5/8] 0, 128
      %4024 = vxpose.xlu0.c.b16.cont [6/8] 0, 128
      %4025 = vxpose.xlu0.c.b16.cont [7/8] 0, 128
      %4026 = vxpose.xlu0.c.b16.end [8/8] 0, 128
      %v4027 = vpop.trf.xlu0
      %v4028 = vpop.trf.xlu0
      %v4029 = vpop.trf.xlu0
      %v4030 = vpop.trf.xlu0
      %v4031 = vpop.trf.xlu0
      %v4032 = vpop.trf.xlu0
      %v4033 = vpop.trf.xlu0
      %v4034 = vpop.trf.xlu0
      %4035 = vxpose.xlu0.c.b16.start [1/8] %v888, 128
      %4036 = vxpose.xlu0.c.b16.cont [2/8] %v890, 128
      %4037 = vxpose.xlu0.c.b16.cont [3/8] %v892, 128
      %4038 = vxpose.xlu0.c.b16.cont [4/8] %v894, 128
      %4039 = vxpose.xlu0.c.b16.cont [5/8] 0, 128
      %4040 = vxpose.xlu0.c.b16.cont [6/8] 0, 128
      %4041 = vxpose.xlu0.c.b16.cont [7/8] 0, 128
      %4042 = vxpose.xlu0.c.b16.end [8/8] 0, 128
      %v4043 = vpop.trf.xlu0
      %v4044 = vpop.trf.xlu0
      %v4045 = vpop.trf.xlu0
      %v4046 = vpop.trf.xlu0
      %v4047 = vpop.trf.xlu0
      %v4048 = vpop.trf.xlu0
      %v4049 = vpop.trf.xlu0
      %v4050 = vpop.trf.xlu0
      %v4052 = vsel %vm1287, %v4027, 0
      %v4055 = vsel %vm1287, %v4028, 0
      %v4058 = vsel %vm1287, %v4029, 0
      %v4061 = vsel %vm1287, %v4030, 0
      %v4064 = vsel %vm1287, %v4031, 0
      %v4067 = vsel %vm1287, %v4032, 0
      %v4070 = vsel %vm1287, %v4033, 0
      %v4073 = vsel %vm1287, %v4034, 0
      %v4076 = vsel %vm1287, %v4043, 0
      %v4079 = vsel %vm1287, %v4044, 0
      %v4082 = vsel %vm1287, %v4045, 0
      %v4085 = vsel %vm1287, %v4046, 0
      %v4088 = vsel %vm1287, %v4047, 0
      %v4091 = vsel %vm1287, %v4048, 0
      %v4094 = vsel %vm1287, %v4049, 0
      %v4097 = vsel %vm1287, %v4050, 0
      %4099 = vmatprep.subr.bf16.mxu0 0
      %4100 = vmatpush1.bf16.msra.mxu0 %v2061
      %4101 = vmatprep.subr.bf16.mxu0 0
      %4102 = vmatpush1.bf16.msra.mxu0 %v2062
      %4103 = vmatprep.subr.bf16.mxu0 0
      %4104 = vmatpush1.bf16.msra.mxu0 %v2063
      %4105 = vmatprep.subr.bf16.mxu0 0
      %4106 = vmatpush1.bf16.msra.mxu0 %v2064
      %4107 = vmatprep.subr.bf16.mxu0 0
      %4108 = vmatpush1.bf16.msra.mxu0 0
      %4109 = vmatprep.subr.bf16.mxu0 0
      %4110 = vmatpush1.bf16.msra.mxu0 0
      %4111 = vmatprep.subr.bf16.mxu0 0
      %4112 = vmatpush1.bf16.msra.mxu0 0
      %4113 = vmatprep.subr.bf16.mxu0 0
      %4114 = vmatpush1.bf16.msra.mxu0 0
      %4115 = vmatprep.subr.bf16.mxu0 0
      %4116 = vmatpush1.bf16.msra.mxu0 0
      %4117 = vmatprep.subr.bf16.mxu0 0
      %4118 = vmatpush1.bf16.msra.mxu0 0
      %4119 = vmatprep.subr.bf16.mxu0 0
      %4120 = vmatpush1.bf16.msra.mxu0 0
      %4121 = vmatprep.subr.bf16.mxu0 0
      %4122 = vmatpush1.bf16.msra.mxu0 0
      %4123 = vmatprep.subr.bf16.mxu0 0
      %4124 = vmatpush1.bf16.msra.mxu0 0
      %4125 = vmatprep.subr.bf16.mxu0 0
      %4126 = vmatpush1.bf16.msra.mxu0 0
      %4127 = vmatprep.subr.bf16.mxu0 0
      %4128 = vmatpush1.bf16.msra.mxu0 0
      %4129 = vmatprep.subr.bf16.mxu0 0
      %4130 = vmatpush1.bf16.msra.mxu0 0
      %4131 = vmatprep.mubr.bf16.mxu0 0
      %4132 = vmatmul.mubr.bf16.gmra.mrb[0].mxu0 %v4052
      %v4133 = vpop.f32.mrb[0].mxu0
      %v4134 = vadd.f32 %v2116, %v4133
      %v4135 = vpop.f32.mrb[0].mxu0
      %v4136 = vpop.f32.mrb[0].mxu0
      %v4137 = vadd.f32 %v2116, %v4136
      %v4138 = vpop.f32.mrb[0].mxu0
      %4139 = vmatprep.mubr.bf16.mxu0 0
      %4140 = vmatmul.mubr.bf16.gmra.mrb[0].mxu0 %v4055
      %v4141 = vpop.f32.mrb[0].mxu0
      %v4142 = vadd.f32 %v2116, %v4141
      %v4143 = vpop.f32.mrb[0].mxu0
      %v4144 = vpop.f32.mrb[0].mxu0
      %v4145 = vadd.f32 %v2116, %v4144
      %v4146 = vpop.f32.mrb[0].mxu0
      %4147 = vmatprep.mubr.bf16.mxu0 0
      %4148 = vmatmul.mubr.bf16.gmra.mrb[0].mxu0 %v4058
      %v4149 = vpop.f32.mrb[0].mxu0
      %v4150 = vadd.f32 %v2116, %v4149
      %v4151 = vpop.f32.mrb[0].mxu0
      %v4152 = vpop.f32.mrb[0].mxu0
      %v4153 = vadd.f32 %v2116, %v4152
      %v4154 = vpop.f32.mrb[0].mxu0
      %4155 = vmatprep.mubr.bf16.mxu0 0
      %4156 = vmatmul.mubr.bf16.gmra.mrb[0].mxu0 %v4061
      %v4157 = vpop.f32.mrb[0].mxu0
      %v4158 = vadd.f32 %v2116, %v4157
      %v4159 = vpop.f32.mrb[0].mxu0
      %v4160 = vpop.f32.mrb[0].mxu0
      %v4161 = vadd.f32 %v2116, %v4160
      %v4162 = vpop.f32.mrb[0].mxu0
      %4163 = vmatprep.mubr.bf16.mxu0 0
      %4164 = vmatmul.mubr.bf16.gmra.mrb[0].mxu0 %v4064
      %v4165 = vpop.f32.mrb[0].mxu0
      %v4166 = vadd.f32 %v2116, %v4165
      %v4167 = vpop.f32.mrb[0].mxu0
      %v4168 = vpop.f32.mrb[0].mxu0
      %v4169 = vadd.f32 %v2116, %v4168
      %v4170 = vpop.f32.mrb[0].mxu0
      %4171 = vmatprep.mubr.bf16.mxu0 0
      %4172 = vmatmul.mubr.bf16.gmra.mrb[0].mxu0 %v4067
      %v4173 = vpop.f32.mrb[0].mxu0
      %v4174 = vadd.f32 %v2116, %v4173
      %v4175 = vpop.f32.mrb[0].mxu0
      %v4176 = vpop.f32.mrb[0].mxu0
      %v4177 = vadd.f32 %v2116, %v4176
      %v4178 = vpop.f32.mrb[0].mxu0
      %4179 = vmatprep.mubr.bf16.mxu0 0
      %4180 = vmatmul.mubr.bf16.gmra.mrb[0].mxu0 %v4070
      %v4181 = vpop.f32.mrb[0].mxu0
      %v4182 = vadd.f32 %v2116, %v4181
      %v4183 = vpop.f32.mrb[0].mxu0
      %v4184 = vpop.f32.mrb[0].mxu0
      %v4185 = vadd.f32 %v2116, %v4184
      %v4186 = vpop.f32.mrb[0].mxu0
      %4187 = vmatprep.mubr.bf16.mxu0 0
      %4188 = vmatmul.mubr.bf16.gmra.mrb[0].mxu0 %v4073
      %v4189 = vpop.f32.mrb[0].mxu0
      %v4190 = vadd.f32 %v2116, %v4189
      %v4191 = vpop.f32.mrb[0].mxu0
      %v4192 = vpop.f32.mrb[0].mxu0
      %v4193 = vadd.f32 %v2116, %v4192
      %v4194 = vpop.f32.mrb[0].mxu0
      %4195 = vmatprep.mubr.bf16.mxu0 0
      %4196 = vmatmul.mubr.bf16.gmra.mrb[0].mxu0 %v4076
      %v4197 = vpop.f32.mrb[0].mxu0
      %v4198 = vadd.f32 %v2116, %v4197
      %v4199 = vpop.f32.mrb[0].mxu0
      %v4200 = vpop.f32.mrb[0].mxu0
      %v4201 = vadd.f32 %v2116, %v4200
      %v4202 = vpop.f32.mrb[0].mxu0
      %4203 = vmatprep.mubr.bf16.mxu0 0
      %4204 = vmatmul.mubr.bf16.gmra.mrb[0].mxu0 %v4079
      %v4205 = vpop.f32.mrb[0].mxu0
      %v4206 = vadd.f32 %v2116, %v4205
      %v4207 = vpop.f32.mrb[0].mxu0
      %v4208 = vpop.f32.mrb[0].mxu0
      %v4209 = vadd.f32 %v2116, %v4208
      %v4210 = vpop.f32.mrb[0].mxu0
      %4211 = vmatprep.mubr.bf16.mxu0 0
      %4212 = vmatmul.mubr.bf16.gmra.mrb[0].mxu0 %v4082
      %v4213 = vpop.f32.mrb[0].mxu0
      %v4214 = vadd.f32 %v2116, %v4213
      %v4215 = vpop.f32.mrb[0].mxu0
      %v4216 = vpop.f32.mrb[0].mxu0
      %v4217 = vadd.f32 %v2116, %v4216
      %v4218 = vpop.f32.mrb[0].mxu0
      %4219 = vmatprep.mubr.bf16.mxu0 0
      %4220 = vmatmul.mubr.bf16.gmra.mrb[0].mxu0 %v4085
      %v4221 = vpop.f32.mrb[0].mxu0
      %v4222 = vadd.f32 %v2116, %v4221
      %v4223 = vpop.f32.mrb[0].mxu0
      %v4224 = vpop.f32.mrb[0].mxu0
      %v4225 = vadd.f32 %v2116, %v4224
      %v4226 = vpop.f32.mrb[0].mxu0
      %4227 = vmatprep.mubr.bf16.mxu0 0
      %4228 = vmatmul.mubr.bf16.gmra.mrb[0].mxu0 %v4088
      %v4229 = vpop.f32.mrb[0].mxu0
      %v4230 = vadd.f32 %v2116, %v4229
      %v4231 = vpop.f32.mrb[0].mxu0
      %v4232 = vpop.f32.mrb[0].mxu0
      %v4233 = vadd.f32 %v2116, %v4232
      %v4234 = vpop.f32.mrb[0].mxu0
      %4235 = vmatprep.mubr.bf16.mxu0 0
      %4236 = vmatmul.mubr.bf16.gmra.mrb[0].mxu0 %v4091
      %v4237 = vpop.f32.mrb[0].mxu0
      %v4238 = vadd.f32 %v2116, %v4237
      %v4239 = vpop.f32.mrb[0].mxu0
      %v4240 = vpop.f32.mrb[0].mxu0
      %v4241 = vadd.f32 %v2116, %v4240
      %v4242 = vpop.f32.mrb[0].mxu0
      %4243 = vmatprep.mubr.bf16.mxu0 0
      %4244 = vmatmul.mubr.bf16.gmra.mrb[0].mxu0 %v4094
      %v4245 = vpop.f32.mrb[0].mxu0
      %v4246 = vadd.f32 %v2116, %v4245
      %v4247 = vpop.f32.mrb[0].mxu0
      %v4248 = vpop.f32.mrb[0].mxu0
      %v4249 = vadd.f32 %v2116, %v4248
      %v4250 = vpop.f32.mrb[0].mxu0
      %4251 = vmatprep.mubr.bf16.mxu0 0
      %4252 = vmatmul.mubr.bf16.gmra.mrb[0].mxu0 %v4097
      %v4253 = vpop.f32.mrb[0].mxu0
      %v4254 = vadd.f32 %v2116, %v4253
      %v4255 = vpop.f32.mrb[0].mxu0
      %v4256 = vpop.f32.mrb[0].mxu0
      %v4257 = vadd.f32 %v2116, %v4256
      %v4258 = vpop.f32.mrb[0].mxu0
      %4259 = vdwg.mxu0
      %4260 = vmax.xlane.f32.xlu0 %v4134
      %v4261 = vpop.xlane.xlu0 %4260
      %4262 = vmax.xlane.f32.xlu0 %v4137
      %v4263 = vpop.xlane.xlu0 %4262
      %4264 = vmax.xlane.f32.xlu0 %v4142
      %v4265 = vpop.xlane.xlu0 %4264
      %4266 = vmax.xlane.f32.xlu0 %v4145
      %v4267 = vpop.xlane.xlu0 %4266
      %4268 = vmax.xlane.f32.xlu0 %v4150
      %v4269 = vpop.xlane.xlu0 %4268
      %4270 = vmax.xlane.f32.xlu0 %v4153
      %v4271 = vpop.xlane.xlu0 %4270
      %4272 = vmax.xlane.f32.xlu0 %v4158
      %v4273 = vpop.xlane.xlu0 %4272
      %4274 = vmax.xlane.f32.xlu0 %v4161
      %v4275 = vpop.xlane.xlu0 %4274
      %4276 = vmax.xlane.f32.xlu0 %v4166
      %v4277 = vpop.xlane.xlu0 %4276
      %4278 = vmax.xlane.f32.xlu0 %v4169
      %v4279 = vpop.xlane.xlu0 %4278
      %4280 = vmax.xlane.f32.xlu0 %v4174
      %v4281 = vpop.xlane.xlu0 %4280
      %4282 = vmax.xlane.f32.xlu0 %v4177
      %v4283 = vpop.xlane.xlu0 %4282
      %4284 = vmax.xlane.f32.xlu0 %v4182
      %v4285 = vpop.xlane.xlu0 %4284
      %4286 = vmax.xlane.f32.xlu0 %v4185
      %v4287 = vpop.xlane.xlu0 %4286
      %4288 = vmax.xlane.f32.xlu0 %v4190
      %v4289 = vpop.xlane.xlu0 %4288
      %4290 = vmax.xlane.f32.xlu0 %v4193
      %v4291 = vpop.xlane.xlu0 %4290
      %4292 = vmax.xlane.f32.xlu0 %v4198
      %v4293 = vpop.xlane.xlu0 %4292
      %4294 = vmax.xlane.f32.xlu0 %v4201
      %v4295 = vpop.xlane.xlu0 %4294
      %4296 = vmax.xlane.f32.xlu0 %v4206
      %v4297 = vpop.xlane.xlu0 %4296
      %4298 = vmax.xlane.f32.xlu0 %v4209
      %v4299 = vpop.xlane.xlu0 %4298
      %4300 = vmax.xlane.f32.xlu0 %v4214
      %v4301 = vpop.xlane.xlu0 %4300
      %4302 = vmax.xlane.f32.xlu0 %v4217
      %v4303 = vpop.xlane.xlu0 %4302
      %4304 = vmax.xlane.f32.xlu0 %v4222
      %v4305 = vpop.xlane.xlu0 %4304
      %4306 = vmax.xlane.f32.xlu0 %v4225
      %v4307 = vpop.xlane.xlu0 %4306
      %4308 = vmax.xlane.f32.xlu0 %v4230
      %v4309 = vpop.xlane.xlu0 %4308
      %4310 = vmax.xlane.f32.xlu0 %v4233
      %v4311 = vpop.xlane.xlu0 %4310
      %4312 = vmax.xlane.f32.xlu0 %v4238
      %v4313 = vpop.xlane.xlu0 %4312
      %4314 = vmax.xlane.f32.xlu0 %v4241
      %v4315 = vpop.xlane.xlu0 %4314
      %4316 = vmax.xlane.f32.xlu0 %v4246
      %v4317 = vpop.xlane.xlu0 %4316
      %4318 = vmax.xlane.f32.xlu0 %v4249
      %v4319 = vpop.xlane.xlu0 %4318
      %4320 = vmax.xlane.f32.xlu0 %v4254
      %v4321 = vpop.xlane.xlu0 %4320
      %4322 = vmax.xlane.f32.xlu0 %v4257
      %v4323 = vpop.xlane.xlu0 %4322
      %v4324 = vsub.f32 %v4134, %v4261
      %v4325 = vsub.f32 %v4137, %v4263
      %v4326 = vsub.f32 %v4142, %v4265
      %v4327 = vsub.f32 %v4145, %v4267
      %v4328 = vsub.f32 %v4150, %v4269
      %v4329 = vsub.f32 %v4153, %v4271
      %v4330 = vsub.f32 %v4158, %v4273
      %v4331 = vsub.f32 %v4161, %v4275
      %v4332 = vsub.f32 %v4166, %v4277
      %v4333 = vsub.f32 %v4169, %v4279
      %v4334 = vsub.f32 %v4174, %v4281
      %v4335 = vsub.f32 %v4177, %v4283
      %v4336 = vsub.f32 %v4182, %v4285
      %v4337 = vsub.f32 %v4185, %v4287
      %v4338 = vsub.f32 %v4190, %v4289
      %v4339 = vsub.f32 %v4193, %v4291
      %v4340 = vsub.f32 %v4198, %v4293
      %v4341 = vsub.f32 %v4201, %v4295
      %v4342 = vsub.f32 %v4206, %v4297
      %v4343 = vsub.f32 %v4209, %v4299
      %v4344 = vsub.f32 %v4214, %v4301
      %v4345 = vsub.f32 %v4217, %v4303
      %v4346 = vsub.f32 %v4222, %v4305
      %v4347 = vsub.f32 %v4225, %v4307
      %v4348 = vsub.f32 %v4230, %v4309
      %v4349 = vsub.f32 %v4233, %v4311
      %v4350 = vsub.f32 %v4238, %v4313
      %v4351 = vsub.f32 %v4241, %v4315
      %v4352 = vsub.f32 %v4246, %v4317
      %v4353 = vsub.f32 %v4249, %v4319
      %v4354 = vsub.f32 %v4254, %v4321
      %v4355 = vsub.f32 %v4257, %v4323
      %v4356 = vmul.f32 %v4324, 1.442695
      %v4357 = vpow.pop %v4356
      %v4358 = vmul.f32 %v4325, 1.442695
      %v4359 = vpow.pop %v4358
      %v4360 = vmul.f32 %v4326, 1.442695
      %v4361 = vpow.pop %v4360
      %v4362 = vmul.f32 %v4327, 1.442695
      %v4363 = vpow.pop %v4362
      %v4364 = vmul.f32 %v4328, 1.442695
      %v4365 = vpow.pop %v4364
      %v4366 = vmul.f32 %v4329, 1.442695
      %v4367 = vpow.pop %v4366
      %v4368 = vmul.f32 %v4330, 1.442695
      %v4369 = vpow.pop %v4368
      %v4370 = vmul.f32 %v4331, 1.442695
      %v4371 = vpow.pop %v4370
      %v4372 = vmul.f32 %v4332, 1.442695
      %v4373 = vpow.pop %v4372
      %v4374 = vmul.f32 %v4333, 1.442695
      %v4375 = vpow.pop %v4374
      %v4376 = vmul.f32 %v4334, 1.442695
      %v4377 = vpow.pop %v4376
      %v4378 = vmul.f32 %v4335, 1.442695
      %v4379 = vpow.pop %v4378
      %v4380 = vmul.f32 %v4336, 1.442695
      %v4381 = vpow.pop %v4380
      %v4382 = vmul.f32 %v4337, 1.442695
      %v4383 = vpow.pop %v4382
      %v4384 = vmul.f32 %v4338, 1.442695
      %v4385 = vpow.pop %v4384
      %v4386 = vmul.f32 %v4339, 1.442695
      %v4387 = vpow.pop %v4386
      %v4388 = vmul.f32 %v4340, 1.442695
      %v4389 = vpow.pop %v4388
      %v4390 = vmul.f32 %v4341, 1.442695
      %v4391 = vpow.pop %v4390
      %v4392 = vmul.f32 %v4342, 1.442695
      %v4393 = vpow.pop %v4392
      %v4394 = vmul.f32 %v4343, 1.442695
      %v4395 = vpow.pop %v4394
      %v4396 = vmul.f32 %v4344, 1.442695
      %v4397 = vpow.pop %v4396
      %v4398 = vmul.f32 %v4345, 1.442695
      %v4399 = vpow.pop %v4398
      %v4400 = vmul.f32 %v4346, 1.442695
      %v4401 = vpow.pop %v4400
      %v4402 = vmul.f32 %v4347, 1.442695
      %v4403 = vpow.pop %v4402
      %v4404 = vmul.f32 %v4348, 1.442695
      %v4405 = vpow.pop %v4404
      %v4406 = vmul.f32 %v4349, 1.442695
      %v4407 = vpow.pop %v4406
      %v4408 = vmul.f32 %v4350, 1.442695
      %v4409 = vpow.pop %v4408
      %v4410 = vmul.f32 %v4351, 1.442695
      %v4411 = vpow.pop %v4410
      %v4412 = vmul.f32 %v4352, 1.442695
      %v4413 = vpow.pop %v4412
      %v4414 = vmul.f32 %v4353, 1.442695
      %v4415 = vpow.pop %v4414
      %v4416 = vmul.f32 %v4354, 1.442695
      %v4417 = vpow.pop %v4416
      %v4418 = vmul.f32 %v4355, 1.442695
      %v4419 = vpow.pop %v4418
      %4420 = vadd.xlane.f32.xlu0 %v4357
      %v4421 = vpop.xlane.xlu0 %4420
      %4422 = vadd.xlane.f32.xlu0 %v4359
      %v4423 = vpop.xlane.xlu0 %4422
      %4424 = vadd.xlane.f32.xlu0 %v4361
      %v4425 = vpop.xlane.xlu0 %4424
      %4426 = vadd.xlane.f32.xlu0 %v4363
      %v4427 = vpop.xlane.xlu0 %4426
      %4428 = vadd.xlane.f32.xlu0 %v4365
      %v4429 = vpop.xlane.xlu0 %4428
      %4430 = vadd.xlane.f32.xlu0 %v4367
      %v4431 = vpop.xlane.xlu0 %4430
      %4432 = vadd.xlane.f32.xlu0 %v4369
      %v4433 = vpop.xlane.xlu0 %4432
      %4434 = vadd.xlane.f32.xlu0 %v4371
      %v4435 = vpop.xlane.xlu0 %4434
      %4436 = vadd.xlane.f32.xlu0 %v4373
      %v4437 = vpop.xlane.xlu0 %4436
      %4438 = vadd.xlane.f32.xlu0 %v4375
      %v4439 = vpop.xlane.xlu0 %4438
      %4440 = vadd.xlane.f32.xlu0 %v4377
      %v4441 = vpop.xlane.xlu0 %4440
      %4442 = vadd.xlane.f32.xlu0 %v4379
      %v4443 = vpop.xlane.xlu0 %4442
      %4444 = vadd.xlane.f32.xlu0 %v4381
      %v4445 = vpop.xlane.xlu0 %4444
      %4446 = vadd.xlane.f32.xlu0 %v4383
      %v4447 = vpop.xlane.xlu0 %4446
      %4448 = vadd.xlane.f32.xlu0 %v4385
      %v4449 = vpop.xlane.xlu0 %4448
      %4450 = vadd.xlane.f32.xlu0 %v4387
      %v4451 = vpop.xlane.xlu0 %4450
      %4452 = vadd.xlane.f32.xlu0 %v4389
      %v4453 = vpop.xlane.xlu0 %4452
      %4454 = vadd.xlane.f32.xlu0 %v4391
      %v4455 = vpop.xlane.xlu0 %4454
      %4456 = vadd.xlane.f32.xlu0 %v4393
      %v4457 = vpop.xlane.xlu0 %4456
      %4458 = vadd.xlane.f32.xlu0 %v4395
      %v4459 = vpop.xlane.xlu0 %4458
      %4460 = vadd.xlane.f32.xlu0 %v4397
      %v4461 = vpop.xlane.xlu0 %4460
      %4462 = vadd.xlane.f32.xlu0 %v4399
      %v4463 = vpop.xlane.xlu0 %4462
      %4464 = vadd.xlane.f32.xlu0 %v4401
      %v4465 = vpop.xlane.xlu0 %4464
      %4466 = vadd.xlane.f32.xlu0 %v4403
      %v4467 = vpop.xlane.xlu0 %4466
      %4468 = vadd.xlane.f32.xlu0 %v4405
      %v4469 = vpop.xlane.xlu0 %4468
      %4470 = vadd.xlane.f32.xlu0 %v4407
      %v4471 = vpop.xlane.xlu0 %4470
      %4472 = vadd.xlane.f32.xlu0 %v4409
      %v4473 = vpop.xlane.xlu0 %4472
      %4474 = vadd.xlane.f32.xlu0 %v4411
      %v4475 = vpop.xlane.xlu0 %4474
      %4476 = vadd.xlane.f32.xlu0 %v4413
      %v4477 = vpop.xlane.xlu0 %4476
      %4478 = vadd.xlane.f32.xlu0 %v4415
      %v4479 = vpop.xlane.xlu0 %4478
      %4480 = vadd.xlane.f32.xlu0 %v4417
      %v4481 = vpop.xlane.xlu0 %4480
      %4482 = vadd.xlane.f32.xlu0 %v4419
      %v4483 = vpop.xlane.xlu0 %4482
      %v4484 = vrcp.pop %v4421
      %v4485 = vrcp.pop %v4423
      %v4486 = vrcp.pop %v4425
      %v4487 = vrcp.pop %v4427
      %v4488 = vrcp.pop %v4429
      %v4489 = vrcp.pop %v4431
      %v4490 = vrcp.pop %v4433
      %v4491 = vrcp.pop %v4435
      %v4492 = vrcp.pop %v4437
      %v4493 = vrcp.pop %v4439
      %v4494 = vrcp.pop %v4441
      %v4495 = vrcp.pop %v4443
      %v4496 = vrcp.pop %v4445
      %v4497 = vrcp.pop %v4447
      %v4498 = vrcp.pop %v4449
      %v4499 = vrcp.pop %v4451
      %v4500 = vrcp.pop %v4453
      %v4501 = vrcp.pop %v4455
      %v4502 = vrcp.pop %v4457
      %v4503 = vrcp.pop %v4459
      %v4504 = vrcp.pop %v4461
      %v4505 = vrcp.pop %v4463
      %v4506 = vrcp.pop %v4465
      %v4507 = vrcp.pop %v4467
      %v4508 = vrcp.pop %v4469
      %v4509 = vrcp.pop %v4471
      %v4510 = vrcp.pop %v4473
      %v4511 = vrcp.pop %v4475
      %v4512 = vrcp.pop %v4477
      %v4513 = vrcp.pop %v4479
      %v4514 = vrcp.pop %v4481
      %v4515 = vrcp.pop %v4483
      %v4516 = vmul.f32 %v4357, %v4484
      %v4517 = vmul.f32 %v4359, %v4485
      %v4518 = vmul.f32 %v4361, %v4486
      %v4519 = vmul.f32 %v4363, %v4487
      %v4520 = vmul.f32 %v4365, %v4488
      %v4521 = vmul.f32 %v4367, %v4489
      %v4522 = vmul.f32 %v4369, %v4490
      %v4523 = vmul.f32 %v4371, %v4491
      %v4524 = vmul.f32 %v4373, %v4492
      %v4525 = vmul.f32 %v4375, %v4493
      %v4526 = vmul.f32 %v4377, %v4494
      %v4527 = vmul.f32 %v4379, %v4495
      %v4528 = vmul.f32 %v4381, %v4496
      %v4529 = vmul.f32 %v4383, %v4497
      %v4530 = vmul.f32 %v4385, %v4498
      %v4531 = vmul.f32 %v4387, %v4499
      %v4532 = vmul.f32 %v4389, %v4500
      %v4533 = vmul.f32 %v4391, %v4501
      %v4534 = vmul.f32 %v4393, %v4502
      %v4535 = vmul.f32 %v4395, %v4503
      %v4536 = vmul.f32 %v4397, %v4504
      %v4537 = vmul.f32 %v4399, %v4505
      %v4538 = vmul.f32 %v4401, %v4506
      %v4539 = vmul.f32 %v4403, %v4507
      %v4540 = vmul.f32 %v4405, %v4508
      %v4541 = vmul.f32 %v4407, %v4509
      %v4542 = vmul.f32 %v4409, %v4510
      %v4543 = vmul.f32 %v4411, %v4511
      %v4544 = vmul.f32 %v4413, %v4512
      %v4545 = vmul.f32 %v4415, %v4513
      %v4546 = vmul.f32 %v4417, %v4514
      %v4547 = vmul.f32 %v4419, %v4515
      %v4548 = vpack.c.bf16 %v4517, %v4516
      %v4549 = vpack.c.bf16 %v4519, %v4518
      %v4550 = vpack.c.bf16 %v4521, %v4520
      %v4551 = vpack.c.bf16 %v4523, %v4522
      %v4552 = vpack.c.bf16 %v4525, %v4524
      %v4553 = vpack.c.bf16 %v4527, %v4526
      %v4554 = vpack.c.bf16 %v4529, %v4528
      %v4555 = vpack.c.bf16 %v4531, %v4530
      %v4556 = vpack.c.bf16 %v4533, %v4532
      %v4557 = vpack.c.bf16 %v4535, %v4534
      %v4558 = vpack.c.bf16 %v4537, %v4536
      %v4559 = vpack.c.bf16 %v4539, %v4538
      %v4560 = vpack.c.bf16 %v4541, %v4540
      %v4561 = vpack.c.bf16 %v4543, %v4542
      %v4562 = vpack.c.bf16 %v4545, %v4544
      %v4563 = vpack.c.bf16 %v4547, %v4546
      %4564 = vmatprep.subr.bf16.mxu0 0
      %4565 = vmatpush1.bf16.xpose.msra.mxu0 %v4548
      %4566 = vmatprep.subr.bf16.mxu0 0
      %4567 = vmatpush1.bf16.xpose.msra.mxu0 %v4549
      %4568 = vmatprep.subr.bf16.mxu0 0
      %4569 = vmatpush1.bf16.xpose.msra.mxu0 %v4550
      %4570 = vmatprep.subr.bf16.mxu0 0
      %4571 = vmatpush1.bf16.xpose.msra.mxu0 %v4551
      %4572 = vmatprep.subr.bf16.mxu0 0
      %4573 = vmatpush1.bf16.xpose.msra.mxu0 %v4552
      %4574 = vmatprep.subr.bf16.mxu0 0
      %4575 = vmatpush1.bf16.xpose.msra.mxu0 %v4553
      %4576 = vmatprep.subr.bf16.mxu0 0
      %4577 = vmatpush1.bf16.xpose.msra.mxu0 %v4554
      %4578 = vmatprep.subr.bf16.mxu0 0
      %4579 = vmatpush1.bf16.xpose.msra.mxu0 %v4555
      %4580 = vmatprep.subr.bf16.mxu0 0
      %4581 = vmatpush1.bf16.xpose.msra.mxu0 %v4556
      %4582 = vmatprep.subr.bf16.mxu0 0
      %4583 = vmatpush1.bf16.xpose.msra.mxu0 %v4557
      %4584 = vmatprep.subr.bf16.mxu0 0
      %4585 = vmatpush1.bf16.xpose.msra.mxu0 %v4558
      %4586 = vmatprep.subr.bf16.mxu0 0
      %4587 = vmatpush1.bf16.xpose.msra.mxu0 %v4559
      %4588 = vmatprep.subr.bf16.mxu0 0
      %4589 = vmatpush1.bf16.xpose.msra.mxu0 %v4560
      %4590 = vmatprep.subr.bf16.mxu0 0
      %4591 = vmatpush1.bf16.xpose.msra.mxu0 %v4561
      %4592 = vmatprep.subr.bf16.mxu0 0
      %4593 = vmatpush1.bf16.xpose.msra.mxu0 %v4562
      %4594 = vmatprep.subr.bf16.mxu0 0
      %4595 = vmatpush1.bf16.xpose.msra.mxu0 %v4563
      %4596 = vmatprep.mubr.bf16.mxu0 0
      %4597 = vmatmul.mubr.bf16.gmra.mrb[0].mxu0 %v2093
      %v4598 = vpop.f32.mrb[0].mxu0
      %v4599 = vadd.f32 0.0, %v4598
      %v4600 = vpop.f32.mrb[0].mxu0
      %v4601 = vadd.f32 0.0, %v4600
      %v4602 = vpop.f32.mrb[0].mxu0
      %v4603 = vadd.f32 0.0, %v4602
      %v4604 = vpop.f32.mrb[0].mxu0
      %v4605 = vadd.f32 0.0, %v4604
      %4606 = vmatprep.mubr.bf16.mxu0 0
      %4607 = vmatmul.mubr.bf16.gmra.mrb[0].mxu0 %v2094
      %v4608 = vpop.f32.mrb[0].mxu0
      %v4609 = vadd.f32 0.0, %v4608
      %v4610 = vpop.f32.mrb[0].mxu0
      %v4611 = vadd.f32 0.0, %v4610
      %v4612 = vpop.f32.mrb[0].mxu0
      %v4613 = vadd.f32 0.0, %v4612
      %v4614 = vpop.f32.mrb[0].mxu0
      %v4615 = vadd.f32 0.0, %v4614
      %4616 = vmatprep.mubr.bf16.mxu0 0
      %4617 = vmatmul.mubr.bf16.gmra.mrb[0].mxu0 %v2095
      %v4618 = vpop.f32.mrb[0].mxu0
      %v4619 = vadd.f32 0.0, %v4618
      %v4620 = vpop.f32.mrb[0].mxu0
      %v4621 = vadd.f32 0.0, %v4620
      %v4622 = vpop.f32.mrb[0].mxu0
      %v4623 = vadd.f32 0.0, %v4622
      %v4624 = vpop.f32.mrb[0].mxu0
      %v4625 = vadd.f32 0.0, %v4624
      %4626 = vmatprep.mubr.bf16.mxu0 0
      %4627 = vmatmul.mubr.bf16.gmra.mrb[0].mxu0 %v2096
      %v4628 = vpop.f32.mrb[0].mxu0
      %v4629 = vadd.f32 0.0, %v4628
      %v4630 = vpop.f32.mrb[0].mxu0
      %v4631 = vadd.f32 0.0, %v4630
      %v4632 = vpop.f32.mrb[0].mxu0
      %v4633 = vadd.f32 0.0, %v4632
      %v4634 = vpop.f32.mrb[0].mxu0
      %v4635 = vadd.f32 0.0, %v4634
      %4636 = vdwg.mxu0
      %v4637 = vpack.c.bf16 %v4603, %v4599
      %v4638 = vpack.c.bf16 %v4605, %v4601
      %v4639 = vpack.c.bf16 %v4613, %v4609
      %v4640 = vpack.c.bf16 %v4615, %v4611
      %v4641 = vpack.c.bf16 %v4623, %v4619
      %v4642 = vpack.c.bf16 %v4625, %v4621
      %v4643 = vpack.c.bf16 %v4633, %v4629
      %v4644 = vpack.c.bf16 %v4635, %v4631
      %4645 = vst [vmem:[#allocation2 + $0xc0] sm:$0xff] %v4637
      %4646 = vst [vmem:[#allocation2 + $0xc8] sm:$0xff] %v4638
      %4647 = vst [vmem:[#allocation2 + $0xd0] sm:$0xff] %v4639
      %4648 = vst [vmem:[#allocation2 + $0xd8] sm:$0xff] %v4640
      %4649 = vst [vmem:[#allocation2 + $0xe0] sm:$0xff] %v4641
      %4650 = vst [vmem:[#allocation2 + $0xe8] sm:$0xff] %v4642
      %4651 = vst [vmem:[#allocation2 + $0xf0] sm:$0xff] %v4643
      %4652 = vst [vmem:[#allocation2 + $0xf8] sm:$0xff] %v4644
      %4653 = vxpose.xlu0.c.b16.start [1/8] %v895, 128
      %4654 = vxpose.xlu0.c.b16.cont [2/8] %v897, 128
      %4655 = vxpose.xlu0.c.b16.cont [3/8] %v899, 128
      %4656 = vxpose.xlu0.c.b16.cont [4/8] %v901, 128
      %4657 = vxpose.xlu0.c.b16.cont [5/8] 0, 128
      %4658 = vxpose.xlu0.c.b16.cont [6/8] 0, 128
      %4659 = vxpose.xlu0.c.b16.cont [7/8] 0, 128
      %4660 = vxpose.xlu0.c.b16.end [8/8] 0, 128
      %v4661 = vpop.trf.xlu0
      %v4662 = vpop.trf.xlu0
      %v4663 = vpop.trf.xlu0
      %v4664 = vpop.trf.xlu0
      %v4665 = vpop.trf.xlu0
      %v4666 = vpop.trf.xlu0
      %v4667 = vpop.trf.xlu0
      %v4668 = vpop.trf.xlu0
      %4669 = vxpose.xlu0.c.b16.start [1/8] %v896, 128
      %4670 = vxpose.xlu0.c.b16.cont [2/8] %v898, 128
      %4671 = vxpose.xlu0.c.b16.cont [3/8] %v900, 128
      %4672 = vxpose.xlu0.c.b16.cont [4/8] %v902, 128
      %4673 = vxpose.xlu0.c.b16.cont [5/8] 0, 128
      %4674 = vxpose.xlu0.c.b16.cont [6/8] 0, 128
      %4675 = vxpose.xlu0.c.b16.cont [7/8] 0, 128
      %4676 = vxpose.xlu0.c.b16.end [8/8] 0, 128
      %v4677 = vpop.trf.xlu0
      %v4678 = vpop.trf.xlu0
      %v4679 = vpop.trf.xlu0
      %v4680 = vpop.trf.xlu0
      %v4681 = vpop.trf.xlu0
      %v4682 = vpop.trf.xlu0
      %v4683 = vpop.trf.xlu0
      %v4684 = vpop.trf.xlu0
      %v4686 = vsel %vm1287, %v4661, 0
      %v4689 = vsel %vm1287, %v4662, 0
      %v4692 = vsel %vm1287, %v4663, 0
      %v4695 = vsel %vm1287, %v4664, 0
      %v4698 = vsel %vm1287, %v4665, 0
      %v4701 = vsel %vm1287, %v4666, 0
      %v4704 = vsel %vm1287, %v4667, 0
      %v4707 = vsel %vm1287, %v4668, 0
      %v4710 = vsel %vm1287, %v4677, 0
      %v4713 = vsel %vm1287, %v4678, 0
      %v4716 = vsel %vm1287, %v4679, 0
      %v4719 = vsel %vm1287, %v4680, 0
      %v4722 = vsel %vm1287, %v4681, 0
      %v4725 = vsel %vm1287, %v4682, 0
      %v4728 = vsel %vm1287, %v4683, 0
      %v4731 = vsel %vm1287, %v4684, 0
      %4733 = vmatprep.subr.bf16.mxu0 0
      %4734 = vmatpush1.bf16.msra.mxu0 %v2065
      %4735 = vmatprep.subr.bf16.mxu0 0
      %4736 = vmatpush1.bf16.msra.mxu0 %v2066
      %4737 = vmatprep.subr.bf16.mxu0 0
      %4738 = vmatpush1.bf16.msra.mxu0 %v2067
      %4739 = vmatprep.subr.bf16.mxu0 0
      %4740 = vmatpush1.bf16.msra.mxu0 %v2068
      %4741 = vmatprep.subr.bf16.mxu0 0
      %4742 = vmatpush1.bf16.msra.mxu0 0
      %4743 = vmatprep.subr.bf16.mxu0 0
      %4744 = vmatpush1.bf16.msra.mxu0 0
      %4745 = vmatprep.subr.bf16.mxu0 0
      %4746 = vmatpush1.bf16.msra.mxu0 0
      %4747 = vmatprep.subr.bf16.mxu0 0
      %4748 = vmatpush1.bf16.msra.mxu0 0
      %4749 = vmatprep.subr.bf16.mxu0 0
      %4750 = vmatpush1.bf16.msra.mxu0 0
      %4751 = vmatprep.subr.bf16.mxu0 0
      %4752 = vmatpush1.bf16.msra.mxu0 0
      %4753 = vmatprep.subr.bf16.mxu0 0
      %4754 = vmatpush1.bf16.msra.mxu0 0
      %4755 = vmatprep.subr.bf16.mxu0 0
      %4756 = vmatpush1.bf16.msra.mxu0 0
      %4757 = vmatprep.subr.bf16.mxu0 0
      %4758 = vmatpush1.bf16.msra.mxu0 0
      %4759 = vmatprep.subr.bf16.mxu0 0
      %4760 = vmatpush1.bf16.msra.mxu0 0
      %4761 = vmatprep.subr.bf16.mxu0 0
      %4762 = vmatpush1.bf16.msra.mxu0 0
      %4763 = vmatprep.subr.bf16.mxu0 0
      %4764 = vmatpush1.bf16.msra.mxu0 0
      %4765 = vmatprep.mubr.bf16.mxu0 0
      %4766 = vmatmul.mubr.bf16.gmra.mrb[0].mxu0 %v4686
      %v4767 = vpop.f32.mrb[0].mxu0
      %v4768 = vadd.f32 %v2116, %v4767
      %v4769 = vpop.f32.mrb[0].mxu0
      %v4770 = vpop.f32.mrb[0].mxu0
      %v4771 = vadd.f32 %v2116, %v4770
      %v4772 = vpop.f32.mrb[0].mxu0
      %4773 = vmatprep.mubr.bf16.mxu0 0
      %4774 = vmatmul.mubr.bf16.gmra.mrb[0].mxu0 %v4689
      %v4775 = vpop.f32.mrb[0].mxu0
      %v4776 = vadd.f32 %v2116, %v4775
      %v4777 = vpop.f32.mrb[0].mxu0
      %v4778 = vpop.f32.mrb[0].mxu0
      %v4779 = vadd.f32 %v2116, %v4778
      %v4780 = vpop.f32.mrb[0].mxu0
      %4781 = vmatprep.mubr.bf16.mxu0 0
      %4782 = vmatmul.mubr.bf16.gmra.mrb[0].mxu0 %v4692
      %v4783 = vpop.f32.mrb[0].mxu0
      %v4784 = vadd.f32 %v2116, %v4783
      %v4785 = vpop.f32.mrb[0].mxu0
      %v4786 = vpop.f32.mrb[0].mxu0
      %v4787 = vadd.f32 %v2116, %v4786
      %v4788 = vpop.f32.mrb[0].mxu0
      %4789 = vmatprep.mubr.bf16.mxu0 0
      %4790 = vmatmul.mubr.bf16.gmra.mrb[0].mxu0 %v4695
      %v4791 = vpop.f32.mrb[0].mxu0
      %v4792 = vadd.f32 %v2116, %v4791
      %v4793 = vpop.f32.mrb[0].mxu0
      %v4794 = vpop.f32.mrb[0].mxu0
      %v4795 = vadd.f32 %v2116, %v4794
      %v4796 = vpop.f32.mrb[0].mxu0
      %4797 = vmatprep.mubr.bf16.mxu0 0
      %4798 = vmatmul.mubr.bf16.gmra.mrb[0].mxu0 %v4698
      %v4799 = vpop.f32.mrb[0].mxu0
      %v4800 = vadd.f32 %v2116, %v4799
      %v4801 = vpop.f32.mrb[0].mxu0
      %v4802 = vpop.f32.mrb[0].mxu0
      %v4803 = vadd.f32 %v2116, %v4802
      %v4804 = vpop.f32.mrb[0].mxu0
      %4805 = vmatprep.mubr.bf16.mxu0 0
      %4806 = vmatmul.mubr.bf16.gmra.mrb[0].mxu0 %v4701
      %v4807 = vpop.f32.mrb[0].mxu0
      %v4808 = vadd.f32 %v2116, %v4807
      %v4809 = vpop.f32.mrb[0].mxu0
      %v4810 = vpop.f32.mrb[0].mxu0
      %v4811 = vadd.f32 %v2116, %v4810
      %v4812 = vpop.f32.mrb[0].mxu0
      %4813 = vmatprep.mubr.bf16.mxu0 0
      %4814 = vmatmul.mubr.bf16.gmra.mrb[0].mxu0 %v4704
      %v4815 = vpop.f32.mrb[0].mxu0
      %v4816 = vadd.f32 %v2116, %v4815
      %v4817 = vpop.f32.mrb[0].mxu0
      %v4818 = vpop.f32.mrb[0].mxu0
      %v4819 = vadd.f32 %v2116, %v4818
      %v4820 = vpop.f32.mrb[0].mxu0
      %4821 = vmatprep.mubr.bf16.mxu0 0
      %4822 = vmatmul.mubr.bf16.gmra.mrb[0].mxu0 %v4707
      %v4823 = vpop.f32.mrb[0].mxu0
      %v4824 = vadd.f32 %v2116, %v4823
      %v4825 = vpop.f32.mrb[0].mxu0
      %v4826 = vpop.f32.mrb[0].mxu0
      %v4827 = vadd.f32 %v2116, %v4826
      %v4828 = vpop.f32.mrb[0].mxu0
      %4829 = vmatprep.mubr.bf16.mxu0 0
      %4830 = vmatmul.mubr.bf16.gmra.mrb[0].mxu0 %v4710
      %v4831 = vpop.f32.mrb[0].mxu0
      %v4832 = vadd.f32 %v2116, %v4831
      %v4833 = vpop.f32.mrb[0].mxu0
      %v4834 = vpop.f32.mrb[0].mxu0
      %v4835 = vadd.f32 %v2116, %v4834
      %v4836 = vpop.f32.mrb[0].mxu0
      %4837 = vmatprep.mubr.bf16.mxu0 0
      %4838 = vmatmul.mubr.bf16.gmra.mrb[0].mxu0 %v4713
      %v4839 = vpop.f32.mrb[0].mxu0
      %v4840 = vadd.f32 %v2116, %v4839
      %v4841 = vpop.f32.mrb[0].mxu0
      %v4842 = vpop.f32.mrb[0].mxu0
      %v4843 = vadd.f32 %v2116, %v4842
      %v4844 = vpop.f32.mrb[0].mxu0
      %4845 = vmatprep.mubr.bf16.mxu0 0
      %4846 = vmatmul.mubr.bf16.gmra.mrb[0].mxu0 %v4716
      %v4847 = vpop.f32.mrb[0].mxu0
      %v4848 = vadd.f32 %v2116, %v4847
      %v4849 = vpop.f32.mrb[0].mxu0
      %v4850 = vpop.f32.mrb[0].mxu0
      %v4851 = vadd.f32 %v2116, %v4850
      %v4852 = vpop.f32.mrb[0].mxu0
      %4853 = vmatprep.mubr.bf16.mxu0 0
      %4854 = vmatmul.mubr.bf16.gmra.mrb[0].mxu0 %v4719
      %v4855 = vpop.f32.mrb[0].mxu0
      %v4856 = vadd.f32 %v2116, %v4855
      %v4857 = vpop.f32.mrb[0].mxu0
      %v4858 = vpop.f32.mrb[0].mxu0
      %v4859 = vadd.f32 %v2116, %v4858
      %v4860 = vpop.f32.mrb[0].mxu0
      %4861 = vmatprep.mubr.bf16.mxu0 0
      %4862 = vmatmul.mubr.bf16.gmra.mrb[0].mxu0 %v4722
      %v4863 = vpop.f32.mrb[0].mxu0
      %v4864 = vadd.f32 %v2116, %v4863
      %v4865 = vpop.f32.mrb[0].mxu0
      %v4866 = vpop.f32.mrb[0].mxu0
      %v4867 = vadd.f32 %v2116, %v4866
      %v4868 = vpop.f32.mrb[0].mxu0
      %4869 = vmatprep.mubr.bf16.mxu0 0
      %4870 = vmatmul.mubr.bf16.gmra.mrb[0].mxu0 %v4725
      %v4871 = vpop.f32.mrb[0].mxu0
      %v4872 = vadd.f32 %v2116, %v4871
      %v4873 = vpop.f32.mrb[0].mxu0
      %v4874 = vpop.f32.mrb[0].mxu0
      %v4875 = vadd.f32 %v2116, %v4874
      %v4876 = vpop.f32.mrb[0].mxu0
      %4877 = vmatprep.mubr.bf16.mxu0 0
      %4878 = vmatmul.mubr.bf16.gmra.mrb[0].mxu0 %v4728
      %v4879 = vpop.f32.mrb[0].mxu0
      %v4880 = vadd.f32 %v2116, %v4879
      %v4881 = vpop.f32.mrb[0].mxu0
      %v4882 = vpop.f32.mrb[0].mxu0
      %v4883 = vadd.f32 %v2116, %v4882
      %v4884 = vpop.f32.mrb[0].mxu0
      %4885 = vmatprep.mubr.bf16.mxu0 0
      %4886 = vmatmul.mubr.bf16.gmra.mrb[0].mxu0 %v4731
      %v4887 = vpop.f32.mrb[0].mxu0
      %v4888 = vadd.f32 %v2116, %v4887
      %v4889 = vpop.f32.mrb[0].mxu0
      %v4890 = vpop.f32.mrb[0].mxu0
      %v4891 = vadd.f32 %v2116, %v4890
      %v4892 = vpop.f32.mrb[0].mxu0
      %4893 = vdwg.mxu0
      %4894 = vmax.xlane.f32.xlu0 %v4768
      %v4895 = vpop.xlane.xlu0 %4894
      %4896 = vmax.xlane.f32.xlu0 %v4771
      %v4897 = vpop.xlane.xlu0 %4896
      %4898 = vmax.xlane.f32.xlu0 %v4776
      %v4899 = vpop.xlane.xlu0 %4898
      %4900 = vmax.xlane.f32.xlu0 %v4779
      %v4901 = vpop.xlane.xlu0 %4900
      %4902 = vmax.xlane.f32.xlu0 %v4784
      %v4903 = vpop.xlane.xlu0 %4902
      %4904 = vmax.xlane.f32.xlu0 %v4787
      %v4905 = vpop.xlane.xlu0 %4904
      %4906 = vmax.xlane.f32.xlu0 %v4792
      %v4907 = vpop.xlane.xlu0 %4906
      %4908 = vmax.xlane.f32.xlu0 %v4795
      %v4909 = vpop.xlane.xlu0 %4908
      %4910 = vmax.xlane.f32.xlu0 %v4800
      %v4911 = vpop.xlane.xlu0 %4910
      %4912 = vmax.xlane.f32.xlu0 %v4803
      %v4913 = vpop.xlane.xlu0 %4912
      %4914 = vmax.xlane.f32.xlu0 %v4808
      %v4915 = vpop.xlane.xlu0 %4914
      %4916 = vmax.xlane.f32.xlu0 %v4811
      %v4917 = vpop.xlane.xlu0 %4916
      %4918 = vmax.xlane.f32.xlu0 %v4816
      %v4919 = vpop.xlane.xlu0 %4918
      %4920 = vmax.xlane.f32.xlu0 %v4819
      %v4921 = vpop.xlane.xlu0 %4920
      %4922 = vmax.xlane.f32.xlu0 %v4824
      %v4923 = vpop.xlane.xlu0 %4922
      %4924 = vmax.xlane.f32.xlu0 %v4827
      %v4925 = vpop.xlane.xlu0 %4924
      %4926 = vmax.xlane.f32.xlu0 %v4832
      %v4927 = vpop.xlane.xlu0 %4926
      %4928 = vmax.xlane.f32.xlu0 %v4835
      %v4929 = vpop.xlane.xlu0 %4928
      %4930 = vmax.xlane.f32.xlu0 %v4840
      %v4931 = vpop.xlane.xlu0 %4930
      %4932 = vmax.xlane.f32.xlu0 %v4843
      %v4933 = vpop.xlane.xlu0 %4932
      %4934 = vmax.xlane.f32.xlu0 %v4848
      %v4935 = vpop.xlane.xlu0 %4934
      %4936 = vmax.xlane.f32.xlu0 %v4851
      %v4937 = vpop.xlane.xlu0 %4936
      %4938 = vmax.xlane.f32.xlu0 %v4856
      %v4939 = vpop.xlane.xlu0 %4938
      %4940 = vmax.xlane.f32.xlu0 %v4859
      %v4941 = vpop.xlane.xlu0 %4940
      %4942 = vmax.xlane.f32.xlu0 %v4864
      %v4943 = vpop.xlane.xlu0 %4942
      %4944 = vmax.xlane.f32.xlu0 %v4867
      %v4945 = vpop.xlane.xlu0 %4944
      %4946 = vmax.xlane.f32.xlu0 %v4872
      %v4947 = vpop.xlane.xlu0 %4946
      %4948 = vmax.xlane.f32.xlu0 %v4875
      %v4949 = vpop.xlane.xlu0 %4948
      %4950 = vmax.xlane.f32.xlu0 %v4880
      %v4951 = vpop.xlane.xlu0 %4950
      %4952 = vmax.xlane.f32.xlu0 %v4883
      %v4953 = vpop.xlane.xlu0 %4952
      %4954 = vmax.xlane.f32.xlu0 %v4888
      %v4955 = vpop.xlane.xlu0 %4954
      %4956 = vmax.xlane.f32.xlu0 %v4891
      %v4957 = vpop.xlane.xlu0 %4956
      %v4958 = vsub.f32 %v4768, %v4895
      %v4959 = vsub.f32 %v4771, %v4897
      %v4960 = vsub.f32 %v4776, %v4899
      %v4961 = vsub.f32 %v4779, %v4901
      %v4962 = vsub.f32 %v4784, %v4903
      %v4963 = vsub.f32 %v4787, %v4905
      %v4964 = vsub.f32 %v4792, %v4907
      %v4965 = vsub.f32 %v4795, %v4909
      %v4966 = vsub.f32 %v4800, %v4911
      %v4967 = vsub.f32 %v4803, %v4913
      %v4968 = vsub.f32 %v4808, %v4915
      %v4969 = vsub.f32 %v4811, %v4917
      %v4970 = vsub.f32 %v4816, %v4919
      %v4971 = vsub.f32 %v4819, %v4921
      %v4972 = vsub.f32 %v4824, %v4923
      %v4973 = vsub.f32 %v4827, %v4925
      %v4974 = vsub.f32 %v4832, %v4927
      %v4975 = vsub.f32 %v4835, %v4929
      %v4976 = vsub.f32 %v4840, %v4931
      %v4977 = vsub.f32 %v4843, %v4933
      %v4978 = vsub.f32 %v4848, %v4935
      %v4979 = vsub.f32 %v4851, %v4937
      %v4980 = vsub.f32 %v4856, %v4939
      %v4981 = vsub.f32 %v4859, %v4941
      %v4982 = vsub.f32 %v4864, %v4943
      %v4983 = vsub.f32 %v4867, %v4945
      %v4984 = vsub.f32 %v4872, %v4947
      %v4985 = vsub.f32 %v4875, %v4949
      %v4986 = vsub.f32 %v4880, %v4951
      %v4987 = vsub.f32 %v4883, %v4953
      %v4988 = vsub.f32 %v4888, %v4955
      %v4989 = vsub.f32 %v4891, %v4957
      %v4990 = vmul.f32 %v4958, 1.442695
      %v4991 = vpow.pop %v4990
      %v4992 = vmul.f32 %v4959, 1.442695
      %v4993 = vpow.pop %v4992
      %v4994 = vmul.f32 %v4960, 1.442695
      %v4995 = vpow.pop %v4994
      %v4996 = vmul.f32 %v4961, 1.442695
      %v4997 = vpow.pop %v4996
      %v4998 = vmul.f32 %v4962, 1.442695
      %v4999 = vpow.pop %v4998
      %v5000 = vmul.f32 %v4963, 1.442695
      %v5001 = vpow.pop %v5000
      %v5002 = vmul.f32 %v4964, 1.442695
      %v5003 = vpow.pop %v5002
      %v5004 = vmul.f32 %v4965, 1.442695
      %v5005 = vpow.pop %v5004
      %v5006 = vmul.f32 %v4966, 1.442695
      %v5007 = vpow.pop %v5006
      %v5008 = vmul.f32 %v4967, 1.442695
      %v5009 = vpow.pop %v5008
      %v5010 = vmul.f32 %v4968, 1.442695
      %v5011 = vpow.pop %v5010
      %v5012 = vmul.f32 %v4969, 1.442695
      %v5013 = vpow.pop %v5012
      %v5014 = vmul.f32 %v4970, 1.442695
      %v5015 = vpow.pop %v5014
      %v5016 = vmul.f32 %v4971, 1.442695
      %v5017 = vpow.pop %v5016
      %v5018 = vmul.f32 %v4972, 1.442695
      %v5019 = vpow.pop %v5018
      %v5020 = vmul.f32 %v4973, 1.442695
      %v5021 = vpow.pop %v5020
      %v5022 = vmul.f32 %v4974, 1.442695
      %v5023 = vpow.pop %v5022
      %v5024 = vmul.f32 %v4975, 1.442695
      %v5025 = vpow.pop %v5024
      %v5026 = vmul.f32 %v4976, 1.442695
      %v5027 = vpow.pop %v5026
      %v5028 = vmul.f32 %v4977, 1.442695
      %v5029 = vpow.pop %v5028
      %v5030 = vmul.f32 %v4978, 1.442695
      %v5031 = vpow.pop %v5030
      %v5032 = vmul.f32 %v4979, 1.442695
      %v5033 = vpow.pop %v5032
      %v5034 = vmul.f32 %v4980, 1.442695
      %v5035 = vpow.pop %v5034
      %v5036 = vmul.f32 %v4981, 1.442695
      %v5037 = vpow.pop %v5036
      %v5038 = vmul.f32 %v4982, 1.442695
      %v5039 = vpow.pop %v5038
      %v5040 = vmul.f32 %v4983, 1.442695
      %v5041 = vpow.pop %v5040
      %v5042 = vmul.f32 %v4984, 1.442695
      %v5043 = vpow.pop %v5042
      %v5044 = vmul.f32 %v4985, 1.442695
      %v5045 = vpow.pop %v5044
      %v5046 = vmul.f32 %v4986, 1.442695
      %v5047 = vpow.pop %v5046
      %v5048 = vmul.f32 %v4987, 1.442695
      %v5049 = vpow.pop %v5048
      %v5050 = vmul.f32 %v4988, 1.442695
      %v5051 = vpow.pop %v5050
      %v5052 = vmul.f32 %v4989, 1.442695
      %v5053 = vpow.pop %v5052
      %5054 = vadd.xlane.f32.xlu0 %v4991
      %v5055 = vpop.xlane.xlu0 %5054
      %5056 = vadd.xlane.f32.xlu0 %v4993
      %v5057 = vpop.xlane.xlu0 %5056
      %5058 = vadd.xlane.f32.xlu0 %v4995
      %v5059 = vpop.xlane.xlu0 %5058
      %5060 = vadd.xlane.f32.xlu0 %v4997
      %v5061 = vpop.xlane.xlu0 %5060
      %5062 = vadd.xlane.f32.xlu0 %v4999
      %v5063 = vpop.xlane.xlu0 %5062
      %5064 = vadd.xlane.f32.xlu0 %v5001
      %v5065 = vpop.xlane.xlu0 %5064
      %5066 = vadd.xlane.f32.xlu0 %v5003
      %v5067 = vpop.xlane.xlu0 %5066
      %5068 = vadd.xlane.f32.xlu0 %v5005
      %v5069 = vpop.xlane.xlu0 %5068
      %5070 = vadd.xlane.f32.xlu0 %v5007
      %v5071 = vpop.xlane.xlu0 %5070
      %5072 = vadd.xlane.f32.xlu0 %v5009
      %v5073 = vpop.xlane.xlu0 %5072
      %5074 = vadd.xlane.f32.xlu0 %v5011
      %v5075 = vpop.xlane.xlu0 %5074
      %5076 = vadd.xlane.f32.xlu0 %v5013
      %v5077 = vpop.xlane.xlu0 %5076
      %5078 = vadd.xlane.f32.xlu0 %v5015
      %v5079 = vpop.xlane.xlu0 %5078
      %5080 = vadd.xlane.f32.xlu0 %v5017
      %v5081 = vpop.xlane.xlu0 %5080
      %5082 = vadd.xlane.f32.xlu0 %v5019
      %v5083 = vpop.xlane.xlu0 %5082
      %5084 = vadd.xlane.f32.xlu0 %v5021
      %v5085 = vpop.xlane.xlu0 %5084
      %5086 = vadd.xlane.f32.xlu0 %v5023
      %v5087 = vpop.xlane.xlu0 %5086
      %5088 = vadd.xlane.f32.xlu0 %v5025
      %v5089 = vpop.xlane.xlu0 %5088
      %5090 = vadd.xlane.f32.xlu0 %v5027
      %v5091 = vpop.xlane.xlu0 %5090
      %5092 = vadd.xlane.f32.xlu0 %v5029
      %v5093 = vpop.xlane.xlu0 %5092
      %5094 = vadd.xlane.f32.xlu0 %v5031
      %v5095 = vpop.xlane.xlu0 %5094
      %5096 = vadd.xlane.f32.xlu0 %v5033
      %v5097 = vpop.xlane.xlu0 %5096
      %5098 = vadd.xlane.f32.xlu0 %v5035
      %v5099 = vpop.xlane.xlu0 %5098
      %5100 = vadd.xlane.f32.xlu0 %v5037
      %v5101 = vpop.xlane.xlu0 %5100
      %5102 = vadd.xlane.f32.xlu0 %v5039
      %v5103 = vpop.xlane.xlu0 %5102
      %5104 = vadd.xlane.f32.xlu0 %v5041
      %v5105 = vpop.xlane.xlu0 %5104
      %5106 = vadd.xlane.f32.xlu0 %v5043
      %v5107 = vpop.xlane.xlu0 %5106
      %5108 = vadd.xlane.f32.xlu0 %v5045
      %v5109 = vpop.xlane.xlu0 %5108
      %5110 = vadd.xlane.f32.xlu0 %v5047
      %v5111 = vpop.xlane.xlu0 %5110
      %5112 = vadd.xlane.f32.xlu0 %v5049
      %v5113 = vpop.xlane.xlu0 %5112
      %5114 = vadd.xlane.f32.xlu0 %v5051
      %v5115 = vpop.xlane.xlu0 %5114
      %5116 = vadd.xlane.f32.xlu0 %v5053
      %v5117 = vpop.xlane.xlu0 %5116
      %v5118 = vrcp.pop %v5055
      %v5119 = vrcp.pop %v5057
      %v5120 = vrcp.pop %v5059
      %v5121 = vrcp.pop %v5061
      %v5122 = vrcp.pop %v5063
      %v5123 = vrcp.pop %v5065
      %v5124 = vrcp.pop %v5067
      %v5125 = vrcp.pop %v5069
      %v5126 = vrcp.pop %v5071
      %v5127 = vrcp.pop %v5073
      %v5128 = vrcp.pop %v5075
      %v5129 = vrcp.pop %v5077
      %v5130 = vrcp.pop %v5079
      %v5131 = vrcp.pop %v5081
      %v5132 = vrcp.pop %v5083
      %v5133 = vrcp.pop %v5085
      %v5134 = vrcp.pop %v5087
      %v5135 = vrcp.pop %v5089
      %v5136 = vrcp.pop %v5091
      %v5137 = vrcp.pop %v5093
      %v5138 = vrcp.pop %v5095
      %v5139 = vrcp.pop %v5097
      %v5140 = vrcp.pop %v5099
      %v5141 = vrcp.pop %v5101
      %v5142 = vrcp.pop %v5103
      %v5143 = vrcp.pop %v5105
      %v5144 = vrcp.pop %v5107
      %v5145 = vrcp.pop %v5109
      %v5146 = vrcp.pop %v5111
      %v5147 = vrcp.pop %v5113
      %v5148 = vrcp.pop %v5115
      %v5149 = vrcp.pop %v5117
      %v5150 = vmul.f32 %v4991, %v5118
      %v5151 = vmul.f32 %v4993, %v5119
      %v5152 = vmul.f32 %v4995, %v5120
      %v5153 = vmul.f32 %v4997, %v5121
      %v5154 = vmul.f32 %v4999, %v5122
      %v5155 = vmul.f32 %v5001, %v5123
      %v5156 = vmul.f32 %v5003, %v5124
      %v5157 = vmul.f32 %v5005, %v5125
      %v5158 = vmul.f32 %v5007, %v5126
      %v5159 = vmul.f32 %v5009, %v5127
      %v5160 = vmul.f32 %v5011, %v5128
      %v5161 = vmul.f32 %v5013, %v5129
      %v5162 = vmul.f32 %v5015, %v5130
      %v5163 = vmul.f32 %v5017, %v5131
      %v5164 = vmul.f32 %v5019, %v5132
      %v5165 = vmul.f32 %v5021, %v5133
      %v5166 = vmul.f32 %v5023, %v5134
      %v5167 = vmul.f32 %v5025, %v5135
      %v5168 = vmul.f32 %v5027, %v5136
      %v5169 = vmul.f32 %v5029, %v5137
      %v5170 = vmul.f32 %v5031, %v5138
      %v5171 = vmul.f32 %v5033, %v5139
      %v5172 = vmul.f32 %v5035, %v5140
      %v5173 = vmul.f32 %v5037, %v5141
      %v5174 = vmul.f32 %v5039, %v5142
      %v5175 = vmul.f32 %v5041, %v5143
      %v5176 = vmul.f32 %v5043, %v5144
      %v5177 = vmul.f32 %v5045, %v5145
      %v5178 = vmul.f32 %v5047, %v5146
      %v5179 = vmul.f32 %v5049, %v5147
      %v5180 = vmul.f32 %v5051, %v5148
      %v5181 = vmul.f32 %v5053, %v5149
      %v5182 = vpack.c.bf16 %v5151, %v5150
      %v5183 = vpack.c.bf16 %v5153, %v5152
      %v5184 = vpack.c.bf16 %v5155, %v5154
      %v5185 = vpack.c.bf16 %v5157, %v5156
      %v5186 = vpack.c.bf16 %v5159, %v5158
      %v5187 = vpack.c.bf16 %v5161, %v5160
      %v5188 = vpack.c.bf16 %v5163, %v5162
      %v5189 = vpack.c.bf16 %v5165, %v5164
      %v5190 = vpack.c.bf16 %v5167, %v5166
      %v5191 = vpack.c.bf16 %v5169, %v5168
      %v5192 = vpack.c.bf16 %v5171, %v5170
      %v5193 = vpack.c.bf16 %v5173, %v5172
      %v5194 = vpack.c.bf16 %v5175, %v5174
      %v5195 = vpack.c.bf16 %v5177, %v5176
      %v5196 = vpack.c.bf16 %v5179, %v5178
      %v5197 = vpack.c.bf16 %v5181, %v5180
      %5198 = vmatprep.subr.bf16.mxu0 0
      %5199 = vmatpush1.bf16.xpose.msra.mxu0 %v5182
      %5200 = vmatprep.subr.bf16.mxu0 0
      %5201 = vmatpush1.bf16.xpose.msra.mxu0 %v5183
      %5202 = vmatprep.subr.bf16.mxu0 0
      %5203 = vmatpush1.bf16.xpose.msra.mxu0 %v5184
      %5204 = vmatprep.subr.bf16.mxu0 0
      %5205 = vmatpush1.bf16.xpose.msra.mxu0 %v5185
      %5206 = vmatprep.subr.bf16.mxu0 0
      %5207 = vmatpush1.bf16.xpose.msra.mxu0 %v5186
      %5208 = vmatprep.subr.bf16.mxu0 0
      %5209 = vmatpush1.bf16.xpose.msra.mxu0 %v5187
      %5210 = vmatprep.subr.bf16.mxu0 0
      %5211 = vmatpush1.bf16.xpose.msra.mxu0 %v5188
      %5212 = vmatprep.subr.bf16.mxu0 0
      %5213 = vmatpush1.bf16.xpose.msra.mxu0 %v5189
      %5214 = vmatprep.subr.bf16.mxu0 0
      %5215 = vmatpush1.bf16.xpose.msra.mxu0 %v5190
      %5216 = vmatprep.subr.bf16.mxu0 0
      %5217 = vmatpush1.bf16.xpose.msra.mxu0 %v5191
      %5218 = vmatprep.subr.bf16.mxu0 0
      %5219 = vmatpush1.bf16.xpose.msra.mxu0 %v5192
      %5220 = vmatprep.subr.bf16.mxu0 0
      %5221 = vmatpush1.bf16.xpose.msra.mxu0 %v5193
      %5222 = vmatprep.subr.bf16.mxu0 0
      %5223 = vmatpush1.bf16.xpose.msra.mxu0 %v5194
      %5224 = vmatprep.subr.bf16.mxu0 0
      %5225 = vmatpush1.bf16.xpose.msra.mxu0 %v5195
      %5226 = vmatprep.subr.bf16.mxu0 0
      %5227 = vmatpush1.bf16.xpose.msra.mxu0 %v5196
      %5228 = vmatprep.subr.bf16.mxu0 0
      %5229 = vmatpush1.bf16.xpose.msra.mxu0 %v5197
      %5230 = vmatprep.mubr.bf16.mxu0 0
      %5231 = vmatmul.mubr.bf16.gmra.mrb[0].mxu0 %v2097
      %v5232 = vpop.f32.mrb[0].mxu0
      %v5233 = vadd.f32 0.0, %v5232
      %v5234 = vpop.f32.mrb[0].mxu0
      %v5235 = vadd.f32 0.0, %v5234
      %v5236 = vpop.f32.mrb[0].mxu0
      %v5237 = vadd.f32 0.0, %v5236
      %v5238 = vpop.f32.mrb[0].mxu0
      %v5239 = vadd.f32 0.0, %v5238
      %5240 = vmatprep.mubr.bf16.mxu0 0
      %5241 = vmatmul.mubr.bf16.gmra.mrb[0].mxu0 %v2098
      %v5242 = vpop.f32.mrb[0].mxu0
      %v5243 = vadd.f32 0.0, %v5242
      %v5244 = vpop.f32.mrb[0].mxu0
      %v5245 = vadd.f32 0.0, %v5244
      %v5246 = vpop.f32.mrb[0].mxu0
      %v5247 = vadd.f32 0.0, %v5246
      %v5248 = vpop.f32.mrb[0].mxu0
      %v5249 = vadd.f32 0.0, %v5248
      %5250 = vmatprep.mubr.bf16.mxu0 0
      %5251 = vmatmul.mubr.bf16.gmra.mrb[0].mxu0 %v2099
      %v5252 = vpop.f32.mrb[0].mxu0
      %v5253 = vadd.f32 0.0, %v5252
      %v5254 = vpop.f32.mrb[0].mxu0
      %v5255 = vadd.f32 0.0, %v5254
      %v5256 = vpop.f32.mrb[0].mxu0
      %v5257 = vadd.f32 0.0, %v5256
      %v5258 = vpop.f32.mrb[0].mxu0
      %v5259 = vadd.f32 0.0, %v5258
      %5260 = vmatprep.mubr.bf16.mxu0 0
      %5261 = vmatmul.mubr.bf16.gmra.mrb[0].mxu0 %v2100
      %v5262 = vpop.f32.mrb[0].mxu0
      %v5263 = vadd.f32 0.0, %v5262
      %v5264 = vpop.f32.mrb[0].mxu0
      %v5265 = vadd.f32 0.0, %v5264
      %v5266 = vpop.f32.mrb[0].mxu0
      %v5267 = vadd.f32 0.0, %v5266
      %v5268 = vpop.f32.mrb[0].mxu0
      %v5269 = vadd.f32 0.0, %v5268
      %5270 = vdwg.mxu0
      %v5271 = vpack.c.bf16 %v5237, %v5233
      %v5272 = vpack.c.bf16 %v5239, %v5235
      %v5273 = vpack.c.bf16 %v5247, %v5243
      %v5274 = vpack.c.bf16 %v5249, %v5245
      %v5275 = vpack.c.bf16 %v5257, %v5253
      %v5276 = vpack.c.bf16 %v5259, %v5255
      %v5277 = vpack.c.bf16 %v5267, %v5263
      %v5278 = vpack.c.bf16 %v5269, %v5265
      %5279 = vst [vmem:[#allocation2 + $0x100] sm:$0xff] %v5271
      %5280 = vst [vmem:[#allocation2 + $0x108] sm:$0xff] %v5272
      %5281 = vst [vmem:[#allocation2 + $0x110] sm:$0xff] %v5273
      %5282 = vst [vmem:[#allocation2 + $0x118] sm:$0xff] %v5274
      %5283 = vst [vmem:[#allocation2 + $0x120] sm:$0xff] %v5275
      %5284 = vst [vmem:[#allocation2 + $0x128] sm:$0xff] %v5276
      %5285 = vst [vmem:[#allocation2 + $0x130] sm:$0xff] %v5277
      %5286 = vst [vmem:[#allocation2 + $0x138] sm:$0xff] %v5278
      %5287 = vxpose.xlu0.c.b16.start [1/8] %v903, 128
      %5288 = vxpose.xlu0.c.b16.cont [2/8] %v905, 128
      %5289 = vxpose.xlu0.c.b16.cont [3/8] %v907, 128
      %5290 = vxpose.xlu0.c.b16.cont [4/8] %v909, 128
      %5291 = vxpose.xlu0.c.b16.cont [5/8] 0, 128
      %5292 = vxpose.xlu0.c.b16.cont [6/8] 0, 128
      %5293 = vxpose.xlu0.c.b16.cont [7/8] 0, 128
      %5294 = vxpose.xlu0.c.b16.end [8/8] 0, 128
      %v5295 = vpop.trf.xlu0
      %v5296 = vpop.trf.xlu0
      %v5297 = vpop.trf.xlu0
      %v5298 = vpop.trf.xlu0
      %v5299 = vpop.trf.xlu0
      %v5300 = vpop.trf.xlu0
      %v5301 = vpop.trf.xlu0
      %v5302 = vpop.trf.xlu0
      %5303 = vxpose.xlu0.c.b16.start [1/8] %v904, 128
      %5304 = vxpose.xlu0.c.b16.cont [2/8] %v906, 128
      %5305 = vxpose.xlu0.c.b16.cont [3/8] %v908, 128
      %5306 = vxpose.xlu0.c.b16.cont [4/8] %v910, 128
      %5307 = vxpose.xlu0.c.b16.cont [5/8] 0, 128
      %5308 = vxpose.xlu0.c.b16.cont [6/8] 0, 128
      %5309 = vxpose.xlu0.c.b16.cont [7/8] 0, 128
      %5310 = vxpose.xlu0.c.b16.end [8/8] 0, 128
      %v5311 = vpop.trf.xlu0
      %v5312 = vpop.trf.xlu0
      %v5313 = vpop.trf.xlu0
      %v5314 = vpop.trf.xlu0
      %v5315 = vpop.trf.xlu0
      %v5316 = vpop.trf.xlu0
      %v5317 = vpop.trf.xlu0
      %v5318 = vpop.trf.xlu0
      %v5320 = vsel %vm1287, %v5295, 0
      %v5323 = vsel %vm1287, %v5296, 0
      %v5326 = vsel %vm1287, %v5297, 0
      %v5329 = vsel %vm1287, %v5298, 0
      %v5332 = vsel %vm1287, %v5299, 0
      %v5335 = vsel %vm1287, %v5300, 0
      %v5338 = vsel %vm1287, %v5301, 0
      %v5341 = vsel %vm1287, %v5302, 0
      %v5344 = vsel %vm1287, %v5311, 0
      %v5347 = vsel %vm1287, %v5312, 0
      %v5350 = vsel %vm1287, %v5313, 0
      %v5353 = vsel %vm1287, %v5314, 0
      %v5356 = vsel %vm1287, %v5315, 0
      %v5359 = vsel %vm1287, %v5316, 0
      %v5362 = vsel %vm1287, %v5317, 0
      %v5365 = vsel %vm1287, %v5318, 0
      %5367 = vmatprep.subr.bf16.mxu0 0
      %5368 = vmatpush1.bf16.msra.mxu0 %v2069
      %5369 = vmatprep.subr.bf16.mxu0 0
      %5370 = vmatpush1.bf16.msra.mxu0 %v2070
      %5371 = vmatprep.subr.bf16.mxu0 0
      %5372 = vmatpush1.bf16.msra.mxu0 %v2071
      %5373 = vmatprep.subr.bf16.mxu0 0
      %5374 = vmatpush1.bf16.msra.mxu0 %v2072
      %5375 = vmatprep.subr.bf16.mxu0 0
      %5376 = vmatpush1.bf16.msra.mxu0 0
      %5377 = vmatprep.subr.bf16.mxu0 0
      %5378 = vmatpush1.bf16.msra.mxu0 0
      %5379 = vmatprep.subr.bf16.mxu0 0
      %5380 = vmatpush1.bf16.msra.mxu0 0
      %5381 = vmatprep.subr.bf16.mxu0 0
      %5382 = vmatpush1.bf16.msra.mxu0 0
      %5383 = vmatprep.subr.bf16.mxu0 0
      %5384 = vmatpush1.bf16.msra.mxu0 0
      %5385 = vmatprep.subr.bf16.mxu0 0
      %5386 = vmatpush1.bf16.msra.mxu0 0
      %5387 = vmatprep.subr.bf16.mxu0 0
      %5388 = vmatpush1.bf16.msra.mxu0 0
      %5389 = vmatprep.subr.bf16.mxu0 0
      %5390 = vmatpush1.bf16.msra.mxu0 0
      %5391 = vmatprep.subr.bf16.mxu0 0
      %5392 = vmatpush1.bf16.msra.mxu0 0
      %5393 = vmatprep.subr.bf16.mxu0 0
      %5394 = vmatpush1.bf16.msra.mxu0 0
      %5395 = vmatprep.subr.bf16.mxu0 0
      %5396 = vmatpush1.bf16.msra.mxu0 0
      %5397 = vmatprep.subr.bf16.mxu0 0
      %5398 = vmatpush1.bf16.msra.mxu0 0
      %5399 = vmatprep.mubr.bf16.mxu0 0
      %5400 = vmatmul.mubr.bf16.gmra.mrb[0].mxu0 %v5320
      %v5401 = vpop.f32.mrb[0].mxu0
      %v5402 = vadd.f32 %v2116, %v5401
      %v5403 = vpop.f32.mrb[0].mxu0
      %v5404 = vpop.f32.mrb[0].mxu0
      %v5405 = vadd.f32 %v2116, %v5404
      %v5406 = vpop.f32.mrb[0].mxu0
      %5407 = vmatprep.mubr.bf16.mxu0 0
      %5408 = vmatmul.mubr.bf16.gmra.mrb[0].mxu0 %v5323
      %v5409 = vpop.f32.mrb[0].mxu0
      %v5410 = vadd.f32 %v2116, %v5409
      %v5411 = vpop.f32.mrb[0].mxu0
      %v5412 = vpop.f32.mrb[0].mxu0
      %v5413 = vadd.f32 %v2116, %v5412
      %v5414 = vpop.f32.mrb[0].mxu0
      %5415 = vmatprep.mubr.bf16.mxu0 0
      %5416 = vmatmul.mubr.bf16.gmra.mrb[0].mxu0 %v5326
      %v5417 = vpop.f32.mrb[0].mxu0
      %v5418 = vadd.f32 %v2116, %v5417
      %v5419 = vpop.f32.mrb[0].mxu0
      %v5420 = vpop.f32.mrb[0].mxu0
      %v5421 = vadd.f32 %v2116, %v5420
      %v5422 = vpop.f32.mrb[0].mxu0
      %5423 = vmatprep.mubr.bf16.mxu0 0
      %5424 = vmatmul.mubr.bf16.gmra.mrb[0].mxu0 %v5329
      %v5425 = vpop.f32.mrb[0].mxu0
      %v5426 = vadd.f32 %v2116, %v5425
      %v5427 = vpop.f32.mrb[0].mxu0
      %v5428 = vpop.f32.mrb[0].mxu0
      %v5429 = vadd.f32 %v2116, %v5428
      %v5430 = vpop.f32.mrb[0].mxu0
      %5431 = vmatprep.mubr.bf16.mxu0 0
      %5432 = vmatmul.mubr.bf16.gmra.mrb[0].mxu0 %v5332
      %v5433 = vpop.f32.mrb[0].mxu0
      %v5434 = vadd.f32 %v2116, %v5433
      %v5435 = vpop.f32.mrb[0].mxu0
      %v5436 = vpop.f32.mrb[0].mxu0
      %v5437 = vadd.f32 %v2116, %v5436
      %v5438 = vpop.f32.mrb[0].mxu0
      %5439 = vmatprep.mubr.bf16.mxu0 0
      %5440 = vmatmul.mubr.bf16.gmra.mrb[0].mxu0 %v5335
      %v5441 = vpop.f32.mrb[0].mxu0
      %v5442 = vadd.f32 %v2116, %v5441
      %v5443 = vpop.f32.mrb[0].mxu0
      %v5444 = vpop.f32.mrb[0].mxu0
      %v5445 = vadd.f32 %v2116, %v5444
      %v5446 = vpop.f32.mrb[0].mxu0
      %5447 = vmatprep.mubr.bf16.mxu0 0
      %5448 = vmatmul.mubr.bf16.gmra.mrb[0].mxu0 %v5338
      %v5449 = vpop.f32.mrb[0].mxu0
      %v5450 = vadd.f32 %v2116, %v5449
      %v5451 = vpop.f32.mrb[0].mxu0
      %v5452 = vpop.f32.mrb[0].mxu0
      %v5453 = vadd.f32 %v2116, %v5452
      %v5454 = vpop.f32.mrb[0].mxu0
      %5455 = vmatprep.mubr.bf16.mxu0 0
      %5456 = vmatmul.mubr.bf16.gmra.mrb[0].mxu0 %v5341
      %v5457 = vpop.f32.mrb[0].mxu0
      %v5458 = vadd.f32 %v2116, %v5457
      %v5459 = vpop.f32.mrb[0].mxu0
      %v5460 = vpop.f32.mrb[0].mxu0
      %v5461 = vadd.f32 %v2116, %v5460
      %v5462 = vpop.f32.mrb[0].mxu0
      %5463 = vmatprep.mubr.bf16.mxu0 0
      %5464 = vmatmul.mubr.bf16.gmra.mrb[0].mxu0 %v5344
      %v5465 = vpop.f32.mrb[0].mxu0
      %v5466 = vadd.f32 %v2116, %v5465
      %v5467 = vpop.f32.mrb[0].mxu0
      %v5468 = vpop.f32.mrb[0].mxu0
      %v5469 = vadd.f32 %v2116, %v5468
      %v5470 = vpop.f32.mrb[0].mxu0
      %5471 = vmatprep.mubr.bf16.mxu0 0
      %5472 = vmatmul.mubr.bf16.gmra.mrb[0].mxu0 %v5347
      %v5473 = vpop.f32.mrb[0].mxu0
      %v5474 = vadd.f32 %v2116, %v5473
      %v5475 = vpop.f32.mrb[0].mxu0
      %v5476 = vpop.f32.mrb[0].mxu0
      %v5477 = vadd.f32 %v2116, %v5476
      %v5478 = vpop.f32.mrb[0].mxu0
      %5479 = vmatprep.mubr.bf16.mxu0 0
      %5480 = vmatmul.mubr.bf16.gmra.mrb[0].mxu0 %v5350
      %v5481 = vpop.f32.mrb[0].mxu0
      %v5482 = vadd.f32 %v2116, %v5481
      %v5483 = vpop.f32.mrb[0].mxu0
      %v5484 = vpop.f32.mrb[0].mxu0
      %v5485 = vadd.f32 %v2116, %v5484
      %v5486 = vpop.f32.mrb[0].mxu0
      %5487 = vmatprep.mubr.bf16.mxu0 0
      %5488 = vmatmul.mubr.bf16.gmra.mrb[0].mxu0 %v5353
      %v5489 = vpop.f32.mrb[0].mxu0
      %v5490 = vadd.f32 %v2116, %v5489
      %v5491 = vpop.f32.mrb[0].mxu0
      %v5492 = vpop.f32.mrb[0].mxu0
      %v5493 = vadd.f32 %v2116, %v5492
      %v5494 = vpop.f32.mrb[0].mxu0
      %5495 = vmatprep.mubr.bf16.mxu0 0
      %5496 = vmatmul.mubr.bf16.gmra.mrb[0].mxu0 %v5356
      %v5497 = vpop.f32.mrb[0].mxu0
      %v5498 = vadd.f32 %v2116, %v5497
      %v5499 = vpop.f32.mrb[0].mxu0
      %v5500 = vpop.f32.mrb[0].mxu0
      %v5501 = vadd.f32 %v2116, %v5500
      %v5502 = vpop.f32.mrb[0].mxu0
      %5503 = vmatprep.mubr.bf16.mxu0 0
      %5504 = vmatmul.mubr.bf16.gmra.mrb[0].mxu0 %v5359
      %v5505 = vpop.f32.mrb[0].mxu0
      %v5506 = vadd.f32 %v2116, %v5505
      %v5507 = vpop.f32.mrb[0].mxu0
      %v5508 = vpop.f32.mrb[0].mxu0
      %v5509 = vadd.f32 %v2116, %v5508
      %v5510 = vpop.f32.mrb[0].mxu0
      %5511 = vmatprep.mubr.bf16.mxu0 0
      %5512 = vmatmul.mubr.bf16.gmra.mrb[0].mxu0 %v5362
      %v5513 = vpop.f32.mrb[0].mxu0
      %v5514 = vadd.f32 %v2116, %v5513
      %v5515 = vpop.f32.mrb[0].mxu0
      %v5516 = vpop.f32.mrb[0].mxu0
      %v5517 = vadd.f32 %v2116, %v5516
      %v5518 = vpop.f32.mrb[0].mxu0
      %5519 = vmatprep.mubr.bf16.mxu0 0
      %5520 = vmatmul.mubr.bf16.gmra.mrb[0].mxu0 %v5365
      %v5521 = vpop.f32.mrb[0].mxu0
      %v5522 = vadd.f32 %v2116, %v5521
      %v5523 = vpop.f32.mrb[0].mxu0
      %v5524 = vpop.f32.mrb[0].mxu0
      %v5525 = vadd.f32 %v2116, %v5524
      %v5526 = vpop.f32.mrb[0].mxu0
      %5527 = vdwg.mxu0
      %5528 = vmax.xlane.f32.xlu0 %v5402
      %v5529 = vpop.xlane.xlu0 %5528
      %5530 = vmax.xlane.f32.xlu0 %v5405
      %v5531 = vpop.xlane.xlu0 %5530
      %5532 = vmax.xlane.f32.xlu0 %v5410
      %v5533 = vpop.xlane.xlu0 %5532
      %5534 = vmax.xlane.f32.xlu0 %v5413
      %v5535 = vpop.xlane.xlu0 %5534
      %5536 = vmax.xlane.f32.xlu0 %v5418
      %v5537 = vpop.xlane.xlu0 %5536
      %5538 = vmax.xlane.f32.xlu0 %v5421
      %v5539 = vpop.xlane.xlu0 %5538
      %5540 = vmax.xlane.f32.xlu0 %v5426
      %v5541 = vpop.xlane.xlu0 %5540
      %5542 = vmax.xlane.f32.xlu0 %v5429
      %v5543 = vpop.xlane.xlu0 %5542
      %5544 = vmax.xlane.f32.xlu0 %v5434
      %v5545 = vpop.xlane.xlu0 %5544
      %5546 = vmax.xlane.f32.xlu0 %v5437
      %v5547 = vpop.xlane.xlu0 %5546
      %5548 = vmax.xlane.f32.xlu0 %v5442
      %v5549 = vpop.xlane.xlu0 %5548
      %5550 = vmax.xlane.f32.xlu0 %v5445
      %v5551 = vpop.xlane.xlu0 %5550
      %5552 = vmax.xlane.f32.xlu0 %v5450
      %v5553 = vpop.xlane.xlu0 %5552
      %5554 = vmax.xlane.f32.xlu0 %v5453
      %v5555 = vpop.xlane.xlu0 %5554
      %5556 = vmax.xlane.f32.xlu0 %v5458
      %v5557 = vpop.xlane.xlu0 %5556
      %5558 = vmax.xlane.f32.xlu0 %v5461
      %v5559 = vpop.xlane.xlu0 %5558
      %5560 = vmax.xlane.f32.xlu0 %v5466
      %v5561 = vpop.xlane.xlu0 %5560
      %5562 = vmax.xlane.f32.xlu0 %v5469
      %v5563 = vpop.xlane.xlu0 %5562
      %5564 = vmax.xlane.f32.xlu0 %v5474
      %v5565 = vpop.xlane.xlu0 %5564
      %5566 = vmax.xlane.f32.xlu0 %v5477
      %v5567 = vpop.xlane.xlu0 %5566
      %5568 = vmax.xlane.f32.xlu0 %v5482
      %v5569 = vpop.xlane.xlu0 %5568
      %5570 = vmax.xlane.f32.xlu0 %v5485
      %v5571 = vpop.xlane.xlu0 %5570
      %5572 = vmax.xlane.f32.xlu0 %v5490
      %v5573 = vpop.xlane.xlu0 %5572
      %5574 = vmax.xlane.f32.xlu0 %v5493
      %v5575 = vpop.xlane.xlu0 %5574
      %5576 = vmax.xlane.f32.xlu0 %v5498
      %v5577 = vpop.xlane.xlu0 %5576
      %5578 = vmax.xlane.f32.xlu0 %v5501
      %v5579 = vpop.xlane.xlu0 %5578
      %5580 = vmax.xlane.f32.xlu0 %v5506
      %v5581 = vpop.xlane.xlu0 %5580
      %5582 = vmax.xlane.f32.xlu0 %v5509
      %v5583 = vpop.xlane.xlu0 %5582
      %5584 = vmax.xlane.f32.xlu0 %v5514
      %v5585 = vpop.xlane.xlu0 %5584
      %5586 = vmax.xlane.f32.xlu0 %v5517
      %v5587 = vpop.xlane.xlu0 %5586
      %5588 = vmax.xlane.f32.xlu0 %v5522
      %v5589 = vpop.xlane.xlu0 %5588
      %5590 = vmax.xlane.f32.xlu0 %v5525
      %v5591 = vpop.xlane.xlu0 %5590
      %v5592 = vsub.f32 %v5402, %v5529
      %v5593 = vsub.f32 %v5405, %v5531
      %v5594 = vsub.f32 %v5410, %v5533
      %v5595 = vsub.f32 %v5413, %v5535
      %v5596 = vsub.f32 %v5418, %v5537
      %v5597 = vsub.f32 %v5421, %v5539
      %v5598 = vsub.f32 %v5426, %v5541
      %v5599 = vsub.f32 %v5429, %v5543
      %v5600 = vsub.f32 %v5434, %v5545
      %v5601 = vsub.f32 %v5437, %v5547
      %v5602 = vsub.f32 %v5442, %v5549
      %v5603 = vsub.f32 %v5445, %v5551
      %v5604 = vsub.f32 %v5450, %v5553
      %v5605 = vsub.f32 %v5453, %v5555
      %v5606 = vsub.f32 %v5458, %v5557
      %v5607 = vsub.f32 %v5461, %v5559
      %v5608 = vsub.f32 %v5466, %v5561
      %v5609 = vsub.f32 %v5469, %v5563
      %v5610 = vsub.f32 %v5474, %v5565
      %v5611 = vsub.f32 %v5477, %v5567
      %v5612 = vsub.f32 %v5482, %v5569
      %v5613 = vsub.f32 %v5485, %v5571
      %v5614 = vsub.f32 %v5490, %v5573
      %v5615 = vsub.f32 %v5493, %v5575
      %v5616 = vsub.f32 %v5498, %v5577
      %v5617 = vsub.f32 %v5501, %v5579
      %v5618 = vsub.f32 %v5506, %v5581
      %v5619 = vsub.f32 %v5509, %v5583
      %v5620 = vsub.f32 %v5514, %v5585
      %v5621 = vsub.f32 %v5517, %v5587
      %v5622 = vsub.f32 %v5522, %v5589
      %v5623 = vsub.f32 %v5525, %v5591
      %v5624 = vmul.f32 %v5592, 1.442695
      %v5625 = vpow.pop %v5624
      %v5626 = vmul.f32 %v5593, 1.442695
      %v5627 = vpow.pop %v5626
      %v5628 = vmul.f32 %v5594, 1.442695
      %v5629 = vpow.pop %v5628
      %v5630 = vmul.f32 %v5595, 1.442695
      %v5631 = vpow.pop %v5630
      %v5632 = vmul.f32 %v5596, 1.442695
      %v5633 = vpow.pop %v5632
      %v5634 = vmul.f32 %v5597, 1.442695
      %v5635 = vpow.pop %v5634
      %v5636 = vmul.f32 %v5598, 1.442695
      %v5637 = vpow.pop %v5636
      %v5638 = vmul.f32 %v5599, 1.442695
      %v5639 = vpow.pop %v5638
      %v5640 = vmul.f32 %v5600, 1.442695
      %v5641 = vpow.pop %v5640
      %v5642 = vmul.f32 %v5601, 1.442695
      %v5643 = vpow.pop %v5642
      %v5644 = vmul.f32 %v5602, 1.442695
      %v5645 = vpow.pop %v5644
      %v5646 = vmul.f32 %v5603, 1.442695
      %v5647 = vpow.pop %v5646
      %v5648 = vmul.f32 %v5604, 1.442695
      %v5649 = vpow.pop %v5648
      %v5650 = vmul.f32 %v5605, 1.442695
      %v5651 = vpow.pop %v5650
      %v5652 = vmul.f32 %v5606, 1.442695
      %v5653 = vpow.pop %v5652
      %v5654 = vmul.f32 %v5607, 1.442695
      %v5655 = vpow.pop %v5654
      %v5656 = vmul.f32 %v5608, 1.442695
      %v5657 = vpow.pop %v5656
      %v5658 = vmul.f32 %v5609, 1.442695
      %v5659 = vpow.pop %v5658
      %v5660 = vmul.f32 %v5610, 1.442695
      %v5661 = vpow.pop %v5660
      %v5662 = vmul.f32 %v5611, 1.442695
      %v5663 = vpow.pop %v5662
      %v5664 = vmul.f32 %v5612, 1.442695
      %v5665 = vpow.pop %v5664
      %v5666 = vmul.f32 %v5613, 1.442695
      %v5667 = vpow.pop %v5666
      %v5668 = vmul.f32 %v5614, 1.442695
      %v5669 = vpow.pop %v5668
      %v5670 = vmul.f32 %v5615, 1.442695
      %v5671 = vpow.pop %v5670
      %v5672 = vmul.f32 %v5616, 1.442695
      %v5673 = vpow.pop %v5672
      %v5674 = vmul.f32 %v5617, 1.442695
      %v5675 = vpow.pop %v5674
      %v5676 = vmul.f32 %v5618, 1.442695
      %v5677 = vpow.pop %v5676
      %v5678 = vmul.f32 %v5619, 1.442695
      %v5679 = vpow.pop %v5678
      %v5680 = vmul.f32 %v5620, 1.442695
      %v5681 = vpow.pop %v5680
      %v5682 = vmul.f32 %v5621, 1.442695
      %v5683 = vpow.pop %v5682
      %v5684 = vmul.f32 %v5622, 1.442695
      %v5685 = vpow.pop %v5684
      %v5686 = vmul.f32 %v5623, 1.442695
      %v5687 = vpow.pop %v5686
      %5688 = vadd.xlane.f32.xlu0 %v5625
      %v5689 = vpop.xlane.xlu0 %5688
      %5690 = vadd.xlane.f32.xlu0 %v5627
      %v5691 = vpop.xlane.xlu0 %5690
      %5692 = vadd.xlane.f32.xlu0 %v5629
      %v5693 = vpop.xlane.xlu0 %5692
      %5694 = vadd.xlane.f32.xlu0 %v5631
      %v5695 = vpop.xlane.xlu0 %5694
      %5696 = vadd.xlane.f32.xlu0 %v5633
      %v5697 = vpop.xlane.xlu0 %5696
      %5698 = vadd.xlane.f32.xlu0 %v5635
      %v5699 = vpop.xlane.xlu0 %5698
      %5700 = vadd.xlane.f32.xlu0 %v5637
      %v5701 = vpop.xlane.xlu0 %5700
      %5702 = vadd.xlane.f32.xlu0 %v5639
      %v5703 = vpop.xlane.xlu0 %5702
      %5704 = vadd.xlane.f32.xlu0 %v5641
      %v5705 = vpop.xlane.xlu0 %5704
      %5706 = vadd.xlane.f32.xlu0 %v5643
      %v5707 = vpop.xlane.xlu0 %5706
      %5708 = vadd.xlane.f32.xlu0 %v5645
      %v5709 = vpop.xlane.xlu0 %5708
      %5710 = vadd.xlane.f32.xlu0 %v5647
      %v5711 = vpop.xlane.xlu0 %5710
      %5712 = vadd.xlane.f32.xlu0 %v5649
      %v5713 = vpop.xlane.xlu0 %5712
      %5714 = vadd.xlane.f32.xlu0 %v5651
      %v5715 = vpop.xlane.xlu0 %5714
      %5716 = vadd.xlane.f32.xlu0 %v5653
      %v5717 = vpop.xlane.xlu0 %5716
      %5718 = vadd.xlane.f32.xlu0 %v5655
      %v5719 = vpop.xlane.xlu0 %5718
      %5720 = vadd.xlane.f32.xlu0 %v5657
      %v5721 = vpop.xlane.xlu0 %5720
      %5722 = vadd.xlane.f32.xlu0 %v5659
      %v5723 = vpop.xlane.xlu0 %5722
      %5724 = vadd.xlane.f32.xlu0 %v5661
      %v5725 = vpop.xlane.xlu0 %5724
      %5726 = vadd.xlane.f32.xlu0 %v5663
      %v5727 = vpop.xlane.xlu0 %5726
      %5728 = vadd.xlane.f32.xlu0 %v5665
      %v5729 = vpop.xlane.xlu0 %5728
      %5730 = vadd.xlane.f32.xlu0 %v5667
      %v5731 = vpop.xlane.xlu0 %5730
      %5732 = vadd.xlane.f32.xlu0 %v5669
      %v5733 = vpop.xlane.xlu0 %5732
      %5734 = vadd.xlane.f32.xlu0 %v5671
      %v5735 = vpop.xlane.xlu0 %5734
      %5736 = vadd.xlane.f32.xlu0 %v5673
      %v5737 = vpop.xlane.xlu0 %5736
      %5738 = vadd.xlane.f32.xlu0 %v5675
      %v5739 = vpop.xlane.xlu0 %5738
      %5740 = vadd.xlane.f32.xlu0 %v5677
      %v5741 = vpop.xlane.xlu0 %5740
      %5742 = vadd.xlane.f32.xlu0 %v5679
      %v5743 = vpop.xlane.xlu0 %5742
      %5744 = vadd.xlane.f32.xlu0 %v5681
      %v5745 = vpop.xlane.xlu0 %5744
      %5746 = vadd.xlane.f32.xlu0 %v5683
      %v5747 = vpop.xlane.xlu0 %5746
      %5748 = vadd.xlane.f32.xlu0 %v5685
      %v5749 = vpop.xlane.xlu0 %5748
      %5750 = vadd.xlane.f32.xlu0 %v5687
      %v5751 = vpop.xlane.xlu0 %5750
      %v5752 = vrcp.pop %v5689
      %v5753 = vrcp.pop %v5691
      %v5754 = vrcp.pop %v5693
      %v5755 = vrcp.pop %v5695
      %v5756 = vrcp.pop %v5697
      %v5757 = vrcp.pop %v5699
      %v5758 = vrcp.pop %v5701
      %v5759 = vrcp.pop %v5703
      %v5760 = vrcp.pop %v5705
      %v5761 = vrcp.pop %v5707
      %v5762 = vrcp.pop %v5709
      %v5763 = vrcp.pop %v5711
      %v5764 = vrcp.pop %v5713
      %v5765 = vrcp.pop %v5715
      %v5766 = vrcp.pop %v5717
      %v5767 = vrcp.pop %v5719
      %v5768 = vrcp.pop %v5721
      %v5769 = vrcp.pop %v5723
      %v5770 = vrcp.pop %v5725
      %v5771 = vrcp.pop %v5727
      %v5772 = vrcp.pop %v5729
      %v5773 = vrcp.pop %v5731
      %v5774 = vrcp.pop %v5733
      %v5775 = vrcp.pop %v5735
      %v5776 = vrcp.pop %v5737
      %v5777 = vrcp.pop %v5739
      %v5778 = vrcp.pop %v5741
      %v5779 = vrcp.pop %v5743
      %v5780 = vrcp.pop %v5745
      %v5781 = vrcp.pop %v5747
      %v5782 = vrcp.pop %v5749
      %v5783 = vrcp.pop %v5751
      %v5784 = vmul.f32 %v5625, %v5752
      %v5785 = vmul.f32 %v5627, %v5753
      %v5786 = vmul.f32 %v5629, %v5754
      %v5787 = vmul.f32 %v5631, %v5755
      %v5788 = vmul.f32 %v5633, %v5756
      %v5789 = vmul.f32 %v5635, %v5757
      %v5790 = vmul.f32 %v5637, %v5758
      %v5791 = vmul.f32 %v5639, %v5759
      %v5792 = vmul.f32 %v5641, %v5760
      %v5793 = vmul.f32 %v5643, %v5761
      %v5794 = vmul.f32 %v5645, %v5762
      %v5795 = vmul.f32 %v5647, %v5763
      %v5796 = vmul.f32 %v5649, %v5764
      %v5797 = vmul.f32 %v5651, %v5765
      %v5798 = vmul.f32 %v5653, %v5766
      %v5799 = vmul.f32 %v5655, %v5767
      %v5800 = vmul.f32 %v5657, %v5768
      %v5801 = vmul.f32 %v5659, %v5769
      %v5802 = vmul.f32 %v5661, %v5770
      %v5803 = vmul.f32 %v5663, %v5771
      %v5804 = vmul.f32 %v5665, %v5772
      %v5805 = vmul.f32 %v5667, %v5773
      %v5806 = vmul.f32 %v5669, %v5774
      %v5807 = vmul.f32 %v5671, %v5775
      %v5808 = vmul.f32 %v5673, %v5776
      %v5809 = vmul.f32 %v5675, %v5777
      %v5810 = vmul.f32 %v5677, %v5778
      %v5811 = vmul.f32 %v5679, %v5779
      %v5812 = vmul.f32 %v5681, %v5780
      %v5813 = vmul.f32 %v5683, %v5781
      %v5814 = vmul.f32 %v5685, %v5782
      %v5815 = vmul.f32 %v5687, %v5783
      %v5816 = vpack.c.bf16 %v5785, %v5784
      %v5817 = vpack.c.bf16 %v5787, %v5786
      %v5818 = vpack.c.bf16 %v5789, %v5788
      %v5819 = vpack.c.bf16 %v5791, %v5790
      %v5820 = vpack.c.bf16 %v5793, %v5792
      %v5821 = vpack.c.bf16 %v5795, %v5794
      %v5822 = vpack.c.bf16 %v5797, %v5796
      %v5823 = vpack.c.bf16 %v5799, %v5798
      %v5824 = vpack.c.bf16 %v5801, %v5800
      %v5825 = vpack.c.bf16 %v5803, %v5802
      %v5826 = vpack.c.bf16 %v5805, %v5804
      %v5827 = vpack.c.bf16 %v5807, %v5806
      %v5828 = vpack.c.bf16 %v5809, %v5808
      %v5829 = vpack.c.bf16 %v5811, %v5810
      %v5830 = vpack.c.bf16 %v5813, %v5812
      %v5831 = vpack.c.bf16 %v5815, %v5814
      %5832 = vmatprep.subr.bf16.mxu0 0
      %5833 = vmatpush1.bf16.xpose.msra.mxu0 %v5816
      %5834 = vmatprep.subr.bf16.mxu0 0
      %5835 = vmatpush1.bf16.xpose.msra.mxu0 %v5817
      %5836 = vmatprep.subr.bf16.mxu0 0
      %5837 = vmatpush1.bf16.xpose.msra.mxu0 %v5818
      %5838 = vmatprep.subr.bf16.mxu0 0
      %5839 = vmatpush1.bf16.xpose.msra.mxu0 %v5819
      %5840 = vmatprep.subr.bf16.mxu0 0
      %5841 = vmatpush1.bf16.xpose.msra.mxu0 %v5820
      %5842 = vmatprep.subr.bf16.mxu0 0
      %5843 = vmatpush1.bf16.xpose.msra.mxu0 %v5821
      %5844 = vmatprep.subr.bf16.mxu0 0
      %5845 = vmatpush1.bf16.xpose.msra.mxu0 %v5822
      %5846 = vmatprep.subr.bf16.mxu0 0
      %5847 = vmatpush1.bf16.xpose.msra.mxu0 %v5823
      %5848 = vmatprep.subr.bf16.mxu0 0
      %5849 = vmatpush1.bf16.xpose.msra.mxu0 %v5824
      %5850 = vmatprep.subr.bf16.mxu0 0
      %5851 = vmatpush1.bf16.xpose.msra.mxu0 %v5825
      %5852 = vmatprep.subr.bf16.mxu0 0
      %5853 = vmatpush1.bf16.xpose.msra.mxu0 %v5826
      %5854 = vmatprep.subr.bf16.mxu0 0
      %5855 = vmatpush1.bf16.xpose.msra.mxu0 %v5827
      %5856 = vmatprep.subr.bf16.mxu0 0
      %5857 = vmatpush1.bf16.xpose.msra.mxu0 %v5828
      %5858 = vmatprep.subr.bf16.mxu0 0
      %5859 = vmatpush1.bf16.xpose.msra.mxu0 %v5829
      %5860 = vmatprep.subr.bf16.mxu0 0
      %5861 = vmatpush1.bf16.xpose.msra.mxu0 %v5830
      %5862 = vmatprep.subr.bf16.mxu0 0
      %5863 = vmatpush1.bf16.xpose.msra.mxu0 %v5831
      %5864 = vmatprep.mubr.bf16.mxu0 0
      %5865 = vmatmul.mubr.bf16.gmra.mrb[0].mxu0 %v2101
      %v5866 = vpop.f32.mrb[0].mxu0
      %v5867 = vadd.f32 0.0, %v5866
      %v5868 = vpop.f32.mrb[0].mxu0
      %v5869 = vadd.f32 0.0, %v5868
      %v5870 = vpop.f32.mrb[0].mxu0
      %v5871 = vadd.f32 0.0, %v5870
      %v5872 = vpop.f32.mrb[0].mxu0
      %v5873 = vadd.f32 0.0, %v5872
      %5874 = vmatprep.mubr.bf16.mxu0 0
      %5875 = vmatmul.mubr.bf16.gmra.mrb[0].mxu0 %v2102
      %v5876 = vpop.f32.mrb[0].mxu0
      %v5877 = vadd.f32 0.0, %v5876
      %v5878 = vpop.f32.mrb[0].mxu0
      %v5879 = vadd.f32 0.0, %v5878
      %v5880 = vpop.f32.mrb[0].mxu0
      %v5881 = vadd.f32 0.0, %v5880
      %v5882 = vpop.f32.mrb[0].mxu0
      %v5883 = vadd.f32 0.0, %v5882
      %5884 = vmatprep.mubr.bf16.mxu0 0
      %5885 = vmatmul.mubr.bf16.gmra.mrb[0].mxu0 %v2103
      %v5886 = vpop.f32.mrb[0].mxu0
      %v5887 = vadd.f32 0.0, %v5886
      %v5888 = vpop.f32.mrb[0].mxu0
      %v5889 = vadd.f32 0.0, %v5888
      %v5890 = vpop.f32.mrb[0].mxu0
      %v5891 = vadd.f32 0.0, %v5890
      %v5892 = vpop.f32.mrb[0].mxu0
      %v5893 = vadd.f32 0.0, %v5892
      %5894 = vmatprep.mubr.bf16.mxu0 0
      %5895 = vmatmul.mubr.bf16.gmra.mrb[0].mxu0 %v2104
      %v5896 = vpop.f32.mrb[0].mxu0
      %v5897 = vadd.f32 0.0, %v5896
      %v5898 = vpop.f32.mrb[0].mxu0
      %v5899 = vadd.f32 0.0, %v5898
      %v5900 = vpop.f32.mrb[0].mxu0
      %v5901 = vadd.f32 0.0, %v5900
      %v5902 = vpop.f32.mrb[0].mxu0
      %v5903 = vadd.f32 0.0, %v5902
      %5904 = vdwg.mxu0
      %v5905 = vpack.c.bf16 %v5871, %v5867
      %v5906 = vpack.c.bf16 %v5873, %v5869
      %v5907 = vpack.c.bf16 %v5881, %v5877
      %v5908 = vpack.c.bf16 %v5883, %v5879
      %v5909 = vpack.c.bf16 %v5891, %v5887
      %v5910 = vpack.c.bf16 %v5893, %v5889
      %v5911 = vpack.c.bf16 %v5901, %v5897
      %v5912 = vpack.c.bf16 %v5903, %v5899
      %5913 = vst [vmem:[#allocation2 + $0x140] sm:$0xff] %v5905
      %5914 = vst [vmem:[#allocation2 + $0x148] sm:$0xff] %v5906
      %5915 = vst [vmem:[#allocation2 + $0x150] sm:$0xff] %v5907
      %5916 = vst [vmem:[#allocation2 + $0x158] sm:$0xff] %v5908
      %5917 = vst [vmem:[#allocation2 + $0x160] sm:$0xff] %v5909
      %5918 = vst [vmem:[#allocation2 + $0x168] sm:$0xff] %v5910
      %5919 = vst [vmem:[#allocation2 + $0x170] sm:$0xff] %v5911
      %5920 = vst [vmem:[#allocation2 + $0x178] sm:$0xff] %v5912
      %5921 = vxpose.xlu0.c.b16.start [1/8] %v911, 128
      %5922 = vxpose.xlu0.c.b16.cont [2/8] %v913, 128
      %5923 = vxpose.xlu0.c.b16.cont [3/8] %v915, 128
      %5924 = vxpose.xlu0.c.b16.cont [4/8] %v917, 128
      %5925 = vxpose.xlu0.c.b16.cont [5/8] 0, 128
      %5926 = vxpose.xlu0.c.b16.cont [6/8] 0, 128
      %5927 = vxpose.xlu0.c.b16.cont [7/8] 0, 128
      %5928 = vxpose.xlu0.c.b16.end [8/8] 0, 128
      %v5929 = vpop.trf.xlu0
      %v5930 = vpop.trf.xlu0
      %v5931 = vpop.trf.xlu0
      %v5932 = vpop.trf.xlu0
      %v5933 = vpop.trf.xlu0
      %v5934 = vpop.trf.xlu0
      %v5935 = vpop.trf.xlu0
      %v5936 = vpop.trf.xlu0
      %5937 = vxpose.xlu0.c.b16.start [1/8] %v912, 128
      %5938 = vxpose.xlu0.c.b16.cont [2/8] %v914, 128
      %5939 = vxpose.xlu0.c.b16.cont [3/8] %v916, 128
      %5940 = vxpose.xlu0.c.b16.cont [4/8] %v918, 128
      %5941 = vxpose.xlu0.c.b16.cont [5/8] 0, 128
      %5942 = vxpose.xlu0.c.b16.cont [6/8] 0, 128
      %5943 = vxpose.xlu0.c.b16.cont [7/8] 0, 128
      %5944 = vxpose.xlu0.c.b16.end [8/8] 0, 128
      %v5945 = vpop.trf.xlu0
      %v5946 = vpop.trf.xlu0
      %v5947 = vpop.trf.xlu0
      %v5948 = vpop.trf.xlu0
      %v5949 = vpop.trf.xlu0
      %v5950 = vpop.trf.xlu0
      %v5951 = vpop.trf.xlu0
      %v5952 = vpop.trf.xlu0
      %v5954 = vsel %vm1287, %v5929, 0
      %v5957 = vsel %vm1287, %v5930, 0
      %v5960 = vsel %vm1287, %v5931, 0
      %v5963 = vsel %vm1287, %v5932, 0
      %v5966 = vsel %vm1287, %v5933, 0
      %v5969 = vsel %vm1287, %v5934, 0
      %v5972 = vsel %vm1287, %v5935, 0
      %v5975 = vsel %vm1287, %v5936, 0
      %v5978 = vsel %vm1287, %v5945, 0
      %v5981 = vsel %vm1287, %v5946, 0
      %v5984 = vsel %vm1287, %v5947, 0
      %v5987 = vsel %vm1287, %v5948, 0
      %v5990 = vsel %vm1287, %v5949, 0
      %v5993 = vsel %vm1287, %v5950, 0
      %v5996 = vsel %vm1287, %v5951, 0
      %v5999 = vsel %vm1287, %v5952, 0
      %6001 = vmatprep.subr.bf16.mxu0 0
      %6002 = vmatpush1.bf16.msra.mxu0 %v2073
      %6003 = vmatprep.subr.bf16.mxu0 0
      %6004 = vmatpush1.bf16.msra.mxu0 %v2074
      %6005 = vmatprep.subr.bf16.mxu0 0
      %6006 = vmatpush1.bf16.msra.mxu0 %v2075
      %6007 = vmatprep.subr.bf16.mxu0 0
      %6008 = vmatpush1.bf16.msra.mxu0 %v2076
      %6009 = vmatprep.subr.bf16.mxu0 0
      %6010 = vmatpush1.bf16.msra.mxu0 0
      %6011 = vmatprep.subr.bf16.mxu0 0
      %6012 = vmatpush1.bf16.msra.mxu0 0
      %6013 = vmatprep.subr.bf16.mxu0 0
      %6014 = vmatpush1.bf16.msra.mxu0 0
      %6015 = vmatprep.subr.bf16.mxu0 0
      %6016 = vmatpush1.bf16.msra.mxu0 0
      %6017 = vmatprep.subr.bf16.mxu0 0
      %6018 = vmatpush1.bf16.msra.mxu0 0
      %6019 = vmatprep.subr.bf16.mxu0 0
      %6020 = vmatpush1.bf16.msra.mxu0 0
      %6021 = vmatprep.subr.bf16.mxu0 0
      %6022 = vmatpush1.bf16.msra.mxu0 0
      %6023 = vmatprep.subr.bf16.mxu0 0
      %6024 = vmatpush1.bf16.msra.mxu0 0
      %6025 = vmatprep.subr.bf16.mxu0 0
      %6026 = vmatpush1.bf16.msra.mxu0 0
      %6027 = vmatprep.subr.bf16.mxu0 0
      %6028 = vmatpush1.bf16.msra.mxu0 0
      %6029 = vmatprep.subr.bf16.mxu0 0
      %6030 = vmatpush1.bf16.msra.mxu0 0
      %6031 = vmatprep.subr.bf16.mxu0 0
      %6032 = vmatpush1.bf16.msra.mxu0 0
      %6033 = vmatprep.mubr.bf16.mxu0 0
      %6034 = vmatmul.mubr.bf16.gmra.mrb[0].mxu0 %v5954
      %v6035 = vpop.f32.mrb[0].mxu0
      %v6036 = vadd.f32 %v2116, %v6035
      %v6037 = vpop.f32.mrb[0].mxu0
      %v6038 = vpop.f32.mrb[0].mxu0
      %v6039 = vadd.f32 %v2116, %v6038
      %v6040 = vpop.f32.mrb[0].mxu0
      %6041 = vmatprep.mubr.bf16.mxu0 0
      %6042 = vmatmul.mubr.bf16.gmra.mrb[0].mxu0 %v5957
      %v6043 = vpop.f32.mrb[0].mxu0
      %v6044 = vadd.f32 %v2116, %v6043
      %v6045 = vpop.f32.mrb[0].mxu0
      %v6046 = vpop.f32.mrb[0].mxu0
      %v6047 = vadd.f32 %v2116, %v6046
      %v6048 = vpop.f32.mrb[0].mxu0
      %6049 = vmatprep.mubr.bf16.mxu0 0
      %6050 = vmatmul.mubr.bf16.gmra.mrb[0].mxu0 %v5960
      %v6051 = vpop.f32.mrb[0].mxu0
      %v6052 = vadd.f32 %v2116, %v6051
      %v6053 = vpop.f32.mrb[0].mxu0
      %v6054 = vpop.f32.mrb[0].mxu0
      %v6055 = vadd.f32 %v2116, %v6054
      %v6056 = vpop.f32.mrb[0].mxu0
      %6057 = vmatprep.mubr.bf16.mxu0 0
      %6058 = vmatmul.mubr.bf16.gmra.mrb[0].mxu0 %v5963
      %v6059 = vpop.f32.mrb[0].mxu0
      %v6060 = vadd.f32 %v2116, %v6059
      %v6061 = vpop.f32.mrb[0].mxu0
      %v6062 = vpop.f32.mrb[0].mxu0
      %v6063 = vadd.f32 %v2116, %v6062
      %v6064 = vpop.f32.mrb[0].mxu0
      %6065 = vmatprep.mubr.bf16.mxu0 0
      %6066 = vmatmul.mubr.bf16.gmra.mrb[0].mxu0 %v5966
      %v6067 = vpop.f32.mrb[0].mxu0
      %v6068 = vadd.f32 %v2116, %v6067
      %v6069 = vpop.f32.mrb[0].mxu0
      %v6070 = vpop.f32.mrb[0].mxu0
      %v6071 = vadd.f32 %v2116, %v6070
      %v6072 = vpop.f32.mrb[0].mxu0
      %6073 = vmatprep.mubr.bf16.mxu0 0
      %6074 = vmatmul.mubr.bf16.gmra.mrb[0].mxu0 %v5969
      %v6075 = vpop.f32.mrb[0].mxu0
      %v6076 = vadd.f32 %v2116, %v6075
      %v6077 = vpop.f32.mrb[0].mxu0
      %v6078 = vpop.f32.mrb[0].mxu0
      %v6079 = vadd.f32 %v2116, %v6078
      %v6080 = vpop.f32.mrb[0].mxu0
      %6081 = vmatprep.mubr.bf16.mxu0 0
      %6082 = vmatmul.mubr.bf16.gmra.mrb[0].mxu0 %v5972
      %v6083 = vpop.f32.mrb[0].mxu0
      %v6084 = vadd.f32 %v2116, %v6083
      %v6085 = vpop.f32.mrb[0].mxu0
      %v6086 = vpop.f32.mrb[0].mxu0
      %v6087 = vadd.f32 %v2116, %v6086
      %v6088 = vpop.f32.mrb[0].mxu0
      %6089 = vmatprep.mubr.bf16.mxu0 0
      %6090 = vmatmul.mubr.bf16.gmra.mrb[0].mxu0 %v5975
      %v6091 = vpop.f32.mrb[0].mxu0
      %v6092 = vadd.f32 %v2116, %v6091
      %v6093 = vpop.f32.mrb[0].mxu0
      %v6094 = vpop.f32.mrb[0].mxu0
      %v6095 = vadd.f32 %v2116, %v6094
      %v6096 = vpop.f32.mrb[0].mxu0
      %6097 = vmatprep.mubr.bf16.mxu0 0
      %6098 = vmatmul.mubr.bf16.gmra.mrb[0].mxu0 %v5978
      %v6099 = vpop.f32.mrb[0].mxu0
      %v6100 = vadd.f32 %v2116, %v6099
      %v6101 = vpop.f32.mrb[0].mxu0
      %v6102 = vpop.f32.mrb[0].mxu0
      %v6103 = vadd.f32 %v2116, %v6102
      %v6104 = vpop.f32.mrb[0].mxu0
      %6105 = vmatprep.mubr.bf16.mxu0 0
      %6106 = vmatmul.mubr.bf16.gmra.mrb[0].mxu0 %v5981
      %v6107 = vpop.f32.mrb[0].mxu0
      %v6108 = vadd.f32 %v2116, %v6107
      %v6109 = vpop.f32.mrb[0].mxu0
      %v6110 = vpop.f32.mrb[0].mxu0
      %v6111 = vadd.f32 %v2116, %v6110
      %v6112 = vpop.f32.mrb[0].mxu0
      %6113 = vmatprep.mubr.bf16.mxu0 0
      %6114 = vmatmul.mubr.bf16.gmra.mrb[0].mxu0 %v5984
      %v6115 = vpop.f32.mrb[0].mxu0
      %v6116 = vadd.f32 %v2116, %v6115
      %v6117 = vpop.f32.mrb[0].mxu0
      %v6118 = vpop.f32.mrb[0].mxu0
      %v6119 = vadd.f32 %v2116, %v6118
      %v6120 = vpop.f32.mrb[0].mxu0
      %6121 = vmatprep.mubr.bf16.mxu0 0
      %6122 = vmatmul.mubr.bf16.gmra.mrb[0].mxu0 %v5987
      %v6123 = vpop.f32.mrb[0].mxu0
      %v6124 = vadd.f32 %v2116, %v6123
      %v6125 = vpop.f32.mrb[0].mxu0
      %v6126 = vpop.f32.mrb[0].mxu0
      %v6127 = vadd.f32 %v2116, %v6126
      %v6128 = vpop.f32.mrb[0].mxu0
      %6129 = vmatprep.mubr.bf16.mxu0 0
      %6130 = vmatmul.mubr.bf16.gmra.mrb[0].mxu0 %v5990
      %v6131 = vpop.f32.mrb[0].mxu0
      %v6132 = vadd.f32 %v2116, %v6131
      %v6133 = vpop.f32.mrb[0].mxu0
      %v6134 = vpop.f32.mrb[0].mxu0
      %v6135 = vadd.f32 %v2116, %v6134
      %v6136 = vpop.f32.mrb[0].mxu0
      %6137 = vmatprep.mubr.bf16.mxu0 0
      %6138 = vmatmul.mubr.bf16.gmra.mrb[0].mxu0 %v5993
      %v6139 = vpop.f32.mrb[0].mxu0
      %v6140 = vadd.f32 %v2116, %v6139
      %v6141 = vpop.f32.mrb[0].mxu0
      %v6142 = vpop.f32.mrb[0].mxu0
      %v6143 = vadd.f32 %v2116, %v6142
      %v6144 = vpop.f32.mrb[0].mxu0
      %6145 = vmatprep.mubr.bf16.mxu0 0
      %6146 = vmatmul.mubr.bf16.gmra.mrb[0].mxu0 %v5996
      %v6147 = vpop.f32.mrb[0].mxu0
      %v6148 = vadd.f32 %v2116, %v6147
      %v6149 = vpop.f32.mrb[0].mxu0
      %v6150 = vpop.f32.mrb[0].mxu0
      %v6151 = vadd.f32 %v2116, %v6150
      %v6152 = vpop.f32.mrb[0].mxu0
      %6153 = vmatprep.mubr.bf16.mxu0 0
      %6154 = vmatmul.mubr.bf16.gmra.mrb[0].mxu0 %v5999
      %v6155 = vpop.f32.mrb[0].mxu0
      %v6156 = vadd.f32 %v2116, %v6155
      %v6157 = vpop.f32.mrb[0].mxu0
      %v6158 = vpop.f32.mrb[0].mxu0
      %v6159 = vadd.f32 %v2116, %v6158
      %v6160 = vpop.f32.mrb[0].mxu0
      %6161 = vdwg.mxu0
      %6162 = vmax.xlane.f32.xlu0 %v6036
      %v6163 = vpop.xlane.xlu0 %6162
      %6164 = vmax.xlane.f32.xlu0 %v6039
      %v6165 = vpop.xlane.xlu0 %6164
      %6166 = vmax.xlane.f32.xlu0 %v6044
      %v6167 = vpop.xlane.xlu0 %6166
      %6168 = vmax.xlane.f32.xlu0 %v6047
      %v6169 = vpop.xlane.xlu0 %6168
      %6170 = vmax.xlane.f32.xlu0 %v6052
      %v6171 = vpop.xlane.xlu0 %6170
      %6172 = vmax.xlane.f32.xlu0 %v6055
      %v6173 = vpop.xlane.xlu0 %6172
      %6174 = vmax.xlane.f32.xlu0 %v6060
      %v6175 = vpop.xlane.xlu0 %6174
      %6176 = vmax.xlane.f32.xlu0 %v6063
      %v6177 = vpop.xlane.xlu0 %6176
      %6178 = vmax.xlane.f32.xlu0 %v6068
      %v6179 = vpop.xlane.xlu0 %6178
      %6180 = vmax.xlane.f32.xlu0 %v6071
      %v6181 = vpop.xlane.xlu0 %6180
      %6182 = vmax.xlane.f32.xlu0 %v6076
      %v6183 = vpop.xlane.xlu0 %6182
      %6184 = vmax.xlane.f32.xlu0 %v6079
      %v6185 = vpop.xlane.xlu0 %6184
      %6186 = vmax.xlane.f32.xlu0 %v6084
      %v6187 = vpop.xlane.xlu0 %6186
      %6188 = vmax.xlane.f32.xlu0 %v6087
      %v6189 = vpop.xlane.xlu0 %6188
      %6190 = vmax.xlane.f32.xlu0 %v6092
      %v6191 = vpop.xlane.xlu0 %6190
      %6192 = vmax.xlane.f32.xlu0 %v6095
      %v6193 = vpop.xlane.xlu0 %6192
      %6194 = vmax.xlane.f32.xlu0 %v6100
      %v6195 = vpop.xlane.xlu0 %6194
      %6196 = vmax.xlane.f32.xlu0 %v6103
      %v6197 = vpop.xlane.xlu0 %6196
      %6198 = vmax.xlane.f32.xlu0 %v6108
      %v6199 = vpop.xlane.xlu0 %6198
      %6200 = vmax.xlane.f32.xlu0 %v6111
      %v6201 = vpop.xlane.xlu0 %6200
      %6202 = vmax.xlane.f32.xlu0 %v6116
      %v6203 = vpop.xlane.xlu0 %6202
      %6204 = vmax.xlane.f32.xlu0 %v6119
      %v6205 = vpop.xlane.xlu0 %6204
      %6206 = vmax.xlane.f32.xlu0 %v6124
      %v6207 = vpop.xlane.xlu0 %6206
      %6208 = vmax.xlane.f32.xlu0 %v6127
      %v6209 = vpop.xlane.xlu0 %6208
      %6210 = vmax.xlane.f32.xlu0 %v6132
      %v6211 = vpop.xlane.xlu0 %6210
      %6212 = vmax.xlane.f32.xlu0 %v6135
      %v6213 = vpop.xlane.xlu0 %6212
      %6214 = vmax.xlane.f32.xlu0 %v6140
      %v6215 = vpop.xlane.xlu0 %6214
      %6216 = vmax.xlane.f32.xlu0 %v6143
      %v6217 = vpop.xlane.xlu0 %6216
      %6218 = vmax.xlane.f32.xlu0 %v6148
      %v6219 = vpop.xlane.xlu0 %6218
      %6220 = vmax.xlane.f32.xlu0 %v6151
      %v6221 = vpop.xlane.xlu0 %6220
      %6222 = vmax.xlane.f32.xlu0 %v6156
      %v6223 = vpop.xlane.xlu0 %6222
      %6224 = vmax.xlane.f32.xlu0 %v6159
      %v6225 = vpop.xlane.xlu0 %6224
      %v6226 = vsub.f32 %v6036, %v6163
      %v6227 = vsub.f32 %v6039, %v6165
      %v6228 = vsub.f32 %v6044, %v6167
      %v6229 = vsub.f32 %v6047, %v6169
      %v6230 = vsub.f32 %v6052, %v6171
      %v6231 = vsub.f32 %v6055, %v6173
      %v6232 = vsub.f32 %v6060, %v6175
      %v6233 = vsub.f32 %v6063, %v6177
      %v6234 = vsub.f32 %v6068, %v6179
      %v6235 = vsub.f32 %v6071, %v6181
      %v6236 = vsub.f32 %v6076, %v6183
      %v6237 = vsub.f32 %v6079, %v6185
      %v6238 = vsub.f32 %v6084, %v6187
      %v6239 = vsub.f32 %v6087, %v6189
      %v6240 = vsub.f32 %v6092, %v6191
      %v6241 = vsub.f32 %v6095, %v6193
      %v6242 = vsub.f32 %v6100, %v6195
      %v6243 = vsub.f32 %v6103, %v6197
      %v6244 = vsub.f32 %v6108, %v6199
      %v6245 = vsub.f32 %v6111, %v6201
      %v6246 = vsub.f32 %v6116, %v6203
      %v6247 = vsub.f32 %v6119, %v6205
      %v6248 = vsub.f32 %v6124, %v6207
      %v6249 = vsub.f32 %v6127, %v6209
      %v6250 = vsub.f32 %v6132, %v6211
      %v6251 = vsub.f32 %v6135, %v6213
      %v6252 = vsub.f32 %v6140, %v6215
      %v6253 = vsub.f32 %v6143, %v6217
      %v6254 = vsub.f32 %v6148, %v6219
      %v6255 = vsub.f32 %v6151, %v6221
      %v6256 = vsub.f32 %v6156, %v6223
      %v6257 = vsub.f32 %v6159, %v6225
      %v6258 = vmul.f32 %v6226, 1.442695
      %v6259 = vpow.pop %v6258
      %v6260 = vmul.f32 %v6227, 1.442695
      %v6261 = vpow.pop %v6260
      %v6262 = vmul.f32 %v6228, 1.442695
      %v6263 = vpow.pop %v6262
      %v6264 = vmul.f32 %v6229, 1.442695
      %v6265 = vpow.pop %v6264
      %v6266 = vmul.f32 %v6230, 1.442695
      %v6267 = vpow.pop %v6266
      %v6268 = vmul.f32 %v6231, 1.442695
      %v6269 = vpow.pop %v6268
      %v6270 = vmul.f32 %v6232, 1.442695
      %v6271 = vpow.pop %v6270
      %v6272 = vmul.f32 %v6233, 1.442695
      %v6273 = vpow.pop %v6272
      %v6274 = vmul.f32 %v6234, 1.442695
      %v6275 = vpow.pop %v6274
      %v6276 = vmul.f32 %v6235, 1.442695
      %v6277 = vpow.pop %v6276
      %v6278 = vmul.f32 %v6236, 1.442695
      %v6279 = vpow.pop %v6278
      %v6280 = vmul.f32 %v6237, 1.442695
      %v6281 = vpow.pop %v6280
      %v6282 = vmul.f32 %v6238, 1.442695
      %v6283 = vpow.pop %v6282
      %v6284 = vmul.f32 %v6239, 1.442695
      %v6285 = vpow.pop %v6284
      %v6286 = vmul.f32 %v6240, 1.442695
      %v6287 = vpow.pop %v6286
      %v6288 = vmul.f32 %v6241, 1.442695
      %v6289 = vpow.pop %v6288
      %v6290 = vmul.f32 %v6242, 1.442695
      %v6291 = vpow.pop %v6290
      %v6292 = vmul.f32 %v6243, 1.442695
      %v6293 = vpow.pop %v6292
      %v6294 = vmul.f32 %v6244, 1.442695
      %v6295 = vpow.pop %v6294
      %v6296 = vmul.f32 %v6245, 1.442695
      %v6297 = vpow.pop %v6296
      %v6298 = vmul.f32 %v6246, 1.442695
      %v6299 = vpow.pop %v6298
      %v6300 = vmul.f32 %v6247, 1.442695
      %v6301 = vpow.pop %v6300
      %v6302 = vmul.f32 %v6248, 1.442695
      %v6303 = vpow.pop %v6302
      %v6304 = vmul.f32 %v6249, 1.442695
      %v6305 = vpow.pop %v6304
      %v6306 = vmul.f32 %v6250, 1.442695
      %v6307 = vpow.pop %v6306
      %v6308 = vmul.f32 %v6251, 1.442695
      %v6309 = vpow.pop %v6308
      %v6310 = vmul.f32 %v6252, 1.442695
      %v6311 = vpow.pop %v6310
      %v6312 = vmul.f32 %v6253, 1.442695
      %v6313 = vpow.pop %v6312
      %v6314 = vmul.f32 %v6254, 1.442695
      %v6315 = vpow.pop %v6314
      %v6316 = vmul.f32 %v6255, 1.442695
      %v6317 = vpow.pop %v6316
      %v6318 = vmul.f32 %v6256, 1.442695
      %v6319 = vpow.pop %v6318
      %v6320 = vmul.f32 %v6257, 1.442695
      %v6321 = vpow.pop %v6320
      %6322 = vadd.xlane.f32.xlu0 %v6259
      %v6323 = vpop.xlane.xlu0 %6322
      %6324 = vadd.xlane.f32.xlu0 %v6261
      %v6325 = vpop.xlane.xlu0 %6324
      %6326 = vadd.xlane.f32.xlu0 %v6263
      %v6327 = vpop.xlane.xlu0 %6326
      %6328 = vadd.xlane.f32.xlu0 %v6265
      %v6329 = vpop.xlane.xlu0 %6328
      %6330 = vadd.xlane.f32.xlu0 %v6267
      %v6331 = vpop.xlane.xlu0 %6330
      %6332 = vadd.xlane.f32.xlu0 %v6269
      %v6333 = vpop.xlane.xlu0 %6332
      %6334 = vadd.xlane.f32.xlu0 %v6271
      %v6335 = vpop.xlane.xlu0 %6334
      %6336 = vadd.xlane.f32.xlu0 %v6273
      %v6337 = vpop.xlane.xlu0 %6336
      %6338 = vadd.xlane.f32.xlu0 %v6275
      %v6339 = vpop.xlane.xlu0 %6338
      %6340 = vadd.xlane.f32.xlu0 %v6277
      %v6341 = vpop.xlane.xlu0 %6340
      %6342 = vadd.xlane.f32.xlu0 %v6279
      %v6343 = vpop.xlane.xlu0 %6342
      %6344 = vadd.xlane.f32.xlu0 %v6281
      %v6345 = vpop.xlane.xlu0 %6344
      %6346 = vadd.xlane.f32.xlu0 %v6283
      %v6347 = vpop.xlane.xlu0 %6346
      %6348 = vadd.xlane.f32.xlu0 %v6285
      %v6349 = vpop.xlane.xlu0 %6348
      %6350 = vadd.xlane.f32.xlu0 %v6287
      %v6351 = vpop.xlane.xlu0 %6350
      %6352 = vadd.xlane.f32.xlu0 %v6289
      %v6353 = vpop.xlane.xlu0 %6352
      %6354 = vadd.xlane.f32.xlu0 %v6291
      %v6355 = vpop.xlane.xlu0 %6354
      %6356 = vadd.xlane.f32.xlu0 %v6293
      %v6357 = vpop.xlane.xlu0 %6356
      %6358 = vadd.xlane.f32.xlu0 %v6295
      %v6359 = vpop.xlane.xlu0 %6358
      %6360 = vadd.xlane.f32.xlu0 %v6297
      %v6361 = vpop.xlane.xlu0 %6360
      %6362 = vadd.xlane.f32.xlu0 %v6299
      %v6363 = vpop.xlane.xlu0 %6362
      %6364 = vadd.xlane.f32.xlu0 %v6301
      %v6365 = vpop.xlane.xlu0 %6364
      %6366 = vadd.xlane.f32.xlu0 %v6303
      %v6367 = vpop.xlane.xlu0 %6366
      %6368 = vadd.xlane.f32.xlu0 %v6305
      %v6369 = vpop.xlane.xlu0 %6368
      %6370 = vadd.xlane.f32.xlu0 %v6307
      %v6371 = vpop.xlane.xlu0 %6370
      %6372 = vadd.xlane.f32.xlu0 %v6309
      %v6373 = vpop.xlane.xlu0 %6372
      %6374 = vadd.xlane.f32.xlu0 %v6311
      %v6375 = vpop.xlane.xlu0 %6374
      %6376 = vadd.xlane.f32.xlu0 %v6313
      %v6377 = vpop.xlane.xlu0 %6376
      %6378 = vadd.xlane.f32.xlu0 %v6315
      %v6379 = vpop.xlane.xlu0 %6378
      %6380 = vadd.xlane.f32.xlu0 %v6317
      %v6381 = vpop.xlane.xlu0 %6380
      %6382 = vadd.xlane.f32.xlu0 %v6319
      %v6383 = vpop.xlane.xlu0 %6382
      %6384 = vadd.xlane.f32.xlu0 %v6321
      %v6385 = vpop.xlane.xlu0 %6384
      %v6386 = vrcp.pop %v6323
      %v6387 = vrcp.pop %v6325
      %v6388 = vrcp.pop %v6327
      %v6389 = vrcp.pop %v6329
      %v6390 = vrcp.pop %v6331
      %v6391 = vrcp.pop %v6333
      %v6392 = vrcp.pop %v6335
      %v6393 = vrcp.pop %v6337
      %v6394 = vrcp.pop %v6339
      %v6395 = vrcp.pop %v6341
      %v6396 = vrcp.pop %v6343
      %v6397 = vrcp.pop %v6345
      %v6398 = vrcp.pop %v6347
      %v6399 = vrcp.pop %v6349
      %v6400 = vrcp.pop %v6351
      %v6401 = vrcp.pop %v6353
      %v6402 = vrcp.pop %v6355
      %v6403 = vrcp.pop %v6357
      %v6404 = vrcp.pop %v6359
      %v6405 = vrcp.pop %v6361
      %v6406 = vrcp.pop %v6363
      %v6407 = vrcp.pop %v6365
      %v6408 = vrcp.pop %v6367
      %v6409 = vrcp.pop %v6369
      %v6410 = vrcp.pop %v6371
      %v6411 = vrcp.pop %v6373
      %v6412 = vrcp.pop %v6375
      %v6413 = vrcp.pop %v6377
      %v6414 = vrcp.pop %v6379
      %v6415 = vrcp.pop %v6381
      %v6416 = vrcp.pop %v6383
      %v6417 = vrcp.pop %v6385
      %v6418 = vmul.f32 %v6259, %v6386
      %v6419 = vmul.f32 %v6261, %v6387
      %v6420 = vmul.f32 %v6263, %v6388
      %v6421 = vmul.f32 %v6265, %v6389
      %v6422 = vmul.f32 %v6267, %v6390
      %v6423 = vmul.f32 %v6269, %v6391
      %v6424 = vmul.f32 %v6271, %v6392
      %v6425 = vmul.f32 %v6273, %v6393
      %v6426 = vmul.f32 %v6275, %v6394
      %v6427 = vmul.f32 %v6277, %v6395
      %v6428 = vmul.f32 %v6279, %v6396
      %v6429 = vmul.f32 %v6281, %v6397
      %v6430 = vmul.f32 %v6283, %v6398
      %v6431 = vmul.f32 %v6285, %v6399
      %v6432 = vmul.f32 %v6287, %v6400
      %v6433 = vmul.f32 %v6289, %v6401
      %v6434 = vmul.f32 %v6291, %v6402
      %v6435 = vmul.f32 %v6293, %v6403
      %v6436 = vmul.f32 %v6295, %v6404
      %v6437 = vmul.f32 %v6297, %v6405
      %v6438 = vmul.f32 %v6299, %v6406
      %v6439 = vmul.f32 %v6301, %v6407
      %v6440 = vmul.f32 %v6303, %v6408
      %v6441 = vmul.f32 %v6305, %v6409
      %v6442 = vmul.f32 %v6307, %v6410
      %v6443 = vmul.f32 %v6309, %v6411
      %v6444 = vmul.f32 %v6311, %v6412
      %v6445 = vmul.f32 %v6313, %v6413
      %v6446 = vmul.f32 %v6315, %v6414
      %v6447 = vmul.f32 %v6317, %v6415
      %v6448 = vmul.f32 %v6319, %v6416
      %v6449 = vmul.f32 %v6321, %v6417
      %v6450 = vpack.c.bf16 %v6419, %v6418
      %v6451 = vpack.c.bf16 %v6421, %v6420
      %v6452 = vpack.c.bf16 %v6423, %v6422
      %v6453 = vpack.c.bf16 %v6425, %v6424
      %v6454 = vpack.c.bf16 %v6427, %v6426
      %v6455 = vpack.c.bf16 %v6429, %v6428
      %v6456 = vpack.c.bf16 %v6431, %v6430
      %v6457 = vpack.c.bf16 %v6433, %v6432
      %v6458 = vpack.c.bf16 %v6435, %v6434
      %v6459 = vpack.c.bf16 %v6437, %v6436
      %v6460 = vpack.c.bf16 %v6439, %v6438
      %v6461 = vpack.c.bf16 %v6441, %v6440
      %v6462 = vpack.c.bf16 %v6443, %v6442
      %v6463 = vpack.c.bf16 %v6445, %v6444
      %v6464 = vpack.c.bf16 %v6447, %v6446
      %v6465 = vpack.c.bf16 %v6449, %v6448
      %6466 = vmatprep.subr.bf16.mxu0 0
      %6467 = vmatpush1.bf16.xpose.msra.mxu0 %v6450
      %6468 = vmatprep.subr.bf16.mxu0 0
      %6469 = vmatpush1.bf16.xpose.msra.mxu0 %v6451
      %6470 = vmatprep.subr.bf16.mxu0 0
      %6471 = vmatpush1.bf16.xpose.msra.mxu0 %v6452
      %6472 = vmatprep.subr.bf16.mxu0 0
      %6473 = vmatpush1.bf16.xpose.msra.mxu0 %v6453
      %6474 = vmatprep.subr.bf16.mxu0 0
      %6475 = vmatpush1.bf16.xpose.msra.mxu0 %v6454
      %6476 = vmatprep.subr.bf16.mxu0 0
      %6477 = vmatpush1.bf16.xpose.msra.mxu0 %v6455
      %6478 = vmatprep.subr.bf16.mxu0 0
      %6479 = vmatpush1.bf16.xpose.msra.mxu0 %v6456
      %6480 = vmatprep.subr.bf16.mxu0 0
      %6481 = vmatpush1.bf16.xpose.msra.mxu0 %v6457
      %6482 = vmatprep.subr.bf16.mxu0 0
      %6483 = vmatpush1.bf16.xpose.msra.mxu0 %v6458
      %6484 = vmatprep.subr.bf16.mxu0 0
      %6485 = vmatpush1.bf16.xpose.msra.mxu0 %v6459
      %6486 = vmatprep.subr.bf16.mxu0 0
      %6487 = vmatpush1.bf16.xpose.msra.mxu0 %v6460
      %6488 = vmatprep.subr.bf16.mxu0 0
      %6489 = vmatpush1.bf16.xpose.msra.mxu0 %v6461
      %6490 = vmatprep.subr.bf16.mxu0 0
      %6491 = vmatpush1.bf16.xpose.msra.mxu0 %v6462
      %6492 = vmatprep.subr.bf16.mxu0 0
      %6493 = vmatpush1.bf16.xpose.msra.mxu0 %v6463
      %6494 = vmatprep.subr.bf16.mxu0 0
      %6495 = vmatpush1.bf16.xpose.msra.mxu0 %v6464
      %6496 = vmatprep.subr.bf16.mxu0 0
      %6497 = vmatpush1.bf16.xpose.msra.mxu0 %v6465
      %6498 = vmatprep.mubr.bf16.mxu0 0
      %6499 = vmatmul.mubr.bf16.gmra.mrb[0].mxu0 %v2105
      %v6500 = vpop.f32.mrb[0].mxu0
      %v6501 = vadd.f32 0.0, %v6500
      %v6502 = vpop.f32.mrb[0].mxu0
      %v6503 = vadd.f32 0.0, %v6502
      %v6504 = vpop.f32.mrb[0].mxu0
      %v6505 = vadd.f32 0.0, %v6504
      %v6506 = vpop.f32.mrb[0].mxu0
      %v6507 = vadd.f32 0.0, %v6506
      %6508 = vmatprep.mubr.bf16.mxu0 0
      %6509 = vmatmul.mubr.bf16.gmra.mrb[0].mxu0 %v2106
      %v6510 = vpop.f32.mrb[0].mxu0
      %v6511 = vadd.f32 0.0, %v6510
      %v6512 = vpop.f32.mrb[0].mxu0
      %v6513 = vadd.f32 0.0, %v6512
      %v6514 = vpop.f32.mrb[0].mxu0
      %v6515 = vadd.f32 0.0, %v6514
      %v6516 = vpop.f32.mrb[0].mxu0
      %v6517 = vadd.f32 0.0, %v6516
      %6518 = vmatprep.mubr.bf16.mxu0 0
      %6519 = vmatmul.mubr.bf16.gmra.mrb[0].mxu0 %v2107
      %v6520 = vpop.f32.mrb[0].mxu0
      %v6521 = vadd.f32 0.0, %v6520
      %v6522 = vpop.f32.mrb[0].mxu0
      %v6523 = vadd.f32 0.0, %v6522
      %v6524 = vpop.f32.mrb[0].mxu0
      %v6525 = vadd.f32 0.0, %v6524
      %v6526 = vpop.f32.mrb[0].mxu0
      %v6527 = vadd.f32 0.0, %v6526
      %6528 = vmatprep.mubr.bf16.mxu0 0
      %6529 = vmatmul.mubr.bf16.gmra.mrb[0].mxu0 %v2108
      %v6530 = vpop.f32.mrb[0].mxu0
      %v6531 = vadd.f32 0.0, %v6530
      %v6532 = vpop.f32.mrb[0].mxu0
      %v6533 = vadd.f32 0.0, %v6532
      %v6534 = vpop.f32.mrb[0].mxu0
      %v6535 = vadd.f32 0.0, %v6534
      %v6536 = vpop.f32.mrb[0].mxu0
      %v6537 = vadd.f32 0.0, %v6536
      %6538 = vdwg.mxu0
      %v6539 = vpack.c.bf16 %v6505, %v6501
      %v6540 = vpack.c.bf16 %v6507, %v6503
      %v6541 = vpack.c.bf16 %v6515, %v6511
      %v6542 = vpack.c.bf16 %v6517, %v6513
      %v6543 = vpack.c.bf16 %v6525, %v6521
      %v6544 = vpack.c.bf16 %v6527, %v6523
      %v6545 = vpack.c.bf16 %v6535, %v6531
      %v6546 = vpack.c.bf16 %v6537, %v6533
      %6547 = vst [vmem:[#allocation2 + $0x180] sm:$0xff] %v6539
      %6548 = vst [vmem:[#allocation2 + $0x188] sm:$0xff] %v6540
      %6549 = vst [vmem:[#allocation2 + $0x190] sm:$0xff] %v6541
      %6550 = vst [vmem:[#allocation2 + $0x198] sm:$0xff] %v6542
      %6551 = vst [vmem:[#allocation2 + $0x1a0] sm:$0xff] %v6543
      %6552 = vst [vmem:[#allocation2 + $0x1a8] sm:$0xff] %v6544
      %6553 = vst [vmem:[#allocation2 + $0x1b0] sm:$0xff] %v6545
      %6554 = vst [vmem:[#allocation2 + $0x1b8] sm:$0xff] %v6546
      %6555 = vxpose.xlu0.c.b16.start [1/8] %v919, 128
      %6556 = vxpose.xlu0.c.b16.cont [2/8] %v921, 128
      %6557 = vxpose.xlu0.c.b16.cont [3/8] %v923, 128
      %6558 = vxpose.xlu0.c.b16.cont [4/8] %v925, 128
      %6559 = vxpose.xlu0.c.b16.cont [5/8] 0, 128
      %6560 = vxpose.xlu0.c.b16.cont [6/8] 0, 128
      %6561 = vxpose.xlu0.c.b16.cont [7/8] 0, 128
      %6562 = vxpose.xlu0.c.b16.end [8/8] 0, 128
      %v6563 = vpop.trf.xlu0
      %v6564 = vpop.trf.xlu0
      %v6565 = vpop.trf.xlu0
      %v6566 = vpop.trf.xlu0
      %v6567 = vpop.trf.xlu0
      %v6568 = vpop.trf.xlu0
      %v6569 = vpop.trf.xlu0
      %v6570 = vpop.trf.xlu0
      %6571 = vxpose.xlu0.c.b16.start [1/8] %v920, 128
      %6572 = vxpose.xlu0.c.b16.cont [2/8] %v922, 128
      %6573 = vxpose.xlu0.c.b16.cont [3/8] %v924, 128
      %6574 = vxpose.xlu0.c.b16.cont [4/8] %v926, 128
      %6575 = vxpose.xlu0.c.b16.cont [5/8] 0, 128
      %6576 = vxpose.xlu0.c.b16.cont [6/8] 0, 128
      %6577 = vxpose.xlu0.c.b16.cont [7/8] 0, 128
      %6578 = vxpose.xlu0.c.b16.end [8/8] 0, 128
      %v6579 = vpop.trf.xlu0
      %v6580 = vpop.trf.xlu0
      %v6581 = vpop.trf.xlu0
      %v6582 = vpop.trf.xlu0
      %v6583 = vpop.trf.xlu0
      %v6584 = vpop.trf.xlu0
      %v6585 = vpop.trf.xlu0
      %v6586 = vpop.trf.xlu0
      %v6588 = vsel %vm1287, %v6563, 0
      %v6591 = vsel %vm1287, %v6564, 0
      %v6594 = vsel %vm1287, %v6565, 0
      %v6597 = vsel %vm1287, %v6566, 0
      %v6600 = vsel %vm1287, %v6567, 0
      %v6603 = vsel %vm1287, %v6568, 0
      %v6606 = vsel %vm1287, %v6569, 0
      %v6609 = vsel %vm1287, %v6570, 0
      %v6612 = vsel %vm1287, %v6579, 0
      %v6615 = vsel %vm1287, %v6580, 0
      %v6618 = vsel %vm1287, %v6581, 0
      %v6621 = vsel %vm1287, %v6582, 0
      %v6624 = vsel %vm1287, %v6583, 0
      %v6627 = vsel %vm1287, %v6584, 0
      %v6630 = vsel %vm1287, %v6585, 0
      %v6633 = vsel %vm1287, %v6586, 0
      %6635 = vmatprep.subr.bf16.mxu0 0
      %6636 = vmatpush1.bf16.msra.mxu0 %v2077
      %6637 = vmatprep.subr.bf16.mxu0 0
      %6638 = vmatpush1.bf16.msra.mxu0 %v2078
      %6639 = vmatprep.subr.bf16.mxu0 0
      %6640 = vmatpush1.bf16.msra.mxu0 %v2079
      %6641 = vmatprep.subr.bf16.mxu0 0
      %6642 = vmatpush1.bf16.msra.mxu0 %v2080
      %6643 = vmatprep.subr.bf16.mxu0 0
      %6644 = vmatpush1.bf16.msra.mxu0 0
      %6645 = vmatprep.subr.bf16.mxu0 0
      %6646 = vmatpush1.bf16.msra.mxu0 0
      %6647 = vmatprep.subr.bf16.mxu0 0
      %6648 = vmatpush1.bf16.msra.mxu0 0
      %6649 = vmatprep.subr.bf16.mxu0 0
      %6650 = vmatpush1.bf16.msra.mxu0 0
      %6651 = vmatprep.subr.bf16.mxu0 0
      %6652 = vmatpush1.bf16.msra.mxu0 0
      %6653 = vmatprep.subr.bf16.mxu0 0
      %6654 = vmatpush1.bf16.msra.mxu0 0
      %6655 = vmatprep.subr.bf16.mxu0 0
      %6656 = vmatpush1.bf16.msra.mxu0 0
      %6657 = vmatprep.subr.bf16.mxu0 0
      %6658 = vmatpush1.bf16.msra.mxu0 0
      %6659 = vmatprep.subr.bf16.mxu0 0
      %6660 = vmatpush1.bf16.msra.mxu0 0
      %6661 = vmatprep.subr.bf16.mxu0 0
      %6662 = vmatpush1.bf16.msra.mxu0 0
      %6663 = vmatprep.subr.bf16.mxu0 0
      %6664 = vmatpush1.bf16.msra.mxu0 0
      %6665 = vmatprep.subr.bf16.mxu0 0
      %6666 = vmatpush1.bf16.msra.mxu0 0
      %6667 = vmatprep.mubr.bf16.mxu0 0
      %6668 = vmatmul.mubr.bf16.gmra.mrb[0].mxu0 %v6588
      %v6669 = vpop.f32.mrb[0].mxu0
      %v6670 = vadd.f32 %v2116, %v6669
      %v6671 = vpop.f32.mrb[0].mxu0
      %v6672 = vpop.f32.mrb[0].mxu0
      %v6673 = vadd.f32 %v2116, %v6672
      %v6674 = vpop.f32.mrb[0].mxu0
      %6675 = vmatprep.mubr.bf16.mxu0 0
      %6676 = vmatmul.mubr.bf16.gmra.mrb[0].mxu0 %v6591
      %v6677 = vpop.f32.mrb[0].mxu0
      %v6678 = vadd.f32 %v2116, %v6677
      %v6679 = vpop.f32.mrb[0].mxu0
      %v6680 = vpop.f32.mrb[0].mxu0
      %v6681 = vadd.f32 %v2116, %v6680
      %v6682 = vpop.f32.mrb[0].mxu0
      %6683 = vmatprep.mubr.bf16.mxu0 0
      %6684 = vmatmul.mubr.bf16.gmra.mrb[0].mxu0 %v6594
      %v6685 = vpop.f32.mrb[0].mxu0
      %v6686 = vadd.f32 %v2116, %v6685
      %v6687 = vpop.f32.mrb[0].mxu0
      %v6688 = vpop.f32.mrb[0].mxu0
      %v6689 = vadd.f32 %v2116, %v6688
      %v6690 = vpop.f32.mrb[0].mxu0
      %6691 = vmatprep.mubr.bf16.mxu0 0
      %6692 = vmatmul.mubr.bf16.gmra.mrb[0].mxu0 %v6597
      %v6693 = vpop.f32.mrb[0].mxu0
      %v6694 = vadd.f32 %v2116, %v6693
      %v6695 = vpop.f32.mrb[0].mxu0
      %v6696 = vpop.f32.mrb[0].mxu0
      %v6697 = vadd.f32 %v2116, %v6696
      %v6698 = vpop.f32.mrb[0].mxu0
      %6699 = vmatprep.mubr.bf16.mxu0 0
      %6700 = vmatmul.mubr.bf16.gmra.mrb[0].mxu0 %v6600
      %v6701 = vpop.f32.mrb[0].mxu0
      %v6702 = vadd.f32 %v2116, %v6701
      %v6703 = vpop.f32.mrb[0].mxu0
      %v6704 = vpop.f32.mrb[0].mxu0
      %v6705 = vadd.f32 %v2116, %v6704
      %v6706 = vpop.f32.mrb[0].mxu0
      %6707 = vmatprep.mubr.bf16.mxu0 0
      %6708 = vmatmul.mubr.bf16.gmra.mrb[0].mxu0 %v6603
      %v6709 = vpop.f32.mrb[0].mxu0
      %v6710 = vadd.f32 %v2116, %v6709
      %v6711 = vpop.f32.mrb[0].mxu0
      %v6712 = vpop.f32.mrb[0].mxu0
      %v6713 = vadd.f32 %v2116, %v6712
      %v6714 = vpop.f32.mrb[0].mxu0
      %6715 = vmatprep.mubr.bf16.mxu0 0
      %6716 = vmatmul.mubr.bf16.gmra.mrb[0].mxu0 %v6606
      %v6717 = vpop.f32.mrb[0].mxu0
      %v6718 = vadd.f32 %v2116, %v6717
      %v6719 = vpop.f32.mrb[0].mxu0
      %v6720 = vpop.f32.mrb[0].mxu0
      %v6721 = vadd.f32 %v2116, %v6720
      %v6722 = vpop.f32.mrb[0].mxu0
      %6723 = vmatprep.mubr.bf16.mxu0 0
      %6724 = vmatmul.mubr.bf16.gmra.mrb[0].mxu0 %v6609
      %v6725 = vpop.f32.mrb[0].mxu0
      %v6726 = vadd.f32 %v2116, %v6725
      %v6727 = vpop.f32.mrb[0].mxu0
      %v6728 = vpop.f32.mrb[0].mxu0
      %v6729 = vadd.f32 %v2116, %v6728
      %v6730 = vpop.f32.mrb[0].mxu0
      %6731 = vmatprep.mubr.bf16.mxu0 0
      %6732 = vmatmul.mubr.bf16.gmra.mrb[0].mxu0 %v6612
      %v6733 = vpop.f32.mrb[0].mxu0
      %v6734 = vadd.f32 %v2116, %v6733
      %v6735 = vpop.f32.mrb[0].mxu0
      %v6736 = vpop.f32.mrb[0].mxu0
      %v6737 = vadd.f32 %v2116, %v6736
      %v6738 = vpop.f32.mrb[0].mxu0
      %6739 = vmatprep.mubr.bf16.mxu0 0
      %6740 = vmatmul.mubr.bf16.gmra.mrb[0].mxu0 %v6615
      %v6741 = vpop.f32.mrb[0].mxu0
      %v6742 = vadd.f32 %v2116, %v6741
      %v6743 = vpop.f32.mrb[0].mxu0
      %v6744 = vpop.f32.mrb[0].mxu0
      %v6745 = vadd.f32 %v2116, %v6744
      %v6746 = vpop.f32.mrb[0].mxu0
      %6747 = vmatprep.mubr.bf16.mxu0 0
      %6748 = vmatmul.mubr.bf16.gmra.mrb[0].mxu0 %v6618
      %v6749 = vpop.f32.mrb[0].mxu0
      %v6750 = vadd.f32 %v2116, %v6749
      %v6751 = vpop.f32.mrb[0].mxu0
      %v6752 = vpop.f32.mrb[0].mxu0
      %v6753 = vadd.f32 %v2116, %v6752
      %v6754 = vpop.f32.mrb[0].mxu0
      %6755 = vmatprep.mubr.bf16.mxu0 0
      %6756 = vmatmul.mubr.bf16.gmra.mrb[0].mxu0 %v6621
      %v6757 = vpop.f32.mrb[0].mxu0
      %v6758 = vadd.f32 %v2116, %v6757
      %v6759 = vpop.f32.mrb[0].mxu0
      %v6760 = vpop.f32.mrb[0].mxu0
      %v6761 = vadd.f32 %v2116, %v6760
      %v6762 = vpop.f32.mrb[0].mxu0
      %6763 = vmatprep.mubr.bf16.mxu0 0
      %6764 = vmatmul.mubr.bf16.gmra.mrb[0].mxu0 %v6624
      %v6765 = vpop.f32.mrb[0].mxu0
      %v6766 = vadd.f32 %v2116, %v6765
      %v6767 = vpop.f32.mrb[0].mxu0
      %v6768 = vpop.f32.mrb[0].mxu0
      %v6769 = vadd.f32 %v2116, %v6768
      %v6770 = vpop.f32.mrb[0].mxu0
      %6771 = vmatprep.mubr.bf16.mxu0 0
      %6772 = vmatmul.mubr.bf16.gmra.mrb[0].mxu0 %v6627
      %v6773 = vpop.f32.mrb[0].mxu0
      %v6774 = vadd.f32 %v2116, %v6773
      %v6775 = vpop.f32.mrb[0].mxu0
      %v6776 = vpop.f32.mrb[0].mxu0
      %v6777 = vadd.f32 %v2116, %v6776
      %v6778 = vpop.f32.mrb[0].mxu0
      %6779 = vmatprep.mubr.bf16.mxu0 0
      %6780 = vmatmul.mubr.bf16.gmra.mrb[0].mxu0 %v6630
      %v6781 = vpop.f32.mrb[0].mxu0
      %v6782 = vadd.f32 %v2116, %v6781
      %v6783 = vpop.f32.mrb[0].mxu0
      %v6784 = vpop.f32.mrb[0].mxu0
      %v6785 = vadd.f32 %v2116, %v6784
      %v6786 = vpop.f32.mrb[0].mxu0
      %6787 = vmatprep.mubr.bf16.mxu0 0
      %6788 = vmatmul.mubr.bf16.gmra.mrb[0].mxu0 %v6633
      %v6789 = vpop.f32.mrb[0].mxu0
      %v6790 = vadd.f32 %v2116, %v6789
      %v6791 = vpop.f32.mrb[0].mxu0
      %v6792 = vpop.f32.mrb[0].mxu0
      %v6793 = vadd.f32 %v2116, %v6792
      %v6794 = vpop.f32.mrb[0].mxu0
      %6795 = vdwg.mxu0
      %6796 = vmax.xlane.f32.xlu0 %v6670
      %v6797 = vpop.xlane.xlu0 %6796
      %6798 = vmax.xlane.f32.xlu0 %v6673
      %v6799 = vpop.xlane.xlu0 %6798
      %6800 = vmax.xlane.f32.xlu0 %v6678
      %v6801 = vpop.xlane.xlu0 %6800
      %6802 = vmax.xlane.f32.xlu0 %v6681
      %v6803 = vpop.xlane.xlu0 %6802
      %6804 = vmax.xlane.f32.xlu0 %v6686
      %v6805 = vpop.xlane.xlu0 %6804
      %6806 = vmax.xlane.f32.xlu0 %v6689
      %v6807 = vpop.xlane.xlu0 %6806
      %6808 = vmax.xlane.f32.xlu0 %v6694
      %v6809 = vpop.xlane.xlu0 %6808
      %6810 = vmax.xlane.f32.xlu0 %v6697
      %v6811 = vpop.xlane.xlu0 %6810
      %6812 = vmax.xlane.f32.xlu0 %v6702
      %v6813 = vpop.xlane.xlu0 %6812
      %6814 = vmax.xlane.f32.xlu0 %v6705
      %v6815 = vpop.xlane.xlu0 %6814
      %6816 = vmax.xlane.f32.xlu0 %v6710
      %v6817 = vpop.xlane.xlu0 %6816
      %6818 = vmax.xlane.f32.xlu0 %v6713
      %v6819 = vpop.xlane.xlu0 %6818
      %6820 = vmax.xlane.f32.xlu0 %v6718
      %v6821 = vpop.xlane.xlu0 %6820
      %6822 = vmax.xlane.f32.xlu0 %v6721
      %v6823 = vpop.xlane.xlu0 %6822
      %6824 = vmax.xlane.f32.xlu0 %v6726
      %v6825 = vpop.xlane.xlu0 %6824
      %6826 = vmax.xlane.f32.xlu0 %v6729
      %v6827 = vpop.xlane.xlu0 %6826
      %6828 = vmax.xlane.f32.xlu0 %v6734
      %v6829 = vpop.xlane.xlu0 %6828
      %6830 = vmax.xlane.f32.xlu0 %v6737
      %v6831 = vpop.xlane.xlu0 %6830
      %6832 = vmax.xlane.f32.xlu0 %v6742
      %v6833 = vpop.xlane.xlu0 %6832
      %6834 = vmax.xlane.f32.xlu0 %v6745
      %v6835 = vpop.xlane.xlu0 %6834
      %6836 = vmax.xlane.f32.xlu0 %v6750
      %v6837 = vpop.xlane.xlu0 %6836
      %6838 = vmax.xlane.f32.xlu0 %v6753
      %v6839 = vpop.xlane.xlu0 %6838
      %6840 = vmax.xlane.f32.xlu0 %v6758
      %v6841 = vpop.xlane.xlu0 %6840
      %6842 = vmax.xlane.f32.xlu0 %v6761
      %v6843 = vpop.xlane.xlu0 %6842
      %6844 = vmax.xlane.f32.xlu0 %v6766
      %v6845 = vpop.xlane.xlu0 %6844
      %6846 = vmax.xlane.f32.xlu0 %v6769
      %v6847 = vpop.xlane.xlu0 %6846
      %6848 = vmax.xlane.f32.xlu0 %v6774
      %v6849 = vpop.xlane.xlu0 %6848
      %6850 = vmax.xlane.f32.xlu0 %v6777
      %v6851 = vpop.xlane.xlu0 %6850
      %6852 = vmax.xlane.f32.xlu0 %v6782
      %v6853 = vpop.xlane.xlu0 %6852
      %6854 = vmax.xlane.f32.xlu0 %v6785
      %v6855 = vpop.xlane.xlu0 %6854
      %6856 = vmax.xlane.f32.xlu0 %v6790
      %v6857 = vpop.xlane.xlu0 %6856
      %6858 = vmax.xlane.f32.xlu0 %v6793
      %v6859 = vpop.xlane.xlu0 %6858
      %v6860 = vsub.f32 %v6670, %v6797
      %v6861 = vsub.f32 %v6673, %v6799
      %v6862 = vsub.f32 %v6678, %v6801
      %v6863 = vsub.f32 %v6681, %v6803
      %v6864 = vsub.f32 %v6686, %v6805
      %v6865 = vsub.f32 %v6689, %v6807
      %v6866 = vsub.f32 %v6694, %v6809
      %v6867 = vsub.f32 %v6697, %v6811
      %v6868 = vsub.f32 %v6702, %v6813
      %v6869 = vsub.f32 %v6705, %v6815
      %v6870 = vsub.f32 %v6710, %v6817
      %v6871 = vsub.f32 %v6713, %v6819
      %v6872 = vsub.f32 %v6718, %v6821
      %v6873 = vsub.f32 %v6721, %v6823
      %v6874 = vsub.f32 %v6726, %v6825
      %v6875 = vsub.f32 %v6729, %v6827
      %v6876 = vsub.f32 %v6734, %v6829
      %v6877 = vsub.f32 %v6737, %v6831
      %v6878 = vsub.f32 %v6742, %v6833
      %v6879 = vsub.f32 %v6745, %v6835
      %v6880 = vsub.f32 %v6750, %v6837
      %v6881 = vsub.f32 %v6753, %v6839
      %v6882 = vsub.f32 %v6758, %v6841
      %v6883 = vsub.f32 %v6761, %v6843
      %v6884 = vsub.f32 %v6766, %v6845
      %v6885 = vsub.f32 %v6769, %v6847
      %v6886 = vsub.f32 %v6774, %v6849
      %v6887 = vsub.f32 %v6777, %v6851
      %v6888 = vsub.f32 %v6782, %v6853
      %v6889 = vsub.f32 %v6785, %v6855
      %v6890 = vsub.f32 %v6790, %v6857
      %v6891 = vsub.f32 %v6793, %v6859
      %v6892 = vmul.f32 %v6860, 1.442695
      %v6893 = vpow.pop %v6892
      %v6894 = vmul.f32 %v6861, 1.442695
      %v6895 = vpow.pop %v6894
      %v6896 = vmul.f32 %v6862, 1.442695
      %v6897 = vpow.pop %v6896
      %v6898 = vmul.f32 %v6863, 1.442695
      %v6899 = vpow.pop %v6898
      %v6900 = vmul.f32 %v6864, 1.442695
      %v6901 = vpow.pop %v6900
      %v6902 = vmul.f32 %v6865, 1.442695
      %v6903 = vpow.pop %v6902
      %v6904 = vmul.f32 %v6866, 1.442695
      %v6905 = vpow.pop %v6904
      %v6906 = vmul.f32 %v6867, 1.442695
      %v6907 = vpow.pop %v6906
      %v6908 = vmul.f32 %v6868, 1.442695
      %v6909 = vpow.pop %v6908
      %v6910 = vmul.f32 %v6869, 1.442695
      %v6911 = vpow.pop %v6910
      %v6912 = vmul.f32 %v6870, 1.442695
      %v6913 = vpow.pop %v6912
      %v6914 = vmul.f32 %v6871, 1.442695
      %v6915 = vpow.pop %v6914
      %v6916 = vmul.f32 %v6872, 1.442695
      %v6917 = vpow.pop %v6916
      %v6918 = vmul.f32 %v6873, 1.442695
      %v6919 = vpow.pop %v6918
      %v6920 = vmul.f32 %v6874, 1.442695
      %v6921 = vpow.pop %v6920
      %v6922 = vmul.f32 %v6875, 1.442695
      %v6923 = vpow.pop %v6922
      %v6924 = vmul.f32 %v6876, 1.442695
      %v6925 = vpow.pop %v6924
      %v6926 = vmul.f32 %v6877, 1.442695
      %v6927 = vpow.pop %v6926
      %v6928 = vmul.f32 %v6878, 1.442695
      %v6929 = vpow.pop %v6928
      %v6930 = vmul.f32 %v6879, 1.442695
      %v6931 = vpow.pop %v6930
      %v6932 = vmul.f32 %v6880, 1.442695
      %v6933 = vpow.pop %v6932
      %v6934 = vmul.f32 %v6881, 1.442695
      %v6935 = vpow.pop %v6934
      %v6936 = vmul.f32 %v6882, 1.442695
      %v6937 = vpow.pop %v6936
      %v6938 = vmul.f32 %v6883, 1.442695
      %v6939 = vpow.pop %v6938
      %v6940 = vmul.f32 %v6884, 1.442695
      %v6941 = vpow.pop %v6940
      %v6942 = vmul.f32 %v6885, 1.442695
      %v6943 = vpow.pop %v6942
      %v6944 = vmul.f32 %v6886, 1.442695
      %v6945 = vpow.pop %v6944
      %v6946 = vmul.f32 %v6887, 1.442695
      %v6947 = vpow.pop %v6946
      %v6948 = vmul.f32 %v6888, 1.442695
      %v6949 = vpow.pop %v6948
      %v6950 = vmul.f32 %v6889, 1.442695
      %v6951 = vpow.pop %v6950
      %v6952 = vmul.f32 %v6890, 1.442695
      %v6953 = vpow.pop %v6952
      %v6954 = vmul.f32 %v6891, 1.442695
      %v6955 = vpow.pop %v6954
      %6956 = vadd.xlane.f32.xlu0 %v6893
      %v6957 = vpop.xlane.xlu0 %6956
      %6958 = vadd.xlane.f32.xlu0 %v6895
      %v6959 = vpop.xlane.xlu0 %6958
      %6960 = vadd.xlane.f32.xlu0 %v6897
      %v6961 = vpop.xlane.xlu0 %6960
      %6962 = vadd.xlane.f32.xlu0 %v6899
      %v6963 = vpop.xlane.xlu0 %6962
      %6964 = vadd.xlane.f32.xlu0 %v6901
      %v6965 = vpop.xlane.xlu0 %6964
      %6966 = vadd.xlane.f32.xlu0 %v6903
      %v6967 = vpop.xlane.xlu0 %6966
      %6968 = vadd.xlane.f32.xlu0 %v6905
      %v6969 = vpop.xlane.xlu0 %6968
      %6970 = vadd.xlane.f32.xlu0 %v6907
      %v6971 = vpop.xlane.xlu0 %6970
      %6972 = vadd.xlane.f32.xlu0 %v6909
      %v6973 = vpop.xlane.xlu0 %6972
      %6974 = vadd.xlane.f32.xlu0 %v6911
      %v6975 = vpop.xlane.xlu0 %6974
      %6976 = vadd.xlane.f32.xlu0 %v6913
      %v6977 = vpop.xlane.xlu0 %6976
      %6978 = vadd.xlane.f32.xlu0 %v6915
      %v6979 = vpop.xlane.xlu0 %6978
      %6980 = vadd.xlane.f32.xlu0 %v6917
      %v6981 = vpop.xlane.xlu0 %6980
      %6982 = vadd.xlane.f32.xlu0 %v6919
      %v6983 = vpop.xlane.xlu0 %6982
      %6984 = vadd.xlane.f32.xlu0 %v6921
      %v6985 = vpop.xlane.xlu0 %6984
      %6986 = vadd.xlane.f32.xlu0 %v6923
      %v6987 = vpop.xlane.xlu0 %6986
      %6988 = vadd.xlane.f32.xlu0 %v6925
      %v6989 = vpop.xlane.xlu0 %6988
      %6990 = vadd.xlane.f32.xlu0 %v6927
      %v6991 = vpop.xlane.xlu0 %6990
      %6992 = vadd.xlane.f32.xlu0 %v6929
      %v6993 = vpop.xlane.xlu0 %6992
      %6994 = vadd.xlane.f32.xlu0 %v6931
      %v6995 = vpop.xlane.xlu0 %6994
      %6996 = vadd.xlane.f32.xlu0 %v6933
      %v6997 = vpop.xlane.xlu0 %6996
      %6998 = vadd.xlane.f32.xlu0 %v6935
      %v6999 = vpop.xlane.xlu0 %6998
      %7000 = vadd.xlane.f32.xlu0 %v6937
      %v7001 = vpop.xlane.xlu0 %7000
      %7002 = vadd.xlane.f32.xlu0 %v6939
      %v7003 = vpop.xlane.xlu0 %7002
      %7004 = vadd.xlane.f32.xlu0 %v6941
      %v7005 = vpop.xlane.xlu0 %7004
      %7006 = vadd.xlane.f32.xlu0 %v6943
      %v7007 = vpop.xlane.xlu0 %7006
      %7008 = vadd.xlane.f32.xlu0 %v6945
      %v7009 = vpop.xlane.xlu0 %7008
      %7010 = vadd.xlane.f32.xlu0 %v6947
      %v7011 = vpop.xlane.xlu0 %7010
      %7012 = vadd.xlane.f32.xlu0 %v6949
      %v7013 = vpop.xlane.xlu0 %7012
      %7014 = vadd.xlane.f32.xlu0 %v6951
      %v7015 = vpop.xlane.xlu0 %7014
      %7016 = vadd.xlane.f32.xlu0 %v6953
      %v7017 = vpop.xlane.xlu0 %7016
      %7018 = vadd.xlane.f32.xlu0 %v6955
      %v7019 = vpop.xlane.xlu0 %7018
      %v7020 = vrcp.pop %v6957
      %v7021 = vrcp.pop %v6959
      %v7022 = vrcp.pop %v6961
      %v7023 = vrcp.pop %v6963
      %v7024 = vrcp.pop %v6965
      %v7025 = vrcp.pop %v6967
      %v7026 = vrcp.pop %v6969
      %v7027 = vrcp.pop %v6971
      %v7028 = vrcp.pop %v6973
      %v7029 = vrcp.pop %v6975
      %v7030 = vrcp.pop %v6977
      %v7031 = vrcp.pop %v6979
      %v7032 = vrcp.pop %v6981
      %v7033 = vrcp.pop %v6983
      %v7034 = vrcp.pop %v6985
      %v7035 = vrcp.pop %v6987
      %v7036 = vrcp.pop %v6989
      %v7037 = vrcp.pop %v6991
      %v7038 = vrcp.pop %v6993
      %v7039 = vrcp.pop %v6995
      %v7040 = vrcp.pop %v6997
      %v7041 = vrcp.pop %v6999
      %v7042 = vrcp.pop %v7001
      %v7043 = vrcp.pop %v7003
      %v7044 = vrcp.pop %v7005
      %v7045 = vrcp.pop %v7007
      %v7046 = vrcp.pop %v7009
      %v7047 = vrcp.pop %v7011
      %v7048 = vrcp.pop %v7013
      %v7049 = vrcp.pop %v7015
      %v7050 = vrcp.pop %v7017
      %v7051 = vrcp.pop %v7019
      %v7052 = vmul.f32 %v6893, %v7020
      %v7053 = vmul.f32 %v6895, %v7021
      %v7054 = vmul.f32 %v6897, %v7022
      %v7055 = vmul.f32 %v6899, %v7023
      %v7056 = vmul.f32 %v6901, %v7024
      %v7057 = vmul.f32 %v6903, %v7025
      %v7058 = vmul.f32 %v6905, %v7026
      %v7059 = vmul.f32 %v6907, %v7027
      %v7060 = vmul.f32 %v6909, %v7028
      %v7061 = vmul.f32 %v6911, %v7029
      %v7062 = vmul.f32 %v6913, %v7030
      %v7063 = vmul.f32 %v6915, %v7031
      %v7064 = vmul.f32 %v6917, %v7032
      %v7065 = vmul.f32 %v6919, %v7033
      %v7066 = vmul.f32 %v6921, %v7034
      %v7067 = vmul.f32 %v6923, %v7035
      %v7068 = vmul.f32 %v6925, %v7036
      %v7069 = vmul.f32 %v6927, %v7037
      %v7070 = vmul.f32 %v6929, %v7038
      %v7071 = vmul.f32 %v6931, %v7039
      %v7072 = vmul.f32 %v6933, %v7040
      %v7073 = vmul.f32 %v6935, %v7041
      %v7074 = vmul.f32 %v6937, %v7042
      %v7075 = vmul.f32 %v6939, %v7043
      %v7076 = vmul.f32 %v6941, %v7044
      %v7077 = vmul.f32 %v6943, %v7045
      %v7078 = vmul.f32 %v6945, %v7046
      %v7079 = vmul.f32 %v6947, %v7047
      %v7080 = vmul.f32 %v6949, %v7048
      %v7081 = vmul.f32 %v6951, %v7049
      %v7082 = vmul.f32 %v6953, %v7050
      %v7083 = vmul.f32 %v6955, %v7051
      %v7084 = vpack.c.bf16 %v7053, %v7052
      %v7085 = vpack.c.bf16 %v7055, %v7054
      %v7086 = vpack.c.bf16 %v7057, %v7056
      %v7087 = vpack.c.bf16 %v7059, %v7058
      %v7088 = vpack.c.bf16 %v7061, %v7060
      %v7089 = vpack.c.bf16 %v7063, %v7062
      %v7090 = vpack.c.bf16 %v7065, %v7064
      %v7091 = vpack.c.bf16 %v7067, %v7066
      %v7092 = vpack.c.bf16 %v7069, %v7068
      %v7093 = vpack.c.bf16 %v7071, %v7070
      %v7094 = vpack.c.bf16 %v7073, %v7072
      %v7095 = vpack.c.bf16 %v7075, %v7074
      %v7096 = vpack.c.bf16 %v7077, %v7076
      %v7097 = vpack.c.bf16 %v7079, %v7078
      %v7098 = vpack.c.bf16 %v7081, %v7080
      %v7099 = vpack.c.bf16 %v7083, %v7082
      %7100 = vmatprep.subr.bf16.mxu0 0
      %7101 = vmatpush1.bf16.xpose.msra.mxu0 %v7084
      %7102 = vmatprep.subr.bf16.mxu0 0
      %7103 = vmatpush1.bf16.xpose.msra.mxu0 %v7085
      %7104 = vmatprep.subr.bf16.mxu0 0
      %7105 = vmatpush1.bf16.xpose.msra.mxu0 %v7086
      %7106 = vmatprep.subr.bf16.mxu0 0
      %7107 = vmatpush1.bf16.xpose.msra.mxu0 %v7087
      %7108 = vmatprep.subr.bf16.mxu0 0
      %7109 = vmatpush1.bf16.xpose.msra.mxu0 %v7088
      %7110 = vmatprep.subr.bf16.mxu0 0
      %7111 = vmatpush1.bf16.xpose.msra.mxu0 %v7089
      %7112 = vmatprep.subr.bf16.mxu0 0
      %7113 = vmatpush1.bf16.xpose.msra.mxu0 %v7090
      %7114 = vmatprep.subr.bf16.mxu0 0
      %7115 = vmatpush1.bf16.xpose.msra.mxu0 %v7091
      %7116 = vmatprep.subr.bf16.mxu0 0
      %7117 = vmatpush1.bf16.xpose.msra.mxu0 %v7092
      %7118 = vmatprep.subr.bf16.mxu0 0
      %7119 = vmatpush1.bf16.xpose.msra.mxu0 %v7093
      %7120 = vmatprep.subr.bf16.mxu0 0
      %7121 = vmatpush1.bf16.xpose.msra.mxu0 %v7094
      %7122 = vmatprep.subr.bf16.mxu0 0
      %7123 = vmatpush1.bf16.xpose.msra.mxu0 %v7095
      %7124 = vmatprep.subr.bf16.mxu0 0
      %7125 = vmatpush1.bf16.xpose.msra.mxu0 %v7096
      %7126 = vmatprep.subr.bf16.mxu0 0
      %7127 = vmatpush1.bf16.xpose.msra.mxu0 %v7097
      %7128 = vmatprep.subr.bf16.mxu0 0
      %7129 = vmatpush1.bf16.xpose.msra.mxu0 %v7098
      %7130 = vmatprep.subr.bf16.mxu0 0
      %7131 = vmatpush1.bf16.xpose.msra.mxu0 %v7099
      %7132 = vmatprep.mubr.bf16.mxu0 0
      %7133 = vmatmul.mubr.bf16.gmra.mrb[0].mxu0 %v2109
      %v7134 = vpop.f32.mrb[0].mxu0
      %v7135 = vadd.f32 0.0, %v7134
      %v7136 = vpop.f32.mrb[0].mxu0
      %v7137 = vadd.f32 0.0, %v7136
      %v7138 = vpop.f32.mrb[0].mxu0
      %v7139 = vadd.f32 0.0, %v7138
      %v7140 = vpop.f32.mrb[0].mxu0
      %v7141 = vadd.f32 0.0, %v7140
      %7142 = vmatprep.mubr.bf16.mxu0 0
      %7143 = vmatmul.mubr.bf16.gmra.mrb[0].mxu0 %v2110
      %v7144 = vpop.f32.mrb[0].mxu0
      %v7145 = vadd.f32 0.0, %v7144
      %v7146 = vpop.f32.mrb[0].mxu0
      %v7147 = vadd.f32 0.0, %v7146
      %v7148 = vpop.f32.mrb[0].mxu0
      %v7149 = vadd.f32 0.0, %v7148
      %v7150 = vpop.f32.mrb[0].mxu0
      %v7151 = vadd.f32 0.0, %v7150
      %7152 = vmatprep.mubr.bf16.mxu0 0
      %7153 = vmatmul.mubr.bf16.gmra.mrb[0].mxu0 %v2111
      %v7154 = vpop.f32.mrb[0].mxu0
      %v7155 = vadd.f32 0.0, %v7154
      %v7156 = vpop.f32.mrb[0].mxu0
      %v7157 = vadd.f32 0.0, %v7156
      %v7158 = vpop.f32.mrb[0].mxu0
      %v7159 = vadd.f32 0.0, %v7158
      %v7160 = vpop.f32.mrb[0].mxu0
      %v7161 = vadd.f32 0.0, %v7160
      %7162 = vmatprep.mubr.bf16.mxu0 0
      %7163 = vmatmul.mubr.bf16.gmra.mrb[0].mxu0 %v2112
      %v7164 = vpop.f32.mrb[0].mxu0
      %v7165 = vadd.f32 0.0, %v7164
      %v7166 = vpop.f32.mrb[0].mxu0
      %v7167 = vadd.f32 0.0, %v7166
      %v7168 = vpop.f32.mrb[0].mxu0
      %v7169 = vadd.f32 0.0, %v7168
      %v7170 = vpop.f32.mrb[0].mxu0
      %v7171 = vadd.f32 0.0, %v7170
      %7172 = vdwg.mxu0
      %v7173 = vpack.c.bf16 %v7139, %v7135
      %v7174 = vpack.c.bf16 %v7141, %v7137
      %v7175 = vpack.c.bf16 %v7149, %v7145
      %v7176 = vpack.c.bf16 %v7151, %v7147
      %v7177 = vpack.c.bf16 %v7159, %v7155
      %v7178 = vpack.c.bf16 %v7161, %v7157
      %v7179 = vpack.c.bf16 %v7169, %v7165
      %v7180 = vpack.c.bf16 %v7171, %v7167
      %7181 = vst [vmem:[#allocation2 + $0x1c0] sm:$0xff] %v7173
      %7182 = vst [vmem:[#allocation2 + $0x1c8] sm:$0xff] %v7174
      %7183 = vst [vmem:[#allocation2 + $0x1d0] sm:$0xff] %v7175
      %7184 = vst [vmem:[#allocation2 + $0x1d8] sm:$0xff] %v7176
      %7185 = vst [vmem:[#allocation2 + $0x1e0] sm:$0xff] %v7177
      %7186 = vst [vmem:[#allocation2 + $0x1e8] sm:$0xff] %v7178
      %7187 = vst [vmem:[#allocation2 + $0x1f0] sm:$0xff] %v7179
      %7188 = vst [vmem:[#allocation2 + $0x1f8] sm:$0xff] %v7180
      %v7189 = vld [vmem:[%s4] sm:$0xff]
      %v7190 = vld [vmem:[%s4 + $0x8] sm:$0xff]
      %v7191 = vld [vmem:[%s4 + $0x10] sm:$0xff]
      %v7192 = vld [vmem:[%s4 + $0x18] sm:$0xff]
      %v7193 = vld [vmem:[%s4 + $0x20] sm:$0xff]
      %v7194 = vld [vmem:[%s4 + $0x28] sm:$0xff]
      %v7195 = vld [vmem:[%s4 + $0x30] sm:$0xff]
      %v7196 = vld [vmem:[%s4 + $0x38] sm:$0xff]
      %v7197 = vld [vmem:[#allocation2] sm:$0xff]
      %v7198 = vld [vmem:[#allocation2 + $0x8] sm:$0xff]
      %v7199 = vld [vmem:[#allocation2 + $0x10] sm:$0xff]
      %v7200 = vld [vmem:[#allocation2 + $0x18] sm:$0xff]
      %v7201 = vld [vmem:[#allocation2 + $0x20] sm:$0xff]
      %v7202 = vld [vmem:[#allocation2 + $0x28] sm:$0xff]
      %v7203 = vld [vmem:[#allocation2 + $0x30] sm:$0xff]
      %v7204 = vld [vmem:[#allocation2 + $0x38] sm:$0xff]
      %v7205 = vld [vmem:[#allocation2 + $0x40] sm:$0xff]
      %v7206 = vld [vmem:[#allocation2 + $0x48] sm:$0xff]
      %v7207 = vld [vmem:[#allocation2 + $0x50] sm:$0xff]
      %v7208 = vld [vmem:[#allocation2 + $0x58] sm:$0xff]
      %v7209 = vld [vmem:[#allocation2 + $0x60] sm:$0xff]
      %v7210 = vld [vmem:[#allocation2 + $0x68] sm:$0xff]
      %v7211 = vld [vmem:[#allocation2 + $0x70] sm:$0xff]
      %v7212 = vld [vmem:[#allocation2 + $0x78] sm:$0xff]
      %v7213 = vld [vmem:[#allocation2 + $0x80] sm:$0xff]
      %v7214 = vld [vmem:[#allocation2 + $0x88] sm:$0xff]
      %v7215 = vld [vmem:[#allocation2 + $0x90] sm:$0xff]
      %v7216 = vld [vmem:[#allocation2 + $0x98] sm:$0xff]
      %v7217 = vld [vmem:[#allocation2 + $0xa0] sm:$0xff]
      %v7218 = vld [vmem:[#allocation2 + $0xa8] sm:$0xff]
      %v7219 = vld [vmem:[#allocation2 + $0xb0] sm:$0xff]
      %v7220 = vld [vmem:[#allocation2 + $0xb8] sm:$0xff]
      %v7221 = vld [vmem:[#allocation2 + $0xc0] sm:$0xff]
      %v7222 = vld [vmem:[#allocation2 + $0xc8] sm:$0xff]
      %v7223 = vld [vmem:[#allocation2 + $0xd0] sm:$0xff]
      %v7224 = vld [vmem:[#allocation2 + $0xd8] sm:$0xff]
      %v7225 = vld [vmem:[#allocation2 + $0xe0] sm:$0xff]
      %v7226 = vld [vmem:[#allocation2 + $0xe8] sm:$0xff]
      %v7227 = vld [vmem:[#allocation2 + $0xf0] sm:$0xff]
      %v7228 = vld [vmem:[#allocation2 + $0xf8] sm:$0xff]
      %v7229 = vld [vmem:[#allocation2 + $0x100] sm:$0xff]
      %v7230 = vld [vmem:[#allocation2 + $0x108] sm:$0xff]
      %v7231 = vld [vmem:[#allocation2 + $0x110] sm:$0xff]
      %v7232 = vld [vmem:[#allocation2 + $0x118] sm:$0xff]
      %v7233 = vld [vmem:[#allocation2 + $0x120] sm:$0xff]
      %v7234 = vld [vmem:[#allocation2 + $0x128] sm:$0xff]
      %v7235 = vld [vmem:[#allocation2 + $0x130] sm:$0xff]
      %v7236 = vld [vmem:[#allocation2 + $0x138] sm:$0xff]
      %v7237 = vld [vmem:[#allocation2 + $0x140] sm:$0xff]
      %v7238 = vld [vmem:[#allocation2 + $0x148] sm:$0xff]
      %v7239 = vld [vmem:[#allocation2 + $0x150] sm:$0xff]
      %v7240 = vld [vmem:[#allocation2 + $0x158] sm:$0xff]
      %v7241 = vld [vmem:[#allocation2 + $0x160] sm:$0xff]
      %v7242 = vld [vmem:[#allocation2 + $0x168] sm:$0xff]
      %v7243 = vld [vmem:[#allocation2 + $0x170] sm:$0xff]
      %v7244 = vld [vmem:[#allocation2 + $0x178] sm:$0xff]
      %v7245 = vld [vmem:[#allocation2 + $0x180] sm:$0xff]
      %v7246 = vld [vmem:[#allocation2 + $0x188] sm:$0xff]
      %v7247 = vld [vmem:[#allocation2 + $0x190] sm:$0xff]
      %v7248 = vld [vmem:[#allocation2 + $0x198] sm:$0xff]
      %v7249 = vld [vmem:[#allocation2 + $0x1a0] sm:$0xff]
      %v7250 = vld [vmem:[#allocation2 + $0x1a8] sm:$0xff]
      %v7251 = vld [vmem:[#allocation2 + $0x1b0] sm:$0xff]
      %v7252 = vld [vmem:[#allocation2 + $0x1b8] sm:$0xff]
      %v7253 = vld [vmem:[#allocation2 + $0x1c0] sm:$0xff]
      %v7254 = vld [vmem:[#allocation2 + $0x1c8] sm:$0xff]
      %v7255 = vld [vmem:[#allocation2 + $0x1d0] sm:$0xff]
      %v7256 = vld [vmem:[#allocation2 + $0x1d8] sm:$0xff]
      %v7257 = vld [vmem:[#allocation2 + $0x1e0] sm:$0xff]
      %v7258 = vld [vmem:[#allocation2 + $0x1e8] sm:$0xff]
      %v7259 = vld [vmem:[#allocation2 + $0x1f0] sm:$0xff]
      %v7260 = vld [vmem:[#allocation2 + $0x1f8] sm:$0xff]
      %v7269 = vunpack.c.l.b16 %v7189
      %v7270 = vunpack.c.h.b16 %v7189
      %v7271 = vunpack.c.l.b16 %v7190
      %v7272 = vunpack.c.h.b16 %v7190
      %v7273 = vunpack.c.l.b16 %v7191
      %v7274 = vunpack.c.h.b16 %v7191
      %v7275 = vunpack.c.l.b16 %v7192
      %v7276 = vunpack.c.h.b16 %v7192
      %v7277 = vunpack.c.l.b16 %v7193
      %v7278 = vunpack.c.h.b16 %v7193
      %v7279 = vunpack.c.l.b16 %v7194
      %v7280 = vunpack.c.h.b16 %v7194
      %v7281 = vunpack.c.l.b16 %v7195
      %v7282 = vunpack.c.h.b16 %v7195
      %v7283 = vunpack.c.l.b16 %v7196
      %v7284 = vunpack.c.h.b16 %v7196
      %v7285 = vpack.c.b16 %v7273, %v7269
      %v7286 = vpack.c.b16 %v7274, %v7270
      %v7287 = vpack.c.b16 %v7275, %v7271
      %v7288 = vpack.c.b16 %v7276, %v7272
      %v7289 = vpack.c.b16 %v7281, %v7277
      %v7290 = vpack.c.b16 %v7282, %v7278
      %v7291 = vpack.c.b16 %v7283, %v7279
      %v7292 = vpack.c.b16 %v7284, %v7280
      %7301 = vmatprep.subr.bf16.mxu0 %v7198
      %7302 = vmatpush1.bf16.msra.mxu0 %v7197
      %7303 = vmatprep.subr.bf16.mxu0 %v7200
      %7304 = vmatpush1.bf16.msra.mxu0 %v7199
      %7305 = vmatprep.subr.bf16.mxu0 %v7202
      %7306 = vmatpush1.bf16.msra.mxu0 %v7201
      %7307 = vmatprep.subr.bf16.mxu0 %v7204
      %7308 = vmatpush1.bf16.msra.mxu0 %v7203
      %7309 = vmatprep.subr.bf16.mxu0 %v7206
      %7310 = vmatpush1.bf16.msra.mxu0 %v7205
      %7311 = vmatprep.subr.bf16.mxu0 %v7208
      %7312 = vmatpush1.bf16.msra.mxu0 %v7207
      %7313 = vmatprep.subr.bf16.mxu0 %v7210
      %7314 = vmatpush1.bf16.msra.mxu0 %v7209
      %7315 = vmatprep.subr.bf16.mxu0 %v7212
      %7316 = vmatpush1.bf16.msra.mxu0 %v7211
      %7317 = vmatprep.subr.bf16.mxu0 %v7214
      %7318 = vmatpush1.bf16.msra.mxu0 %v7213
      %7319 = vmatprep.subr.bf16.mxu0 %v7216
      %7320 = vmatpush1.bf16.msra.mxu0 %v7215
      %7321 = vmatprep.subr.bf16.mxu0 %v7218
      %7322 = vmatpush1.bf16.msra.mxu0 %v7217
      %7323 = vmatprep.subr.bf16.mxu0 %v7220
      %7324 = vmatpush1.bf16.msra.mxu0 %v7219
      %7325 = vmatprep.subr.bf16.mxu0 %v7222
      %7326 = vmatpush1.bf16.msra.mxu0 %v7221
      %7327 = vmatprep.subr.bf16.mxu0 %v7224
      %7328 = vmatpush1.bf16.msra.mxu0 %v7223
      %7329 = vmatprep.subr.bf16.mxu0 %v7226
      %7330 = vmatpush1.bf16.msra.mxu0 %v7225
      %7331 = vmatprep.subr.bf16.mxu0 %v7228
      %7332 = vmatpush1.bf16.msra.mxu0 %v7227
      %7333 = vmatprep.mubr.bf16.mxu0 %v7286
      %7334 = vmatmul.mubr.bf16.gmra.mrb[0].mxu0 %v7285
      %v7335 = vpop.f32.mrb[0].mxu0
      %v7336 = vadd.f32 0.0, %v7335
      %v7337 = vpop.f32.mrb[0].mxu0
      %v7338 = vadd.f32 0.0, %v7337
      %v7339 = vpop.f32.mrb[0].mxu0
      %v7340 = vadd.f32 0.0, %v7339
      %v7341 = vpop.f32.mrb[0].mxu0
      %v7342 = vadd.f32 0.0, %v7341
      %7343 = vmatprep.mubr.bf16.mxu0 %v7290
      %7344 = vmatmul.mubr.bf16.gmra.mrb[0].mxu0 %v7289
      %v7345 = vpop.f32.mrb[0].mxu0
      %v7346 = vadd.f32 0.0, %v7345
      %v7347 = vpop.f32.mrb[0].mxu0
      %v7348 = vadd.f32 0.0, %v7347
      %v7349 = vpop.f32.mrb[0].mxu0
      %v7350 = vadd.f32 0.0, %v7349
      %v7351 = vpop.f32.mrb[0].mxu0
      %v7352 = vadd.f32 0.0, %v7351
      %7353 = vdwg.mxu0
      %7354 = vmatprep.subr.bf16.mxu0 %v7230
      %7355 = vmatpush1.bf16.msra.mxu0 %v7229
      %7356 = vmatprep.subr.bf16.mxu0 %v7232
      %7357 = vmatpush1.bf16.msra.mxu0 %v7231
      %7358 = vmatprep.subr.bf16.mxu0 %v7234
      %7359 = vmatpush1.bf16.msra.mxu0 %v7233
      %7360 = vmatprep.subr.bf16.mxu0 %v7236
      %7361 = vmatpush1.bf16.msra.mxu0 %v7235
      %7362 = vmatprep.subr.bf16.mxu0 %v7238
      %7363 = vmatpush1.bf16.msra.mxu0 %v7237
      %7364 = vmatprep.subr.bf16.mxu0 %v7240
      %7365 = vmatpush1.bf16.msra.mxu0 %v7239
      %7366 = vmatprep.subr.bf16.mxu0 %v7242
      %7367 = vmatpush1.bf16.msra.mxu0 %v7241
      %7368 = vmatprep.subr.bf16.mxu0 %v7244
      %7369 = vmatpush1.bf16.msra.mxu0 %v7243
      %7370 = vmatprep.subr.bf16.mxu0 %v7246
      %7371 = vmatpush1.bf16.msra.mxu0 %v7245
      %7372 = vmatprep.subr.bf16.mxu0 %v7248
      %7373 = vmatpush1.bf16.msra.mxu0 %v7247
      %7374 = vmatprep.subr.bf16.mxu0 %v7250
      %7375 = vmatpush1.bf16.msra.mxu0 %v7249
      %7376 = vmatprep.subr.bf16.mxu0 %v7252
      %7377 = vmatpush1.bf16.msra.mxu0 %v7251
      %7378 = vmatprep.subr.bf16.mxu0 %v7254
      %7379 = vmatpush1.bf16.msra.mxu0 %v7253
      %7380 = vmatprep.subr.bf16.mxu0 %v7256
      %7381 = vmatpush1.bf16.msra.mxu0 %v7255
      %7382 = vmatprep.subr.bf16.mxu0 %v7258
      %7383 = vmatpush1.bf16.msra.mxu0 %v7257
      %7384 = vmatprep.subr.bf16.mxu0 %v7260
      %7385 = vmatpush1.bf16.msra.mxu0 %v7259
      %7386 = vmatprep.mubr.bf16.mxu0 %v7288
      %7387 = vmatmul.mubr.bf16.gmra.mrb[0].mxu0 %v7287
      %v7388 = vpop.f32.mrb[0].mxu0
      %v7389 = vadd.f32 %v7336, %v7388
      %v7390 = vpop.f32.mrb[0].mxu0
      %v7391 = vadd.f32 %v7338, %v7390
      %v7392 = vpop.f32.mrb[0].mxu0
      %v7393 = vadd.f32 %v7340, %v7392
      %v7394 = vpop.f32.mrb[0].mxu0
      %v7395 = vadd.f32 %v7342, %v7394
      %7396 = vmatprep.mubr.bf16.mxu0 %v7292
      %7397 = vmatmul.mubr.bf16.gmra.mrb[0].mxu0 %v7291
      %v7398 = vpop.f32.mrb[0].mxu0
      %v7399 = vadd.f32 %v7346, %v7398
      %v7400 = vpop.f32.mrb[0].mxu0
      %v7401 = vadd.f32 %v7348, %v7400
      %v7402 = vpop.f32.mrb[0].mxu0
      %v7403 = vadd.f32 %v7350, %v7402
      %v7404 = vpop.f32.mrb[0].mxu0
      %v7405 = vadd.f32 %v7352, %v7404
      %7406 = vdwg.mxu0
      %v7407 = vadd.f32 %v273, %v7389
      %v7408 = vadd.f32 %v274, %v7391
      %v7409 = vadd.f32 %v275, %v7393
      %v7410 = vadd.f32 %v276, %v7395
      %v7411 = vadd.f32 %v277, %v7399
      %v7412 = vadd.f32 %v278, %v7401
      %v7413 = vadd.f32 %v279, %v7403
      %v7414 = vadd.f32 %v280, %v7405
      %v7415 = vld [vmem:[%s5] sm:$0xff]
      %v7416 = vld [vmem:[%s5 + $0x8] sm:$0xff]
      %v7417 = vld [vmem:[%s5 + $0x10] sm:$0xff]
      %v7418 = vld [vmem:[%s5 + $0x18] sm:$0xff]
      %7420 = vset.pattern.permute.xlu0 0
      %7421 = vperm.xlu0 %7420, %v7415
      %v7422 = vpop.permute.xlu0 %7421
      %7425 = vset.pattern.permute.xlu0 0
      %7426 = vperm.xlu0 %7425, %v7416
      %v7427 = vpop.permute.xlu0 %7426
      %7430 = vset.pattern.permute.xlu0 0
      %7431 = vperm.xlu0 %7430, %v7417
      %v7432 = vpop.permute.xlu0 %7431
      %7435 = vset.pattern.permute.xlu0 0
      %7436 = vperm.xlu0 %7435, %v7418
      %v7437 = vpop.permute.xlu0 %7436
      %v7439 = vadd.f32 %v7407, %v7422
      %v7440 = vadd.f32 %v7408, %v7422
      %v7441 = vadd.f32 %v7409, %v7427
      %v7442 = vadd.f32 %v7410, %v7427
      %v7443 = vadd.f32 %v7411, %v7432
      %v7444 = vadd.f32 %v7412, %v7432
      %v7445 = vadd.f32 %v7413, %v7437
      %v7446 = vadd.f32 %v7414, %v7437
      %7447 = vst [vmem:[%s271] sm:$0xff] %v7439
      %7448 = vst [vmem:[%s271 + $0x8] sm:$0xff] %v7440
      %7449 = vst [vmem:[%s271 + $0x10] sm:$0xff] %v7441
      %7450 = vst [vmem:[%s271 + $0x18] sm:$0xff] %v7442
      %7451 = vst [vmem:[%s271 + $0x20] sm:$0xff] %v7443
      %7452 = vst [vmem:[%s271 + $0x28] sm:$0xff] %v7444
      %7453 = vst [vmem:[%s271 + $0x30] sm:$0xff] %v7445
      %7454 = vst [vmem:[%s271 + $0x38] sm:$0xff] %v7446
      %p7455 = scmp.lt.s32.totalorder %s17, 1
      %s7456 = scalar_select %p7455, %s17, 1
      %s7457 = smul.addr %s7456, 8
      %s7458 = smul.addr %s7457, 8
      %s7459 = scalar_lea.vmem %s6, %s7458
      // Predicated region
      $region45: #{cross_attention_pallas.1} parent=43 // pred_check
        %p7460 = pneg %p171
      $region46: #{cross_attention_pallas.1} parent=43 // pred_check_branch
        %7462 = sbr.rel (%p7460) target = $region48
      $region47: #{cross_attention_pallas.1} parent=43 // pred_region
        _
      $region48: #{cross_attention_pallas.1} parent=43 // pred_fallthru
        _
    $region44: #{cross_attention_pallas.1} parent=5 // pred_fallthru
      _
    %p7463 = scmp.le.s32.totalorder 2, %s12
    // Predicated region
    $region49: #{cross_attention_pallas.1} parent=5 // pred_check
      %p7464 = pneg %p7463
    $region50: #{cross_attention_pallas.1} parent=5 // pred_check_branch
      %7466 = sbr.rel (%p7464) target = $region52
    $region51: #{cross_attention_pallas.1} parent=5 // pred_region
      %s7467 = ssub.s32 %s12, 2
      // Predicated region
      $region53: #{cross_attention_pallas.1} parent=51 // pred_check
        %p7468 = pneg %p177
      $region54: #{cross_attention_pallas.1} parent=51 // pred_check_branch
        %7470 = sbr.rel (%p7468) target = $region56
      $region55: #{cross_attention_pallas.1} parent=51 // pred_region
        %p7471 = scmp.lt.s32.totalorder %s18, 1
        %s7472 = scalar_select %p7471, %s18, 1
        %s7473 = smul.addr %s7472, 8
        %s7474 = smul.addr %s7473, 8
        %s7475 = scalar_lea.vmem %s6, %s7474
      $region56: #{cross_attention_pallas.1} parent=51 // pred_fallthru
        _
    $region52: #{cross_attention_pallas.1} parent=5 // pred_fallthru
      _
  $region6: #{cross_attention_pallas.1} parent=0 // loop_footer
    %s16 = sadd.s32 1, %s12
  $region7: #{cross_attention_pallas.1} parent=0 // loop_footer_branch
    %11 = sbr.rel target = $region3
  $region8: #{cross_attention_pallas.1} parent=0 // loop_exit
    _

</llo_original>
